<compile_context>
chip_gen: v6e
topology: v6e:2x2x1
jax: 0.10.0
libtpu: 0.0.40
codegen_flags: <defaults>
</compile_context>

<pallas_src>
import functools

import jax
import jax.numpy as jnp
from jax import lax
from jax.experimental import pallas as pl
from jax.experimental.pallas import tpu as pltpu


def _round_up(x, m):
    return ((x + m - 1) // m) * m


def _cdiv(a, b):
    return -(-a // b)


# ---------------------------------------------------------------------------
# Fused Pallas kernel: whole encoder forward for one batch tile.
#   x_ref : [TB, 896]  lane-padded flat-NCHW input images (bf16)
#   m*_ref: dense lane-padded conv-as-matrix operators (bf16)
#   s*_ref: folded bias / BN affine rows (f32, lane-padded)
#   w4/w5 : linear weights (bf16, w5 zero-padded to 128 output lanes)
# ---------------------------------------------------------------------------
def _encoder_kernel(x_ref, m1_ref, s1_ref, m2_ref, s2_ref, m3_ref, s3_ref,
                    w4_ref, b4_ref, w5_ref, b5_ref, o_ref):
    cdt = m1_ref.dtype

    def layer(h, w_ref, s_ref, relu):
        acc = jnp.dot(h, w_ref[...], preferred_element_type=jnp.float32)
        acc = acc + s_ref[...]                       # per-column affine (f32)
        if relu:
            acc = jnp.maximum(acc, 0.0)
        return acc

    h = x_ref[...]
    h = layer(h, m1_ref, s1_ref, True).astype(cdt)   # Conv1 + ReLU
    h = layer(h, m2_ref, s2_ref, True).astype(cdt)   # Conv2 + folded BN + ReLU
    h = layer(h, m3_ref, s3_ref, True).astype(cdt)   # Conv3 + ReLU (+ flatten)
    h = layer(h, w4_ref, b4_ref, True).astype(cdt)   # Linear 288->128 + ReLU
    o_ref[...] = layer(h, w5_ref, b5_ref, False).astype(o_ref.dtype)  # 128->Dp


def _vmem_limit_bytes(mats, tile_b, k_in, d_pad):
    """Derive vmem_limit_bytes from actual buffer arithmetic (+ headroom)."""
    w_bytes = sum(int(a.size) * a.dtype.itemsize for a in mats)
    # default double-buffering on every input/output BlockSpec
    io_bytes = 2 * tile_b * k_in * 2 + 2 * tile_b * d_pad * 2
    # f32 accumulators + bf16 re-casts of intermediate activations
    act_cols = sum(int(w.shape[1]) for w in mats[0::2])
    act_bytes = tile_b * act_cols * (4 + 2)
    limit = 2 * w_bytes + io_bytes + act_bytes + (16 << 20)   # 16 MiB headroom
    return int(min(max(limit, 32 << 20), 60 << 20))           # under v7x 64 MiB


def _fused_encoder_call(xf, mats, *, tile_b, d_pad):
    bp, k_in = xf.shape
    n_tiles = bp // tile_b

    def const_spec(a):
        # Full-array block, constant block index -> loaded into VMEM once,
        # stays resident across the batch grid.
        return pl.BlockSpec(a.shape, lambda i: (0, 0))

    w_list = mats[0::2]
    flops = 2 * bp * sum(int(w.shape[0]) * int(w.shape[1]) for w in w_list)
    bytes_accessed = int(xf.size * xf.dtype.itemsize
                         + sum(int(a.size) * a.dtype.itemsize for a in mats)
                         + bp * d_pad * 2)

    return pl.pallas_call(
        _encoder_kernel,
        out_shape=jax.ShapeDtypeStruct((bp, d_pad), jnp.bfloat16),
        grid_spec=pltpu.PrefetchScalarGridSpec(
            num_scalar_prefetch=0,
            grid=(n_tiles,),
            in_specs=[pl.BlockSpec((tile_b, k_in), lambda i: (i, 0))]
                     + [const_spec(a) for a in mats],
            out_specs=pl.BlockSpec((tile_b, d_pad), lambda i: (i, 0)),
        ),
        compiler_params=pltpu.CompilerParams(
            dimension_semantics=("parallel",),       # batch tiles independent
            vmem_limit_bytes=_vmem_limit_bytes(mats, tile_b, k_in, d_pad),
        ),
        cost_estimate=pl.CostEstimate(flops=flops, transcendentals=0,
                                      bytes_accessed=bytes_accessed),
    )(xf, *mats)


# ---------------------------------------------------------------------------
# Batch tiling: big tiles (<=512) to amortize per-step overhead, >=2 (even)
# tiles whenever the batch allows (v7x 2-TC sharding; no-op on v5e/v6e),
# tile_b sized from cdiv(b, n_tiles) so batch padding stays small.
# ---------------------------------------------------------------------------
def _choose_tiling(b, max_tile=512):
    n_tiles = max(1, _cdiv(b, max_tile))
    if n_tiles == 1 and b > 8:
        n_tiles = 2
    if n_tiles > 1 and n_tiles % 2 == 1:
        n_tiles += 1
    tile_b = _round_up(_cdiv(b, n_tiles), 8)
    return tile_b, tile_b * n_tiles


# ---------------------------------------------------------------------------
# One-time parameter preparation (hoisted out of the forward pass).
# ---------------------------------------------------------------------------
def _conv_as_matrix(weight, stride, padding, in_shape):
    """Exact dense matrix of a Conv2d as a linear map on flat-NCHW vectors."""
    c_in, h, w = in_shape
    k = c_in * h * w
    eye = jnp.eye(k, dtype=jnp.float32).reshape(k, c_in, h, w)
    out = lax.conv_general_dilated(
        eye, weight.astype(jnp.float32),
        window_strides=(stride, stride),
        padding=[(padding, padding), (padding, padding)],
        dimension_numbers=("NCHW", "OIHW", "NCHW"),
        precision=lax.Precision.HIGHEST)
    return out.reshape(k, -1)        # columns follow flat-NCHW output order


def _pad2(a, rows, cols):
    return jnp.zeros((rows, cols), a.dtype).at[:a.shape[0], :a.shape[1]].set(a)


def _pad_row(v, n):
    return jnp.zeros((1, n), jnp.float32).at[0, :v.shape[0]].set(
        v.astype(jnp.float32))


# Lane-aligned (multiple-of-128) layer widths.
_K0 = 896     # 1*28*28 = 784  -> 896
_K1 = 1664    # 8*14*14 = 1568 -> 1664
_K2 = 896     # 16*7*7  = 784  -> 896
_K3 = 384     # 32*3*3  = 288  -> 384
_K4 = 128     # Linear hidden, already aligned


def prepare_encoder_params(params, *, bn_eps=1e-5, compute_dtype=jnp.bfloat16):
    f32 = jnp.float32

    # Conv1 (1x28x28 -> 8x14x14)
    m1 = _conv_as_matrix(params["conv1_w"], 2, 1, (1, 28, 28))
    s1 = jnp.repeat(params["conv1_b"].astype(f32), 14 * 14)

    # Conv2 (8x14x14 -> 16x7x7) with eval-mode BatchNorm folded in.
    # TODO(synk): training-mode BatchNorm (batch statistics) not implemented.
    m2 = _conv_as_matrix(params["conv2_w"], 2, 1, (8, 14, 14))
    bn_scale = (params["bn_gamma"] / jnp.sqrt(params["bn_var"] + bn_eps)).astype(f32)
    m2 = m2 * jnp.repeat(bn_scale, 7 * 7)[None, :]
    s2 = jnp.repeat(((params["conv2_b"] - params["bn_mean"]) * bn_scale
                     + params["bn_beta"]).astype(f32), 7 * 7)

    # Conv3 (16x7x7 -> 32x3x3); output column order == nn.Flatten(NCHW) order.
    m3 = _conv_as_matrix(params["conv3_w"], 2, 0, (16, 7, 7))
    s3 = jnp.repeat(params["conv3_b"].astype(f32), 3 * 3)

    # Linear layers; lin2 zero-padded to 128 output lanes (lane-dense stores).
    w4 = params["lin1_w"].astype(f32).T                  # (288, 128)
    b4 = params["lin1_b"].astype(f32)
    d = params["lin2_b"].shape[0]
    d_pad = _round_up(max(d, 128), 128)
    w5 = params["lin2_w"].astype(f32).T                  # (128, d)
    b5 = params["lin2_b"].astype(f32)

    # Zero-pad every operator dim to a lane multiple; padded activation lanes
    # stay exactly zero (zero weight cols + zero affine -> ReLU(0) = 0), and
    # padded weight rows are zero, so padding never contaminates real lanes.
    return {
        "m1": _pad2(m1, _K0, _K1).astype(compute_dtype), "s1": _pad_row(s1, _K1),
        "m2": _pad2(m2, _K1, _K2).astype(compute_dtype), "s2": _pad_row(s2, _K2),
        "m3": _pad2(m3, _K2, _K3).astype(compute_dtype), "s3": _pad_row(s3, _K3),
        "w4": _pad2(w4, _K3, _K4).astype(compute_dtype), "b4": _pad_row(b4, _K4),
        "w5": _pad2(w5, _K4, d_pad).astype(compute_dtype), "b5": _pad_row(b5, d_pad),
    }


# ---------------------------------------------------------------------------
# Encoder forward (matches nn.Module forward; BatchNorm in eval mode).
# Note: zero-padded batch rows pass through bias+ReLU (garbage) and are
# sliced off; do not add in-kernel batch reductions without masking them.
# ---------------------------------------------------------------------------
@functools.partial(jax.jit, static_argnames=("d_out",))
def encoder_forward(prepped, x, d_out):
    b = x.shape[0]
    assert x.shape[1:] == (1, 28, 28), "Encoder geometry requires 1x28x28 inputs."
    cdt = prepped["m1"].dtype
    xf = x.reshape(b, -1).astype(cdt)                     # flat-NCHW (C=1), 784

    tile_b, bp = _choose_tiling(b)
    xf = jnp.pad(xf, ((0, bp - b), (0, _K0 - xf.shape[1])))  # lane+batch pad

    mats = [prepped[k] for k in ("m1", "s1", "m2", "s2", "m3", "s3",
                                 "w4", "b4", "w5", "b5")]
    d_pad = prepped["w5"].shape[1]
    y = _fused_encoder_call(xf, mats, tile_b=tile_b, d_pad=d_pad)
    return y[:b, :d_out].astype(jnp.float32)              # drop batch/lane pad


# ---------------------------------------------------------------------------
# Parameter init (deterministic, PyTorch-like uniform fan-in bounds)
# ---------------------------------------------------------------------------
def init_encoder_params(key, encoded_space_dim):
    ks = jax.random.split(key, 16)

    def u(k, shape, fan_in):
        bound = 1.0 / jnp.sqrt(jnp.float32(fan_in))
        return jax.random.uniform(k, shape, jnp.float32, -bound, bound)

    p = {}
    p["conv1_w"] = u(ks[0], (8, 1, 3, 3), 1 * 9)
    p["conv1_b"] = u(ks[1], (8,), 1 * 9)
    p["conv2_w"] = u(ks[2], (16, 8, 3, 3), 8 * 9)
    p["conv2_b"] = u(ks[3], (16,), 8 * 9)
    p["bn_gamma"] = 1.0 + 0.1 * jax.random.normal(ks[4], (16,), jnp.float32)
    p["bn_beta"] = 0.1 * jax.random.normal(ks[5], (16,), jnp.float32)
    p["bn_mean"] = 0.05 * jax.random.normal(ks[6], (16,), jnp.float32)
    p["bn_var"] = jnp.abs(1.0 + 0.1 * jax.random.normal(ks[7], (16,), jnp.float32))
    p["conv3_w"] = u(ks[8], (32, 16, 3, 3), 16 * 9)
    p["conv3_b"] = u(ks[9], (32,), 16 * 9)
    p["lin1_w"] = u(ks[10], (128, 288), 288)          # PyTorch Linear: [out, in]
    p["lin1_b"] = u(ks[11], (128,), 288)
    p["lin2_w"] = u(ks[12], (encoded_space_dim, 128), 128)
    p["lin2_b"] = u(ks[13], (encoded_space_dim,), 128)
    return p


# ---------------------------------------------------------------------------
# Pure-JAX f32 reference (for correctness check only)
# ---------------------------------------------------------------------------
def encoder_reference(params, x, bn_eps=1e-5):
    hp = lax.Precision.HIGHEST

    def conv(h, w, stride, padding):
        return lax.conv_general_dilated(
            h, w, (stride, stride), [(padding, padding)] * 2,
            dimension_numbers=("NCHW", "OIHW", "NCHW"), precision=hp)

    h = conv(x, params["conv1_w"], 2, 1) + params["conv1_b"][None, :, None, None]
    h = jax.nn.relu(h)
    h = conv(h, params["conv2_w"], 2, 1) + params["conv2_b"][None, :, None, None]
    s = params["bn_gamma"] / jnp.sqrt(params["bn_var"] + bn_eps)
    h = (h - params["bn_mean"][None, :, None, None]) * s[None, :, None, None] \
        + params["bn_beta"][None, :, None, None]
    h = jax.nn.relu(h)
    h = conv(h, params["conv3_w"], 2, 0) + params["conv3_b"][None, :, None, None]
    h = jax.nn.relu(h)
    hf = h.reshape(x.shape[0], -1)
    hf = jax.nn.relu(jnp.dot(hf, params["lin1_w"].T, precision=hp) + params["lin1_b"])
    return jnp.dot(hf, params["lin2_w"].T, precision=hp) + params["lin2_b"]


if __name__ == "__main__":
    encoded_space_dim = 8      # D; fc2_input_dim is unused in the module's forward.
    key = jax.random.PRNGKey(0)
    k_param, k_x = jax.random.split(key)

    params = init_encoder_params(k_param, encoded_space_dim)
    prepped = prepare_encoder_params(params)        # one-time weight prep

    # Geometry is fixed by the module (3*3*32 = 288 flatten) => 1x28x28 inputs.
    def check(batch):
        x = jax.random.normal(k_x, (batch, 1, 28, 28), jnp.float32)
        y = jax.block_until_ready(encoder_forward(prepped, x, encoded_space_dim))
        assert y.shape == (batch, encoded_space_dim)
        assert bool(jnp.all(jnp.isfinite(y)))
        y_ref = encoder_reference(params, x)
        max_err = float(jnp.max(jnp.abs(y - y_ref)))
        ok = bool(jnp.allclose(y, y_ref, rtol=2e-2, atol=2e-2))
        assert ok, f"mismatch vs f32 reference (batch={batch}): max_abs_err={max_err}"

    check(2)     # single-tile path
    check(20)    # multi-tile path (2 tiles, exercises batch padding)
    print("KERNEL_OK")
</pallas_src>

<mosaic_0001>
module attributes {stable_mosaic.version = 11 : i64} {
  func.func @_encoder_kernel(%arg0: i32, %arg1: memref<8x896xbf16, #tpu.memory_space<vmem>>, %arg2: memref<896x1664xbf16, #tpu.memory_space<vmem>>, %arg3: memref<1x1664xf32, #tpu.memory_space<vmem>>, %arg4: memref<1664x896xbf16, #tpu.memory_space<vmem>>, %arg5: memref<1x896xf32, #tpu.memory_space<vmem>>, %arg6: memref<896x384xbf16, #tpu.memory_space<vmem>>, %arg7: memref<1x384xf32, #tpu.memory_space<vmem>>, %arg8: memref<384x128xbf16, #tpu.memory_space<vmem>>, %arg9: memref<1x128xf32, #tpu.memory_space<vmem>>, %arg10: memref<128x128xbf16, #tpu.memory_space<vmem>>, %arg11: memref<1x128xf32, #tpu.memory_space<vmem>>, %arg12: memref<8x128xbf16, #tpu.memory_space<vmem>>) attributes {dimension_semantics = [#tpu.dimension_semantics<parallel>], iteration_bounds = array<i64: 1>, scalar_prefetch = 0 : i64, scratch_operands = 0 : i64, tpu.core_type = #tpu.core_type<tc>, window_params = [{transform_indices = @transform_0, window_bounds = array<i64: 8, 896>}, {pipeline_mode = #tpu.pipeline_mode<synchronous>, transform_indices = @transform_1, window_bounds = array<i64: 896, 1664>}, {pipeline_mode = #tpu.pipeline_mode<synchronous>, transform_indices = @transform_2, window_bounds = array<i64: 1, 1664>}, {pipeline_mode = #tpu.pipeline_mode<synchronous>, transform_indices = @transform_3, window_bounds = array<i64: 1664, 896>}, {pipeline_mode = #tpu.pipeline_mode<synchronous>, transform_indices = @transform_4, window_bounds = array<i64: 1, 896>}, {pipeline_mode = #tpu.pipeline_mode<synchronous>, transform_indices = @transform_5, window_bounds = array<i64: 896, 384>}, {pipeline_mode = #tpu.pipeline_mode<synchronous>, transform_indices = @transform_6, window_bounds = array<i64: 1, 384>}, {pipeline_mode = #tpu.pipeline_mode<synchronous>, transform_indices = @transform_7, window_bounds = array<i64: 384, 128>}, {pipeline_mode = #tpu.pipeline_mode<synchronous>, transform_indices = @transform_8, window_bounds = array<i64: 1, 128>}, {pipeline_mode = #tpu.pipeline_mode<synchronous>, transform_indices = @transform_9, window_bounds = array<i64: 128, 128>}, {pipeline_mode = #tpu.pipeline_mode<synchronous>, transform_indices = @transform_10, window_bounds = array<i64: 1, 128>}, {transform_indices = @transform_11, window_bounds = array<i64: 8, 128>}]} {
    %c0 = arith.constant 0 : index
    %c0_0 = arith.constant 0 : index
    %0 = vector.load %arg1[%c0, %c0_0] : memref<8x896xbf16, #tpu.memory_space<vmem>>, vector<8x896xbf16>
    %c0_1 = arith.constant 0 : index
    %c0_2 = arith.constant 0 : index
    %1 = vector.load %arg2[%c0_1, %c0_2] : memref<896x1664xbf16, #tpu.memory_space<vmem>>, vector<896x1664xbf16>
    %cst = arith.constant dense<0.000000e+00> : vector<8x1664xf32>
    %2 = tpu.matmul %0, %1, %cst {dimension_numbers = #tpu.dot_dimension_numbers<[1], [0], [0], [1], [0, 0, 1, 1], [], []>} : vector<8x896xbf16>, vector<896x1664xbf16>, vector<8x1664xf32> -> vector<8x1664xf32>
    %c0_3 = arith.constant 0 : index
    %c0_4 = arith.constant 0 : index
    %3 = vector.load %arg3[%c0_3, %c0_4] : memref<1x1664xf32, #tpu.memory_space<vmem>>, vector<1x1664xf32>
    %4 = vector.broadcast %3 : vector<1x1664xf32> to vector<8x1664xf32>
    %5 = arith.addf %2, %4 : vector<8x1664xf32>
    %cst_5 = arith.constant 0.000000e+00 : f32
    %6 = vector.broadcast %cst_5 : f32 to vector<8x1664xf32>
    %7 = arith.maximumf %5, %6 : vector<8x1664xf32>
    %8 = arith.truncf %7 : vector<8x1664xf32> to vector<8x1664xbf16>
    %c0_6 = arith.constant 0 : index
    %c0_7 = arith.constant 0 : index
    %9 = vector.load %arg4[%c0_6, %c0_7] : memref<1664x896xbf16, #tpu.memory_space<vmem>>, vector<1664x896xbf16>
    %cst_8 = arith.constant dense<0.000000e+00> : vector<8x896xf32>
    %10 = tpu.matmul %8, %9, %cst_8 {dimension_numbers = #tpu.dot_dimension_numbers<[1], [0], [0], [1], [0, 0, 1, 1], [], []>} : vector<8x1664xbf16>, vector<1664x896xbf16>, vector<8x896xf32> -> vector<8x896xf32>
    %c0_9 = arith.constant 0 : index
    %c0_10 = arith.constant 0 : index
    %11 = vector.load %arg5[%c0_9, %c0_10] : memref<1x896xf32, #tpu.memory_space<vmem>>, vector<1x896xf32>
    %12 = vector.broadcast %11 : vector<1x896xf32> to vector<8x896xf32>
    %13 = arith.addf %10, %12 : vector<8x896xf32>
    %cst_11 = arith.constant 0.000000e+00 : f32
    %14 = vector.broadcast %cst_11 : f32 to vector<8x896xf32>
    %15 = arith.maximumf %13, %14 : vector<8x896xf32>
    %16 = arith.truncf %15 : vector<8x896xf32> to vector<8x896xbf16>
    %c0_12 = arith.constant 0 : index
    %c0_13 = arith.constant 0 : index
    %17 = vector.load %arg6[%c0_12, %c0_13] : memref<896x384xbf16, #tpu.memory_space<vmem>>, vector<896x384xbf16>
    %cst_14 = arith.constant dense<0.000000e+00> : vector<8x384xf32>
    %18 = tpu.matmul %16, %17, %cst_14 {dimension_numbers = #tpu.dot_dimension_numbers<[1], [0], [0], [1], [0, 0, 1, 1], [], []>} : vector<8x896xbf16>, vector<896x384xbf16>, vector<8x384xf32> -> vector<8x384xf32>
    %c0_15 = arith.constant 0 : index
    %c0_16 = arith.constant 0 : index
    %19 = vector.load %arg7[%c0_15, %c0_16] : memref<1x384xf32, #tpu.memory_space<vmem>>, vector<1x384xf32>
    %20 = vector.broadcast %19 : vector<1x384xf32> to vector<8x384xf32>
    %21 = arith.addf %18, %20 : vector<8x384xf32>
    %cst_17 = arith.constant 0.000000e+00 : f32
    %22 = vector.broadcast %cst_17 : f32 to vector<8x384xf32>
    %23 = arith.maximumf %21, %22 : vector<8x384xf32>
    %24 = arith.truncf %23 : vector<8x384xf32> to vector<8x384xbf16>
    %c0_18 = arith.constant 0 : index
    %c0_19 = arith.constant 0 : index
    %25 = vector.load %arg8[%c0_18, %c0_19] : memref<384x128xbf16, #tpu.memory_space<vmem>>, vector<384x128xbf16>
    %cst_20 = arith.constant dense<0.000000e+00> : vector<8x128xf32>
    %26 = tpu.matmul %24, %25, %cst_20 {dimension_numbers = #tpu.dot_dimension_numbers<[1], [0], [0], [1], [0, 0, 1, 1], [], []>} : vector<8x384xbf16>, vector<384x128xbf16>, vector<8x128xf32> -> vector<8x128xf32>
    %c0_21 = arith.constant 0 : index
    %c0_22 = arith.constant 0 : index
    %27 = vector.load %arg9[%c0_21, %c0_22] : memref<1x128xf32, #tpu.memory_space<vmem>>, vector<1x128xf32>
    %28 = vector.broadcast %27 : vector<1x128xf32> to vector<8x128xf32>
    %29 = arith.addf %26, %28 : vector<8x128xf32>
    %cst_23 = arith.constant 0.000000e+00 : f32
    %30 = vector.broadcast %cst_23 : f32 to vector<8x128xf32>
    %31 = arith.maximumf %29, %30 : vector<8x128xf32>
    %32 = arith.truncf %31 : vector<8x128xf32> to vector<8x128xbf16>
    %c0_24 = arith.constant 0 : index
    %c0_25 = arith.constant 0 : index
    %33 = vector.load %arg10[%c0_24, %c0_25] : memref<128x128xbf16, #tpu.memory_space<vmem>>, vector<128x128xbf16>
    %cst_26 = arith.constant dense<0.000000e+00> : vector<8x128xf32>
    %34 = tpu.matmul %32, %33, %cst_26 {dimension_numbers = #tpu.dot_dimension_numbers<[1], [0], [0], [1], [0, 0, 1, 1], [], []>} : vector<8x128xbf16>, vector<128x128xbf16>, vector<8x128xf32> -> vector<8x128xf32>
    %c0_27 = arith.constant 0 : index
    %c0_28 = arith.constant 0 : index
    %35 = vector.load %arg11[%c0_27, %c0_28] : memref<1x128xf32, #tpu.memory_space<vmem>>, vector<1x128xf32>
    %36 = vector.broadcast %35 : vector<1x128xf32> to vector<8x128xf32>
    %37 = arith.addf %34, %36 : vector<8x128xf32>
    %38 = arith.truncf %37 : vector<8x128xf32> to vector<8x128xbf16>
    %c0_29 = arith.constant 0 : index
    %c0_30 = arith.constant 0 : index
    %39 = vector.load %arg12[%c0_29, %c0_30] : memref<8x128xbf16, #tpu.memory_space<vmem>>, vector<8x128xbf16>
    tpu.vector_store %arg12[%c0_29, %c0_30], %38 {strides = array<i32>} : memref<8x128xbf16, #tpu.memory_space<vmem>>, vector<8x128xbf16>,
    return
  }
  func.func @transform_0(%arg0: i32) -> (i32, i32) {
    %c0_i32 = arith.constant 0 : i32
    %c0_i32_0 = arith.constant 0 : i32
    return %arg0, %c0_i32 : i32, i32
  }
  func.func @transform_1(%arg0: i32) -> (i32, i32) {
    %c0_i32 = arith.constant 0 : i32
    %c0_i32_0 = arith.constant 0 : i32
    %c0_i32_1 = arith.constant 0 : i32
    return %c0_i32, %c0_i32_0 : i32, i32
  }
  func.func @transform_2(%arg0: i32) -> (i32, i32) {
    %c0_i32 = arith.constant 0 : i32
    %c0_i32_0 = arith.constant 0 : i32
    %c0_i32_1 = arith.constant 0 : i32
    return %c0_i32, %c0_i32_0 : i32, i32
  }
  func.func @transform_3(%arg0: i32) -> (i32, i32) {
    %c0_i32 = arith.constant 0 : i32
    %c0_i32_0 = arith.constant 0 : i32
    %c0_i32_1 = arith.constant 0 : i32
    return %c0_i32, %c0_i32_0 : i32, i32
  }
  func.func @transform_4(%arg0: i32) -> (i32, i32) {
    %c0_i32 = arith.constant 0 : i32
    %c0_i32_0 = arith.constant 0 : i32
    %c0_i32_1 = arith.constant 0 : i32
    return %c0_i32, %c0_i32_0 : i32, i32
  }
  func.func @transform_5(%arg0: i32) -> (i32, i32) {
    %c0_i32 = arith.constant 0 : i32
    %c0_i32_0 = arith.constant 0 : i32
    %c0_i32_1 = arith.constant 0 : i32
    return %c0_i32, %c0_i32_0 : i32, i32
  }
  func.func @transform_6(%arg0: i32) -> (i32, i32) {
    %c0_i32 = arith.constant 0 : i32
    %c0_i32_0 = arith.constant 0 : i32
    %c0_i32_1 = arith.constant 0 : i32
    return %c0_i32, %c0_i32_0 : i32, i32
  }
  func.func @transform_7(%arg0: i32) -> (i32, i32) {
    %c0_i32 = arith.constant 0 : i32
    %c0_i32_0 = arith.constant 0 : i32
    %c0_i32_1 = arith.constant 0 : i32
    return %c0_i32, %c0_i32_0 : i32, i32
  }
  func.func @transform_8(%arg0: i32) -> (i32, i32) {
    %c0_i32 = arith.constant 0 : i32
    %c0_i32_0 = arith.constant 0 : i32
    %c0_i32_1 = arith.constant 0 : i32
    return %c0_i32, %c0_i32_0 : i32, i32
  }
  func.func @transform_9(%arg0: i32) -> (i32, i32) {
    %c0_i32 = arith.constant 0 : i32
    %c0_i32_0 = arith.constant 0 : i32
    %c0_i32_1 = arith.constant 0 : i32
    return %c0_i32, %c0_i32_0 : i32, i32
  }
  func.func @transform_10(%arg0: i32) -> (i32, i32) {
    %c0_i32 = arith.constant 0 : i32
    %c0_i32_0 = arith.constant 0 : i32
    %c0_i32_1 = arith.constant 0 : i32
    return %c0_i32, %c0_i32_0 : i32, i32
  }
  func.func @transform_11(%arg0: i32) -> (i32, i32) {
    %c0_i32 = arith.constant 0 : i32
    %c0_i32_0 = arith.constant 0 : i32
    return %arg0, %c0_i32 : i32, i32
  }
}

</mosaic_0001>

<llo_original>
// kernel: encoder_forward.1
$region0: #{encoder_forward.1}
  #allocation0 [shape = 'u32[]', space=smem, size = 0x4, offset = 0x4, fixed_abs, tag = 'smem constant byte address 0x4 - core index']
  #allocation1 [shape = 'u32[144,128]{1,0:T(1,128)}', space=vmem, size = 0x12000, scoped, tag = 'internal scratch']
  %s0 = inlined_call_operand.vmem [shape: bf16[8,896], index: 0, kind: input, shape index: {}]
  %s1 = inlined_call_operand.hbm [shape: bf16[896,1664], index: 1, kind: input, shape index: {}]
  %s2 = inlined_call_operand.hbm [shape: f32[1,1664], index: 2, kind: input, shape index: {}]
  %s3 = inlined_call_operand.hbm [shape: bf16[1664,896], index: 3, kind: input, shape index: {}]
  %s4 = inlined_call_operand.hbm [shape: f32[1,896], index: 4, kind: input, shape index: {}]
  %s5 = inlined_call_operand.hbm [shape: bf16[896,384], index: 5, kind: input, shape index: {}]
  %s6 = inlined_call_operand.hbm [shape: f32[1,384], index: 6, kind: input, shape index: {}]
  %s7 = inlined_call_operand.hbm [shape: bf16[384,128], index: 7, kind: input, shape index: {}]
  %s8 = inlined_call_operand.hbm [shape: f32[1,128], index: 8, kind: input, shape index: {}]
  %s9 = inlined_call_operand.hbm [shape: bf16[128,128], index: 9, kind: input, shape index: {}]
  %s10 = inlined_call_operand.hbm [shape: f32[1,128], index: 10, kind: input, shape index: {}]
  %s11 = inlined_call_operand.vmem [shape: bf16[8,128], index: 11, kind: output, shape index: {}]
  %s12 = sld [smem:[#allocation0]]
  $region94: #{encoder_forward.1} parent=0
    _
  %s14 = ssub.s32 1, %s12
  %s15 = scalar_select 0, %s14, %s12
  $region1: #{encoder_forward.1} parent=0
    #allocation2 [shape = 'u8[2981888]{0}', space=vmem, size = 0x2d8000, scoped, tag = 'input window, operand 1, single buffered']
    #allocation3 [shape = 's32[1]{0}', space=sflag, size = 0x4, scoped, tag = 'scoped memory for encoder_forward.1']
    #allocation4 [shape = 'u8[6656]{0}', space=vmem, size = 0x1c00, scoped, tag = 'input window, operand 2, single buffered']
    #allocation5 [shape = 's32[1]{0}', space=sflag, size = 0x4, scoped, tag = 'scoped memory for encoder_forward.1']
    #allocation6 [shape = 'u8[2981888]{0}', space=vmem, size = 0x2d8000, scoped, tag = 'input window, operand 3, single buffered']
    #allocation7 [shape = 'u8[3584]{0}', space=vmem, size = 0x1000, scoped, tag = 'input window, operand 4, single buffered']
    #allocation8 [shape = 's32[1]{0}', space=sflag, size = 0x4, scoped, tag = 'scoped memory for encoder_forward.1']
    #allocation9 [shape = 'u8[688128]{0}', space=vmem, size = 0xa8000, scoped, tag = 'input window, operand 5, single buffered']
    #allocation10 [shape = 'u8[1536]{0}', space=vmem, size = 0x800, scoped, tag = 'input window, operand 6, single buffered']
    #allocation11 [shape = 's32[1]{0}', space=sflag, size = 0x4, scoped, tag = 'scoped memory for encoder_forward.1']
    #allocation12 [shape = 'u8[98304]{0}', space=vmem, size = 0x18000, scoped, tag = 'input window, operand 7, single buffered']
    #allocation13 [shape = 'u8[512]{0}', space=vmem, size = 0x400, scoped, tag = 'input window, operand 8, single buffered']
    #allocation14 [shape = 's32[1]{0}', space=sflag, size = 0x4, scoped, tag = 'scoped memory for encoder_forward.1']
    #allocation15 [shape = 'u8[32768]{0}', space=vmem, size = 0x8000, scoped, tag = 'input window, operand 9, single buffered']
    #allocation16 [shape = 'u8[512]{0}', space=vmem, size = 0x400, scoped, tag = 'input window, operand 10, single buffered']
    #allocation17 [shape = 's32[1]{0}', space=sflag, size = 0x4, scoped, tag = 'scoped memory for encoder_forward.1']
    %16 = vsyncpa [#allocation3], 0
    %17 = vsyncpa [#allocation5], 0
    %18 = vsyncpa [#allocation8], 0
    %19 = vsyncpa [#allocation11], 0
    %20 = vsyncpa [#allocation14], 0
    %21 = vsyncpa [#allocation17], 0
    // Predicated region
    $region2: #{encoder_forward.1} parent=1 // pred_check
      _
    $region3: #{encoder_forward.1} parent=1 // pred_check_branch
      %23 = sbr.rel (0) target = $region5
    $region4: #{encoder_forward.1} parent=1 // pred_region
      _
    $region5: #{encoder_forward.1} parent=1 // pred_fallthru
      _
    // Predicated region
    $region6: #{encoder_forward.1} parent=1 // pred_check
      _
    $region7: #{encoder_forward.1} parent=1 // pred_check_branch
      %25 = sbr.rel (0) target = $region9
    $region8: #{encoder_forward.1} parent=1 // pred_region
      %s27 = ssub.s32 93184, 93184
      %28 = vsyncadd [#allocation3], %s27
      %s29 = sshll.u32 [#allocation2], 4
      %s30 = int_to_ptr.vmem [resolvable:$true] %s29
      %35 = dma.hbm_to_vmem [thread:$0]  %s1, 93184, %s30, [#allocation3], 832, 832, 52
    $region9: #{encoder_forward.1} parent=1 // pred_fallthru
      _
    // Predicated region
    $region10: #{encoder_forward.1} parent=1 // pred_check
      _
    $region11: #{encoder_forward.1} parent=1 // pred_check_branch
      %37 = sbr.rel (0) target = $region13
    $region12: #{encoder_forward.1} parent=1 // pred_region
      %s39 = ssub.s32 208, 208
      %40 = vsyncadd [#allocation5], %s39
      %s42 = sshll.u32 [#allocation4], 4
      %s43 = int_to_ptr.vmem [resolvable:$true] %s42
      %45 = dma.hbm_to_vmem [thread:$0]  %s2, 208, %s43, [#allocation5]
    $region13: #{encoder_forward.1} parent=1 // pred_fallthru
      _
    // Predicated region
    $region14: #{encoder_forward.1} parent=1 // pred_check
      _
    $region15: #{encoder_forward.1} parent=1 // pred_check_branch
      %47 = sbr.rel (0) target = $region17
    $region16: #{encoder_forward.1} parent=1 // pred_region
      %s49 = ssub.s32 93184, 93184
      %50 = vsyncadd [#allocation5], %s49
      %s51 = sshll.u32 [#allocation6], 4
      %s52 = int_to_ptr.vmem [resolvable:$true] %s51
      %57 = dma.hbm_to_vmem [thread:$0]  %s3, 93184, %s52, [#allocation5], 448, 448, 28
    $region17: #{encoder_forward.1} parent=1 // pred_fallthru
      _
    // Predicated region
    $region18: #{encoder_forward.1} parent=1 // pred_check
      _
    $region19: #{encoder_forward.1} parent=1 // pred_check_branch
      %59 = sbr.rel (0) target = $region21
    $region20: #{encoder_forward.1} parent=1 // pred_region
      %s61 = ssub.s32 112, 112
      %62 = vsyncadd [#allocation8], %s61
      %s64 = sshll.u32 [#allocation7], 4
      %s65 = int_to_ptr.vmem [resolvable:$true] %s64
      %67 = dma.hbm_to_vmem [thread:$0]  %s4, 112, %s65, [#allocation8]
    $region21: #{encoder_forward.1} parent=1 // pred_fallthru
      _
    // Predicated region
    $region22: #{encoder_forward.1} parent=1 // pred_check
      _
    $region23: #{encoder_forward.1} parent=1 // pred_check_branch
      %69 = sbr.rel (0) target = $region25
    $region24: #{encoder_forward.1} parent=1 // pred_region
      %s71 = ssub.s32 21504, 21504
      %72 = vsyncadd [#allocation8], %s71
      %s73 = sshll.u32 [#allocation9], 4
      %s74 = int_to_ptr.vmem [resolvable:$true] %s73
      %79 = dma.hbm_to_vmem [thread:$0]  %s5, 21504, %s74, [#allocation8], 192, 192, 12
    $region25: #{encoder_forward.1} parent=1 // pred_fallthru
      _
    // Predicated region
    $region26: #{encoder_forward.1} parent=1 // pred_check
      _
    $region27: #{encoder_forward.1} parent=1 // pred_check_branch
      %81 = sbr.rel (0) target = $region29
    $region28: #{encoder_forward.1} parent=1 // pred_region
      %s83 = ssub.s32 48, 48
      %84 = vsyncadd [#allocation11], %s83
      %s86 = sshll.u32 [#allocation10], 4
      %s87 = int_to_ptr.vmem [resolvable:$true] %s86
      %89 = dma.hbm_to_vmem [thread:$0]  %s6, 48, %s87, [#allocation11]
    $region29: #{encoder_forward.1} parent=1 // pred_fallthru
      _
    // Predicated region
    $region30: #{encoder_forward.1} parent=1 // pred_check
      _
    $region31: #{encoder_forward.1} parent=1 // pred_check_branch
      %91 = sbr.rel (0) target = $region33
    $region32: #{encoder_forward.1} parent=1 // pred_region
      %s93 = ssub.s32 3072, 3072
      %94 = vsyncadd [#allocation11], %s93
      %s95 = sshll.u32 [#allocation12], 4
      %s96 = int_to_ptr.vmem [resolvable:$true] %s95
      %101 = dma.hbm_to_vmem [thread:$0]  %s7, 3072, %s96, [#allocation11], 64, 64, 4
    $region33: #{encoder_forward.1} parent=1 // pred_fallthru
      _
    // Predicated region
    $region34: #{encoder_forward.1} parent=1 // pred_check
      _
    $region35: #{encoder_forward.1} parent=1 // pred_check_branch
      %103 = sbr.rel (0) target = $region37
    $region36: #{encoder_forward.1} parent=1 // pred_region
      %s105 = ssub.s32 16, 16
      %106 = vsyncadd [#allocation14], %s105
      %s108 = sshll.u32 [#allocation13], 4
      %s109 = int_to_ptr.vmem [resolvable:$true] %s108
      %111 = dma.hbm_to_vmem [thread:$0]  %s8, 16, %s109, [#allocation14]
    $region37: #{encoder_forward.1} parent=1 // pred_fallthru
      _
    // Predicated region
    $region38: #{encoder_forward.1} parent=1 // pred_check
      _
    $region39: #{encoder_forward.1} parent=1 // pred_check_branch
      %113 = sbr.rel (0) target = $region41
    $region40: #{encoder_forward.1} parent=1 // pred_region
      %s115 = ssub.s32 1024, 1024
      %116 = vsyncadd [#allocation14], %s115
      %s117 = sshll.u32 [#allocation15], 4
      %s118 = int_to_ptr.vmem [resolvable:$true] %s117
      %123 = dma.hbm_to_vmem [thread:$0]  %s9, 1024, %s118, [#allocation14], 64, 64, 4
    $region41: #{encoder_forward.1} parent=1 // pred_fallthru
      _
    // Predicated region
    $region42: #{encoder_forward.1} parent=1 // pred_check
      _
    $region43: #{encoder_forward.1} parent=1 // pred_check_branch
      %125 = sbr.rel (0) target = $region45
    $region44: #{encoder_forward.1} parent=1 // pred_region
      %s127 = ssub.s32 16, 16
      %128 = vsyncadd [#allocation17], %s127
      %s130 = sshll.u32 [#allocation16], 4
      %s131 = int_to_ptr.vmem [resolvable:$true] %s130
      %133 = dma.hbm_to_vmem [thread:$0]  %s10, 16, %s131, [#allocation17]
    $region45: #{encoder_forward.1} parent=1 // pred_fallthru
      _
    // Predicated region
    $region46: #{encoder_forward.1} parent=1 // pred_check
      _
    $region47: #{encoder_forward.1} parent=1 // pred_check_branch
      %135 = sbr.rel (0) target = $region49
    $region48: #{encoder_forward.1} parent=1 // pred_region
      %136 = dma.done [#allocation3], 93184
    $region49: #{encoder_forward.1} parent=1 // pred_fallthru
      _
    // Predicated region
    $region50: #{encoder_forward.1} parent=1 // pred_check
      _
    $region51: #{encoder_forward.1} parent=1 // pred_check_branch
      %138 = sbr.rel (0) target = $region53
    $region52: #{encoder_forward.1} parent=1 // pred_region
      %139 = dma.done [#allocation5], 208
    $region53: #{encoder_forward.1} parent=1 // pred_fallthru
      _
    // Predicated region
    $region54: #{encoder_forward.1} parent=1 // pred_check
      _
    $region55: #{encoder_forward.1} parent=1 // pred_check_branch
      %141 = sbr.rel (0) target = $region57
    $region56: #{encoder_forward.1} parent=1 // pred_region
      %142 = dma.done [#allocation5], 93184
    $region57: #{encoder_forward.1} parent=1 // pred_fallthru
      _
    // Predicated region
    $region58: #{encoder_forward.1} parent=1 // pred_check
      _
    $region59: #{encoder_forward.1} parent=1 // pred_check_branch
      %144 = sbr.rel (0) target = $region61
    $region60: #{encoder_forward.1} parent=1 // pred_region
      %145 = dma.done [#allocation8], 112
    $region61: #{encoder_forward.1} parent=1 // pred_fallthru
      _
    // Predicated region
    $region62: #{encoder_forward.1} parent=1 // pred_check
      _
    $region63: #{encoder_forward.1} parent=1 // pred_check_branch
      %147 = sbr.rel (0) target = $region65
    $region64: #{encoder_forward.1} parent=1 // pred_region
      %148 = dma.done [#allocation8], 21504
    $region65: #{encoder_forward.1} parent=1 // pred_fallthru
      _
    // Predicated region
    $region66: #{encoder_forward.1} parent=1 // pred_check
      _
    $region67: #{encoder_forward.1} parent=1 // pred_check_branch
      %150 = sbr.rel (0) target = $region69
    $region68: #{encoder_forward.1} parent=1 // pred_region
      %151 = dma.done [#allocation11], 48
    $region69: #{encoder_forward.1} parent=1 // pred_fallthru
      _
    // Predicated region
    $region70: #{encoder_forward.1} parent=1 // pred_check
      _
    $region71: #{encoder_forward.1} parent=1 // pred_check_branch
      %153 = sbr.rel (0) target = $region73
    $region72: #{encoder_forward.1} parent=1 // pred_region
      %154 = dma.done [#allocation11], 3072
    $region73: #{encoder_forward.1} parent=1 // pred_fallthru
      _
    // Predicated region
    $region74: #{encoder_forward.1} parent=1 // pred_check
      _
    $region75: #{encoder_forward.1} parent=1 // pred_check_branch
      %156 = sbr.rel (0) target = $region77
    $region76: #{encoder_forward.1} parent=1 // pred_region
      %157 = dma.done [#allocation14], 16
    $region77: #{encoder_forward.1} parent=1 // pred_fallthru
      _
    // Predicated region
    $region78: #{encoder_forward.1} parent=1 // pred_check
      _
    $region79: #{encoder_forward.1} parent=1 // pred_check_branch
      %159 = sbr.rel (0) target = $region81
    $region80: #{encoder_forward.1} parent=1 // pred_region
      %160 = dma.done [#allocation14], 1024
    $region81: #{encoder_forward.1} parent=1 // pred_fallthru
      _
    // Predicated region
    $region82: #{encoder_forward.1} parent=1 // pred_check
      _
    $region83: #{encoder_forward.1} parent=1 // pred_check_branch
      %162 = sbr.rel (0) target = $region85
    $region84: #{encoder_forward.1} parent=1 // pred_region
      %163 = dma.done [#allocation17], 16
    $region85: #{encoder_forward.1} parent=1 // pred_fallthru
      _
    %v165 = vld [vmem:[%s0] sm:$0xff]
    %v166 = vld [vmem:[%s0 + $0x8] sm:$0xff]
    %v167 = vld [vmem:[%s0 + $0x10] sm:$0xff]
    %v168 = vld [vmem:[%s0 + $0x18] sm:$0xf]
    %v169 = vld [vmem:[#allocation2] sm:$0xff]
    %v170 = vld [vmem:[#allocation2 + $0x8] sm:$0xff]
    %v171 = vld [vmem:[#allocation2 + $0x10] sm:$0xff]
    %v172 = vld [vmem:[#allocation2 + $0x18] sm:$0xff]
    %v173 = vld [vmem:[#allocation2 + $0x20] sm:$0xff]
    %v174 = vld [vmem:[#allocation2 + $0x28] sm:$0xff]
    %v175 = vld [vmem:[#allocation2 + $0x30] sm:$0xf]
    %v176 = vld [vmem:[#allocation2 + $0x34] sm:$0xff]
    %v177 = vld [vmem:[#allocation2 + $0x3c] sm:$0xff]
    %v178 = vld [vmem:[#allocation2 + $0x44] sm:$0xff]
    %v179 = vld [vmem:[#allocation2 + $0x4c] sm:$0xff]
    %v180 = vld [vmem:[#allocation2 + $0x54] sm:$0xff]
    %v181 = vld [vmem:[#allocation2 + $0x5c] sm:$0xff]
    %v182 = vld [vmem:[#allocation2 + $0x64] sm:$0xf]
    %v183 = vld [vmem:[#allocation2 + $0x68] sm:$0xff]
    %v184 = vld [vmem:[#allocation2 + $0x70] sm:$0xff]
    %v185 = vld [vmem:[#allocation2 + $0x78] sm:$0xff]
    %v186 = vld [vmem:[#allocation2 + $0x80] sm:$0xff]
    %v187 = vld [vmem:[#allocation2 + $0x88] sm:$0xff]
    %v188 = vld [vmem:[#allocation2 + $0x90] sm:$0xff]
    %v189 = vld [vmem:[#allocation2 + $0x98] sm:$0xf]
    %v190 = vld [vmem:[#allocation2 + $0x9c] sm:$0xff]
    %v191 = vld [vmem:[#allocation2 + $0xa4] sm:$0xff]
    %v192 = vld [vmem:[#allocation2 + $0xac] sm:$0xff]
    %v193 = vld [vmem:[#allocation2 + $0xb4] sm:$0xff]
    %v194 = vld [vmem:[#allocation2 + $0xbc] sm:$0xff]
    %v195 = vld [vmem:[#allocation2 + $0xc4] sm:$0xff]
    %v196 = vld [vmem:[#allocation2 + $0xcc] sm:$0xf]
    %v197 = vld [vmem:[#allocation2 + $0xd0] sm:$0xff]
    %v198 = vld [vmem:[#allocation2 + $0xd8] sm:$0xff]
    %v199 = vld [vmem:[#allocation2 + $0xe0] sm:$0xff]
    %v200 = vld [vmem:[#allocation2 + $0xe8] sm:$0xff]
    %v201 = vld [vmem:[#allocation2 + $0xf0] sm:$0xff]
    %v202 = vld [vmem:[#allocation2 + $0xf8] sm:$0xff]
    %v203 = vld [vmem:[#allocation2 + $0x100] sm:$0xf]
    %v204 = vld [vmem:[#allocation2 + $0x104] sm:$0xff]
    %v205 = vld [vmem:[#allocation2 + $0x10c] sm:$0xff]
    %v206 = vld [vmem:[#allocation2 + $0x114] sm:$0xff]
    %v207 = vld [vmem:[#allocation2 + $0x11c] sm:$0xff]
    %v208 = vld [vmem:[#allocation2 + $0x124] sm:$0xff]
    %v209 = vld [vmem:[#allocation2 + $0x12c] sm:$0xff]
    %v210 = vld [vmem:[#allocation2 + $0x134] sm:$0xf]
    %v211 = vld [vmem:[#allocation2 + $0x138] sm:$0xff]
    %v212 = vld [vmem:[#allocation2 + $0x140] sm:$0xff]
    %v213 = vld [vmem:[#allocation2 + $0x148] sm:$0xff]
    %v214 = vld [vmem:[#allocation2 + $0x150] sm:$0xff]
    %v215 = vld [vmem:[#allocation2 + $0x158] sm:$0xff]
    %v216 = vld [vmem:[#allocation2 + $0x160] sm:$0xff]
    %v217 = vld [vmem:[#allocation2 + $0x168] sm:$0xf]
    %v218 = vld [vmem:[#allocation2 + $0x16c] sm:$0xff]
    %v219 = vld [vmem:[#allocation2 + $0x174] sm:$0xff]
    %v220 = vld [vmem:[#allocation2 + $0x17c] sm:$0xff]
    %v221 = vld [vmem:[#allocation2 + $0x184] sm:$0xff]
    %v222 = vld [vmem:[#allocation2 + $0x18c] sm:$0xff]
    %v223 = vld [vmem:[#allocation2 + $0x194] sm:$0xff]
    %v224 = vld [vmem:[#allocation2 + $0x19c] sm:$0xf]
    %v225 = vld [vmem:[#allocation2 + $0x1a0] sm:$0xff]
    %v226 = vld [vmem:[#allocation2 + $0x1a8] sm:$0xff]
    %v227 = vld [vmem:[#allocation2 + $0x1b0] sm:$0xff]
    %v228 = vld [vmem:[#allocation2 + $0x1b8] sm:$0xff]
    %v229 = vld [vmem:[#allocation2 + $0x1c0] sm:$0xff]
    %v230 = vld [vmem:[#allocation2 + $0x1c8] sm:$0xff]
    %v231 = vld [vmem:[#allocation2 + $0x1d0] sm:$0xf]
    %v232 = vld [vmem:[#allocation2 + $0x1d4] sm:$0xff]
    %v233 = vld [vmem:[#allocation2 + $0x1dc] sm:$0xff]
    %v234 = vld [vmem:[#allocation2 + $0x1e4] sm:$0xff]
    %v235 = vld [vmem:[#allocation2 + $0x1ec] sm:$0xff]
    %v236 = vld [vmem:[#allocation2 + $0x1f4] sm:$0xff]
    %v237 = vld [vmem:[#allocation2 + $0x1fc] sm:$0xff]
    %v238 = vld [vmem:[#allocation2 + $0x204] sm:$0xf]
    %v239 = vld [vmem:[#allocation2 + $0x208] sm:$0xff]
    %v240 = vld [vmem:[#allocation2 + $0x210] sm:$0xff]
    %v241 = vld [vmem:[#allocation2 + $0x218] sm:$0xff]
    %v242 = vld [vmem:[#allocation2 + $0x220] sm:$0xff]
    %v243 = vld [vmem:[#allocation2 + $0x228] sm:$0xff]
    %v244 = vld [vmem:[#allocation2 + $0x230] sm:$0xff]
    %v245 = vld [vmem:[#allocation2 + $0x238] sm:$0xf]
    %v246 = vld [vmem:[#allocation2 + $0x23c] sm:$0xff]
    %v247 = vld [vmem:[#allocation2 + $0x244] sm:$0xff]
    %v248 = vld [vmem:[#allocation2 + $0x24c] sm:$0xff]
    %v249 = vld [vmem:[#allocation2 + $0x254] sm:$0xff]
    %v250 = vld [vmem:[#allocation2 + $0x25c] sm:$0xff]
    %v251 = vld [vmem:[#allocation2 + $0x264] sm:$0xff]
    %v252 = vld [vmem:[#allocation2 + $0x26c] sm:$0xf]
    %v253 = vld [vmem:[#allocation2 + $0x270] sm:$0xff]
    %v254 = vld [vmem:[#allocation2 + $0x278] sm:$0xff]
    %v255 = vld [vmem:[#allocation2 + $0x280] sm:$0xff]
    %v256 = vld [vmem:[#allocation2 + $0x288] sm:$0xff]
    %v257 = vld [vmem:[#allocation2 + $0x290] sm:$0xff]
    %v258 = vld [vmem:[#allocation2 + $0x298] sm:$0xff]
    %v259 = vld [vmem:[#allocation2 + $0x2a0] sm:$0xf]
    %v260 = vld [vmem:[#allocation2 + $0x2a4] sm:$0xff]
    %v261 = vld [vmem:[#allocation2 + $0x2ac] sm:$0xff]
    %v262 = vld [vmem:[#allocation2 + $0x2b4] sm:$0xff]
    %v263 = vld [vmem:[#allocation2 + $0x2bc] sm:$0xff]
    %v264 = vld [vmem:[#allocation2 + $0x2c4] sm:$0xff]
    %v265 = vld [vmem:[#allocation2 + $0x2cc] sm:$0xff]
    %v266 = vld [vmem:[#allocation2 + $0x2d4] sm:$0xf]
    %v267 = vld [vmem:[#allocation2 + $0x2d8] sm:$0xff]
    %v268 = vld [vmem:[#allocation2 + $0x2e0] sm:$0xff]
    %v269 = vld [vmem:[#allocation2 + $0x2e8] sm:$0xff]
    %v270 = vld [vmem:[#allocation2 + $0x2f0] sm:$0xff]
    %v271 = vld [vmem:[#allocation2 + $0x2f8] sm:$0xff]
    %v272 = vld [vmem:[#allocation2 + $0x300] sm:$0xff]
    %v273 = vld [vmem:[#allocation2 + $0x308] sm:$0xf]
    %v274 = vld [vmem:[#allocation2 + $0x30c] sm:$0xff]
    %v275 = vld [vmem:[#allocation2 + $0x314] sm:$0xff]
    %v276 = vld [vmem:[#allocation2 + $0x31c] sm:$0xff]
    %v277 = vld [vmem:[#allocation2 + $0x324] sm:$0xff]
    %v278 = vld [vmem:[#allocation2 + $0x32c] sm:$0xff]
    %v279 = vld [vmem:[#allocation2 + $0x334] sm:$0xff]
    %v280 = vld [vmem:[#allocation2 + $0x33c] sm:$0xf]
    %v281 = vld [vmem:[#allocation2 + $0x340] sm:$0xff]
    %v282 = vld [vmem:[#allocation2 + $0x348] sm:$0xff]
    %v283 = vld [vmem:[#allocation2 + $0x350] sm:$0xff]
    %v284 = vld [vmem:[#allocation2 + $0x358] sm:$0xff]
    %v285 = vld [vmem:[#allocation2 + $0x360] sm:$0xff]
    %v286 = vld [vmem:[#allocation2 + $0x368] sm:$0xff]
    %v287 = vld [vmem:[#allocation2 + $0x370] sm:$0xf]
    %v288 = vld [vmem:[#allocation2 + $0x374] sm:$0xff]
    %v289 = vld [vmem:[#allocation2 + $0x37c] sm:$0xff]
    %v290 = vld [vmem:[#allocation2 + $0x384] sm:$0xff]
    %v291 = vld [vmem:[#allocation2 + $0x38c] sm:$0xff]
    %v292 = vld [vmem:[#allocation2 + $0x394] sm:$0xff]
    %v293 = vld [vmem:[#allocation2 + $0x39c] sm:$0xff]
    %v294 = vld [vmem:[#allocation2 + $0x3a4] sm:$0xf]
    %v295 = vld [vmem:[#allocation2 + $0x3a8] sm:$0xff]
    %v296 = vld [vmem:[#allocation2 + $0x3b0] sm:$0xff]
    %v297 = vld [vmem:[#allocation2 + $0x3b8] sm:$0xff]
    %v298 = vld [vmem:[#allocation2 + $0x3c0] sm:$0xff]
    %v299 = vld [vmem:[#allocation2 + $0x3c8] sm:$0xff]
    %v300 = vld [vmem:[#allocation2 + $0x3d0] sm:$0xff]
    %v301 = vld [vmem:[#allocation2 + $0x3d8] sm:$0xf]
    %v302 = vld [vmem:[#allocation2 + $0x3dc] sm:$0xff]
    %v303 = vld [vmem:[#allocation2 + $0x3e4] sm:$0xff]
    %v304 = vld [vmem:[#allocation2 + $0x3ec] sm:$0xff]
    %v305 = vld [vmem:[#allocation2 + $0x3f4] sm:$0xff]
    %v306 = vld [vmem:[#allocation2 + $0x3fc] sm:$0xff]
    %v307 = vld [vmem:[#allocation2 + $0x404] sm:$0xff]
    %v308 = vld [vmem:[#allocation2 + $0x40c] sm:$0xf]
    %v309 = vld [vmem:[#allocation2 + $0x410] sm:$0xff]
    %v310 = vld [vmem:[#allocation2 + $0x418] sm:$0xff]
    %v311 = vld [vmem:[#allocation2 + $0x420] sm:$0xff]
    %v312 = vld [vmem:[#allocation2 + $0x428] sm:$0xff]
    %v313 = vld [vmem:[#allocation2 + $0x430] sm:$0xff]
    %v314 = vld [vmem:[#allocation2 + $0x438] sm:$0xff]
    %v315 = vld [vmem:[#allocation2 + $0x440] sm:$0xf]
    %v316 = vld [vmem:[#allocation2 + $0x444] sm:$0xff]
    %v317 = vld [vmem:[#allocation2 + $0x44c] sm:$0xff]
    %v318 = vld [vmem:[#allocation2 + $0x454] sm:$0xff]
    %v319 = vld [vmem:[#allocation2 + $0x45c] sm:$0xff]
    %v320 = vld [vmem:[#allocation2 + $0x464] sm:$0xff]
    %v321 = vld [vmem:[#allocation2 + $0x46c] sm:$0xff]
    %v322 = vld [vmem:[#allocation2 + $0x474] sm:$0xf]
    %v323 = vld [vmem:[#allocation2 + $0x478] sm:$0xff]
    %v324 = vld [vmem:[#allocation2 + $0x480] sm:$0xff]
    %v325 = vld [vmem:[#allocation2 + $0x488] sm:$0xff]
    %v326 = vld [vmem:[#allocation2 + $0x490] sm:$0xff]
    %v327 = vld [vmem:[#allocation2 + $0x498] sm:$0xff]
    %v328 = vld [vmem:[#allocation2 + $0x4a0] sm:$0xff]
    %v329 = vld [vmem:[#allocation2 + $0x4a8] sm:$0xf]
    %v330 = vld [vmem:[#allocation2 + $0x4ac] sm:$0xff]
    %v331 = vld [vmem:[#allocation2 + $0x4b4] sm:$0xff]
    %v332 = vld [vmem:[#allocation2 + $0x4bc] sm:$0xff]
    %v333 = vld [vmem:[#allocation2 + $0x4c4] sm:$0xff]
    %v334 = vld [vmem:[#allocation2 + $0x4cc] sm:$0xff]
    %v335 = vld [vmem:[#allocation2 + $0x4d4] sm:$0xff]
    %v336 = vld [vmem:[#allocation2 + $0x4dc] sm:$0xf]
    %v337 = vld [vmem:[#allocation2 + $0x4e0] sm:$0xff]
    %v338 = vld [vmem:[#allocation2 + $0x4e8] sm:$0xff]
    %v339 = vld [vmem:[#allocation2 + $0x4f0] sm:$0xff]
    %v340 = vld [vmem:[#allocation2 + $0x4f8] sm:$0xff]
    %v341 = vld [vmem:[#allocation2 + $0x500] sm:$0xff]
    %v342 = vld [vmem:[#allocation2 + $0x508] sm:$0xff]
    %v343 = vld [vmem:[#allocation2 + $0x510] sm:$0xf]
    %v344 = vld [vmem:[#allocation2 + $0x514] sm:$0xff]
    %v345 = vld [vmem:[#allocation2 + $0x51c] sm:$0xff]
    %v346 = vld [vmem:[#allocation2 + $0x524] sm:$0xff]
    %v347 = vld [vmem:[#allocation2 + $0x52c] sm:$0xff]
    %v348 = vld [vmem:[#allocation2 + $0x534] sm:$0xff]
    %v349 = vld [vmem:[#allocation2 + $0x53c] sm:$0xff]
    %v350 = vld [vmem:[#allocation2 + $0x544] sm:$0xf]
    %v351 = vld [vmem:[#allocation2 + $0x548] sm:$0xff]
    %v352 = vld [vmem:[#allocation2 + $0x550] sm:$0xff]
    %v353 = vld [vmem:[#allocation2 + $0x558] sm:$0xff]
    %v354 = vld [vmem:[#allocation2 + $0x560] sm:$0xff]
    %v355 = vld [vmem:[#allocation2 + $0x568] sm:$0xff]
    %v356 = vld [vmem:[#allocation2 + $0x570] sm:$0xff]
    %v357 = vld [vmem:[#allocation2 + $0x578] sm:$0xf]
    %v358 = vld [vmem:[#allocation2 + $0x57c] sm:$0xff]
    %v359 = vld [vmem:[#allocation2 + $0x584] sm:$0xff]
    %v360 = vld [vmem:[#allocation2 + $0x58c] sm:$0xff]
    %v361 = vld [vmem:[#allocation2 + $0x594] sm:$0xff]
    %v362 = vld [vmem:[#allocation2 + $0x59c] sm:$0xff]
    %v363 = vld [vmem:[#allocation2 + $0x5a4] sm:$0xff]
    %v364 = vld [vmem:[#allocation2 + $0x5ac] sm:$0xf]
    %v365 = vld [vmem:[#allocation2 + $0x5b0] sm:$0xff]
    %v366 = vld [vmem:[#allocation2 + $0x5b8] sm:$0xff]
    %v367 = vld [vmem:[#allocation2 + $0x5c0] sm:$0xff]
    %v368 = vld [vmem:[#allocation2 + $0x5c8] sm:$0xff]
    %v369 = vld [vmem:[#allocation2 + $0x5d0] sm:$0xff]
    %v370 = vld [vmem:[#allocation2 + $0x5d8] sm:$0xff]
    %v371 = vld [vmem:[#allocation2 + $0x5e0] sm:$0xf]
    %v372 = vld [vmem:[#allocation2 + $0x5e4] sm:$0xff]
    %v373 = vld [vmem:[#allocation2 + $0x5ec] sm:$0xff]
    %v374 = vld [vmem:[#allocation2 + $0x5f4] sm:$0xff]
    %v375 = vld [vmem:[#allocation2 + $0x5fc] sm:$0xff]
    %v376 = vld [vmem:[#allocation2 + $0x604] sm:$0xff]
    %v377 = vld [vmem:[#allocation2 + $0x60c] sm:$0xff]
    %v378 = vld [vmem:[#allocation2 + $0x614] sm:$0xf]
    %v379 = vld [vmem:[#allocation2 + $0x618] sm:$0xff]
    %v380 = vld [vmem:[#allocation2 + $0x620] sm:$0xff]
    %v381 = vld [vmem:[#allocation2 + $0x628] sm:$0xff]
    %v382 = vld [vmem:[#allocation2 + $0x630] sm:$0xff]
    %v383 = vld [vmem:[#allocation2 + $0x638] sm:$0xff]
    %v384 = vld [vmem:[#allocation2 + $0x640] sm:$0xff]
    %v385 = vld [vmem:[#allocation2 + $0x648] sm:$0xf]
    %v386 = vld [vmem:[#allocation2 + $0x64c] sm:$0xff]
    %v387 = vld [vmem:[#allocation2 + $0x654] sm:$0xff]
    %v388 = vld [vmem:[#allocation2 + $0x65c] sm:$0xff]
    %v389 = vld [vmem:[#allocation2 + $0x664] sm:$0xff]
    %v390 = vld [vmem:[#allocation2 + $0x66c] sm:$0xff]
    %v391 = vld [vmem:[#allocation2 + $0x674] sm:$0xff]
    %v392 = vld [vmem:[#allocation2 + $0x67c] sm:$0xf]
    %v393 = vld [vmem:[#allocation2 + $0x680] sm:$0xff]
    %v394 = vld [vmem:[#allocation2 + $0x688] sm:$0xff]
    %v395 = vld [vmem:[#allocation2 + $0x690] sm:$0xff]
    %v396 = vld [vmem:[#allocation2 + $0x698] sm:$0xff]
    %v397 = vld [vmem:[#allocation2 + $0x6a0] sm:$0xff]
    %v398 = vld [vmem:[#allocation2 + $0x6a8] sm:$0xff]
    %v399 = vld [vmem:[#allocation2 + $0x6b0] sm:$0xf]
    %v400 = vld [vmem:[#allocation2 + $0x6b4] sm:$0xff]
    %v401 = vld [vmem:[#allocation2 + $0x6bc] sm:$0xff]
    %v402 = vld [vmem:[#allocation2 + $0x6c4] sm:$0xff]
    %v403 = vld [vmem:[#allocation2 + $0x6cc] sm:$0xff]
    %v404 = vld [vmem:[#allocation2 + $0x6d4] sm:$0xff]
    %v405 = vld [vmem:[#allocation2 + $0x6dc] sm:$0xff]
    %v406 = vld [vmem:[#allocation2 + $0x6e4] sm:$0xf]
    %v407 = vld [vmem:[#allocation2 + $0x6e8] sm:$0xff]
    %v408 = vld [vmem:[#allocation2 + $0x6f0] sm:$0xff]
    %v409 = vld [vmem:[#allocation2 + $0x6f8] sm:$0xff]
    %v410 = vld [vmem:[#allocation2 + $0x700] sm:$0xff]
    %v411 = vld [vmem:[#allocation2 + $0x708] sm:$0xff]
    %v412 = vld [vmem:[#allocation2 + $0x710] sm:$0xff]
    %v413 = vld [vmem:[#allocation2 + $0x718] sm:$0xf]
    %v414 = vld [vmem:[#allocation2 + $0x71c] sm:$0xff]
    %v415 = vld [vmem:[#allocation2 + $0x724] sm:$0xff]
    %v416 = vld [vmem:[#allocation2 + $0x72c] sm:$0xff]
    %v417 = vld [vmem:[#allocation2 + $0x734] sm:$0xff]
    %v418 = vld [vmem:[#allocation2 + $0x73c] sm:$0xff]
    %v419 = vld [vmem:[#allocation2 + $0x744] sm:$0xff]
    %v420 = vld [vmem:[#allocation2 + $0x74c] sm:$0xf]
    %v421 = vld [vmem:[#allocation2 + $0x750] sm:$0xff]
    %v422 = vld [vmem:[#allocation2 + $0x758] sm:$0xff]
    %v423 = vld [vmem:[#allocation2 + $0x760] sm:$0xff]
    %v424 = vld [vmem:[#allocation2 + $0x768] sm:$0xff]
    %v425 = vld [vmem:[#allocation2 + $0x770] sm:$0xff]
    %v426 = vld [vmem:[#allocation2 + $0x778] sm:$0xff]
    %v427 = vld [vmem:[#allocation2 + $0x780] sm:$0xf]
    %v428 = vld [vmem:[#allocation2 + $0x784] sm:$0xff]
    %v429 = vld [vmem:[#allocation2 + $0x78c] sm:$0xff]
    %v430 = vld [vmem:[#allocation2 + $0x794] sm:$0xff]
    %v431 = vld [vmem:[#allocation2 + $0x79c] sm:$0xff]
    %v432 = vld [vmem:[#allocation2 + $0x7a4] sm:$0xff]
    %v433 = vld [vmem:[#allocation2 + $0x7ac] sm:$0xff]
    %v434 = vld [vmem:[#allocation2 + $0x7b4] sm:$0xf]
    %v435 = vld [vmem:[#allocation2 + $0x7b8] sm:$0xff]
    %v436 = vld [vmem:[#allocation2 + $0x7c0] sm:$0xff]
    %v437 = vld [vmem:[#allocation2 + $0x7c8] sm:$0xff]
    %v438 = vld [vmem:[#allocation2 + $0x7d0] sm:$0xff]
    %v439 = vld [vmem:[#allocation2 + $0x7d8] sm:$0xff]
    %v440 = vld [vmem:[#allocation2 + $0x7e0] sm:$0xff]
    %v441 = vld [vmem:[#allocation2 + $0x7e8] sm:$0xf]
    %v442 = vld [vmem:[#allocation2 + $0x7ec] sm:$0xff]
    %v443 = vld [vmem:[#allocation2 + $0x7f4] sm:$0xff]
    %v444 = vld [vmem:[#allocation2 + $0x7fc] sm:$0xff]
    %v445 = vld [vmem:[#allocation2 + $0x804] sm:$0xff]
    %v446 = vld [vmem:[#allocation2 + $0x80c] sm:$0xff]
    %v447 = vld [vmem:[#allocation2 + $0x814] sm:$0xff]
    %v448 = vld [vmem:[#allocation2 + $0x81c] sm:$0xf]
    %v449 = vld [vmem:[#allocation2 + $0x820] sm:$0xff]
    %v450 = vld [vmem:[#allocation2 + $0x828] sm:$0xff]
    %v451 = vld [vmem:[#allocation2 + $0x830] sm:$0xff]
    %v452 = vld [vmem:[#allocation2 + $0x838] sm:$0xff]
    %v453 = vld [vmem:[#allocation2 + $0x840] sm:$0xff]
    %v454 = vld [vmem:[#allocation2 + $0x848] sm:$0xff]
    %v455 = vld [vmem:[#allocation2 + $0x850] sm:$0xf]
    %v456 = vld [vmem:[#allocation2 + $0x854] sm:$0xff]
    %v457 = vld [vmem:[#allocation2 + $0x85c] sm:$0xff]
    %v458 = vld [vmem:[#allocation2 + $0x864] sm:$0xff]
    %v459 = vld [vmem:[#allocation2 + $0x86c] sm:$0xff]
    %v460 = vld [vmem:[#allocation2 + $0x874] sm:$0xff]
    %v461 = vld [vmem:[#allocation2 + $0x87c] sm:$0xff]
    %v462 = vld [vmem:[#allocation2 + $0x884] sm:$0xf]
    %v463 = vld [vmem:[#allocation2 + $0x888] sm:$0xff]
    %v464 = vld [vmem:[#allocation2 + $0x890] sm:$0xff]
    %v465 = vld [vmem:[#allocation2 + $0x898] sm:$0xff]
    %v466 = vld [vmem:[#allocation2 + $0x8a0] sm:$0xff]
    %v467 = vld [vmem:[#allocation2 + $0x8a8] sm:$0xff]
    %v468 = vld [vmem:[#allocation2 + $0x8b0] sm:$0xff]
    %v469 = vld [vmem:[#allocation2 + $0x8b8] sm:$0xf]
    %v470 = vld [vmem:[#allocation2 + $0x8bc] sm:$0xff]
    %v471 = vld [vmem:[#allocation2 + $0x8c4] sm:$0xff]
    %v472 = vld [vmem:[#allocation2 + $0x8cc] sm:$0xff]
    %v473 = vld [vmem:[#allocation2 + $0x8d4] sm:$0xff]
    %v474 = vld [vmem:[#allocation2 + $0x8dc] sm:$0xff]
    %v475 = vld [vmem:[#allocation2 + $0x8e4] sm:$0xff]
    %v476 = vld [vmem:[#allocation2 + $0x8ec] sm:$0xf]
    %v477 = vld [vmem:[#allocation2 + $0x8f0] sm:$0xff]
    %v478 = vld [vmem:[#allocation2 + $0x8f8] sm:$0xff]
    %v479 = vld [vmem:[#allocation2 + $0x900] sm:$0xff]
    %v480 = vld [vmem:[#allocation2 + $0x908] sm:$0xff]
    %v481 = vld [vmem:[#allocation2 + $0x910] sm:$0xff]
    %v482 = vld [vmem:[#allocation2 + $0x918] sm:$0xff]
    %v483 = vld [vmem:[#allocation2 + $0x920] sm:$0xf]
    %v484 = vld [vmem:[#allocation2 + $0x924] sm:$0xff]
    %v485 = vld [vmem:[#allocation2 + $0x92c] sm:$0xff]
    %v486 = vld [vmem:[#allocation2 + $0x934] sm:$0xff]
    %v487 = vld [vmem:[#allocation2 + $0x93c] sm:$0xff]
    %v488 = vld [vmem:[#allocation2 + $0x944] sm:$0xff]
    %v489 = vld [vmem:[#allocation2 + $0x94c] sm:$0xff]
    %v490 = vld [vmem:[#allocation2 + $0x954] sm:$0xf]
    %v491 = vld [vmem:[#allocation2 + $0x958] sm:$0xff]
    %v492 = vld [vmem:[#allocation2 + $0x960] sm:$0xff]
    %v493 = vld [vmem:[#allocation2 + $0x968] sm:$0xff]
    %v494 = vld [vmem:[#allocation2 + $0x970] sm:$0xff]
    %v495 = vld [vmem:[#allocation2 + $0x978] sm:$0xff]
    %v496 = vld [vmem:[#allocation2 + $0x980] sm:$0xff]
    %v497 = vld [vmem:[#allocation2 + $0x988] sm:$0xf]
    %v498 = vld [vmem:[#allocation2 + $0x98c] sm:$0xff]
    %v499 = vld [vmem:[#allocation2 + $0x994] sm:$0xff]
    %v500 = vld [vmem:[#allocation2 + $0x99c] sm:$0xff]
    %v501 = vld [vmem:[#allocation2 + $0x9a4] sm:$0xff]
    %v502 = vld [vmem:[#allocation2 + $0x9ac] sm:$0xff]
    %v503 = vld [vmem:[#allocation2 + $0x9b4] sm:$0xff]
    %v504 = vld [vmem:[#allocation2 + $0x9bc] sm:$0xf]
    %v505 = vld [vmem:[#allocation2 + $0x9c0] sm:$0xff]
    %v506 = vld [vmem:[#allocation2 + $0x9c8] sm:$0xff]
    %v507 = vld [vmem:[#allocation2 + $0x9d0] sm:$0xff]
    %v508 = vld [vmem:[#allocation2 + $0x9d8] sm:$0xff]
    %v509 = vld [vmem:[#allocation2 + $0x9e0] sm:$0xff]
    %v510 = vld [vmem:[#allocation2 + $0x9e8] sm:$0xff]
    %v511 = vld [vmem:[#allocation2 + $0x9f0] sm:$0xf]
    %v512 = vld [vmem:[#allocation2 + $0x9f4] sm:$0xff]
    %v513 = vld [vmem:[#allocation2 + $0x9fc] sm:$0xff]
    %v514 = vld [vmem:[#allocation2 + $0xa04] sm:$0xff]
    %v515 = vld [vmem:[#allocation2 + $0xa0c] sm:$0xff]
    %v516 = vld [vmem:[#allocation2 + $0xa14] sm:$0xff]
    %v517 = vld [vmem:[#allocation2 + $0xa1c] sm:$0xff]
    %v518 = vld [vmem:[#allocation2 + $0xa24] sm:$0xf]
    %v519 = vld [vmem:[#allocation2 + $0xa28] sm:$0xff]
    %v520 = vld [vmem:[#allocation2 + $0xa30] sm:$0xff]
    %v521 = vld [vmem:[#allocation2 + $0xa38] sm:$0xff]
    %v522 = vld [vmem:[#allocation2 + $0xa40] sm:$0xff]
    %v523 = vld [vmem:[#allocation2 + $0xa48] sm:$0xff]
    %v524 = vld [vmem:[#allocation2 + $0xa50] sm:$0xff]
    %v525 = vld [vmem:[#allocation2 + $0xa58] sm:$0xf]
    %v526 = vld [vmem:[#allocation2 + $0xa5c] sm:$0xff]
    %v527 = vld [vmem:[#allocation2 + $0xa64] sm:$0xff]
    %v528 = vld [vmem:[#allocation2 + $0xa6c] sm:$0xff]
    %v529 = vld [vmem:[#allocation2 + $0xa74] sm:$0xff]
    %v530 = vld [vmem:[#allocation2 + $0xa7c] sm:$0xff]
    %v531 = vld [vmem:[#allocation2 + $0xa84] sm:$0xff]
    %v532 = vld [vmem:[#allocation2 + $0xa8c] sm:$0xf]
    %v533 = vld [vmem:[#allocation2 + $0xa90] sm:$0xff]
    %v534 = vld [vmem:[#allocation2 + $0xa98] sm:$0xff]
    %v535 = vld [vmem:[#allocation2 + $0xaa0] sm:$0xff]
    %v536 = vld [vmem:[#allocation2 + $0xaa8] sm:$0xff]
    %v537 = vld [vmem:[#allocation2 + $0xab0] sm:$0xff]
    %v538 = vld [vmem:[#allocation2 + $0xab8] sm:$0xff]
    %v539 = vld [vmem:[#allocation2 + $0xac0] sm:$0xf]
    %v540 = vld [vmem:[#allocation2 + $0xac4] sm:$0xff]
    %v541 = vld [vmem:[#allocation2 + $0xacc] sm:$0xff]
    %v542 = vld [vmem:[#allocation2 + $0xad4] sm:$0xff]
    %v543 = vld [vmem:[#allocation2 + $0xadc] sm:$0xff]
    %v544 = vld [vmem:[#allocation2 + $0xae4] sm:$0xff]
    %v545 = vld [vmem:[#allocation2 + $0xaec] sm:$0xff]
    %v546 = vld [vmem:[#allocation2 + $0xaf4] sm:$0xf]
    %v547 = vld [vmem:[#allocation2 + $0xaf8] sm:$0xff]
    %v548 = vld [vmem:[#allocation2 + $0xb00] sm:$0xff]
    %v549 = vld [vmem:[#allocation2 + $0xb08] sm:$0xff]
    %v550 = vld [vmem:[#allocation2 + $0xb10] sm:$0xff]
    %v551 = vld [vmem:[#allocation2 + $0xb18] sm:$0xff]
    %v552 = vld [vmem:[#allocation2 + $0xb20] sm:$0xff]
    %v553 = vld [vmem:[#allocation2 + $0xb28] sm:$0xf]
    %v554 = vld [vmem:[#allocation2 + $0xb2c] sm:$0xff]
    %v555 = vld [vmem:[#allocation2 + $0xb34] sm:$0xff]
    %v556 = vld [vmem:[#allocation2 + $0xb3c] sm:$0xff]
    %v557 = vld [vmem:[#allocation2 + $0xb44] sm:$0xff]
    %v558 = vld [vmem:[#allocation2 + $0xb4c] sm:$0xff]
    %v559 = vld [vmem:[#allocation2 + $0xb54] sm:$0xff]
    %v560 = vld [vmem:[#allocation2 + $0xb5c] sm:$0xf]
    %v561 = vld [vmem:[#allocation2 + $0xb60] sm:$0xff]
    %v562 = vld [vmem:[#allocation2 + $0xb68] sm:$0xff]
    %v563 = vld [vmem:[#allocation2 + $0xb70] sm:$0xff]
    %v564 = vld [vmem:[#allocation2 + $0xb78] sm:$0xff]
    %v565 = vld [vmem:[#allocation2 + $0xb80] sm:$0xff]
    %v566 = vld [vmem:[#allocation2 + $0xb88] sm:$0xff]
    %v567 = vld [vmem:[#allocation2 + $0xb90] sm:$0xf]
    %v568 = vld [vmem:[#allocation2 + $0xb94] sm:$0xff]
    %v569 = vld [vmem:[#allocation2 + $0xb9c] sm:$0xff]
    %v570 = vld [vmem:[#allocation2 + $0xba4] sm:$0xff]
    %v571 = vld [vmem:[#allocation2 + $0xbac] sm:$0xff]
    %v572 = vld [vmem:[#allocation2 + $0xbb4] sm:$0xff]
    %v573 = vld [vmem:[#allocation2 + $0xbbc] sm:$0xff]
    %v574 = vld [vmem:[#allocation2 + $0xbc4] sm:$0xf]
    %v575 = vld [vmem:[#allocation2 + $0xbc8] sm:$0xff]
    %v576 = vld [vmem:[#allocation2 + $0xbd0] sm:$0xff]
    %v577 = vld [vmem:[#allocation2 + $0xbd8] sm:$0xff]
    %v578 = vld [vmem:[#allocation2 + $0xbe0] sm:$0xff]
    %v579 = vld [vmem:[#allocation2 + $0xbe8] sm:$0xff]
    %v580 = vld [vmem:[#allocation2 + $0xbf0] sm:$0xff]
    %v581 = vld [vmem:[#allocation2 + $0xbf8] sm:$0xf]
    %v582 = vld [vmem:[#allocation2 + $0xbfc] sm:$0xff]
    %v583 = vld [vmem:[#allocation2 + $0xc04] sm:$0xff]
    %v584 = vld [vmem:[#allocation2 + $0xc0c] sm:$0xff]
    %v585 = vld [vmem:[#allocation2 + $0xc14] sm:$0xff]
    %v586 = vld [vmem:[#allocation2 + $0xc1c] sm:$0xff]
    %v587 = vld [vmem:[#allocation2 + $0xc24] sm:$0xff]
    %v588 = vld [vmem:[#allocation2 + $0xc2c] sm:$0xf]
    %v589 = vld [vmem:[#allocation2 + $0xc30] sm:$0xff]
    %v590 = vld [vmem:[#allocation2 + $0xc38] sm:$0xff]
    %v591 = vld [vmem:[#allocation2 + $0xc40] sm:$0xff]
    %v592 = vld [vmem:[#allocation2 + $0xc48] sm:$0xff]
    %v593 = vld [vmem:[#allocation2 + $0xc50] sm:$0xff]
    %v594 = vld [vmem:[#allocation2 + $0xc58] sm:$0xff]
    %v595 = vld [vmem:[#allocation2 + $0xc60] sm:$0xf]
    %v596 = vld [vmem:[#allocation2 + $0xc64] sm:$0xff]
    %v597 = vld [vmem:[#allocation2 + $0xc6c] sm:$0xff]
    %v598 = vld [vmem:[#allocation2 + $0xc74] sm:$0xff]
    %v599 = vld [vmem:[#allocation2 + $0xc7c] sm:$0xff]
    %v600 = vld [vmem:[#allocation2 + $0xc84] sm:$0xff]
    %v601 = vld [vmem:[#allocation2 + $0xc8c] sm:$0xff]
    %v602 = vld [vmem:[#allocation2 + $0xc94] sm:$0xf]
    %v603 = vld [vmem:[#allocation2 + $0xc98] sm:$0xff]
    %v604 = vld [vmem:[#allocation2 + $0xca0] sm:$0xff]
    %v605 = vld [vmem:[#allocation2 + $0xca8] sm:$0xff]
    %v606 = vld [vmem:[#allocation2 + $0xcb0] sm:$0xff]
    %v607 = vld [vmem:[#allocation2 + $0xcb8] sm:$0xff]
    %v608 = vld [vmem:[#allocation2 + $0xcc0] sm:$0xff]
    %v609 = vld [vmem:[#allocation2 + $0xcc8] sm:$0xf]
    %v610 = vld [vmem:[#allocation2 + $0xccc] sm:$0xff]
    %v611 = vld [vmem:[#allocation2 + $0xcd4] sm:$0xff]
    %v612 = vld [vmem:[#allocation2 + $0xcdc] sm:$0xff]
    %v613 = vld [vmem:[#allocation2 + $0xce4] sm:$0xff]
    %v614 = vld [vmem:[#allocation2 + $0xcec] sm:$0xff]
    %v615 = vld [vmem:[#allocation2 + $0xcf4] sm:$0xff]
    %v616 = vld [vmem:[#allocation2 + $0xcfc] sm:$0xf]
    %v617 = vld [vmem:[#allocation2 + $0xd00] sm:$0xff]
    %v618 = vld [vmem:[#allocation2 + $0xd08] sm:$0xff]
    %v619 = vld [vmem:[#allocation2 + $0xd10] sm:$0xff]
    %v620 = vld [vmem:[#allocation2 + $0xd18] sm:$0xff]
    %v621 = vld [vmem:[#allocation2 + $0xd20] sm:$0xff]
    %v622 = vld [vmem:[#allocation2 + $0xd28] sm:$0xff]
    %v623 = vld [vmem:[#allocation2 + $0xd30] sm:$0xf]
    %v624 = vld [vmem:[#allocation2 + $0xd34] sm:$0xff]
    %v625 = vld [vmem:[#allocation2 + $0xd3c] sm:$0xff]
    %v626 = vld [vmem:[#allocation2 + $0xd44] sm:$0xff]
    %v627 = vld [vmem:[#allocation2 + $0xd4c] sm:$0xff]
    %v628 = vld [vmem:[#allocation2 + $0xd54] sm:$0xff]
    %v629 = vld [vmem:[#allocation2 + $0xd5c] sm:$0xff]
    %v630 = vld [vmem:[#allocation2 + $0xd64] sm:$0xf]
    %v631 = vld [vmem:[#allocation2 + $0xd68] sm:$0xff]
    %v632 = vld [vmem:[#allocation2 + $0xd70] sm:$0xff]
    %v633 = vld [vmem:[#allocation2 + $0xd78] sm:$0xff]
    %v634 = vld [vmem:[#allocation2 + $0xd80] sm:$0xff]
    %v635 = vld [vmem:[#allocation2 + $0xd88] sm:$0xff]
    %v636 = vld [vmem:[#allocation2 + $0xd90] sm:$0xff]
    %v637 = vld [vmem:[#allocation2 + $0xd98] sm:$0xf]
    %v638 = vld [vmem:[#allocation2 + $0xd9c] sm:$0xff]
    %v639 = vld [vmem:[#allocation2 + $0xda4] sm:$0xff]
    %v640 = vld [vmem:[#allocation2 + $0xdac] sm:$0xff]
    %v641 = vld [vmem:[#allocation2 + $0xdb4] sm:$0xff]
    %v642 = vld [vmem:[#allocation2 + $0xdbc] sm:$0xff]
    %v643 = vld [vmem:[#allocation2 + $0xdc4] sm:$0xff]
    %v644 = vld [vmem:[#allocation2 + $0xdcc] sm:$0xf]
    %v645 = vld [vmem:[#allocation2 + $0xdd0] sm:$0xff]
    %v646 = vld [vmem:[#allocation2 + $0xdd8] sm:$0xff]
    %v647 = vld [vmem:[#allocation2 + $0xde0] sm:$0xff]
    %v648 = vld [vmem:[#allocation2 + $0xde8] sm:$0xff]
    %v649 = vld [vmem:[#allocation2 + $0xdf0] sm:$0xff]
    %v650 = vld [vmem:[#allocation2 + $0xdf8] sm:$0xff]
    %v651 = vld [vmem:[#allocation2 + $0xe00] sm:$0xf]
    %v652 = vld [vmem:[#allocation2 + $0xe04] sm:$0xff]
    %v653 = vld [vmem:[#allocation2 + $0xe0c] sm:$0xff]
    %v654 = vld [vmem:[#allocation2 + $0xe14] sm:$0xff]
    %v655 = vld [vmem:[#allocation2 + $0xe1c] sm:$0xff]
    %v656 = vld [vmem:[#allocation2 + $0xe24] sm:$0xff]
    %v657 = vld [vmem:[#allocation2 + $0xe2c] sm:$0xff]
    %v658 = vld [vmem:[#allocation2 + $0xe34] sm:$0xf]
    %v659 = vld [vmem:[#allocation2 + $0xe38] sm:$0xff]
    %v660 = vld [vmem:[#allocation2 + $0xe40] sm:$0xff]
    %v661 = vld [vmem:[#allocation2 + $0xe48] sm:$0xff]
    %v662 = vld [vmem:[#allocation2 + $0xe50] sm:$0xff]
    %v663 = vld [vmem:[#allocation2 + $0xe58] sm:$0xff]
    %v664 = vld [vmem:[#allocation2 + $0xe60] sm:$0xff]
    %v665 = vld [vmem:[#allocation2 + $0xe68] sm:$0xf]
    %v666 = vld [vmem:[#allocation2 + $0xe6c] sm:$0xff]
    %v667 = vld [vmem:[#allocation2 + $0xe74] sm:$0xff]
    %v668 = vld [vmem:[#allocation2 + $0xe7c] sm:$0xff]
    %v669 = vld [vmem:[#allocation2 + $0xe84] sm:$0xff]
    %v670 = vld [vmem:[#allocation2 + $0xe8c] sm:$0xff]
    %v671 = vld [vmem:[#allocation2 + $0xe94] sm:$0xff]
    %v672 = vld [vmem:[#allocation2 + $0xe9c] sm:$0xf]
    %v673 = vld [vmem:[#allocation2 + $0xea0] sm:$0xff]
    %v674 = vld [vmem:[#allocation2 + $0xea8] sm:$0xff]
    %v675 = vld [vmem:[#allocation2 + $0xeb0] sm:$0xff]
    %v676 = vld [vmem:[#allocation2 + $0xeb8] sm:$0xff]
    %v677 = vld [vmem:[#allocation2 + $0xec0] sm:$0xff]
    %v678 = vld [vmem:[#allocation2 + $0xec8] sm:$0xff]
    %v679 = vld [vmem:[#allocation2 + $0xed0] sm:$0xf]
    %v680 = vld [vmem:[#allocation2 + $0xed4] sm:$0xff]
    %v681 = vld [vmem:[#allocation2 + $0xedc] sm:$0xff]
    %v682 = vld [vmem:[#allocation2 + $0xee4] sm:$0xff]
    %v683 = vld [vmem:[#allocation2 + $0xeec] sm:$0xff]
    %v684 = vld [vmem:[#allocation2 + $0xef4] sm:$0xff]
    %v685 = vld [vmem:[#allocation2 + $0xefc] sm:$0xff]
    %v686 = vld [vmem:[#allocation2 + $0xf04] sm:$0xf]
    %v687 = vld [vmem:[#allocation2 + $0xf08] sm:$0xff]
    %v688 = vld [vmem:[#allocation2 + $0xf10] sm:$0xff]
    %v689 = vld [vmem:[#allocation2 + $0xf18] sm:$0xff]
    %v690 = vld [vmem:[#allocation2 + $0xf20] sm:$0xff]
    %v691 = vld [vmem:[#allocation2 + $0xf28] sm:$0xff]
    %v692 = vld [vmem:[#allocation2 + $0xf30] sm:$0xff]
    %v693 = vld [vmem:[#allocation2 + $0xf38] sm:$0xf]
    %v694 = vld [vmem:[#allocation2 + $0xf3c] sm:$0xff]
    %v695 = vld [vmem:[#allocation2 + $0xf44] sm:$0xff]
    %v696 = vld [vmem:[#allocation2 + $0xf4c] sm:$0xff]
    %v697 = vld [vmem:[#allocation2 + $0xf54] sm:$0xff]
    %v698 = vld [vmem:[#allocation2 + $0xf5c] sm:$0xff]
    %v699 = vld [vmem:[#allocation2 + $0xf64] sm:$0xff]
    %v700 = vld [vmem:[#allocation2 + $0xf6c] sm:$0xf]
    %v701 = vld [vmem:[#allocation2 + $0xf70] sm:$0xff]
    %v702 = vld [vmem:[#allocation2 + $0xf78] sm:$0xff]
    %v703 = vld [vmem:[#allocation2 + $0xf80] sm:$0xff]
    %v704 = vld [vmem:[#allocation2 + $0xf88] sm:$0xff]
    %v705 = vld [vmem:[#allocation2 + $0xf90] sm:$0xff]
    %v706 = vld [vmem:[#allocation2 + $0xf98] sm:$0xff]
    %v707 = vld [vmem:[#allocation2 + $0xfa0] sm:$0xf]
    %v708 = vld [vmem:[#allocation2 + $0xfa4] sm:$0xff]
    %v709 = vld [vmem:[#allocation2 + $0xfac] sm:$0xff]
    %v710 = vld [vmem:[#allocation2 + $0xfb4] sm:$0xff]
    %v711 = vld [vmem:[#allocation2 + $0xfbc] sm:$0xff]
    %v712 = vld [vmem:[#allocation2 + $0xfc4] sm:$0xff]
    %v713 = vld [vmem:[#allocation2 + $0xfcc] sm:$0xff]
    %v714 = vld [vmem:[#allocation2 + $0xfd4] sm:$0xf]
    %v715 = vld [vmem:[#allocation2 + $0xfd8] sm:$0xff]
    %v716 = vld [vmem:[#allocation2 + $0xfe0] sm:$0xff]
    %v717 = vld [vmem:[#allocation2 + $0xfe8] sm:$0xff]
    %v718 = vld [vmem:[#allocation2 + $0xff0] sm:$0xff]
    %v719 = vld [vmem:[#allocation2 + $0xff8] sm:$0xff]
    %v720 = vld [vmem:[#allocation2 + $0x1000] sm:$0xff]
    %v721 = vld [vmem:[#allocation2 + $0x1008] sm:$0xf]
    %v722 = vld [vmem:[#allocation2 + $0x100c] sm:$0xff]
    %v723 = vld [vmem:[#allocation2 + $0x1014] sm:$0xff]
    %v724 = vld [vmem:[#allocation2 + $0x101c] sm:$0xff]
    %v725 = vld [vmem:[#allocation2 + $0x1024] sm:$0xff]
    %v726 = vld [vmem:[#allocation2 + $0x102c] sm:$0xff]
    %v727 = vld [vmem:[#allocation2 + $0x1034] sm:$0xff]
    %v728 = vld [vmem:[#allocation2 + $0x103c] sm:$0xf]
    %v729 = vld [vmem:[#allocation2 + $0x1040] sm:$0xff]
    %v730 = vld [vmem:[#allocation2 + $0x1048] sm:$0xff]
    %v731 = vld [vmem:[#allocation2 + $0x1050] sm:$0xff]
    %v732 = vld [vmem:[#allocation2 + $0x1058] sm:$0xff]
    %v733 = vld [vmem:[#allocation2 + $0x1060] sm:$0xff]
    %v734 = vld [vmem:[#allocation2 + $0x1068] sm:$0xff]
    %v735 = vld [vmem:[#allocation2 + $0x1070] sm:$0xf]
    %v736 = vld [vmem:[#allocation2 + $0x1074] sm:$0xff]
    %v737 = vld [vmem:[#allocation2 + $0x107c] sm:$0xff]
    %v738 = vld [vmem:[#allocation2 + $0x1084] sm:$0xff]
    %v739 = vld [vmem:[#allocation2 + $0x108c] sm:$0xff]
    %v740 = vld [vmem:[#allocation2 + $0x1094] sm:$0xff]
    %v741 = vld [vmem:[#allocation2 + $0x109c] sm:$0xff]
    %v742 = vld [vmem:[#allocation2 + $0x10a4] sm:$0xf]
    %v743 = vld [vmem:[#allocation2 + $0x10a8] sm:$0xff]
    %v744 = vld [vmem:[#allocation2 + $0x10b0] sm:$0xff]
    %v745 = vld [vmem:[#allocation2 + $0x10b8] sm:$0xff]
    %v746 = vld [vmem:[#allocation2 + $0x10c0] sm:$0xff]
    %v747 = vld [vmem:[#allocation2 + $0x10c8] sm:$0xff]
    %v748 = vld [vmem:[#allocation2 + $0x10d0] sm:$0xff]
    %v749 = vld [vmem:[#allocation2 + $0x10d8] sm:$0xf]
    %v750 = vld [vmem:[#allocation2 + $0x10dc] sm:$0xff]
    %v751 = vld [vmem:[#allocation2 + $0x10e4] sm:$0xff]
    %v752 = vld [vmem:[#allocation2 + $0x10ec] sm:$0xff]
    %v753 = vld [vmem:[#allocation2 + $0x10f4] sm:$0xff]
    %v754 = vld [vmem:[#allocation2 + $0x10fc] sm:$0xff]
    %v755 = vld [vmem:[#allocation2 + $0x1104] sm:$0xff]
    %v756 = vld [vmem:[#allocation2 + $0x110c] sm:$0xf]
    %v757 = vld [vmem:[#allocation2 + $0x1110] sm:$0xff]
    %v758 = vld [vmem:[#allocation2 + $0x1118] sm:$0xff]
    %v759 = vld [vmem:[#allocation2 + $0x1120] sm:$0xff]
    %v760 = vld [vmem:[#allocation2 + $0x1128] sm:$0xff]
    %v761 = vld [vmem:[#allocation2 + $0x1130] sm:$0xff]
    %v762 = vld [vmem:[#allocation2 + $0x1138] sm:$0xff]
    %v763 = vld [vmem:[#allocation2 + $0x1140] sm:$0xf]
    %v764 = vld [vmem:[#allocation2 + $0x1144] sm:$0xff]
    %v765 = vld [vmem:[#allocation2 + $0x114c] sm:$0xff]
    %v766 = vld [vmem:[#allocation2 + $0x1154] sm:$0xff]
    %v767 = vld [vmem:[#allocation2 + $0x115c] sm:$0xff]
    %v768 = vld [vmem:[#allocation2 + $0x1164] sm:$0xff]
    %v769 = vld [vmem:[#allocation2 + $0x116c] sm:$0xff]
    %v770 = vld [vmem:[#allocation2 + $0x1174] sm:$0xf]
    %v771 = vld [vmem:[#allocation2 + $0x1178] sm:$0xff]
    %v772 = vld [vmem:[#allocation2 + $0x1180] sm:$0xff]
    %v773 = vld [vmem:[#allocation2 + $0x1188] sm:$0xff]
    %v774 = vld [vmem:[#allocation2 + $0x1190] sm:$0xff]
    %v775 = vld [vmem:[#allocation2 + $0x1198] sm:$0xff]
    %v776 = vld [vmem:[#allocation2 + $0x11a0] sm:$0xff]
    %v777 = vld [vmem:[#allocation2 + $0x11a8] sm:$0xf]
    %v778 = vld [vmem:[#allocation2 + $0x11ac] sm:$0xff]
    %v779 = vld [vmem:[#allocation2 + $0x11b4] sm:$0xff]
    %v780 = vld [vmem:[#allocation2 + $0x11bc] sm:$0xff]
    %v781 = vld [vmem:[#allocation2 + $0x11c4] sm:$0xff]
    %v782 = vld [vmem:[#allocation2 + $0x11cc] sm:$0xff]
    %v783 = vld [vmem:[#allocation2 + $0x11d4] sm:$0xff]
    %v784 = vld [vmem:[#allocation2 + $0x11dc] sm:$0xf]
    %v785 = vld [vmem:[#allocation2 + $0x11e0] sm:$0xff]
    %v786 = vld [vmem:[#allocation2 + $0x11e8] sm:$0xff]
    %v787 = vld [vmem:[#allocation2 + $0x11f0] sm:$0xff]
    %v788 = vld [vmem:[#allocation2 + $0x11f8] sm:$0xff]
    %v789 = vld [vmem:[#allocation2 + $0x1200] sm:$0xff]
    %v790 = vld [vmem:[#allocation2 + $0x1208] sm:$0xff]
    %v791 = vld [vmem:[#allocation2 + $0x1210] sm:$0xf]
    %v792 = vld [vmem:[#allocation2 + $0x1214] sm:$0xff]
    %v793 = vld [vmem:[#allocation2 + $0x121c] sm:$0xff]
    %v794 = vld [vmem:[#allocation2 + $0x1224] sm:$0xff]
    %v795 = vld [vmem:[#allocation2 + $0x122c] sm:$0xff]
    %v796 = vld [vmem:[#allocation2 + $0x1234] sm:$0xff]
    %v797 = vld [vmem:[#allocation2 + $0x123c] sm:$0xff]
    %v798 = vld [vmem:[#allocation2 + $0x1244] sm:$0xf]
    %v799 = vld [vmem:[#allocation2 + $0x1248] sm:$0xff]
    %v800 = vld [vmem:[#allocation2 + $0x1250] sm:$0xff]
    %v801 = vld [vmem:[#allocation2 + $0x1258] sm:$0xff]
    %v802 = vld [vmem:[#allocation2 + $0x1260] sm:$0xff]
    %v803 = vld [vmem:[#allocation2 + $0x1268] sm:$0xff]
    %v804 = vld [vmem:[#allocation2 + $0x1270] sm:$0xff]
    %v805 = vld [vmem:[#allocation2 + $0x1278] sm:$0xf]
    %v806 = vld [vmem:[#allocation2 + $0x127c] sm:$0xff]
    %v807 = vld [vmem:[#allocation2 + $0x1284] sm:$0xff]
    %v808 = vld [vmem:[#allocation2 + $0x128c] sm:$0xff]
    %v809 = vld [vmem:[#allocation2 + $0x1294] sm:$0xff]
    %v810 = vld [vmem:[#allocation2 + $0x129c] sm:$0xff]
    %v811 = vld [vmem:[#allocation2 + $0x12a4] sm:$0xff]
    %v812 = vld [vmem:[#allocation2 + $0x12ac] sm:$0xf]
    %v813 = vld [vmem:[#allocation2 + $0x12b0] sm:$0xff]
    %v814 = vld [vmem:[#allocation2 + $0x12b8] sm:$0xff]
    %v815 = vld [vmem:[#allocation2 + $0x12c0] sm:$0xff]
    %v816 = vld [vmem:[#allocation2 + $0x12c8] sm:$0xff]
    %v817 = vld [vmem:[#allocation2 + $0x12d0] sm:$0xff]
    %v818 = vld [vmem:[#allocation2 + $0x12d8] sm:$0xff]
    %v819 = vld [vmem:[#allocation2 + $0x12e0] sm:$0xf]
    %v820 = vld [vmem:[#allocation2 + $0x12e4] sm:$0xff]
    %v821 = vld [vmem:[#allocation2 + $0x12ec] sm:$0xff]
    %v822 = vld [vmem:[#allocation2 + $0x12f4] sm:$0xff]
    %v823 = vld [vmem:[#allocation2 + $0x12fc] sm:$0xff]
    %v824 = vld [vmem:[#allocation2 + $0x1304] sm:$0xff]
    %v825 = vld [vmem:[#allocation2 + $0x130c] sm:$0xff]
    %v826 = vld [vmem:[#allocation2 + $0x1314] sm:$0xf]
    %v827 = vld [vmem:[#allocation2 + $0x1318] sm:$0xff]
    %v828 = vld [vmem:[#allocation2 + $0x1320] sm:$0xff]
    %v829 = vld [vmem:[#allocation2 + $0x1328] sm:$0xff]
    %v830 = vld [vmem:[#allocation2 + $0x1330] sm:$0xff]
    %v831 = vld [vmem:[#allocation2 + $0x1338] sm:$0xff]
    %v832 = vld [vmem:[#allocation2 + $0x1340] sm:$0xff]
    %v833 = vld [vmem:[#allocation2 + $0x1348] sm:$0xf]
    %v834 = vld [vmem:[#allocation2 + $0x134c] sm:$0xff]
    %v835 = vld [vmem:[#allocation2 + $0x1354] sm:$0xff]
    %v836 = vld [vmem:[#allocation2 + $0x135c] sm:$0xff]
    %v837 = vld [vmem:[#allocation2 + $0x1364] sm:$0xff]
    %v838 = vld [vmem:[#allocation2 + $0x136c] sm:$0xff]
    %v839 = vld [vmem:[#allocation2 + $0x1374] sm:$0xff]
    %v840 = vld [vmem:[#allocation2 + $0x137c] sm:$0xf]
    %v841 = vld [vmem:[#allocation2 + $0x1380] sm:$0xff]
    %v842 = vld [vmem:[#allocation2 + $0x1388] sm:$0xff]
    %v843 = vld [vmem:[#allocation2 + $0x1390] sm:$0xff]
    %v844 = vld [vmem:[#allocation2 + $0x1398] sm:$0xff]
    %v845 = vld [vmem:[#allocation2 + $0x13a0] sm:$0xff]
    %v846 = vld [vmem:[#allocation2 + $0x13a8] sm:$0xff]
    %v847 = vld [vmem:[#allocation2 + $0x13b0] sm:$0xf]
    %v848 = vld [vmem:[#allocation2 + $0x13b4] sm:$0xff]
    %v849 = vld [vmem:[#allocation2 + $0x13bc] sm:$0xff]
    %v850 = vld [vmem:[#allocation2 + $0x13c4] sm:$0xff]
    %v851 = vld [vmem:[#allocation2 + $0x13cc] sm:$0xff]
    %v852 = vld [vmem:[#allocation2 + $0x13d4] sm:$0xff]
    %v853 = vld [vmem:[#allocation2 + $0x13dc] sm:$0xff]
    %v854 = vld [vmem:[#allocation2 + $0x13e4] sm:$0xf]
    %v855 = vld [vmem:[#allocation2 + $0x13e8] sm:$0xff]
    %v856 = vld [vmem:[#allocation2 + $0x13f0] sm:$0xff]
    %v857 = vld [vmem:[#allocation2 + $0x13f8] sm:$0xff]
    %v858 = vld [vmem:[#allocation2 + $0x1400] sm:$0xff]
    %v859 = vld [vmem:[#allocation2 + $0x1408] sm:$0xff]
    %v860 = vld [vmem:[#allocation2 + $0x1410] sm:$0xff]
    %v861 = vld [vmem:[#allocation2 + $0x1418] sm:$0xf]
    %v862 = vld [vmem:[#allocation2 + $0x141c] sm:$0xff]
    %v863 = vld [vmem:[#allocation2 + $0x1424] sm:$0xff]
    %v864 = vld [vmem:[#allocation2 + $0x142c] sm:$0xff]
    %v865 = vld [vmem:[#allocation2 + $0x1434] sm:$0xff]
    %v866 = vld [vmem:[#allocation2 + $0x143c] sm:$0xff]
    %v867 = vld [vmem:[#allocation2 + $0x1444] sm:$0xff]
    %v868 = vld [vmem:[#allocation2 + $0x144c] sm:$0xf]
    %v869 = vld [vmem:[#allocation2 + $0x1450] sm:$0xff]
    %v870 = vld [vmem:[#allocation2 + $0x1458] sm:$0xff]
    %v871 = vld [vmem:[#allocation2 + $0x1460] sm:$0xff]
    %v872 = vld [vmem:[#allocation2 + $0x1468] sm:$0xff]
    %v873 = vld [vmem:[#allocation2 + $0x1470] sm:$0xff]
    %v874 = vld [vmem:[#allocation2 + $0x1478] sm:$0xff]
    %v875 = vld [vmem:[#allocation2 + $0x1480] sm:$0xf]
    %v876 = vld [vmem:[#allocation2 + $0x1484] sm:$0xff]
    %v877 = vld [vmem:[#allocation2 + $0x148c] sm:$0xff]
    %v878 = vld [vmem:[#allocation2 + $0x1494] sm:$0xff]
    %v879 = vld [vmem:[#allocation2 + $0x149c] sm:$0xff]
    %v880 = vld [vmem:[#allocation2 + $0x14a4] sm:$0xff]
    %v881 = vld [vmem:[#allocation2 + $0x14ac] sm:$0xff]
    %v882 = vld [vmem:[#allocation2 + $0x14b4] sm:$0xf]
    %v883 = vld [vmem:[#allocation2 + $0x14b8] sm:$0xff]
    %v884 = vld [vmem:[#allocation2 + $0x14c0] sm:$0xff]
    %v885 = vld [vmem:[#allocation2 + $0x14c8] sm:$0xff]
    %v886 = vld [vmem:[#allocation2 + $0x14d0] sm:$0xff]
    %v887 = vld [vmem:[#allocation2 + $0x14d8] sm:$0xff]
    %v888 = vld [vmem:[#allocation2 + $0x14e0] sm:$0xff]
    %v889 = vld [vmem:[#allocation2 + $0x14e8] sm:$0xf]
    %v890 = vld [vmem:[#allocation2 + $0x14ec] sm:$0xff]
    %v891 = vld [vmem:[#allocation2 + $0x14f4] sm:$0xff]
    %v892 = vld [vmem:[#allocation2 + $0x14fc] sm:$0xff]
    %v893 = vld [vmem:[#allocation2 + $0x1504] sm:$0xff]
    %v894 = vld [vmem:[#allocation2 + $0x150c] sm:$0xff]
    %v895 = vld [vmem:[#allocation2 + $0x1514] sm:$0xff]
    %v896 = vld [vmem:[#allocation2 + $0x151c] sm:$0xf]
    %v897 = vld [vmem:[#allocation2 + $0x1520] sm:$0xff]
    %v898 = vld [vmem:[#allocation2 + $0x1528] sm:$0xff]
    %v899 = vld [vmem:[#allocation2 + $0x1530] sm:$0xff]
    %v900 = vld [vmem:[#allocation2 + $0x1538] sm:$0xff]
    %v901 = vld [vmem:[#allocation2 + $0x1540] sm:$0xff]
    %v902 = vld [vmem:[#allocation2 + $0x1548] sm:$0xff]
    %v903 = vld [vmem:[#allocation2 + $0x1550] sm:$0xf]
    %v904 = vld [vmem:[#allocation2 + $0x1554] sm:$0xff]
    %v905 = vld [vmem:[#allocation2 + $0x155c] sm:$0xff]
    %v906 = vld [vmem:[#allocation2 + $0x1564] sm:$0xff]
    %v907 = vld [vmem:[#allocation2 + $0x156c] sm:$0xff]
    %v908 = vld [vmem:[#allocation2 + $0x1574] sm:$0xff]
    %v909 = vld [vmem:[#allocation2 + $0x157c] sm:$0xff]
    %v910 = vld [vmem:[#allocation2 + $0x1584] sm:$0xf]
    %v911 = vld [vmem:[#allocation2 + $0x1588] sm:$0xff]
    %v912 = vld [vmem:[#allocation2 + $0x1590] sm:$0xff]
    %v913 = vld [vmem:[#allocation2 + $0x1598] sm:$0xff]
    %v914 = vld [vmem:[#allocation2 + $0x15a0] sm:$0xff]
    %v915 = vld [vmem:[#allocation2 + $0x15a8] sm:$0xff]
    %v916 = vld [vmem:[#allocation2 + $0x15b0] sm:$0xff]
    %v917 = vld [vmem:[#allocation2 + $0x15b8] sm:$0xf]
    %v918 = vld [vmem:[#allocation2 + $0x15bc] sm:$0xff]
    %v919 = vld [vmem:[#allocation2 + $0x15c4] sm:$0xff]
    %v920 = vld [vmem:[#allocation2 + $0x15cc] sm:$0xff]
    %v921 = vld [vmem:[#allocation2 + $0x15d4] sm:$0xff]
    %v922 = vld [vmem:[#allocation2 + $0x15dc] sm:$0xff]
    %v923 = vld [vmem:[#allocation2 + $0x15e4] sm:$0xff]
    %v924 = vld [vmem:[#allocation2 + $0x15ec] sm:$0xf]
    %v925 = vld [vmem:[#allocation2 + $0x15f0] sm:$0xff]
    %v926 = vld [vmem:[#allocation2 + $0x15f8] sm:$0xff]
    %v927 = vld [vmem:[#allocation2 + $0x1600] sm:$0xff]
    %v928 = vld [vmem:[#allocation2 + $0x1608] sm:$0xff]
    %v929 = vld [vmem:[#allocation2 + $0x1610] sm:$0xff]
    %v930 = vld [vmem:[#allocation2 + $0x1618] sm:$0xff]
    %v931 = vld [vmem:[#allocation2 + $0x1620] sm:$0xf]
    %v932 = vld [vmem:[#allocation2 + $0x1624] sm:$0xff]
    %v933 = vld [vmem:[#allocation2 + $0x162c] sm:$0xff]
    %v934 = vld [vmem:[#allocation2 + $0x1634] sm:$0xff]
    %v935 = vld [vmem:[#allocation2 + $0x163c] sm:$0xff]
    %v936 = vld [vmem:[#allocation2 + $0x1644] sm:$0xff]
    %v937 = vld [vmem:[#allocation2 + $0x164c] sm:$0xff]
    %v938 = vld [vmem:[#allocation2 + $0x1654] sm:$0xf]
    %v939 = vld [vmem:[#allocation2 + $0x1658] sm:$0xff]
    %v940 = vld [vmem:[#allocation2 + $0x1660] sm:$0xff]
    %v941 = vld [vmem:[#allocation2 + $0x1668] sm:$0xff]
    %v942 = vld [vmem:[#allocation2 + $0x1670] sm:$0xff]
    %v943 = vld [vmem:[#allocation2 + $0x1678] sm:$0xff]
    %v944 = vld [vmem:[#allocation2 + $0x1680] sm:$0xff]
    %v945 = vld [vmem:[#allocation2 + $0x1688] sm:$0xf]
    %v946 = vld [vmem:[#allocation2 + $0x168c] sm:$0xff]
    %v947 = vld [vmem:[#allocation2 + $0x1694] sm:$0xff]
    %v948 = vld [vmem:[#allocation2 + $0x169c] sm:$0xff]
    %v949 = vld [vmem:[#allocation2 + $0x16a4] sm:$0xff]
    %v950 = vld [vmem:[#allocation2 + $0x16ac] sm:$0xff]
    %v951 = vld [vmem:[#allocation2 + $0x16b4] sm:$0xff]
    %v952 = vld [vmem:[#allocation2 + $0x16bc] sm:$0xf]
    %v953 = vld [vmem:[#allocation4] sm:$0xff]
    %v954 = vld [vmem:[#allocation4 + $0x8] sm:$0x1f]
    %v957 = vlaneseq
    %v958 = vshrl.u32 %v957, 7
    %v959 = vsub.s32 0, %v958
    %v960 = vrot.slane %v953, %v959
    %v961 = vlaneseq
    %v962 = vshrl.u32 %v961, 7
    %v963 = vsub.s32 1, %v962
    %v964 = vrot.slane %v953, %v963
    %v965 = vlaneseq
    %v966 = vshrl.u32 %v965, 7
    %v967 = vsub.s32 2, %v966
    %v968 = vrot.slane %v953, %v967
    %v969 = vlaneseq
    %v970 = vshrl.u32 %v969, 7
    %v971 = vsub.s32 3, %v970
    %v972 = vrot.slane %v953, %v971
    %v973 = vlaneseq
    %v974 = vshrl.u32 %v973, 7
    %v975 = vsub.s32 4, %v974
    %v976 = vrot.slane %v953, %v975
    %v977 = vlaneseq
    %v978 = vshrl.u32 %v977, 7
    %v979 = vsub.s32 5, %v978
    %v980 = vrot.slane %v953, %v979
    %v981 = vlaneseq
    %v982 = vshrl.u32 %v981, 7
    %v983 = vsub.s32 6, %v982
    %v984 = vrot.slane %v953, %v983
    %v985 = vlaneseq
    %v986 = vshrl.u32 %v985, 7
    %v987 = vsub.s32 7, %v986
    %v988 = vrot.slane %v953, %v987
    %v989 = vlaneseq
    %v990 = vshrl.u32 %v989, 7
    %v991 = vsub.s32 0, %v990
    %v992 = vrot.slane %v954, %v991
    %v993 = vlaneseq
    %v994 = vshrl.u32 %v993, 7
    %v995 = vsub.s32 1, %v994
    %v996 = vrot.slane %v954, %v995
    %v997 = vlaneseq
    %v998 = vshrl.u32 %v997, 7
    %v999 = vsub.s32 2, %v998
    %v1000 = vrot.slane %v954, %v999
    %v1001 = vlaneseq
    %v1002 = vshrl.u32 %v1001, 7
    %v1003 = vsub.s32 3, %v1002
    %v1004 = vrot.slane %v954, %v1003
    %v1005 = vlaneseq
    %v1006 = vshrl.u32 %v1005, 7
    %v1007 = vsub.s32 4, %v1006
    %v1008 = vrot.slane %v954, %v1007
    %v1026 = vunpack.c.l.b16 %v165
    %v1027 = vunpack.c.h.b16 %v165
    %v1028 = vunpack.c.l.b16 %v166
    %v1029 = vunpack.c.h.b16 %v166
    %v1030 = vunpack.c.l.b16 %v167
    %v1031 = vunpack.c.h.b16 %v167
    %v1032 = vunpack.c.l.b16 %v168
    %v1033 = vpack.c.b16 %v1026, %v1026
    %v1034 = vpack.c.b16 %v1027, %v1027
    %v1035 = vpack.c.b16 %v1028, %v1028
    %v1036 = vpack.c.b16 %v1029, %v1029
    %v1037 = vpack.c.b16 %v1030, %v1030
    %v1038 = vpack.c.b16 %v1031, %v1031
    %v1039 = vpack.c.b16 %v1032, %v1032
    %v1831 = vunpack.c.l.b16 %v169
    %v1832 = vunpack.c.h.b16 %v169
    %v1833 = vunpack.c.l.b16 %v170
    %v1834 = vunpack.c.h.b16 %v170
    %v1835 = vunpack.c.l.b16 %v171
    %v1836 = vunpack.c.h.b16 %v171
    %v1837 = vunpack.c.l.b16 %v172
    %v1838 = vunpack.c.h.b16 %v172
    %v1839 = vunpack.c.l.b16 %v173
    %v1840 = vunpack.c.h.b16 %v173
    %v1841 = vunpack.c.l.b16 %v174
    %v1842 = vunpack.c.h.b16 %v174
    %v1843 = vunpack.c.l.b16 %v175
    %v1844 = vunpack.c.l.b16 %v176
    %v1845 = vunpack.c.h.b16 %v176
    %v1846 = vunpack.c.l.b16 %v177
    %v1847 = vunpack.c.h.b16 %v177
    %v1848 = vunpack.c.l.b16 %v178
    %v1849 = vunpack.c.h.b16 %v178
    %v1850 = vunpack.c.l.b16 %v179
    %v1851 = vunpack.c.h.b16 %v179
    %v1852 = vunpack.c.l.b16 %v180
    %v1853 = vunpack.c.h.b16 %v180
    %v1854 = vunpack.c.l.b16 %v181
    %v1855 = vunpack.c.h.b16 %v181
    %v1856 = vunpack.c.l.b16 %v182
    %v1857 = vunpack.c.l.b16 %v183
    %v1858 = vunpack.c.h.b16 %v183
    %v1859 = vunpack.c.l.b16 %v184
    %v1860 = vunpack.c.h.b16 %v184
    %v1861 = vunpack.c.l.b16 %v185
    %v1862 = vunpack.c.h.b16 %v185
    %v1863 = vunpack.c.l.b16 %v186
    %v1864 = vunpack.c.h.b16 %v186
    %v1865 = vunpack.c.l.b16 %v187
    %v1866 = vunpack.c.h.b16 %v187
    %v1867 = vunpack.c.l.b16 %v188
    %v1868 = vunpack.c.h.b16 %v188
    %v1869 = vunpack.c.l.b16 %v189
    %v1870 = vunpack.c.l.b16 %v190
    %v1871 = vunpack.c.h.b16 %v190
    %v1872 = vunpack.c.l.b16 %v191
    %v1873 = vunpack.c.h.b16 %v191
    %v1874 = vunpack.c.l.b16 %v192
    %v1875 = vunpack.c.h.b16 %v192
    %v1876 = vunpack.c.l.b16 %v193
    %v1877 = vunpack.c.h.b16 %v193
    %v1878 = vunpack.c.l.b16 %v194
    %v1879 = vunpack.c.h.b16 %v194
    %v1880 = vunpack.c.l.b16 %v195
    %v1881 = vunpack.c.h.b16 %v195
    %v1882 = vunpack.c.l.b16 %v196
    %v1883 = vunpack.c.l.b16 %v197
    %v1884 = vunpack.c.h.b16 %v197
    %v1885 = vunpack.c.l.b16 %v198
    %v1886 = vunpack.c.h.b16 %v198
    %v1887 = vunpack.c.l.b16 %v199
    %v1888 = vunpack.c.h.b16 %v199
    %v1889 = vunpack.c.l.b16 %v200
    %v1890 = vunpack.c.h.b16 %v200
    %v1891 = vunpack.c.l.b16 %v201
    %v1892 = vunpack.c.h.b16 %v201
    %v1893 = vunpack.c.l.b16 %v202
    %v1894 = vunpack.c.h.b16 %v202
    %v1895 = vunpack.c.l.b16 %v203
    %v1896 = vunpack.c.l.b16 %v204
    %v1897 = vunpack.c.h.b16 %v204
    %v1898 = vunpack.c.l.b16 %v205
    %v1899 = vunpack.c.h.b16 %v205
    %v1900 = vunpack.c.l.b16 %v206
    %v1901 = vunpack.c.h.b16 %v206
    %v1902 = vunpack.c.l.b16 %v207
    %v1903 = vunpack.c.h.b16 %v207
    %v1904 = vunpack.c.l.b16 %v208
    %v1905 = vunpack.c.h.b16 %v208
    %v1906 = vunpack.c.l.b16 %v209
    %v1907 = vunpack.c.h.b16 %v209
    %v1908 = vunpack.c.l.b16 %v210
    %v1909 = vunpack.c.l.b16 %v211
    %v1910 = vunpack.c.h.b16 %v211
    %v1911 = vunpack.c.l.b16 %v212
    %v1912 = vunpack.c.h.b16 %v212
    %v1913 = vunpack.c.l.b16 %v213
    %v1914 = vunpack.c.h.b16 %v213
    %v1915 = vunpack.c.l.b16 %v214
    %v1916 = vunpack.c.h.b16 %v214
    %v1917 = vunpack.c.l.b16 %v215
    %v1918 = vunpack.c.h.b16 %v215
    %v1919 = vunpack.c.l.b16 %v216
    %v1920 = vunpack.c.h.b16 %v216
    %v1921 = vunpack.c.l.b16 %v217
    %v1922 = vunpack.c.l.b16 %v218
    %v1923 = vunpack.c.h.b16 %v218
    %v1924 = vunpack.c.l.b16 %v219
    %v1925 = vunpack.c.h.b16 %v219
    %v1926 = vunpack.c.l.b16 %v220
    %v1927 = vunpack.c.h.b16 %v220
    %v1928 = vunpack.c.l.b16 %v221
    %v1929 = vunpack.c.h.b16 %v221
    %v1930 = vunpack.c.l.b16 %v222
    %v1931 = vunpack.c.h.b16 %v222
    %v1932 = vunpack.c.l.b16 %v223
    %v1933 = vunpack.c.h.b16 %v223
    %v1934 = vunpack.c.l.b16 %v224
    %v1935 = vunpack.c.l.b16 %v225
    %v1936 = vunpack.c.h.b16 %v225
    %v1937 = vunpack.c.l.b16 %v226
    %v1938 = vunpack.c.h.b16 %v226
    %v1939 = vunpack.c.l.b16 %v227
    %v1940 = vunpack.c.h.b16 %v227
    %v1941 = vunpack.c.l.b16 %v228
    %v1942 = vunpack.c.h.b16 %v228
    %v1943 = vunpack.c.l.b16 %v229
    %v1944 = vunpack.c.h.b16 %v229
    %v1945 = vunpack.c.l.b16 %v230
    %v1946 = vunpack.c.h.b16 %v230
    %v1947 = vunpack.c.l.b16 %v231
    %v1948 = vunpack.c.l.b16 %v232
    %v1949 = vunpack.c.h.b16 %v232
    %v1950 = vunpack.c.l.b16 %v233
    %v1951 = vunpack.c.h.b16 %v233
    %v1952 = vunpack.c.l.b16 %v234
    %v1953 = vunpack.c.h.b16 %v234
    %v1954 = vunpack.c.l.b16 %v235
    %v1955 = vunpack.c.h.b16 %v235
    %v1956 = vunpack.c.l.b16 %v236
    %v1957 = vunpack.c.h.b16 %v236
    %v1958 = vunpack.c.l.b16 %v237
    %v1959 = vunpack.c.h.b16 %v237
    %v1960 = vunpack.c.l.b16 %v238
    %v1961 = vunpack.c.l.b16 %v239
    %v1962 = vunpack.c.h.b16 %v239
    %v1963 = vunpack.c.l.b16 %v240
    %v1964 = vunpack.c.h.b16 %v240
    %v1965 = vunpack.c.l.b16 %v241
    %v1966 = vunpack.c.h.b16 %v241
    %v1967 = vunpack.c.l.b16 %v242
    %v1968 = vunpack.c.h.b16 %v242
    %v1969 = vunpack.c.l.b16 %v243
    %v1970 = vunpack.c.h.b16 %v243
    %v1971 = vunpack.c.l.b16 %v244
    %v1972 = vunpack.c.h.b16 %v244
    %v1973 = vunpack.c.l.b16 %v245
    %v1974 = vunpack.c.l.b16 %v246
    %v1975 = vunpack.c.h.b16 %v246
    %v1976 = vunpack.c.l.b16 %v247
    %v1977 = vunpack.c.h.b16 %v247
    %v1978 = vunpack.c.l.b16 %v248
    %v1979 = vunpack.c.h.b16 %v248
    %v1980 = vunpack.c.l.b16 %v249
    %v1981 = vunpack.c.h.b16 %v249
    %v1982 = vunpack.c.l.b16 %v250
    %v1983 = vunpack.c.h.b16 %v250
    %v1984 = vunpack.c.l.b16 %v251
    %v1985 = vunpack.c.h.b16 %v251
    %v1986 = vunpack.c.l.b16 %v252
    %v1987 = vunpack.c.l.b16 %v253
    %v1988 = vunpack.c.h.b16 %v253
    %v1989 = vunpack.c.l.b16 %v254
    %v1990 = vunpack.c.h.b16 %v254
    %v1991 = vunpack.c.l.b16 %v255
    %v1992 = vunpack.c.h.b16 %v255
    %v1993 = vunpack.c.l.b16 %v256
    %v1994 = vunpack.c.h.b16 %v256
    %v1995 = vunpack.c.l.b16 %v257
    %v1996 = vunpack.c.h.b16 %v257
    %v1997 = vunpack.c.l.b16 %v258
    %v1998 = vunpack.c.h.b16 %v258
    %v1999 = vunpack.c.l.b16 %v259
    %v2000 = vunpack.c.l.b16 %v260
    %v2001 = vunpack.c.h.b16 %v260
    %v2002 = vunpack.c.l.b16 %v261
    %v2003 = vunpack.c.h.b16 %v261
    %v2004 = vunpack.c.l.b16 %v262
    %v2005 = vunpack.c.h.b16 %v262
    %v2006 = vunpack.c.l.b16 %v263
    %v2007 = vunpack.c.h.b16 %v263
    %v2008 = vunpack.c.l.b16 %v264
    %v2009 = vunpack.c.h.b16 %v264
    %v2010 = vunpack.c.l.b16 %v265
    %v2011 = vunpack.c.h.b16 %v265
    %v2012 = vunpack.c.l.b16 %v266
    %v2013 = vunpack.c.l.b16 %v267
    %v2014 = vunpack.c.h.b16 %v267
    %v2015 = vunpack.c.l.b16 %v268
    %v2016 = vunpack.c.h.b16 %v268
    %v2017 = vunpack.c.l.b16 %v269
    %v2018 = vunpack.c.h.b16 %v269
    %v2019 = vunpack.c.l.b16 %v270
    %v2020 = vunpack.c.h.b16 %v270
    %v2021 = vunpack.c.l.b16 %v271
    %v2022 = vunpack.c.h.b16 %v271
    %v2023 = vunpack.c.l.b16 %v272
    %v2024 = vunpack.c.h.b16 %v272
    %v2025 = vunpack.c.l.b16 %v273
    %v2026 = vunpack.c.l.b16 %v274
    %v2027 = vunpack.c.h.b16 %v274
    %v2028 = vunpack.c.l.b16 %v275
    %v2029 = vunpack.c.h.b16 %v275
    %v2030 = vunpack.c.l.b16 %v276
    %v2031 = vunpack.c.h.b16 %v276
    %v2032 = vunpack.c.l.b16 %v277
    %v2033 = vunpack.c.h.b16 %v277
    %v2034 = vunpack.c.l.b16 %v278
    %v2035 = vunpack.c.h.b16 %v278
    %v2036 = vunpack.c.l.b16 %v279
    %v2037 = vunpack.c.h.b16 %v279
    %v2038 = vunpack.c.l.b16 %v280
    %v2039 = vunpack.c.l.b16 %v281
    %v2040 = vunpack.c.h.b16 %v281
    %v2041 = vunpack.c.l.b16 %v282
    %v2042 = vunpack.c.h.b16 %v282
    %v2043 = vunpack.c.l.b16 %v283
    %v2044 = vunpack.c.h.b16 %v283
    %v2045 = vunpack.c.l.b16 %v284
    %v2046 = vunpack.c.h.b16 %v284
    %v2047 = vunpack.c.l.b16 %v285
    %v2048 = vunpack.c.h.b16 %v285
    %v2049 = vunpack.c.l.b16 %v286
    %v2050 = vunpack.c.h.b16 %v286
    %v2051 = vunpack.c.l.b16 %v287
    %v2052 = vunpack.c.l.b16 %v288
    %v2053 = vunpack.c.h.b16 %v288
    %v2054 = vunpack.c.l.b16 %v289
    %v2055 = vunpack.c.h.b16 %v289
    %v2056 = vunpack.c.l.b16 %v290
    %v2057 = vunpack.c.h.b16 %v290
    %v2058 = vunpack.c.l.b16 %v291
    %v2059 = vunpack.c.h.b16 %v291
    %v2060 = vunpack.c.l.b16 %v292
    %v2061 = vunpack.c.h.b16 %v292
    %v2062 = vunpack.c.l.b16 %v293
    %v2063 = vunpack.c.h.b16 %v293
    %v2064 = vunpack.c.l.b16 %v294
    %v2065 = vunpack.c.l.b16 %v295
    %v2066 = vunpack.c.h.b16 %v295
    %v2067 = vunpack.c.l.b16 %v296
    %v2068 = vunpack.c.h.b16 %v296
    %v2069 = vunpack.c.l.b16 %v297
    %v2070 = vunpack.c.h.b16 %v297
    %v2071 = vunpack.c.l.b16 %v298
    %v2072 = vunpack.c.h.b16 %v298
    %v2073 = vunpack.c.l.b16 %v299
    %v2074 = vunpack.c.h.b16 %v299
    %v2075 = vunpack.c.l.b16 %v300
    %v2076 = vunpack.c.h.b16 %v300
    %v2077 = vunpack.c.l.b16 %v301
    %v2078 = vunpack.c.l.b16 %v302
    %v2079 = vunpack.c.h.b16 %v302
    %v2080 = vunpack.c.l.b16 %v303
    %v2081 = vunpack.c.h.b16 %v303
    %v2082 = vunpack.c.l.b16 %v304
    %v2083 = vunpack.c.h.b16 %v304
    %v2084 = vunpack.c.l.b16 %v305
    %v2085 = vunpack.c.h.b16 %v305
    %v2086 = vunpack.c.l.b16 %v306
    %v2087 = vunpack.c.h.b16 %v306
    %v2088 = vunpack.c.l.b16 %v307
    %v2089 = vunpack.c.h.b16 %v307
    %v2090 = vunpack.c.l.b16 %v308
    %v2091 = vunpack.c.l.b16 %v309
    %v2092 = vunpack.c.h.b16 %v309
    %v2093 = vunpack.c.l.b16 %v310
    %v2094 = vunpack.c.h.b16 %v310
    %v2095 = vunpack.c.l.b16 %v311
    %v2096 = vunpack.c.h.b16 %v311
    %v2097 = vunpack.c.l.b16 %v312
    %v2098 = vunpack.c.h.b16 %v312
    %v2099 = vunpack.c.l.b16 %v313
    %v2100 = vunpack.c.h.b16 %v313
    %v2101 = vunpack.c.l.b16 %v314
    %v2102 = vunpack.c.h.b16 %v314
    %v2103 = vunpack.c.l.b16 %v315
    %v2104 = vunpack.c.l.b16 %v316
    %v2105 = vunpack.c.h.b16 %v316
    %v2106 = vunpack.c.l.b16 %v317
    %v2107 = vunpack.c.h.b16 %v317
    %v2108 = vunpack.c.l.b16 %v318
    %v2109 = vunpack.c.h.b16 %v318
    %v2110 = vunpack.c.l.b16 %v319
    %v2111 = vunpack.c.h.b16 %v319
    %v2112 = vunpack.c.l.b16 %v320
    %v2113 = vunpack.c.h.b16 %v320
    %v2114 = vunpack.c.l.b16 %v321
    %v2115 = vunpack.c.h.b16 %v321
    %v2116 = vunpack.c.l.b16 %v322
    %v2117 = vunpack.c.l.b16 %v323
    %v2118 = vunpack.c.h.b16 %v323
    %v2119 = vunpack.c.l.b16 %v324
    %v2120 = vunpack.c.h.b16 %v324
    %v2121 = vunpack.c.l.b16 %v325
    %v2122 = vunpack.c.h.b16 %v325
    %v2123 = vunpack.c.l.b16 %v326
    %v2124 = vunpack.c.h.b16 %v326
    %v2125 = vunpack.c.l.b16 %v327
    %v2126 = vunpack.c.h.b16 %v327
    %v2127 = vunpack.c.l.b16 %v328
    %v2128 = vunpack.c.h.b16 %v328
    %v2129 = vunpack.c.l.b16 %v329
    %v2130 = vunpack.c.l.b16 %v330
    %v2131 = vunpack.c.h.b16 %v330
    %v2132 = vunpack.c.l.b16 %v331
    %v2133 = vunpack.c.h.b16 %v331
    %v2134 = vunpack.c.l.b16 %v332
    %v2135 = vunpack.c.h.b16 %v332
    %v2136 = vunpack.c.l.b16 %v333
    %v2137 = vunpack.c.h.b16 %v333
    %v2138 = vunpack.c.l.b16 %v334
    %v2139 = vunpack.c.h.b16 %v334
    %v2140 = vunpack.c.l.b16 %v335
    %v2141 = vunpack.c.h.b16 %v335
    %v2142 = vunpack.c.l.b16 %v336
    %v2143 = vunpack.c.l.b16 %v337
    %v2144 = vunpack.c.h.b16 %v337
    %v2145 = vunpack.c.l.b16 %v338
    %v2146 = vunpack.c.h.b16 %v338
    %v2147 = vunpack.c.l.b16 %v339
    %v2148 = vunpack.c.h.b16 %v339
    %v2149 = vunpack.c.l.b16 %v340
    %v2150 = vunpack.c.h.b16 %v340
    %v2151 = vunpack.c.l.b16 %v341
    %v2152 = vunpack.c.h.b16 %v341
    %v2153 = vunpack.c.l.b16 %v342
    %v2154 = vunpack.c.h.b16 %v342
    %v2155 = vunpack.c.l.b16 %v343
    %v2156 = vunpack.c.l.b16 %v344
    %v2157 = vunpack.c.h.b16 %v344
    %v2158 = vunpack.c.l.b16 %v345
    %v2159 = vunpack.c.h.b16 %v345
    %v2160 = vunpack.c.l.b16 %v346
    %v2161 = vunpack.c.h.b16 %v346
    %v2162 = vunpack.c.l.b16 %v347
    %v2163 = vunpack.c.h.b16 %v347
    %v2164 = vunpack.c.l.b16 %v348
    %v2165 = vunpack.c.h.b16 %v348
    %v2166 = vunpack.c.l.b16 %v349
    %v2167 = vunpack.c.h.b16 %v349
    %v2168 = vunpack.c.l.b16 %v350
    %v2169 = vunpack.c.l.b16 %v351
    %v2170 = vunpack.c.h.b16 %v351
    %v2171 = vunpack.c.l.b16 %v352
    %v2172 = vunpack.c.h.b16 %v352
    %v2173 = vunpack.c.l.b16 %v353
    %v2174 = vunpack.c.h.b16 %v353
    %v2175 = vunpack.c.l.b16 %v354
    %v2176 = vunpack.c.h.b16 %v354
    %v2177 = vunpack.c.l.b16 %v355
    %v2178 = vunpack.c.h.b16 %v355
    %v2179 = vunpack.c.l.b16 %v356
    %v2180 = vunpack.c.h.b16 %v356
    %v2181 = vunpack.c.l.b16 %v357
    %v2182 = vunpack.c.l.b16 %v358
    %v2183 = vunpack.c.h.b16 %v358
    %v2184 = vunpack.c.l.b16 %v359
    %v2185 = vunpack.c.h.b16 %v359
    %v2186 = vunpack.c.l.b16 %v360
    %v2187 = vunpack.c.h.b16 %v360
    %v2188 = vunpack.c.l.b16 %v361
    %v2189 = vunpack.c.h.b16 %v361
    %v2190 = vunpack.c.l.b16 %v362
    %v2191 = vunpack.c.h.b16 %v362
    %v2192 = vunpack.c.l.b16 %v363
    %v2193 = vunpack.c.h.b16 %v363
    %v2194 = vunpack.c.l.b16 %v364
    %v2195 = vunpack.c.l.b16 %v365
    %v2196 = vunpack.c.h.b16 %v365
    %v2197 = vunpack.c.l.b16 %v366
    %v2198 = vunpack.c.h.b16 %v366
    %v2199 = vunpack.c.l.b16 %v367
    %v2200 = vunpack.c.h.b16 %v367
    %v2201 = vunpack.c.l.b16 %v368
    %v2202 = vunpack.c.h.b16 %v368
    %v2203 = vunpack.c.l.b16 %v369
    %v2204 = vunpack.c.h.b16 %v369
    %v2205 = vunpack.c.l.b16 %v370
    %v2206 = vunpack.c.h.b16 %v370
    %v2207 = vunpack.c.l.b16 %v371
    %v2208 = vunpack.c.l.b16 %v372
    %v2209 = vunpack.c.h.b16 %v372
    %v2210 = vunpack.c.l.b16 %v373
    %v2211 = vunpack.c.h.b16 %v373
    %v2212 = vunpack.c.l.b16 %v374
    %v2213 = vunpack.c.h.b16 %v374
    %v2214 = vunpack.c.l.b16 %v375
    %v2215 = vunpack.c.h.b16 %v375
    %v2216 = vunpack.c.l.b16 %v376
    %v2217 = vunpack.c.h.b16 %v376
    %v2218 = vunpack.c.l.b16 %v377
    %v2219 = vunpack.c.h.b16 %v377
    %v2220 = vunpack.c.l.b16 %v378
    %v2221 = vunpack.c.l.b16 %v379
    %v2222 = vunpack.c.h.b16 %v379
    %v2223 = vunpack.c.l.b16 %v380
    %v2224 = vunpack.c.h.b16 %v380
    %v2225 = vunpack.c.l.b16 %v381
    %v2226 = vunpack.c.h.b16 %v381
    %v2227 = vunpack.c.l.b16 %v382
    %v2228 = vunpack.c.h.b16 %v382
    %v2229 = vunpack.c.l.b16 %v383
    %v2230 = vunpack.c.h.b16 %v383
    %v2231 = vunpack.c.l.b16 %v384
    %v2232 = vunpack.c.h.b16 %v384
    %v2233 = vunpack.c.l.b16 %v385
    %v2234 = vunpack.c.l.b16 %v386
    %v2235 = vunpack.c.h.b16 %v386
    %v2236 = vunpack.c.l.b16 %v387
    %v2237 = vunpack.c.h.b16 %v387
    %v2238 = vunpack.c.l.b16 %v388
    %v2239 = vunpack.c.h.b16 %v388
    %v2240 = vunpack.c.l.b16 %v389
    %v2241 = vunpack.c.h.b16 %v389
    %v2242 = vunpack.c.l.b16 %v390
    %v2243 = vunpack.c.h.b16 %v390
    %v2244 = vunpack.c.l.b16 %v391
    %v2245 = vunpack.c.h.b16 %v391
    %v2246 = vunpack.c.l.b16 %v392
    %v2247 = vunpack.c.l.b16 %v393
    %v2248 = vunpack.c.h.b16 %v393
    %v2249 = vunpack.c.l.b16 %v394
    %v2250 = vunpack.c.h.b16 %v394
    %v2251 = vunpack.c.l.b16 %v395
    %v2252 = vunpack.c.h.b16 %v395
    %v2253 = vunpack.c.l.b16 %v396
    %v2254 = vunpack.c.h.b16 %v396
    %v2255 = vunpack.c.l.b16 %v397
    %v2256 = vunpack.c.h.b16 %v397
    %v2257 = vunpack.c.l.b16 %v398
    %v2258 = vunpack.c.h.b16 %v398
    %v2259 = vunpack.c.l.b16 %v399
    %v2260 = vunpack.c.l.b16 %v400
    %v2261 = vunpack.c.h.b16 %v400
    %v2262 = vunpack.c.l.b16 %v401
    %v2263 = vunpack.c.h.b16 %v401
    %v2264 = vunpack.c.l.b16 %v402
    %v2265 = vunpack.c.h.b16 %v402
    %v2266 = vunpack.c.l.b16 %v403
    %v2267 = vunpack.c.h.b16 %v403
    %v2268 = vunpack.c.l.b16 %v404
    %v2269 = vunpack.c.h.b16 %v404
    %v2270 = vunpack.c.l.b16 %v405
    %v2271 = vunpack.c.h.b16 %v405
    %v2272 = vunpack.c.l.b16 %v406
    %v2273 = vunpack.c.l.b16 %v407
    %v2274 = vunpack.c.h.b16 %v407
    %v2275 = vunpack.c.l.b16 %v408
    %v2276 = vunpack.c.h.b16 %v408
    %v2277 = vunpack.c.l.b16 %v409
    %v2278 = vunpack.c.h.b16 %v409
    %v2279 = vunpack.c.l.b16 %v410
    %v2280 = vunpack.c.h.b16 %v410
    %v2281 = vunpack.c.l.b16 %v411
    %v2282 = vunpack.c.h.b16 %v411
    %v2283 = vunpack.c.l.b16 %v412
    %v2284 = vunpack.c.h.b16 %v412
    %v2285 = vunpack.c.l.b16 %v413
    %v2286 = vunpack.c.l.b16 %v414
    %v2287 = vunpack.c.h.b16 %v414
    %v2288 = vunpack.c.l.b16 %v415
    %v2289 = vunpack.c.h.b16 %v415
    %v2290 = vunpack.c.l.b16 %v416
    %v2291 = vunpack.c.h.b16 %v416
    %v2292 = vunpack.c.l.b16 %v417
    %v2293 = vunpack.c.h.b16 %v417
    %v2294 = vunpack.c.l.b16 %v418
    %v2295 = vunpack.c.h.b16 %v418
    %v2296 = vunpack.c.l.b16 %v419
    %v2297 = vunpack.c.h.b16 %v419
    %v2298 = vunpack.c.l.b16 %v420
    %v2299 = vunpack.c.l.b16 %v421
    %v2300 = vunpack.c.h.b16 %v421
    %v2301 = vunpack.c.l.b16 %v422
    %v2302 = vunpack.c.h.b16 %v422
    %v2303 = vunpack.c.l.b16 %v423
    %v2304 = vunpack.c.h.b16 %v423
    %v2305 = vunpack.c.l.b16 %v424
    %v2306 = vunpack.c.h.b16 %v424
    %v2307 = vunpack.c.l.b16 %v425
    %v2308 = vunpack.c.h.b16 %v425
    %v2309 = vunpack.c.l.b16 %v426
    %v2310 = vunpack.c.h.b16 %v426
    %v2311 = vunpack.c.l.b16 %v427
    %v2312 = vunpack.c.l.b16 %v428
    %v2313 = vunpack.c.h.b16 %v428
    %v2314 = vunpack.c.l.b16 %v429
    %v2315 = vunpack.c.h.b16 %v429
    %v2316 = vunpack.c.l.b16 %v430
    %v2317 = vunpack.c.h.b16 %v430
    %v2318 = vunpack.c.l.b16 %v431
    %v2319 = vunpack.c.h.b16 %v431
    %v2320 = vunpack.c.l.b16 %v432
    %v2321 = vunpack.c.h.b16 %v432
    %v2322 = vunpack.c.l.b16 %v433
    %v2323 = vunpack.c.h.b16 %v433
    %v2324 = vunpack.c.l.b16 %v434
    %v2325 = vunpack.c.l.b16 %v435
    %v2326 = vunpack.c.h.b16 %v435
    %v2327 = vunpack.c.l.b16 %v436
    %v2328 = vunpack.c.h.b16 %v436
    %v2329 = vunpack.c.l.b16 %v437
    %v2330 = vunpack.c.h.b16 %v437
    %v2331 = vunpack.c.l.b16 %v438
    %v2332 = vunpack.c.h.b16 %v438
    %v2333 = vunpack.c.l.b16 %v439
    %v2334 = vunpack.c.h.b16 %v439
    %v2335 = vunpack.c.l.b16 %v440
    %v2336 = vunpack.c.h.b16 %v440
    %v2337 = vunpack.c.l.b16 %v441
    %v2338 = vunpack.c.l.b16 %v442
    %v2339 = vunpack.c.h.b16 %v442
    %v2340 = vunpack.c.l.b16 %v443
    %v2341 = vunpack.c.h.b16 %v443
    %v2342 = vunpack.c.l.b16 %v444
    %v2343 = vunpack.c.h.b16 %v444
    %v2344 = vunpack.c.l.b16 %v445
    %v2345 = vunpack.c.h.b16 %v445
    %v2346 = vunpack.c.l.b16 %v446
    %v2347 = vunpack.c.h.b16 %v446
    %v2348 = vunpack.c.l.b16 %v447
    %v2349 = vunpack.c.h.b16 %v447
    %v2350 = vunpack.c.l.b16 %v448
    %v2351 = vunpack.c.l.b16 %v449
    %v2352 = vunpack.c.h.b16 %v449
    %v2353 = vunpack.c.l.b16 %v450
    %v2354 = vunpack.c.h.b16 %v450
    %v2355 = vunpack.c.l.b16 %v451
    %v2356 = vunpack.c.h.b16 %v451
    %v2357 = vunpack.c.l.b16 %v452
    %v2358 = vunpack.c.h.b16 %v452
    %v2359 = vunpack.c.l.b16 %v453
    %v2360 = vunpack.c.h.b16 %v453
    %v2361 = vunpack.c.l.b16 %v454
    %v2362 = vunpack.c.h.b16 %v454
    %v2363 = vunpack.c.l.b16 %v455
    %v2364 = vunpack.c.l.b16 %v456
    %v2365 = vunpack.c.h.b16 %v456
    %v2366 = vunpack.c.l.b16 %v457
    %v2367 = vunpack.c.h.b16 %v457
    %v2368 = vunpack.c.l.b16 %v458
    %v2369 = vunpack.c.h.b16 %v458
    %v2370 = vunpack.c.l.b16 %v459
    %v2371 = vunpack.c.h.b16 %v459
    %v2372 = vunpack.c.l.b16 %v460
    %v2373 = vunpack.c.h.b16 %v460
    %v2374 = vunpack.c.l.b16 %v461
    %v2375 = vunpack.c.h.b16 %v461
    %v2376 = vunpack.c.l.b16 %v462
    %v2377 = vunpack.c.l.b16 %v463
    %v2378 = vunpack.c.h.b16 %v463
    %v2379 = vunpack.c.l.b16 %v464
    %v2380 = vunpack.c.h.b16 %v464
    %v2381 = vunpack.c.l.b16 %v465
    %v2382 = vunpack.c.h.b16 %v465
    %v2383 = vunpack.c.l.b16 %v466
    %v2384 = vunpack.c.h.b16 %v466
    %v2385 = vunpack.c.l.b16 %v467
    %v2386 = vunpack.c.h.b16 %v467
    %v2387 = vunpack.c.l.b16 %v468
    %v2388 = vunpack.c.h.b16 %v468
    %v2389 = vunpack.c.l.b16 %v469
    %v2390 = vunpack.c.l.b16 %v470
    %v2391 = vunpack.c.h.b16 %v470
    %v2392 = vunpack.c.l.b16 %v471
    %v2393 = vunpack.c.h.b16 %v471
    %v2394 = vunpack.c.l.b16 %v472
    %v2395 = vunpack.c.h.b16 %v472
    %v2396 = vunpack.c.l.b16 %v473
    %v2397 = vunpack.c.h.b16 %v473
    %v2398 = vunpack.c.l.b16 %v474
    %v2399 = vunpack.c.h.b16 %v474
    %v2400 = vunpack.c.l.b16 %v475
    %v2401 = vunpack.c.h.b16 %v475
    %v2402 = vunpack.c.l.b16 %v476
    %v2403 = vunpack.c.l.b16 %v477
    %v2404 = vunpack.c.h.b16 %v477
    %v2405 = vunpack.c.l.b16 %v478
    %v2406 = vunpack.c.h.b16 %v478
    %v2407 = vunpack.c.l.b16 %v479
    %v2408 = vunpack.c.h.b16 %v479
    %v2409 = vunpack.c.l.b16 %v480
    %v2410 = vunpack.c.h.b16 %v480
    %v2411 = vunpack.c.l.b16 %v481
    %v2412 = vunpack.c.h.b16 %v481
    %v2413 = vunpack.c.l.b16 %v482
    %v2414 = vunpack.c.h.b16 %v482
    %v2415 = vunpack.c.l.b16 %v483
    %v2416 = vunpack.c.l.b16 %v484
    %v2417 = vunpack.c.h.b16 %v484
    %v2418 = vunpack.c.l.b16 %v485
    %v2419 = vunpack.c.h.b16 %v485
    %v2420 = vunpack.c.l.b16 %v486
    %v2421 = vunpack.c.h.b16 %v486
    %v2422 = vunpack.c.l.b16 %v487
    %v2423 = vunpack.c.h.b16 %v487
    %v2424 = vunpack.c.l.b16 %v488
    %v2425 = vunpack.c.h.b16 %v488
    %v2426 = vunpack.c.l.b16 %v489
    %v2427 = vunpack.c.h.b16 %v489
    %v2428 = vunpack.c.l.b16 %v490
    %v2429 = vunpack.c.l.b16 %v491
    %v2430 = vunpack.c.h.b16 %v491
    %v2431 = vunpack.c.l.b16 %v492
    %v2432 = vunpack.c.h.b16 %v492
    %v2433 = vunpack.c.l.b16 %v493
    %v2434 = vunpack.c.h.b16 %v493
    %v2435 = vunpack.c.l.b16 %v494
    %v2436 = vunpack.c.h.b16 %v494
    %v2437 = vunpack.c.l.b16 %v495
    %v2438 = vunpack.c.h.b16 %v495
    %v2439 = vunpack.c.l.b16 %v496
    %v2440 = vunpack.c.h.b16 %v496
    %v2441 = vunpack.c.l.b16 %v497
    %v2442 = vunpack.c.l.b16 %v498
    %v2443 = vunpack.c.h.b16 %v498
    %v2444 = vunpack.c.l.b16 %v499
    %v2445 = vunpack.c.h.b16 %v499
    %v2446 = vunpack.c.l.b16 %v500
    %v2447 = vunpack.c.h.b16 %v500
    %v2448 = vunpack.c.l.b16 %v501
    %v2449 = vunpack.c.h.b16 %v501
    %v2450 = vunpack.c.l.b16 %v502
    %v2451 = vunpack.c.h.b16 %v502
    %v2452 = vunpack.c.l.b16 %v503
    %v2453 = vunpack.c.h.b16 %v503
    %v2454 = vunpack.c.l.b16 %v504
    %v2455 = vunpack.c.l.b16 %v505
    %v2456 = vunpack.c.h.b16 %v505
    %v2457 = vunpack.c.l.b16 %v506
    %v2458 = vunpack.c.h.b16 %v506
    %v2459 = vunpack.c.l.b16 %v507
    %v2460 = vunpack.c.h.b16 %v507
    %v2461 = vunpack.c.l.b16 %v508
    %v2462 = vunpack.c.h.b16 %v508
    %v2463 = vunpack.c.l.b16 %v509
    %v2464 = vunpack.c.h.b16 %v509
    %v2465 = vunpack.c.l.b16 %v510
    %v2466 = vunpack.c.h.b16 %v510
    %v2467 = vunpack.c.l.b16 %v511
    %v2468 = vunpack.c.l.b16 %v512
    %v2469 = vunpack.c.h.b16 %v512
    %v2470 = vunpack.c.l.b16 %v513
    %v2471 = vunpack.c.h.b16 %v513
    %v2472 = vunpack.c.l.b16 %v514
    %v2473 = vunpack.c.h.b16 %v514
    %v2474 = vunpack.c.l.b16 %v515
    %v2475 = vunpack.c.h.b16 %v515
    %v2476 = vunpack.c.l.b16 %v516
    %v2477 = vunpack.c.h.b16 %v516
    %v2478 = vunpack.c.l.b16 %v517
    %v2479 = vunpack.c.h.b16 %v517
    %v2480 = vunpack.c.l.b16 %v518
    %v2481 = vunpack.c.l.b16 %v519
    %v2482 = vunpack.c.h.b16 %v519
    %v2483 = vunpack.c.l.b16 %v520
    %v2484 = vunpack.c.h.b16 %v520
    %v2485 = vunpack.c.l.b16 %v521
    %v2486 = vunpack.c.h.b16 %v521
    %v2487 = vunpack.c.l.b16 %v522
    %v2488 = vunpack.c.h.b16 %v522
    %v2489 = vunpack.c.l.b16 %v523
    %v2490 = vunpack.c.h.b16 %v523
    %v2491 = vunpack.c.l.b16 %v524
    %v2492 = vunpack.c.h.b16 %v524
    %v2493 = vunpack.c.l.b16 %v525
    %v2494 = vunpack.c.l.b16 %v526
    %v2495 = vunpack.c.h.b16 %v526
    %v2496 = vunpack.c.l.b16 %v527
    %v2497 = vunpack.c.h.b16 %v527
    %v2498 = vunpack.c.l.b16 %v528
    %v2499 = vunpack.c.h.b16 %v528
    %v2500 = vunpack.c.l.b16 %v529
    %v2501 = vunpack.c.h.b16 %v529
    %v2502 = vunpack.c.l.b16 %v530
    %v2503 = vunpack.c.h.b16 %v530
    %v2504 = vunpack.c.l.b16 %v531
    %v2505 = vunpack.c.h.b16 %v531
    %v2506 = vunpack.c.l.b16 %v532
    %v2507 = vunpack.c.l.b16 %v533
    %v2508 = vunpack.c.h.b16 %v533
    %v2509 = vunpack.c.l.b16 %v534
    %v2510 = vunpack.c.h.b16 %v534
    %v2511 = vunpack.c.l.b16 %v535
    %v2512 = vunpack.c.h.b16 %v535
    %v2513 = vunpack.c.l.b16 %v536
    %v2514 = vunpack.c.h.b16 %v536
    %v2515 = vunpack.c.l.b16 %v537
    %v2516 = vunpack.c.h.b16 %v537
    %v2517 = vunpack.c.l.b16 %v538
    %v2518 = vunpack.c.h.b16 %v538
    %v2519 = vunpack.c.l.b16 %v539
    %v2520 = vunpack.c.l.b16 %v540
    %v2521 = vunpack.c.h.b16 %v540
    %v2522 = vunpack.c.l.b16 %v541
    %v2523 = vunpack.c.h.b16 %v541
    %v2524 = vunpack.c.l.b16 %v542
    %v2525 = vunpack.c.h.b16 %v542
    %v2526 = vunpack.c.l.b16 %v543
    %v2527 = vunpack.c.h.b16 %v543
    %v2528 = vunpack.c.l.b16 %v544
    %v2529 = vunpack.c.h.b16 %v544
    %v2530 = vunpack.c.l.b16 %v545
    %v2531 = vunpack.c.h.b16 %v545
    %v2532 = vunpack.c.l.b16 %v546
    %v2533 = vunpack.c.l.b16 %v547
    %v2534 = vunpack.c.h.b16 %v547
    %v2535 = vunpack.c.l.b16 %v548
    %v2536 = vunpack.c.h.b16 %v548
    %v2537 = vunpack.c.l.b16 %v549
    %v2538 = vunpack.c.h.b16 %v549
    %v2539 = vunpack.c.l.b16 %v550
    %v2540 = vunpack.c.h.b16 %v550
    %v2541 = vunpack.c.l.b16 %v551
    %v2542 = vunpack.c.h.b16 %v551
    %v2543 = vunpack.c.l.b16 %v552
    %v2544 = vunpack.c.h.b16 %v552
    %v2545 = vunpack.c.l.b16 %v553
    %v2546 = vunpack.c.l.b16 %v554
    %v2547 = vunpack.c.h.b16 %v554
    %v2548 = vunpack.c.l.b16 %v555
    %v2549 = vunpack.c.h.b16 %v555
    %v2550 = vunpack.c.l.b16 %v556
    %v2551 = vunpack.c.h.b16 %v556
    %v2552 = vunpack.c.l.b16 %v557
    %v2553 = vunpack.c.h.b16 %v557
    %v2554 = vunpack.c.l.b16 %v558
    %v2555 = vunpack.c.h.b16 %v558
    %v2556 = vunpack.c.l.b16 %v559
    %v2557 = vunpack.c.h.b16 %v559
    %v2558 = vunpack.c.l.b16 %v560
    %v2559 = vunpack.c.l.b16 %v561
    %v2560 = vunpack.c.h.b16 %v561
    %v2561 = vunpack.c.l.b16 %v562
    %v2562 = vunpack.c.h.b16 %v562
    %v2563 = vunpack.c.l.b16 %v563
    %v2564 = vunpack.c.h.b16 %v563
    %v2565 = vunpack.c.l.b16 %v564
    %v2566 = vunpack.c.h.b16 %v564
    %v2567 = vunpack.c.l.b16 %v565
    %v2568 = vunpack.c.h.b16 %v565
    %v2569 = vunpack.c.l.b16 %v566
    %v2570 = vunpack.c.h.b16 %v566
    %v2571 = vunpack.c.l.b16 %v567
    %v2572 = vunpack.c.l.b16 %v568
    %v2573 = vunpack.c.h.b16 %v568
    %v2574 = vunpack.c.l.b16 %v569
    %v2575 = vunpack.c.h.b16 %v569
    %v2576 = vunpack.c.l.b16 %v570
    %v2577 = vunpack.c.h.b16 %v570
    %v2578 = vunpack.c.l.b16 %v571
    %v2579 = vunpack.c.h.b16 %v571
    %v2580 = vunpack.c.l.b16 %v572
    %v2581 = vunpack.c.h.b16 %v572
    %v2582 = vunpack.c.l.b16 %v573
    %v2583 = vunpack.c.h.b16 %v573
    %v2584 = vunpack.c.l.b16 %v574
    %v2585 = vunpack.c.l.b16 %v575
    %v2586 = vunpack.c.h.b16 %v575
    %v2587 = vunpack.c.l.b16 %v576
    %v2588 = vunpack.c.h.b16 %v576
    %v2589 = vunpack.c.l.b16 %v577
    %v2590 = vunpack.c.h.b16 %v577
    %v2591 = vunpack.c.l.b16 %v578
    %v2592 = vunpack.c.h.b16 %v578
    %v2593 = vunpack.c.l.b16 %v579
    %v2594 = vunpack.c.h.b16 %v579
    %v2595 = vunpack.c.l.b16 %v580
    %v2596 = vunpack.c.h.b16 %v580
    %v2597 = vunpack.c.l.b16 %v581
    %v2598 = vunpack.c.l.b16 %v582
    %v2599 = vunpack.c.h.b16 %v582
    %v2600 = vunpack.c.l.b16 %v583
    %v2601 = vunpack.c.h.b16 %v583
    %v2602 = vunpack.c.l.b16 %v584
    %v2603 = vunpack.c.h.b16 %v584
    %v2604 = vunpack.c.l.b16 %v585
    %v2605 = vunpack.c.h.b16 %v585
    %v2606 = vunpack.c.l.b16 %v586
    %v2607 = vunpack.c.h.b16 %v586
    %v2608 = vunpack.c.l.b16 %v587
    %v2609 = vunpack.c.h.b16 %v587
    %v2610 = vunpack.c.l.b16 %v588
    %v2611 = vunpack.c.l.b16 %v589
    %v2612 = vunpack.c.h.b16 %v589
    %v2613 = vunpack.c.l.b16 %v590
    %v2614 = vunpack.c.h.b16 %v590
    %v2615 = vunpack.c.l.b16 %v591
    %v2616 = vunpack.c.h.b16 %v591
    %v2617 = vunpack.c.l.b16 %v592
    %v2618 = vunpack.c.h.b16 %v592
    %v2619 = vunpack.c.l.b16 %v593
    %v2620 = vunpack.c.h.b16 %v593
    %v2621 = vunpack.c.l.b16 %v594
    %v2622 = vunpack.c.h.b16 %v594
    %v2623 = vunpack.c.l.b16 %v595
    %v2624 = vunpack.c.l.b16 %v596
    %v2625 = vunpack.c.h.b16 %v596
    %v2626 = vunpack.c.l.b16 %v597
    %v2627 = vunpack.c.h.b16 %v597
    %v2628 = vunpack.c.l.b16 %v598
    %v2629 = vunpack.c.h.b16 %v598
    %v2630 = vunpack.c.l.b16 %v599
    %v2631 = vunpack.c.h.b16 %v599
    %v2632 = vunpack.c.l.b16 %v600
    %v2633 = vunpack.c.h.b16 %v600
    %v2634 = vunpack.c.l.b16 %v601
    %v2635 = vunpack.c.h.b16 %v601
    %v2636 = vunpack.c.l.b16 %v602
    %v2637 = vunpack.c.l.b16 %v603
    %v2638 = vunpack.c.h.b16 %v603
    %v2639 = vunpack.c.l.b16 %v604
    %v2640 = vunpack.c.h.b16 %v604
    %v2641 = vunpack.c.l.b16 %v605
    %v2642 = vunpack.c.h.b16 %v605
    %v2643 = vunpack.c.l.b16 %v606
    %v2644 = vunpack.c.h.b16 %v606
    %v2645 = vunpack.c.l.b16 %v607
    %v2646 = vunpack.c.h.b16 %v607
    %v2647 = vunpack.c.l.b16 %v608
    %v2648 = vunpack.c.h.b16 %v608
    %v2649 = vunpack.c.l.b16 %v609
    %v2650 = vunpack.c.l.b16 %v610
    %v2651 = vunpack.c.h.b16 %v610
    %v2652 = vunpack.c.l.b16 %v611
    %v2653 = vunpack.c.h.b16 %v611
    %v2654 = vunpack.c.l.b16 %v612
    %v2655 = vunpack.c.h.b16 %v612
    %v2656 = vunpack.c.l.b16 %v613
    %v2657 = vunpack.c.h.b16 %v613
    %v2658 = vunpack.c.l.b16 %v614
    %v2659 = vunpack.c.h.b16 %v614
    %v2660 = vunpack.c.l.b16 %v615
    %v2661 = vunpack.c.h.b16 %v615
    %v2662 = vunpack.c.l.b16 %v616
    %v2663 = vunpack.c.l.b16 %v617
    %v2664 = vunpack.c.h.b16 %v617
    %v2665 = vunpack.c.l.b16 %v618
    %v2666 = vunpack.c.h.b16 %v618
    %v2667 = vunpack.c.l.b16 %v619
    %v2668 = vunpack.c.h.b16 %v619
    %v2669 = vunpack.c.l.b16 %v620
    %v2670 = vunpack.c.h.b16 %v620
    %v2671 = vunpack.c.l.b16 %v621
    %v2672 = vunpack.c.h.b16 %v621
    %v2673 = vunpack.c.l.b16 %v622
    %v2674 = vunpack.c.h.b16 %v622
    %v2675 = vunpack.c.l.b16 %v623
    %v2676 = vunpack.c.l.b16 %v624
    %v2677 = vunpack.c.h.b16 %v624
    %v2678 = vunpack.c.l.b16 %v625
    %v2679 = vunpack.c.h.b16 %v625
    %v2680 = vunpack.c.l.b16 %v626
    %v2681 = vunpack.c.h.b16 %v626
    %v2682 = vunpack.c.l.b16 %v627
    %v2683 = vunpack.c.h.b16 %v627
    %v2684 = vunpack.c.l.b16 %v628
    %v2685 = vunpack.c.h.b16 %v628
    %v2686 = vunpack.c.l.b16 %v629
    %v2687 = vunpack.c.h.b16 %v629
    %v2688 = vunpack.c.l.b16 %v630
    %v2689 = vunpack.c.l.b16 %v631
    %v2690 = vunpack.c.h.b16 %v631
    %v2691 = vunpack.c.l.b16 %v632
    %v2692 = vunpack.c.h.b16 %v632
    %v2693 = vunpack.c.l.b16 %v633
    %v2694 = vunpack.c.h.b16 %v633
    %v2695 = vunpack.c.l.b16 %v634
    %v2696 = vunpack.c.h.b16 %v634
    %v2697 = vunpack.c.l.b16 %v635
    %v2698 = vunpack.c.h.b16 %v635
    %v2699 = vunpack.c.l.b16 %v636
    %v2700 = vunpack.c.h.b16 %v636
    %v2701 = vunpack.c.l.b16 %v637
    %v2702 = vunpack.c.l.b16 %v638
    %v2703 = vunpack.c.h.b16 %v638
    %v2704 = vunpack.c.l.b16 %v639
    %v2705 = vunpack.c.h.b16 %v639
    %v2706 = vunpack.c.l.b16 %v640
    %v2707 = vunpack.c.h.b16 %v640
    %v2708 = vunpack.c.l.b16 %v641
    %v2709 = vunpack.c.h.b16 %v641
    %v2710 = vunpack.c.l.b16 %v642
    %v2711 = vunpack.c.h.b16 %v642
    %v2712 = vunpack.c.l.b16 %v643
    %v2713 = vunpack.c.h.b16 %v643
    %v2714 = vunpack.c.l.b16 %v644
    %v2715 = vunpack.c.l.b16 %v645
    %v2716 = vunpack.c.h.b16 %v645
    %v2717 = vunpack.c.l.b16 %v646
    %v2718 = vunpack.c.h.b16 %v646
    %v2719 = vunpack.c.l.b16 %v647
    %v2720 = vunpack.c.h.b16 %v647
    %v2721 = vunpack.c.l.b16 %v648
    %v2722 = vunpack.c.h.b16 %v648
    %v2723 = vunpack.c.l.b16 %v649
    %v2724 = vunpack.c.h.b16 %v649
    %v2725 = vunpack.c.l.b16 %v650
    %v2726 = vunpack.c.h.b16 %v650
    %v2727 = vunpack.c.l.b16 %v651
    %v2728 = vunpack.c.l.b16 %v652
    %v2729 = vunpack.c.h.b16 %v652
    %v2730 = vunpack.c.l.b16 %v653
    %v2731 = vunpack.c.h.b16 %v653
    %v2732 = vunpack.c.l.b16 %v654
    %v2733 = vunpack.c.h.b16 %v654
    %v2734 = vunpack.c.l.b16 %v655
    %v2735 = vunpack.c.h.b16 %v655
    %v2736 = vunpack.c.l.b16 %v656
    %v2737 = vunpack.c.h.b16 %v656
    %v2738 = vunpack.c.l.b16 %v657
    %v2739 = vunpack.c.h.b16 %v657
    %v2740 = vunpack.c.l.b16 %v658
    %v2741 = vunpack.c.l.b16 %v659
    %v2742 = vunpack.c.h.b16 %v659
    %v2743 = vunpack.c.l.b16 %v660
    %v2744 = vunpack.c.h.b16 %v660
    %v2745 = vunpack.c.l.b16 %v661
    %v2746 = vunpack.c.h.b16 %v661
    %v2747 = vunpack.c.l.b16 %v662
    %v2748 = vunpack.c.h.b16 %v662
    %v2749 = vunpack.c.l.b16 %v663
    %v2750 = vunpack.c.h.b16 %v663
    %v2751 = vunpack.c.l.b16 %v664
    %v2752 = vunpack.c.h.b16 %v664
    %v2753 = vunpack.c.l.b16 %v665
    %v2754 = vunpack.c.l.b16 %v666
    %v2755 = vunpack.c.h.b16 %v666
    %v2756 = vunpack.c.l.b16 %v667
    %v2757 = vunpack.c.h.b16 %v667
    %v2758 = vunpack.c.l.b16 %v668
    %v2759 = vunpack.c.h.b16 %v668
    %v2760 = vunpack.c.l.b16 %v669
    %v2761 = vunpack.c.h.b16 %v669
    %v2762 = vunpack.c.l.b16 %v670
    %v2763 = vunpack.c.h.b16 %v670
    %v2764 = vunpack.c.l.b16 %v671
    %v2765 = vunpack.c.h.b16 %v671
    %v2766 = vunpack.c.l.b16 %v672
    %v2767 = vunpack.c.l.b16 %v673
    %v2768 = vunpack.c.h.b16 %v673
    %v2769 = vunpack.c.l.b16 %v674
    %v2770 = vunpack.c.h.b16 %v674
    %v2771 = vunpack.c.l.b16 %v675
    %v2772 = vunpack.c.h.b16 %v675
    %v2773 = vunpack.c.l.b16 %v676
    %v2774 = vunpack.c.h.b16 %v676
    %v2775 = vunpack.c.l.b16 %v677
    %v2776 = vunpack.c.h.b16 %v677
    %v2777 = vunpack.c.l.b16 %v678
    %v2778 = vunpack.c.h.b16 %v678
    %v2779 = vunpack.c.l.b16 %v679
    %v2780 = vunpack.c.l.b16 %v680
    %v2781 = vunpack.c.h.b16 %v680
    %v2782 = vunpack.c.l.b16 %v681
    %v2783 = vunpack.c.h.b16 %v681
    %v2784 = vunpack.c.l.b16 %v682
    %v2785 = vunpack.c.h.b16 %v682
    %v2786 = vunpack.c.l.b16 %v683
    %v2787 = vunpack.c.h.b16 %v683
    %v2788 = vunpack.c.l.b16 %v684
    %v2789 = vunpack.c.h.b16 %v684
    %v2790 = vunpack.c.l.b16 %v685
    %v2791 = vunpack.c.h.b16 %v685
    %v2792 = vunpack.c.l.b16 %v686
    %v2793 = vunpack.c.l.b16 %v687
    %v2794 = vunpack.c.h.b16 %v687
    %v2795 = vunpack.c.l.b16 %v688
    %v2796 = vunpack.c.h.b16 %v688
    %v2797 = vunpack.c.l.b16 %v689
    %v2798 = vunpack.c.h.b16 %v689
    %v2799 = vunpack.c.l.b16 %v690
    %v2800 = vunpack.c.h.b16 %v690
    %v2801 = vunpack.c.l.b16 %v691
    %v2802 = vunpack.c.h.b16 %v691
    %v2803 = vunpack.c.l.b16 %v692
    %v2804 = vunpack.c.h.b16 %v692
    %v2805 = vunpack.c.l.b16 %v693
    %v2806 = vunpack.c.l.b16 %v694
    %v2807 = vunpack.c.h.b16 %v694
    %v2808 = vunpack.c.l.b16 %v695
    %v2809 = vunpack.c.h.b16 %v695
    %v2810 = vunpack.c.l.b16 %v696
    %v2811 = vunpack.c.h.b16 %v696
    %v2812 = vunpack.c.l.b16 %v697
    %v2813 = vunpack.c.h.b16 %v697
    %v2814 = vunpack.c.l.b16 %v698
    %v2815 = vunpack.c.h.b16 %v698
    %v2816 = vunpack.c.l.b16 %v699
    %v2817 = vunpack.c.h.b16 %v699
    %v2818 = vunpack.c.l.b16 %v700
    %v2819 = vunpack.c.l.b16 %v701
    %v2820 = vunpack.c.h.b16 %v701
    %v2821 = vunpack.c.l.b16 %v702
    %v2822 = vunpack.c.h.b16 %v702
    %v2823 = vunpack.c.l.b16 %v703
    %v2824 = vunpack.c.h.b16 %v703
    %v2825 = vunpack.c.l.b16 %v704
    %v2826 = vunpack.c.h.b16 %v704
    %v2827 = vunpack.c.l.b16 %v705
    %v2828 = vunpack.c.h.b16 %v705
    %v2829 = vunpack.c.l.b16 %v706
    %v2830 = vunpack.c.h.b16 %v706
    %v2831 = vunpack.c.l.b16 %v707
    %v2832 = vunpack.c.l.b16 %v708
    %v2833 = vunpack.c.h.b16 %v708
    %v2834 = vunpack.c.l.b16 %v709
    %v2835 = vunpack.c.h.b16 %v709
    %v2836 = vunpack.c.l.b16 %v710
    %v2837 = vunpack.c.h.b16 %v710
    %v2838 = vunpack.c.l.b16 %v711
    %v2839 = vunpack.c.h.b16 %v711
    %v2840 = vunpack.c.l.b16 %v712
    %v2841 = vunpack.c.h.b16 %v712
    %v2842 = vunpack.c.l.b16 %v713
    %v2843 = vunpack.c.h.b16 %v713
    %v2844 = vunpack.c.l.b16 %v714
    %v2845 = vunpack.c.l.b16 %v715
    %v2846 = vunpack.c.h.b16 %v715
    %v2847 = vunpack.c.l.b16 %v716
    %v2848 = vunpack.c.h.b16 %v716
    %v2849 = vunpack.c.l.b16 %v717
    %v2850 = vunpack.c.h.b16 %v717
    %v2851 = vunpack.c.l.b16 %v718
    %v2852 = vunpack.c.h.b16 %v718
    %v2853 = vunpack.c.l.b16 %v719
    %v2854 = vunpack.c.h.b16 %v719
    %v2855 = vunpack.c.l.b16 %v720
    %v2856 = vunpack.c.h.b16 %v720
    %v2857 = vunpack.c.l.b16 %v721
    %v2858 = vunpack.c.l.b16 %v722
    %v2859 = vunpack.c.h.b16 %v722
    %v2860 = vunpack.c.l.b16 %v723
    %v2861 = vunpack.c.h.b16 %v723
    %v2862 = vunpack.c.l.b16 %v724
    %v2863 = vunpack.c.h.b16 %v724
    %v2864 = vunpack.c.l.b16 %v725
    %v2865 = vunpack.c.h.b16 %v725
    %v2866 = vunpack.c.l.b16 %v726
    %v2867 = vunpack.c.h.b16 %v726
    %v2868 = vunpack.c.l.b16 %v727
    %v2869 = vunpack.c.h.b16 %v727
    %v2870 = vunpack.c.l.b16 %v728
    %v2871 = vunpack.c.l.b16 %v729
    %v2872 = vunpack.c.h.b16 %v729
    %v2873 = vunpack.c.l.b16 %v730
    %v2874 = vunpack.c.h.b16 %v730
    %v2875 = vunpack.c.l.b16 %v731
    %v2876 = vunpack.c.h.b16 %v731
    %v2877 = vunpack.c.l.b16 %v732
    %v2878 = vunpack.c.h.b16 %v732
    %v2879 = vunpack.c.l.b16 %v733
    %v2880 = vunpack.c.h.b16 %v733
    %v2881 = vunpack.c.l.b16 %v734
    %v2882 = vunpack.c.h.b16 %v734
    %v2883 = vunpack.c.l.b16 %v735
    %v2884 = vunpack.c.l.b16 %v736
    %v2885 = vunpack.c.h.b16 %v736
    %v2886 = vunpack.c.l.b16 %v737
    %v2887 = vunpack.c.h.b16 %v737
    %v2888 = vunpack.c.l.b16 %v738
    %v2889 = vunpack.c.h.b16 %v738
    %v2890 = vunpack.c.l.b16 %v739
    %v2891 = vunpack.c.h.b16 %v739
    %v2892 = vunpack.c.l.b16 %v740
    %v2893 = vunpack.c.h.b16 %v740
    %v2894 = vunpack.c.l.b16 %v741
    %v2895 = vunpack.c.h.b16 %v741
    %v2896 = vunpack.c.l.b16 %v742
    %v2897 = vunpack.c.l.b16 %v743
    %v2898 = vunpack.c.h.b16 %v743
    %v2899 = vunpack.c.l.b16 %v744
    %v2900 = vunpack.c.h.b16 %v744
    %v2901 = vunpack.c.l.b16 %v745
    %v2902 = vunpack.c.h.b16 %v745
    %v2903 = vunpack.c.l.b16 %v746
    %v2904 = vunpack.c.h.b16 %v746
    %v2905 = vunpack.c.l.b16 %v747
    %v2906 = vunpack.c.h.b16 %v747
    %v2907 = vunpack.c.l.b16 %v748
    %v2908 = vunpack.c.h.b16 %v748
    %v2909 = vunpack.c.l.b16 %v749
    %v2910 = vunpack.c.l.b16 %v750
    %v2911 = vunpack.c.h.b16 %v750
    %v2912 = vunpack.c.l.b16 %v751
    %v2913 = vunpack.c.h.b16 %v751
    %v2914 = vunpack.c.l.b16 %v752
    %v2915 = vunpack.c.h.b16 %v752
    %v2916 = vunpack.c.l.b16 %v753
    %v2917 = vunpack.c.h.b16 %v753
    %v2918 = vunpack.c.l.b16 %v754
    %v2919 = vunpack.c.h.b16 %v754
    %v2920 = vunpack.c.l.b16 %v755
    %v2921 = vunpack.c.h.b16 %v755
    %v2922 = vunpack.c.l.b16 %v756
    %v2923 = vunpack.c.l.b16 %v757
    %v2924 = vunpack.c.h.b16 %v757
    %v2925 = vunpack.c.l.b16 %v758
    %v2926 = vunpack.c.h.b16 %v758
    %v2927 = vunpack.c.l.b16 %v759
    %v2928 = vunpack.c.h.b16 %v759
    %v2929 = vunpack.c.l.b16 %v760
    %v2930 = vunpack.c.h.b16 %v760
    %v2931 = vunpack.c.l.b16 %v761
    %v2932 = vunpack.c.h.b16 %v761
    %v2933 = vunpack.c.l.b16 %v762
    %v2934 = vunpack.c.h.b16 %v762
    %v2935 = vunpack.c.l.b16 %v763
    %v2936 = vunpack.c.l.b16 %v764
    %v2937 = vunpack.c.h.b16 %v764
    %v2938 = vunpack.c.l.b16 %v765
    %v2939 = vunpack.c.h.b16 %v765
    %v2940 = vunpack.c.l.b16 %v766
    %v2941 = vunpack.c.h.b16 %v766
    %v2942 = vunpack.c.l.b16 %v767
    %v2943 = vunpack.c.h.b16 %v767
    %v2944 = vunpack.c.l.b16 %v768
    %v2945 = vunpack.c.h.b16 %v768
    %v2946 = vunpack.c.l.b16 %v769
    %v2947 = vunpack.c.h.b16 %v769
    %v2948 = vunpack.c.l.b16 %v770
    %v2949 = vunpack.c.l.b16 %v771
    %v2950 = vunpack.c.h.b16 %v771
    %v2951 = vunpack.c.l.b16 %v772
    %v2952 = vunpack.c.h.b16 %v772
    %v2953 = vunpack.c.l.b16 %v773
    %v2954 = vunpack.c.h.b16 %v773
    %v2955 = vunpack.c.l.b16 %v774
    %v2956 = vunpack.c.h.b16 %v774
    %v2957 = vunpack.c.l.b16 %v775
    %v2958 = vunpack.c.h.b16 %v775
    %v2959 = vunpack.c.l.b16 %v776
    %v2960 = vunpack.c.h.b16 %v776
    %v2961 = vunpack.c.l.b16 %v777
    %v2962 = vunpack.c.l.b16 %v778
    %v2963 = vunpack.c.h.b16 %v778
    %v2964 = vunpack.c.l.b16 %v779
    %v2965 = vunpack.c.h.b16 %v779
    %v2966 = vunpack.c.l.b16 %v780
    %v2967 = vunpack.c.h.b16 %v780
    %v2968 = vunpack.c.l.b16 %v781
    %v2969 = vunpack.c.h.b16 %v781
    %v2970 = vunpack.c.l.b16 %v782
    %v2971 = vunpack.c.h.b16 %v782
    %v2972 = vunpack.c.l.b16 %v783
    %v2973 = vunpack.c.h.b16 %v783
    %v2974 = vunpack.c.l.b16 %v784
    %v2975 = vunpack.c.l.b16 %v785
    %v2976 = vunpack.c.h.b16 %v785
    %v2977 = vunpack.c.l.b16 %v786
    %v2978 = vunpack.c.h.b16 %v786
    %v2979 = vunpack.c.l.b16 %v787
    %v2980 = vunpack.c.h.b16 %v787
    %v2981 = vunpack.c.l.b16 %v788
    %v2982 = vunpack.c.h.b16 %v788
    %v2983 = vunpack.c.l.b16 %v789
    %v2984 = vunpack.c.h.b16 %v789
    %v2985 = vunpack.c.l.b16 %v790
    %v2986 = vunpack.c.h.b16 %v790
    %v2987 = vunpack.c.l.b16 %v791
    %v2988 = vunpack.c.l.b16 %v792
    %v2989 = vunpack.c.h.b16 %v792
    %v2990 = vunpack.c.l.b16 %v793
    %v2991 = vunpack.c.h.b16 %v793
    %v2992 = vunpack.c.l.b16 %v794
    %v2993 = vunpack.c.h.b16 %v794
    %v2994 = vunpack.c.l.b16 %v795
    %v2995 = vunpack.c.h.b16 %v795
    %v2996 = vunpack.c.l.b16 %v796
    %v2997 = vunpack.c.h.b16 %v796
    %v2998 = vunpack.c.l.b16 %v797
    %v2999 = vunpack.c.h.b16 %v797
    %v3000 = vunpack.c.l.b16 %v798
    %v3001 = vunpack.c.l.b16 %v799
    %v3002 = vunpack.c.h.b16 %v799
    %v3003 = vunpack.c.l.b16 %v800
    %v3004 = vunpack.c.h.b16 %v800
    %v3005 = vunpack.c.l.b16 %v801
    %v3006 = vunpack.c.h.b16 %v801
    %v3007 = vunpack.c.l.b16 %v802
    %v3008 = vunpack.c.h.b16 %v802
    %v3009 = vunpack.c.l.b16 %v803
    %v3010 = vunpack.c.h.b16 %v803
    %v3011 = vunpack.c.l.b16 %v804
    %v3012 = vunpack.c.h.b16 %v804
    %v3013 = vunpack.c.l.b16 %v805
    %v3014 = vunpack.c.l.b16 %v806
    %v3015 = vunpack.c.h.b16 %v806
    %v3016 = vunpack.c.l.b16 %v807
    %v3017 = vunpack.c.h.b16 %v807
    %v3018 = vunpack.c.l.b16 %v808
    %v3019 = vunpack.c.h.b16 %v808
    %v3020 = vunpack.c.l.b16 %v809
    %v3021 = vunpack.c.h.b16 %v809
    %v3022 = vunpack.c.l.b16 %v810
    %v3023 = vunpack.c.h.b16 %v810
    %v3024 = vunpack.c.l.b16 %v811
    %v3025 = vunpack.c.h.b16 %v811
    %v3026 = vunpack.c.l.b16 %v812
    %v3027 = vunpack.c.l.b16 %v813
    %v3028 = vunpack.c.h.b16 %v813
    %v3029 = vunpack.c.l.b16 %v814
    %v3030 = vunpack.c.h.b16 %v814
    %v3031 = vunpack.c.l.b16 %v815
    %v3032 = vunpack.c.h.b16 %v815
    %v3033 = vunpack.c.l.b16 %v816
    %v3034 = vunpack.c.h.b16 %v816
    %v3035 = vunpack.c.l.b16 %v817
    %v3036 = vunpack.c.h.b16 %v817
    %v3037 = vunpack.c.l.b16 %v818
    %v3038 = vunpack.c.h.b16 %v818
    %v3039 = vunpack.c.l.b16 %v819
    %v3040 = vunpack.c.l.b16 %v820
    %v3041 = vunpack.c.h.b16 %v820
    %v3042 = vunpack.c.l.b16 %v821
    %v3043 = vunpack.c.h.b16 %v821
    %v3044 = vunpack.c.l.b16 %v822
    %v3045 = vunpack.c.h.b16 %v822
    %v3046 = vunpack.c.l.b16 %v823
    %v3047 = vunpack.c.h.b16 %v823
    %v3048 = vunpack.c.l.b16 %v824
    %v3049 = vunpack.c.h.b16 %v824
    %v3050 = vunpack.c.l.b16 %v825
    %v3051 = vunpack.c.h.b16 %v825
    %v3052 = vunpack.c.l.b16 %v826
    %v3053 = vunpack.c.l.b16 %v827
    %v3054 = vunpack.c.h.b16 %v827
    %v3055 = vunpack.c.l.b16 %v828
    %v3056 = vunpack.c.h.b16 %v828
    %v3057 = vunpack.c.l.b16 %v829
    %v3058 = vunpack.c.h.b16 %v829
    %v3059 = vunpack.c.l.b16 %v830
    %v3060 = vunpack.c.h.b16 %v830
    %v3061 = vunpack.c.l.b16 %v831
    %v3062 = vunpack.c.h.b16 %v831
    %v3063 = vunpack.c.l.b16 %v832
    %v3064 = vunpack.c.h.b16 %v832
    %v3065 = vunpack.c.l.b16 %v833
    %v3066 = vunpack.c.l.b16 %v834
    %v3067 = vunpack.c.h.b16 %v834
    %v3068 = vunpack.c.l.b16 %v835
    %v3069 = vunpack.c.h.b16 %v835
    %v3070 = vunpack.c.l.b16 %v836
    %v3071 = vunpack.c.h.b16 %v836
    %v3072 = vunpack.c.l.b16 %v837
    %v3073 = vunpack.c.h.b16 %v837
    %v3074 = vunpack.c.l.b16 %v838
    %v3075 = vunpack.c.h.b16 %v838
    %v3076 = vunpack.c.l.b16 %v839
    %v3077 = vunpack.c.h.b16 %v839
    %v3078 = vunpack.c.l.b16 %v840
    %v3079 = vunpack.c.l.b16 %v841
    %v3080 = vunpack.c.h.b16 %v841
    %v3081 = vunpack.c.l.b16 %v842
    %v3082 = vunpack.c.h.b16 %v842
    %v3083 = vunpack.c.l.b16 %v843
    %v3084 = vunpack.c.h.b16 %v843
    %v3085 = vunpack.c.l.b16 %v844
    %v3086 = vunpack.c.h.b16 %v844
    %v3087 = vunpack.c.l.b16 %v845
    %v3088 = vunpack.c.h.b16 %v845
    %v3089 = vunpack.c.l.b16 %v846
    %v3090 = vunpack.c.h.b16 %v846
    %v3091 = vunpack.c.l.b16 %v847
    %v3092 = vunpack.c.l.b16 %v848
    %v3093 = vunpack.c.h.b16 %v848
    %v3094 = vunpack.c.l.b16 %v849
    %v3095 = vunpack.c.h.b16 %v849
    %v3096 = vunpack.c.l.b16 %v850
    %v3097 = vunpack.c.h.b16 %v850
    %v3098 = vunpack.c.l.b16 %v851
    %v3099 = vunpack.c.h.b16 %v851
    %v3100 = vunpack.c.l.b16 %v852
    %v3101 = vunpack.c.h.b16 %v852
    %v3102 = vunpack.c.l.b16 %v853
    %v3103 = vunpack.c.h.b16 %v853
    %v3104 = vunpack.c.l.b16 %v854
    %v3105 = vunpack.c.l.b16 %v855
    %v3106 = vunpack.c.h.b16 %v855
    %v3107 = vunpack.c.l.b16 %v856
    %v3108 = vunpack.c.h.b16 %v856
    %v3109 = vunpack.c.l.b16 %v857
    %v3110 = vunpack.c.h.b16 %v857
    %v3111 = vunpack.c.l.b16 %v858
    %v3112 = vunpack.c.h.b16 %v858
    %v3113 = vunpack.c.l.b16 %v859
    %v3114 = vunpack.c.h.b16 %v859
    %v3115 = vunpack.c.l.b16 %v860
    %v3116 = vunpack.c.h.b16 %v860
    %v3117 = vunpack.c.l.b16 %v861
    %v3118 = vunpack.c.l.b16 %v862
    %v3119 = vunpack.c.h.b16 %v862
    %v3120 = vunpack.c.l.b16 %v863
    %v3121 = vunpack.c.h.b16 %v863
    %v3122 = vunpack.c.l.b16 %v864
    %v3123 = vunpack.c.h.b16 %v864
    %v3124 = vunpack.c.l.b16 %v865
    %v3125 = vunpack.c.h.b16 %v865
    %v3126 = vunpack.c.l.b16 %v866
    %v3127 = vunpack.c.h.b16 %v866
    %v3128 = vunpack.c.l.b16 %v867
    %v3129 = vunpack.c.h.b16 %v867
    %v3130 = vunpack.c.l.b16 %v868
    %v3131 = vunpack.c.l.b16 %v869
    %v3132 = vunpack.c.h.b16 %v869
    %v3133 = vunpack.c.l.b16 %v870
    %v3134 = vunpack.c.h.b16 %v870
    %v3135 = vunpack.c.l.b16 %v871
    %v3136 = vunpack.c.h.b16 %v871
    %v3137 = vunpack.c.l.b16 %v872
    %v3138 = vunpack.c.h.b16 %v872
    %v3139 = vunpack.c.l.b16 %v873
    %v3140 = vunpack.c.h.b16 %v873
    %v3141 = vunpack.c.l.b16 %v874
    %v3142 = vunpack.c.h.b16 %v874
    %v3143 = vunpack.c.l.b16 %v875
    %v3144 = vunpack.c.l.b16 %v876
    %v3145 = vunpack.c.h.b16 %v876
    %v3146 = vunpack.c.l.b16 %v877
    %v3147 = vunpack.c.h.b16 %v877
    %v3148 = vunpack.c.l.b16 %v878
    %v3149 = vunpack.c.h.b16 %v878
    %v3150 = vunpack.c.l.b16 %v879
    %v3151 = vunpack.c.h.b16 %v879
    %v3152 = vunpack.c.l.b16 %v880
    %v3153 = vunpack.c.h.b16 %v880
    %v3154 = vunpack.c.l.b16 %v881
    %v3155 = vunpack.c.h.b16 %v881
    %v3156 = vunpack.c.l.b16 %v882
    %v3157 = vunpack.c.l.b16 %v883
    %v3158 = vunpack.c.h.b16 %v883
    %v3159 = vunpack.c.l.b16 %v884
    %v3160 = vunpack.c.h.b16 %v884
    %v3161 = vunpack.c.l.b16 %v885
    %v3162 = vunpack.c.h.b16 %v885
    %v3163 = vunpack.c.l.b16 %v886
    %v3164 = vunpack.c.h.b16 %v886
    %v3165 = vunpack.c.l.b16 %v887
    %v3166 = vunpack.c.h.b16 %v887
    %v3167 = vunpack.c.l.b16 %v888
    %v3168 = vunpack.c.h.b16 %v888
    %v3169 = vunpack.c.l.b16 %v889
    %v3170 = vunpack.c.l.b16 %v890
    %v3171 = vunpack.c.h.b16 %v890
    %v3172 = vunpack.c.l.b16 %v891
    %v3173 = vunpack.c.h.b16 %v891
    %v3174 = vunpack.c.l.b16 %v892
    %v3175 = vunpack.c.h.b16 %v892
    %v3176 = vunpack.c.l.b16 %v893
    %v3177 = vunpack.c.h.b16 %v893
    %v3178 = vunpack.c.l.b16 %v894
    %v3179 = vunpack.c.h.b16 %v894
    %v3180 = vunpack.c.l.b16 %v895
    %v3181 = vunpack.c.h.b16 %v895
    %v3182 = vunpack.c.l.b16 %v896
    %v3183 = vunpack.c.l.b16 %v897
    %v3184 = vunpack.c.h.b16 %v897
    %v3185 = vunpack.c.l.b16 %v898
    %v3186 = vunpack.c.h.b16 %v898
    %v3187 = vunpack.c.l.b16 %v899
    %v3188 = vunpack.c.h.b16 %v899
    %v3189 = vunpack.c.l.b16 %v900
    %v3190 = vunpack.c.h.b16 %v900
    %v3191 = vunpack.c.l.b16 %v901
    %v3192 = vunpack.c.h.b16 %v901
    %v3193 = vunpack.c.l.b16 %v902
    %v3194 = vunpack.c.h.b16 %v902
    %v3195 = vunpack.c.l.b16 %v903
    %v3196 = vunpack.c.l.b16 %v904
    %v3197 = vunpack.c.h.b16 %v904
    %v3198 = vunpack.c.l.b16 %v905
    %v3199 = vunpack.c.h.b16 %v905
    %v3200 = vunpack.c.l.b16 %v906
    %v3201 = vunpack.c.h.b16 %v906
    %v3202 = vunpack.c.l.b16 %v907
    %v3203 = vunpack.c.h.b16 %v907
    %v3204 = vunpack.c.l.b16 %v908
    %v3205 = vunpack.c.h.b16 %v908
    %v3206 = vunpack.c.l.b16 %v909
    %v3207 = vunpack.c.h.b16 %v909
    %v3208 = vunpack.c.l.b16 %v910
    %v3209 = vunpack.c.l.b16 %v911
    %v3210 = vunpack.c.h.b16 %v911
    %v3211 = vunpack.c.l.b16 %v912
    %v3212 = vunpack.c.h.b16 %v912
    %v3213 = vunpack.c.l.b16 %v913
    %v3214 = vunpack.c.h.b16 %v913
    %v3215 = vunpack.c.l.b16 %v914
    %v3216 = vunpack.c.h.b16 %v914
    %v3217 = vunpack.c.l.b16 %v915
    %v3218 = vunpack.c.h.b16 %v915
    %v3219 = vunpack.c.l.b16 %v916
    %v3220 = vunpack.c.h.b16 %v916
    %v3221 = vunpack.c.l.b16 %v917
    %v3222 = vunpack.c.l.b16 %v918
    %v3223 = vunpack.c.h.b16 %v918
    %v3224 = vunpack.c.l.b16 %v919
    %v3225 = vunpack.c.h.b16 %v919
    %v3226 = vunpack.c.l.b16 %v920
    %v3227 = vunpack.c.h.b16 %v920
    %v3228 = vunpack.c.l.b16 %v921
    %v3229 = vunpack.c.h.b16 %v921
    %v3230 = vunpack.c.l.b16 %v922
    %v3231 = vunpack.c.h.b16 %v922
    %v3232 = vunpack.c.l.b16 %v923
    %v3233 = vunpack.c.h.b16 %v923
    %v3234 = vunpack.c.l.b16 %v924
    %v3235 = vunpack.c.l.b16 %v925
    %v3236 = vunpack.c.h.b16 %v925
    %v3237 = vunpack.c.l.b16 %v926
    %v3238 = vunpack.c.h.b16 %v926
    %v3239 = vunpack.c.l.b16 %v927
    %v3240 = vunpack.c.h.b16 %v927
    %v3241 = vunpack.c.l.b16 %v928
    %v3242 = vunpack.c.h.b16 %v928
    %v3243 = vunpack.c.l.b16 %v929
    %v3244 = vunpack.c.h.b16 %v929
    %v3245 = vunpack.c.l.b16 %v930
    %v3246 = vunpack.c.h.b16 %v930
    %v3247 = vunpack.c.l.b16 %v931
    %v3248 = vunpack.c.l.b16 %v932
    %v3249 = vunpack.c.h.b16 %v932
    %v3250 = vunpack.c.l.b16 %v933
    %v3251 = vunpack.c.h.b16 %v933
    %v3252 = vunpack.c.l.b16 %v934
    %v3253 = vunpack.c.h.b16 %v934
    %v3254 = vunpack.c.l.b16 %v935
    %v3255 = vunpack.c.h.b16 %v935
    %v3256 = vunpack.c.l.b16 %v936
    %v3257 = vunpack.c.h.b16 %v936
    %v3258 = vunpack.c.l.b16 %v937
    %v3259 = vunpack.c.h.b16 %v937
    %v3260 = vunpack.c.l.b16 %v938
    %v3261 = vunpack.c.l.b16 %v939
    %v3262 = vunpack.c.h.b16 %v939
    %v3263 = vunpack.c.l.b16 %v940
    %v3264 = vunpack.c.h.b16 %v940
    %v3265 = vunpack.c.l.b16 %v941
    %v3266 = vunpack.c.h.b16 %v941
    %v3267 = vunpack.c.l.b16 %v942
    %v3268 = vunpack.c.h.b16 %v942
    %v3269 = vunpack.c.l.b16 %v943
    %v3270 = vunpack.c.h.b16 %v943
    %v3271 = vunpack.c.l.b16 %v944
    %v3272 = vunpack.c.h.b16 %v944
    %v3273 = vunpack.c.l.b16 %v945
    %v3274 = vunpack.c.l.b16 %v946
    %v3275 = vunpack.c.h.b16 %v946
    %v3276 = vunpack.c.l.b16 %v947
    %v3277 = vunpack.c.h.b16 %v947
    %v3278 = vunpack.c.l.b16 %v948
    %v3279 = vunpack.c.h.b16 %v948
    %v3280 = vunpack.c.l.b16 %v949
    %v3281 = vunpack.c.h.b16 %v949
    %v3282 = vunpack.c.l.b16 %v950
    %v3283 = vunpack.c.h.b16 %v950
    %v3284 = vunpack.c.l.b16 %v951
    %v3285 = vunpack.c.h.b16 %v951
    %v3286 = vunpack.c.l.b16 %v952
    %v3287 = vpack.c.b16 %v1844, %v1831
    %v3288 = vpack.c.b16 %v1845, %v1832
    %v3289 = vpack.c.b16 %v1846, %v1833
    %v3290 = vpack.c.b16 %v1847, %v1834
    %v3291 = vpack.c.b16 %v1848, %v1835
    %v3292 = vpack.c.b16 %v1849, %v1836
    %v3293 = vpack.c.b16 %v1850, %v1837
    %v3294 = vpack.c.b16 %v1851, %v1838
    %v3295 = vpack.c.b16 %v1852, %v1839
    %v3296 = vpack.c.b16 %v1853, %v1840
    %v3297 = vpack.c.b16 %v1854, %v1841
    %v3298 = vpack.c.b16 %v1855, %v1842
    %v3299 = vpack.c.b16 %v1856, %v1843
    %v3300 = vpack.c.b16 %v1870, %v1857
    %v3301 = vpack.c.b16 %v1871, %v1858
    %v3302 = vpack.c.b16 %v1872, %v1859
    %v3303 = vpack.c.b16 %v1873, %v1860
    %v3304 = vpack.c.b16 %v1874, %v1861
    %v3305 = vpack.c.b16 %v1875, %v1862
    %v3306 = vpack.c.b16 %v1876, %v1863
    %v3307 = vpack.c.b16 %v1877, %v1864
    %v3308 = vpack.c.b16 %v1878, %v1865
    %v3309 = vpack.c.b16 %v1879, %v1866
    %v3310 = vpack.c.b16 %v1880, %v1867
    %v3311 = vpack.c.b16 %v1881, %v1868
    %v3312 = vpack.c.b16 %v1882, %v1869
    %v3313 = vpack.c.b16 %v1896, %v1883
    %v3314 = vpack.c.b16 %v1897, %v1884
    %v3315 = vpack.c.b16 %v1898, %v1885
    %v3316 = vpack.c.b16 %v1899, %v1886
    %v3317 = vpack.c.b16 %v1900, %v1887
    %v3318 = vpack.c.b16 %v1901, %v1888
    %v3319 = vpack.c.b16 %v1902, %v1889
    %v3320 = vpack.c.b16 %v1903, %v1890
    %v3321 = vpack.c.b16 %v1904, %v1891
    %v3322 = vpack.c.b16 %v1905, %v1892
    %v3323 = vpack.c.b16 %v1906, %v1893
    %v3324 = vpack.c.b16 %v1907, %v1894
    %v3325 = vpack.c.b16 %v1908, %v1895
    %v3326 = vpack.c.b16 %v1922, %v1909
    %v3327 = vpack.c.b16 %v1923, %v1910
    %v3328 = vpack.c.b16 %v1924, %v1911
    %v3329 = vpack.c.b16 %v1925, %v1912
    %v3330 = vpack.c.b16 %v1926, %v1913
    %v3331 = vpack.c.b16 %v1927, %v1914
    %v3332 = vpack.c.b16 %v1928, %v1915
    %v3333 = vpack.c.b16 %v1929, %v1916
    %v3334 = vpack.c.b16 %v1930, %v1917
    %v3335 = vpack.c.b16 %v1931, %v1918
    %v3336 = vpack.c.b16 %v1932, %v1919
    %v3337 = vpack.c.b16 %v1933, %v1920
    %v3338 = vpack.c.b16 %v1934, %v1921
    %v3339 = vpack.c.b16 %v1948, %v1935
    %v3340 = vpack.c.b16 %v1949, %v1936
    %v3341 = vpack.c.b16 %v1950, %v1937
    %v3342 = vpack.c.b16 %v1951, %v1938
    %v3343 = vpack.c.b16 %v1952, %v1939
    %v3344 = vpack.c.b16 %v1953, %v1940
    %v3345 = vpack.c.b16 %v1954, %v1941
    %v3346 = vpack.c.b16 %v1955, %v1942
    %v3347 = vpack.c.b16 %v1956, %v1943
    %v3348 = vpack.c.b16 %v1957, %v1944
    %v3349 = vpack.c.b16 %v1958, %v1945
    %v3350 = vpack.c.b16 %v1959, %v1946
    %v3351 = vpack.c.b16 %v1960, %v1947
    %v3352 = vpack.c.b16 %v1974, %v1961
    %v3353 = vpack.c.b16 %v1975, %v1962
    %v3354 = vpack.c.b16 %v1976, %v1963
    %v3355 = vpack.c.b16 %v1977, %v1964
    %v3356 = vpack.c.b16 %v1978, %v1965
    %v3357 = vpack.c.b16 %v1979, %v1966
    %v3358 = vpack.c.b16 %v1980, %v1967
    %v3359 = vpack.c.b16 %v1981, %v1968
    %v3360 = vpack.c.b16 %v1982, %v1969
    %v3361 = vpack.c.b16 %v1983, %v1970
    %v3362 = vpack.c.b16 %v1984, %v1971
    %v3363 = vpack.c.b16 %v1985, %v1972
    %v3364 = vpack.c.b16 %v1986, %v1973
    %v3365 = vpack.c.b16 %v2000, %v1987
    %v3366 = vpack.c.b16 %v2001, %v1988
    %v3367 = vpack.c.b16 %v2002, %v1989
    %v3368 = vpack.c.b16 %v2003, %v1990
    %v3369 = vpack.c.b16 %v2004, %v1991
    %v3370 = vpack.c.b16 %v2005, %v1992
    %v3371 = vpack.c.b16 %v2006, %v1993
    %v3372 = vpack.c.b16 %v2007, %v1994
    %v3373 = vpack.c.b16 %v2008, %v1995
    %v3374 = vpack.c.b16 %v2009, %v1996
    %v3375 = vpack.c.b16 %v2010, %v1997
    %v3376 = vpack.c.b16 %v2011, %v1998
    %v3377 = vpack.c.b16 %v2012, %v1999
    %v3378 = vpack.c.b16 %v2026, %v2013
    %v3379 = vpack.c.b16 %v2027, %v2014
    %v3380 = vpack.c.b16 %v2028, %v2015
    %v3381 = vpack.c.b16 %v2029, %v2016
    %v3382 = vpack.c.b16 %v2030, %v2017
    %v3383 = vpack.c.b16 %v2031, %v2018
    %v3384 = vpack.c.b16 %v2032, %v2019
    %v3385 = vpack.c.b16 %v2033, %v2020
    %v3386 = vpack.c.b16 %v2034, %v2021
    %v3387 = vpack.c.b16 %v2035, %v2022
    %v3388 = vpack.c.b16 %v2036, %v2023
    %v3389 = vpack.c.b16 %v2037, %v2024
    %v3390 = vpack.c.b16 %v2038, %v2025
    %v3391 = vpack.c.b16 %v2052, %v2039
    %v3392 = vpack.c.b16 %v2053, %v2040
    %v3393 = vpack.c.b16 %v2054, %v2041
    %v3394 = vpack.c.b16 %v2055, %v2042
    %v3395 = vpack.c.b16 %v2056, %v2043
    %v3396 = vpack.c.b16 %v2057, %v2044
    %v3397 = vpack.c.b16 %v2058, %v2045
    %v3398 = vpack.c.b16 %v2059, %v2046
    %v3399 = vpack.c.b16 %v2060, %v2047
    %v3400 = vpack.c.b16 %v2061, %v2048
    %v3401 = vpack.c.b16 %v2062, %v2049
    %v3402 = vpack.c.b16 %v2063, %v2050
    %v3403 = vpack.c.b16 %v2064, %v2051
    %v3404 = vpack.c.b16 %v2078, %v2065
    %v3405 = vpack.c.b16 %v2079, %v2066
    %v3406 = vpack.c.b16 %v2080, %v2067
    %v3407 = vpack.c.b16 %v2081, %v2068
    %v3408 = vpack.c.b16 %v2082, %v2069
    %v3409 = vpack.c.b16 %v2083, %v2070
    %v3410 = vpack.c.b16 %v2084, %v2071
    %v3411 = vpack.c.b16 %v2085, %v2072
    %v3412 = vpack.c.b16 %v2086, %v2073
    %v3413 = vpack.c.b16 %v2087, %v2074
    %v3414 = vpack.c.b16 %v2088, %v2075
    %v3415 = vpack.c.b16 %v2089, %v2076
    %v3416 = vpack.c.b16 %v2090, %v2077
    %v3417 = vpack.c.b16 %v2104, %v2091
    %v3418 = vpack.c.b16 %v2105, %v2092
    %v3419 = vpack.c.b16 %v2106, %v2093
    %v3420 = vpack.c.b16 %v2107, %v2094
    %v3421 = vpack.c.b16 %v2108, %v2095
    %v3422 = vpack.c.b16 %v2109, %v2096
    %v3423 = vpack.c.b16 %v2110, %v2097
    %v3424 = vpack.c.b16 %v2111, %v2098
    %v3425 = vpack.c.b16 %v2112, %v2099
    %v3426 = vpack.c.b16 %v2113, %v2100
    %v3427 = vpack.c.b16 %v2114, %v2101
    %v3428 = vpack.c.b16 %v2115, %v2102
    %v3429 = vpack.c.b16 %v2116, %v2103
    %v3430 = vpack.c.b16 %v2130, %v2117
    %v3431 = vpack.c.b16 %v2131, %v2118
    %v3432 = vpack.c.b16 %v2132, %v2119
    %v3433 = vpack.c.b16 %v2133, %v2120
    %v3434 = vpack.c.b16 %v2134, %v2121
    %v3435 = vpack.c.b16 %v2135, %v2122
    %v3436 = vpack.c.b16 %v2136, %v2123
    %v3437 = vpack.c.b16 %v2137, %v2124
    %v3438 = vpack.c.b16 %v2138, %v2125
    %v3439 = vpack.c.b16 %v2139, %v2126
    %v3440 = vpack.c.b16 %v2140, %v2127
    %v3441 = vpack.c.b16 %v2141, %v2128
    %v3442 = vpack.c.b16 %v2142, %v2129
    %v3443 = vpack.c.b16 %v2156, %v2143
    %v3444 = vpack.c.b16 %v2157, %v2144
    %v3445 = vpack.c.b16 %v2158, %v2145
    %v3446 = vpack.c.b16 %v2159, %v2146
    %v3447 = vpack.c.b16 %v2160, %v2147
    %v3448 = vpack.c.b16 %v2161, %v2148
    %v3449 = vpack.c.b16 %v2162, %v2149
    %v3450 = vpack.c.b16 %v2163, %v2150
    %v3451 = vpack.c.b16 %v2164, %v2151
    %v3452 = vpack.c.b16 %v2165, %v2152
    %v3453 = vpack.c.b16 %v2166, %v2153
    %v3454 = vpack.c.b16 %v2167, %v2154
    %v3455 = vpack.c.b16 %v2168, %v2155
    %v3456 = vpack.c.b16 %v2182, %v2169
    %v3457 = vpack.c.b16 %v2183, %v2170
    %v3458 = vpack.c.b16 %v2184, %v2171
    %v3459 = vpack.c.b16 %v2185, %v2172
    %v3460 = vpack.c.b16 %v2186, %v2173
    %v3461 = vpack.c.b16 %v2187, %v2174
    %v3462 = vpack.c.b16 %v2188, %v2175
    %v3463 = vpack.c.b16 %v2189, %v2176
    %v3464 = vpack.c.b16 %v2190, %v2177
    %v3465 = vpack.c.b16 %v2191, %v2178
    %v3466 = vpack.c.b16 %v2192, %v2179
    %v3467 = vpack.c.b16 %v2193, %v2180
    %v3468 = vpack.c.b16 %v2194, %v2181
    %v3469 = vpack.c.b16 %v2208, %v2195
    %v3470 = vpack.c.b16 %v2209, %v2196
    %v3471 = vpack.c.b16 %v2210, %v2197
    %v3472 = vpack.c.b16 %v2211, %v2198
    %v3473 = vpack.c.b16 %v2212, %v2199
    %v3474 = vpack.c.b16 %v2213, %v2200
    %v3475 = vpack.c.b16 %v2214, %v2201
    %v3476 = vpack.c.b16 %v2215, %v2202
    %v3477 = vpack.c.b16 %v2216, %v2203
    %v3478 = vpack.c.b16 %v2217, %v2204
    %v3479 = vpack.c.b16 %v2218, %v2205
    %v3480 = vpack.c.b16 %v2219, %v2206
    %v3481 = vpack.c.b16 %v2220, %v2207
    %v3482 = vpack.c.b16 %v2234, %v2221
    %v3483 = vpack.c.b16 %v2235, %v2222
    %v3484 = vpack.c.b16 %v2236, %v2223
    %v3485 = vpack.c.b16 %v2237, %v2224
    %v3486 = vpack.c.b16 %v2238, %v2225
    %v3487 = vpack.c.b16 %v2239, %v2226
    %v3488 = vpack.c.b16 %v2240, %v2227
    %v3489 = vpack.c.b16 %v2241, %v2228
    %v3490 = vpack.c.b16 %v2242, %v2229
    %v3491 = vpack.c.b16 %v2243, %v2230
    %v3492 = vpack.c.b16 %v2244, %v2231
    %v3493 = vpack.c.b16 %v2245, %v2232
    %v3494 = vpack.c.b16 %v2246, %v2233
    %v3495 = vpack.c.b16 %v2260, %v2247
    %v3496 = vpack.c.b16 %v2261, %v2248
    %v3497 = vpack.c.b16 %v2262, %v2249
    %v3498 = vpack.c.b16 %v2263, %v2250
    %v3499 = vpack.c.b16 %v2264, %v2251
    %v3500 = vpack.c.b16 %v2265, %v2252
    %v3501 = vpack.c.b16 %v2266, %v2253
    %v3502 = vpack.c.b16 %v2267, %v2254
    %v3503 = vpack.c.b16 %v2268, %v2255
    %v3504 = vpack.c.b16 %v2269, %v2256
    %v3505 = vpack.c.b16 %v2270, %v2257
    %v3506 = vpack.c.b16 %v2271, %v2258
    %v3507 = vpack.c.b16 %v2272, %v2259
    %v3508 = vpack.c.b16 %v2286, %v2273
    %v3509 = vpack.c.b16 %v2287, %v2274
    %v3510 = vpack.c.b16 %v2288, %v2275
    %v3511 = vpack.c.b16 %v2289, %v2276
    %v3512 = vpack.c.b16 %v2290, %v2277
    %v3513 = vpack.c.b16 %v2291, %v2278
    %v3514 = vpack.c.b16 %v2292, %v2279
    %v3515 = vpack.c.b16 %v2293, %v2280
    %v3516 = vpack.c.b16 %v2294, %v2281
    %v3517 = vpack.c.b16 %v2295, %v2282
    %v3518 = vpack.c.b16 %v2296, %v2283
    %v3519 = vpack.c.b16 %v2297, %v2284
    %v3520 = vpack.c.b16 %v2298, %v2285
    %v3521 = vpack.c.b16 %v2312, %v2299
    %v3522 = vpack.c.b16 %v2313, %v2300
    %v3523 = vpack.c.b16 %v2314, %v2301
    %v3524 = vpack.c.b16 %v2315, %v2302
    %v3525 = vpack.c.b16 %v2316, %v2303
    %v3526 = vpack.c.b16 %v2317, %v2304
    %v3527 = vpack.c.b16 %v2318, %v2305
    %v3528 = vpack.c.b16 %v2319, %v2306
    %v3529 = vpack.c.b16 %v2320, %v2307
    %v3530 = vpack.c.b16 %v2321, %v2308
    %v3531 = vpack.c.b16 %v2322, %v2309
    %v3532 = vpack.c.b16 %v2323, %v2310
    %v3533 = vpack.c.b16 %v2324, %v2311
    %v3534 = vpack.c.b16 %v2338, %v2325
    %v3535 = vpack.c.b16 %v2339, %v2326
    %v3536 = vpack.c.b16 %v2340, %v2327
    %v3537 = vpack.c.b16 %v2341, %v2328
    %v3538 = vpack.c.b16 %v2342, %v2329
    %v3539 = vpack.c.b16 %v2343, %v2330
    %v3540 = vpack.c.b16 %v2344, %v2331
    %v3541 = vpack.c.b16 %v2345, %v2332
    %v3542 = vpack.c.b16 %v2346, %v2333
    %v3543 = vpack.c.b16 %v2347, %v2334
    %v3544 = vpack.c.b16 %v2348, %v2335
    %v3545 = vpack.c.b16 %v2349, %v2336
    %v3546 = vpack.c.b16 %v2350, %v2337
    %v3547 = vpack.c.b16 %v2364, %v2351
    %v3548 = vpack.c.b16 %v2365, %v2352
    %v3549 = vpack.c.b16 %v2366, %v2353
    %v3550 = vpack.c.b16 %v2367, %v2354
    %v3551 = vpack.c.b16 %v2368, %v2355
    %v3552 = vpack.c.b16 %v2369, %v2356
    %v3553 = vpack.c.b16 %v2370, %v2357
    %v3554 = vpack.c.b16 %v2371, %v2358
    %v3555 = vpack.c.b16 %v2372, %v2359
    %v3556 = vpack.c.b16 %v2373, %v2360
    %v3557 = vpack.c.b16 %v2374, %v2361
    %v3558 = vpack.c.b16 %v2375, %v2362
    %v3559 = vpack.c.b16 %v2376, %v2363
    %v3560 = vpack.c.b16 %v2390, %v2377
    %v3561 = vpack.c.b16 %v2391, %v2378
    %v3562 = vpack.c.b16 %v2392, %v2379
    %v3563 = vpack.c.b16 %v2393, %v2380
    %v3564 = vpack.c.b16 %v2394, %v2381
    %v3565 = vpack.c.b16 %v2395, %v2382
    %v3566 = vpack.c.b16 %v2396, %v2383
    %v3567 = vpack.c.b16 %v2397, %v2384
    %v3568 = vpack.c.b16 %v2398, %v2385
    %v3569 = vpack.c.b16 %v2399, %v2386
    %v3570 = vpack.c.b16 %v2400, %v2387
    %v3571 = vpack.c.b16 %v2401, %v2388
    %v3572 = vpack.c.b16 %v2402, %v2389
    %v3573 = vpack.c.b16 %v2416, %v2403
    %v3574 = vpack.c.b16 %v2417, %v2404
    %v3575 = vpack.c.b16 %v2418, %v2405
    %v3576 = vpack.c.b16 %v2419, %v2406
    %v3577 = vpack.c.b16 %v2420, %v2407
    %v3578 = vpack.c.b16 %v2421, %v2408
    %v3579 = vpack.c.b16 %v2422, %v2409
    %v3580 = vpack.c.b16 %v2423, %v2410
    %v3581 = vpack.c.b16 %v2424, %v2411
    %v3582 = vpack.c.b16 %v2425, %v2412
    %v3583 = vpack.c.b16 %v2426, %v2413
    %v3584 = vpack.c.b16 %v2427, %v2414
    %v3585 = vpack.c.b16 %v2428, %v2415
    %v3586 = vpack.c.b16 %v2442, %v2429
    %v3587 = vpack.c.b16 %v2443, %v2430
    %v3588 = vpack.c.b16 %v2444, %v2431
    %v3589 = vpack.c.b16 %v2445, %v2432
    %v3590 = vpack.c.b16 %v2446, %v2433
    %v3591 = vpack.c.b16 %v2447, %v2434
    %v3592 = vpack.c.b16 %v2448, %v2435
    %v3593 = vpack.c.b16 %v2449, %v2436
    %v3594 = vpack.c.b16 %v2450, %v2437
    %v3595 = vpack.c.b16 %v2451, %v2438
    %v3596 = vpack.c.b16 %v2452, %v2439
    %v3597 = vpack.c.b16 %v2453, %v2440
    %v3598 = vpack.c.b16 %v2454, %v2441
    %v3599 = vpack.c.b16 %v2468, %v2455
    %v3600 = vpack.c.b16 %v2469, %v2456
    %v3601 = vpack.c.b16 %v2470, %v2457
    %v3602 = vpack.c.b16 %v2471, %v2458
    %v3603 = vpack.c.b16 %v2472, %v2459
    %v3604 = vpack.c.b16 %v2473, %v2460
    %v3605 = vpack.c.b16 %v2474, %v2461
    %v3606 = vpack.c.b16 %v2475, %v2462
    %v3607 = vpack.c.b16 %v2476, %v2463
    %v3608 = vpack.c.b16 %v2477, %v2464
    %v3609 = vpack.c.b16 %v2478, %v2465
    %v3610 = vpack.c.b16 %v2479, %v2466
    %v3611 = vpack.c.b16 %v2480, %v2467
    %v3612 = vpack.c.b16 %v2494, %v2481
    %v3613 = vpack.c.b16 %v2495, %v2482
    %v3614 = vpack.c.b16 %v2496, %v2483
    %v3615 = vpack.c.b16 %v2497, %v2484
    %v3616 = vpack.c.b16 %v2498, %v2485
    %v3617 = vpack.c.b16 %v2499, %v2486
    %v3618 = vpack.c.b16 %v2500, %v2487
    %v3619 = vpack.c.b16 %v2501, %v2488
    %v3620 = vpack.c.b16 %v2502, %v2489
    %v3621 = vpack.c.b16 %v2503, %v2490
    %v3622 = vpack.c.b16 %v2504, %v2491
    %v3623 = vpack.c.b16 %v2505, %v2492
    %v3624 = vpack.c.b16 %v2506, %v2493
    %v3625 = vpack.c.b16 %v2520, %v2507
    %v3626 = vpack.c.b16 %v2521, %v2508
    %v3627 = vpack.c.b16 %v2522, %v2509
    %v3628 = vpack.c.b16 %v2523, %v2510
    %v3629 = vpack.c.b16 %v2524, %v2511
    %v3630 = vpack.c.b16 %v2525, %v2512
    %v3631 = vpack.c.b16 %v2526, %v2513
    %v3632 = vpack.c.b16 %v2527, %v2514
    %v3633 = vpack.c.b16 %v2528, %v2515
    %v3634 = vpack.c.b16 %v2529, %v2516
    %v3635 = vpack.c.b16 %v2530, %v2517
    %v3636 = vpack.c.b16 %v2531, %v2518
    %v3637 = vpack.c.b16 %v2532, %v2519
    %v3638 = vpack.c.b16 %v2546, %v2533
    %v3639 = vpack.c.b16 %v2547, %v2534
    %v3640 = vpack.c.b16 %v2548, %v2535
    %v3641 = vpack.c.b16 %v2549, %v2536
    %v3642 = vpack.c.b16 %v2550, %v2537
    %v3643 = vpack.c.b16 %v2551, %v2538
    %v3644 = vpack.c.b16 %v2552, %v2539
    %v3645 = vpack.c.b16 %v2553, %v2540
    %v3646 = vpack.c.b16 %v2554, %v2541
    %v3647 = vpack.c.b16 %v2555, %v2542
    %v3648 = vpack.c.b16 %v2556, %v2543
    %v3649 = vpack.c.b16 %v2557, %v2544
    %v3650 = vpack.c.b16 %v2558, %v2545
    %v3651 = vpack.c.b16 %v2572, %v2559
    %v3652 = vpack.c.b16 %v2573, %v2560
    %v3653 = vpack.c.b16 %v2574, %v2561
    %v3654 = vpack.c.b16 %v2575, %v2562
    %v3655 = vpack.c.b16 %v2576, %v2563
    %v3656 = vpack.c.b16 %v2577, %v2564
    %v3657 = vpack.c.b16 %v2578, %v2565
    %v3658 = vpack.c.b16 %v2579, %v2566
    %v3659 = vpack.c.b16 %v2580, %v2567
    %v3660 = vpack.c.b16 %v2581, %v2568
    %v3661 = vpack.c.b16 %v2582, %v2569
    %v3662 = vpack.c.b16 %v2583, %v2570
    %v3663 = vpack.c.b16 %v2584, %v2571
    %v3664 = vpack.c.b16 %v2598, %v2585
    %v3665 = vpack.c.b16 %v2599, %v2586
    %v3666 = vpack.c.b16 %v2600, %v2587
    %v3667 = vpack.c.b16 %v2601, %v2588
    %v3668 = vpack.c.b16 %v2602, %v2589
    %v3669 = vpack.c.b16 %v2603, %v2590
    %v3670 = vpack.c.b16 %v2604, %v2591
    %v3671 = vpack.c.b16 %v2605, %v2592
    %v3672 = vpack.c.b16 %v2606, %v2593
    %v3673 = vpack.c.b16 %v2607, %v2594
    %v3674 = vpack.c.b16 %v2608, %v2595
    %v3675 = vpack.c.b16 %v2609, %v2596
    %v3676 = vpack.c.b16 %v2610, %v2597
    %v3677 = vpack.c.b16 %v2624, %v2611
    %v3678 = vpack.c.b16 %v2625, %v2612
    %v3679 = vpack.c.b16 %v2626, %v2613
    %v3680 = vpack.c.b16 %v2627, %v2614
    %v3681 = vpack.c.b16 %v2628, %v2615
    %v3682 = vpack.c.b16 %v2629, %v2616
    %v3683 = vpack.c.b16 %v2630, %v2617
    %v3684 = vpack.c.b16 %v2631, %v2618
    %v3685 = vpack.c.b16 %v2632, %v2619
    %v3686 = vpack.c.b16 %v2633, %v2620
    %v3687 = vpack.c.b16 %v2634, %v2621
    %v3688 = vpack.c.b16 %v2635, %v2622
    %v3689 = vpack.c.b16 %v2636, %v2623
    %v3690 = vpack.c.b16 %v2650, %v2637
    %v3691 = vpack.c.b16 %v2651, %v2638
    %v3692 = vpack.c.b16 %v2652, %v2639
    %v3693 = vpack.c.b16 %v2653, %v2640
    %v3694 = vpack.c.b16 %v2654, %v2641
    %v3695 = vpack.c.b16 %v2655, %v2642
    %v3696 = vpack.c.b16 %v2656, %v2643
    %v3697 = vpack.c.b16 %v2657, %v2644
    %v3698 = vpack.c.b16 %v2658, %v2645
    %v3699 = vpack.c.b16 %v2659, %v2646
    %v3700 = vpack.c.b16 %v2660, %v2647
    %v3701 = vpack.c.b16 %v2661, %v2648
    %v3702 = vpack.c.b16 %v2662, %v2649
    %v3703 = vpack.c.b16 %v2676, %v2663
    %v3704 = vpack.c.b16 %v2677, %v2664
    %v3705 = vpack.c.b16 %v2678, %v2665
    %v3706 = vpack.c.b16 %v2679, %v2666
    %v3707 = vpack.c.b16 %v2680, %v2667
    %v3708 = vpack.c.b16 %v2681, %v2668
    %v3709 = vpack.c.b16 %v2682, %v2669
    %v3710 = vpack.c.b16 %v2683, %v2670
    %v3711 = vpack.c.b16 %v2684, %v2671
    %v3712 = vpack.c.b16 %v2685, %v2672
    %v3713 = vpack.c.b16 %v2686, %v2673
    %v3714 = vpack.c.b16 %v2687, %v2674
    %v3715 = vpack.c.b16 %v2688, %v2675
    %v3716 = vpack.c.b16 %v2702, %v2689
    %v3717 = vpack.c.b16 %v2703, %v2690
    %v3718 = vpack.c.b16 %v2704, %v2691
    %v3719 = vpack.c.b16 %v2705, %v2692
    %v3720 = vpack.c.b16 %v2706, %v2693
    %v3721 = vpack.c.b16 %v2707, %v2694
    %v3722 = vpack.c.b16 %v2708, %v2695
    %v3723 = vpack.c.b16 %v2709, %v2696
    %v3724 = vpack.c.b16 %v2710, %v2697
    %v3725 = vpack.c.b16 %v2711, %v2698
    %v3726 = vpack.c.b16 %v2712, %v2699
    %v3727 = vpack.c.b16 %v2713, %v2700
    %v3728 = vpack.c.b16 %v2714, %v2701
    %v3729 = vpack.c.b16 %v2728, %v2715
    %v3730 = vpack.c.b16 %v2729, %v2716
    %v3731 = vpack.c.b16 %v2730, %v2717
    %v3732 = vpack.c.b16 %v2731, %v2718
    %v3733 = vpack.c.b16 %v2732, %v2719
    %v3734 = vpack.c.b16 %v2733, %v2720
    %v3735 = vpack.c.b16 %v2734, %v2721
    %v3736 = vpack.c.b16 %v2735, %v2722
    %v3737 = vpack.c.b16 %v2736, %v2723
    %v3738 = vpack.c.b16 %v2737, %v2724
    %v3739 = vpack.c.b16 %v2738, %v2725
    %v3740 = vpack.c.b16 %v2739, %v2726
    %v3741 = vpack.c.b16 %v2740, %v2727
    %v3742 = vpack.c.b16 %v2754, %v2741
    %v3743 = vpack.c.b16 %v2755, %v2742
    %v3744 = vpack.c.b16 %v2756, %v2743
    %v3745 = vpack.c.b16 %v2757, %v2744
    %v3746 = vpack.c.b16 %v2758, %v2745
    %v3747 = vpack.c.b16 %v2759, %v2746
    %v3748 = vpack.c.b16 %v2760, %v2747
    %v3749 = vpack.c.b16 %v2761, %v2748
    %v3750 = vpack.c.b16 %v2762, %v2749
    %v3751 = vpack.c.b16 %v2763, %v2750
    %v3752 = vpack.c.b16 %v2764, %v2751
    %v3753 = vpack.c.b16 %v2765, %v2752
    %v3754 = vpack.c.b16 %v2766, %v2753
    %v3755 = vpack.c.b16 %v2780, %v2767
    %v3756 = vpack.c.b16 %v2781, %v2768
    %v3757 = vpack.c.b16 %v2782, %v2769
    %v3758 = vpack.c.b16 %v2783, %v2770
    %v3759 = vpack.c.b16 %v2784, %v2771
    %v3760 = vpack.c.b16 %v2785, %v2772
    %v3761 = vpack.c.b16 %v2786, %v2773
    %v3762 = vpack.c.b16 %v2787, %v2774
    %v3763 = vpack.c.b16 %v2788, %v2775
    %v3764 = vpack.c.b16 %v2789, %v2776
    %v3765 = vpack.c.b16 %v2790, %v2777
    %v3766 = vpack.c.b16 %v2791, %v2778
    %v3767 = vpack.c.b16 %v2792, %v2779
    %v3768 = vpack.c.b16 %v2806, %v2793
    %v3769 = vpack.c.b16 %v2807, %v2794
    %v3770 = vpack.c.b16 %v2808, %v2795
    %v3771 = vpack.c.b16 %v2809, %v2796
    %v3772 = vpack.c.b16 %v2810, %v2797
    %v3773 = vpack.c.b16 %v2811, %v2798
    %v3774 = vpack.c.b16 %v2812, %v2799
    %v3775 = vpack.c.b16 %v2813, %v2800
    %v3776 = vpack.c.b16 %v2814, %v2801
    %v3777 = vpack.c.b16 %v2815, %v2802
    %v3778 = vpack.c.b16 %v2816, %v2803
    %v3779 = vpack.c.b16 %v2817, %v2804
    %v3780 = vpack.c.b16 %v2818, %v2805
    %v3781 = vpack.c.b16 %v2832, %v2819
    %v3782 = vpack.c.b16 %v2833, %v2820
    %v3783 = vpack.c.b16 %v2834, %v2821
    %v3784 = vpack.c.b16 %v2835, %v2822
    %v3785 = vpack.c.b16 %v2836, %v2823
    %v3786 = vpack.c.b16 %v2837, %v2824
    %v3787 = vpack.c.b16 %v2838, %v2825
    %v3788 = vpack.c.b16 %v2839, %v2826
    %v3789 = vpack.c.b16 %v2840, %v2827
    %v3790 = vpack.c.b16 %v2841, %v2828
    %v3791 = vpack.c.b16 %v2842, %v2829
    %v3792 = vpack.c.b16 %v2843, %v2830
    %v3793 = vpack.c.b16 %v2844, %v2831
    %v3794 = vpack.c.b16 %v2858, %v2845
    %v3795 = vpack.c.b16 %v2859, %v2846
    %v3796 = vpack.c.b16 %v2860, %v2847
    %v3797 = vpack.c.b16 %v2861, %v2848
    %v3798 = vpack.c.b16 %v2862, %v2849
    %v3799 = vpack.c.b16 %v2863, %v2850
    %v3800 = vpack.c.b16 %v2864, %v2851
    %v3801 = vpack.c.b16 %v2865, %v2852
    %v3802 = vpack.c.b16 %v2866, %v2853
    %v3803 = vpack.c.b16 %v2867, %v2854
    %v3804 = vpack.c.b16 %v2868, %v2855
    %v3805 = vpack.c.b16 %v2869, %v2856
    %v3806 = vpack.c.b16 %v2870, %v2857
    %v3807 = vpack.c.b16 %v2884, %v2871
    %v3808 = vpack.c.b16 %v2885, %v2872
    %v3809 = vpack.c.b16 %v2886, %v2873
    %v3810 = vpack.c.b16 %v2887, %v2874
    %v3811 = vpack.c.b16 %v2888, %v2875
    %v3812 = vpack.c.b16 %v2889, %v2876
    %v3813 = vpack.c.b16 %v2890, %v2877
    %v3814 = vpack.c.b16 %v2891, %v2878
    %v3815 = vpack.c.b16 %v2892, %v2879
    %v3816 = vpack.c.b16 %v2893, %v2880
    %v3817 = vpack.c.b16 %v2894, %v2881
    %v3818 = vpack.c.b16 %v2895, %v2882
    %v3819 = vpack.c.b16 %v2896, %v2883
    %v3820 = vpack.c.b16 %v2910, %v2897
    %v3821 = vpack.c.b16 %v2911, %v2898
    %v3822 = vpack.c.b16 %v2912, %v2899
    %v3823 = vpack.c.b16 %v2913, %v2900
    %v3824 = vpack.c.b16 %v2914, %v2901
    %v3825 = vpack.c.b16 %v2915, %v2902
    %v3826 = vpack.c.b16 %v2916, %v2903
    %v3827 = vpack.c.b16 %v2917, %v2904
    %v3828 = vpack.c.b16 %v2918, %v2905
    %v3829 = vpack.c.b16 %v2919, %v2906
    %v3830 = vpack.c.b16 %v2920, %v2907
    %v3831 = vpack.c.b16 %v2921, %v2908
    %v3832 = vpack.c.b16 %v2922, %v2909
    %v3833 = vpack.c.b16 %v2936, %v2923
    %v3834 = vpack.c.b16 %v2937, %v2924
    %v3835 = vpack.c.b16 %v2938, %v2925
    %v3836 = vpack.c.b16 %v2939, %v2926
    %v3837 = vpack.c.b16 %v2940, %v2927
    %v3838 = vpack.c.b16 %v2941, %v2928
    %v3839 = vpack.c.b16 %v2942, %v2929
    %v3840 = vpack.c.b16 %v2943, %v2930
    %v3841 = vpack.c.b16 %v2944, %v2931
    %v3842 = vpack.c.b16 %v2945, %v2932
    %v3843 = vpack.c.b16 %v2946, %v2933
    %v3844 = vpack.c.b16 %v2947, %v2934
    %v3845 = vpack.c.b16 %v2948, %v2935
    %v3846 = vpack.c.b16 %v2962, %v2949
    %v3847 = vpack.c.b16 %v2963, %v2950
    %v3848 = vpack.c.b16 %v2964, %v2951
    %v3849 = vpack.c.b16 %v2965, %v2952
    %v3850 = vpack.c.b16 %v2966, %v2953
    %v3851 = vpack.c.b16 %v2967, %v2954
    %v3852 = vpack.c.b16 %v2968, %v2955
    %v3853 = vpack.c.b16 %v2969, %v2956
    %v3854 = vpack.c.b16 %v2970, %v2957
    %v3855 = vpack.c.b16 %v2971, %v2958
    %v3856 = vpack.c.b16 %v2972, %v2959
    %v3857 = vpack.c.b16 %v2973, %v2960
    %v3858 = vpack.c.b16 %v2974, %v2961
    %v3859 = vpack.c.b16 %v2988, %v2975
    %v3860 = vpack.c.b16 %v2989, %v2976
    %v3861 = vpack.c.b16 %v2990, %v2977
    %v3862 = vpack.c.b16 %v2991, %v2978
    %v3863 = vpack.c.b16 %v2992, %v2979
    %v3864 = vpack.c.b16 %v2993, %v2980
    %v3865 = vpack.c.b16 %v2994, %v2981
    %v3866 = vpack.c.b16 %v2995, %v2982
    %v3867 = vpack.c.b16 %v2996, %v2983
    %v3868 = vpack.c.b16 %v2997, %v2984
    %v3869 = vpack.c.b16 %v2998, %v2985
    %v3870 = vpack.c.b16 %v2999, %v2986
    %v3871 = vpack.c.b16 %v3000, %v2987
    %v3872 = vpack.c.b16 %v3014, %v3001
    %v3873 = vpack.c.b16 %v3015, %v3002
    %v3874 = vpack.c.b16 %v3016, %v3003
    %v3875 = vpack.c.b16 %v3017, %v3004
    %v3876 = vpack.c.b16 %v3018, %v3005
    %v3877 = vpack.c.b16 %v3019, %v3006
    %v3878 = vpack.c.b16 %v3020, %v3007
    %v3879 = vpack.c.b16 %v3021, %v3008
    %v3880 = vpack.c.b16 %v3022, %v3009
    %v3881 = vpack.c.b16 %v3023, %v3010
    %v3882 = vpack.c.b16 %v3024, %v3011
    %v3883 = vpack.c.b16 %v3025, %v3012
    %v3884 = vpack.c.b16 %v3026, %v3013
    %v3885 = vpack.c.b16 %v3040, %v3027
    %v3886 = vpack.c.b16 %v3041, %v3028
    %v3887 = vpack.c.b16 %v3042, %v3029
    %v3888 = vpack.c.b16 %v3043, %v3030
    %v3889 = vpack.c.b16 %v3044, %v3031
    %v3890 = vpack.c.b16 %v3045, %v3032
    %v3891 = vpack.c.b16 %v3046, %v3033
    %v3892 = vpack.c.b16 %v3047, %v3034
    %v3893 = vpack.c.b16 %v3048, %v3035
    %v3894 = vpack.c.b16 %v3049, %v3036
    %v3895 = vpack.c.b16 %v3050, %v3037
    %v3896 = vpack.c.b16 %v3051, %v3038
    %v3897 = vpack.c.b16 %v3052, %v3039
    %v3898 = vpack.c.b16 %v3066, %v3053
    %v3899 = vpack.c.b16 %v3067, %v3054
    %v3900 = vpack.c.b16 %v3068, %v3055
    %v3901 = vpack.c.b16 %v3069, %v3056
    %v3902 = vpack.c.b16 %v3070, %v3057
    %v3903 = vpack.c.b16 %v3071, %v3058
    %v3904 = vpack.c.b16 %v3072, %v3059
    %v3905 = vpack.c.b16 %v3073, %v3060
    %v3906 = vpack.c.b16 %v3074, %v3061
    %v3907 = vpack.c.b16 %v3075, %v3062
    %v3908 = vpack.c.b16 %v3076, %v3063
    %v3909 = vpack.c.b16 %v3077, %v3064
    %v3910 = vpack.c.b16 %v3078, %v3065
    %v3911 = vpack.c.b16 %v3092, %v3079
    %v3912 = vpack.c.b16 %v3093, %v3080
    %v3913 = vpack.c.b16 %v3094, %v3081
    %v3914 = vpack.c.b16 %v3095, %v3082
    %v3915 = vpack.c.b16 %v3096, %v3083
    %v3916 = vpack.c.b16 %v3097, %v3084
    %v3917 = vpack.c.b16 %v3098, %v3085
    %v3918 = vpack.c.b16 %v3099, %v3086
    %v3919 = vpack.c.b16 %v3100, %v3087
    %v3920 = vpack.c.b16 %v3101, %v3088
    %v3921 = vpack.c.b16 %v3102, %v3089
    %v3922 = vpack.c.b16 %v3103, %v3090
    %v3923 = vpack.c.b16 %v3104, %v3091
    %v3924 = vpack.c.b16 %v3118, %v3105
    %v3925 = vpack.c.b16 %v3119, %v3106
    %v3926 = vpack.c.b16 %v3120, %v3107
    %v3927 = vpack.c.b16 %v3121, %v3108
    %v3928 = vpack.c.b16 %v3122, %v3109
    %v3929 = vpack.c.b16 %v3123, %v3110
    %v3930 = vpack.c.b16 %v3124, %v3111
    %v3931 = vpack.c.b16 %v3125, %v3112
    %v3932 = vpack.c.b16 %v3126, %v3113
    %v3933 = vpack.c.b16 %v3127, %v3114
    %v3934 = vpack.c.b16 %v3128, %v3115
    %v3935 = vpack.c.b16 %v3129, %v3116
    %v3936 = vpack.c.b16 %v3130, %v3117
    %v3937 = vpack.c.b16 %v3144, %v3131
    %v3938 = vpack.c.b16 %v3145, %v3132
    %v3939 = vpack.c.b16 %v3146, %v3133
    %v3940 = vpack.c.b16 %v3147, %v3134
    %v3941 = vpack.c.b16 %v3148, %v3135
    %v3942 = vpack.c.b16 %v3149, %v3136
    %v3943 = vpack.c.b16 %v3150, %v3137
    %v3944 = vpack.c.b16 %v3151, %v3138
    %v3945 = vpack.c.b16 %v3152, %v3139
    %v3946 = vpack.c.b16 %v3153, %v3140
    %v3947 = vpack.c.b16 %v3154, %v3141
    %v3948 = vpack.c.b16 %v3155, %v3142
    %v3949 = vpack.c.b16 %v3156, %v3143
    %v3950 = vpack.c.b16 %v3170, %v3157
    %v3951 = vpack.c.b16 %v3171, %v3158
    %v3952 = vpack.c.b16 %v3172, %v3159
    %v3953 = vpack.c.b16 %v3173, %v3160
    %v3954 = vpack.c.b16 %v3174, %v3161
    %v3955 = vpack.c.b16 %v3175, %v3162
    %v3956 = vpack.c.b16 %v3176, %v3163
    %v3957 = vpack.c.b16 %v3177, %v3164
    %v3958 = vpack.c.b16 %v3178, %v3165
    %v3959 = vpack.c.b16 %v3179, %v3166
    %v3960 = vpack.c.b16 %v3180, %v3167
    %v3961 = vpack.c.b16 %v3181, %v3168
    %v3962 = vpack.c.b16 %v3182, %v3169
    %v3963 = vpack.c.b16 %v3196, %v3183
    %v3964 = vpack.c.b16 %v3197, %v3184
    %v3965 = vpack.c.b16 %v3198, %v3185
    %v3966 = vpack.c.b16 %v3199, %v3186
    %v3967 = vpack.c.b16 %v3200, %v3187
    %v3968 = vpack.c.b16 %v3201, %v3188
    %v3969 = vpack.c.b16 %v3202, %v3189
    %v3970 = vpack.c.b16 %v3203, %v3190
    %v3971 = vpack.c.b16 %v3204, %v3191
    %v3972 = vpack.c.b16 %v3205, %v3192
    %v3973 = vpack.c.b16 %v3206, %v3193
    %v3974 = vpack.c.b16 %v3207, %v3194
    %v3975 = vpack.c.b16 %v3208, %v3195
    %v3976 = vpack.c.b16 %v3222, %v3209
    %v3977 = vpack.c.b16 %v3223, %v3210
    %v3978 = vpack.c.b16 %v3224, %v3211
    %v3979 = vpack.c.b16 %v3225, %v3212
    %v3980 = vpack.c.b16 %v3226, %v3213
    %v3981 = vpack.c.b16 %v3227, %v3214
    %v3982 = vpack.c.b16 %v3228, %v3215
    %v3983 = vpack.c.b16 %v3229, %v3216
    %v3984 = vpack.c.b16 %v3230, %v3217
    %v3985 = vpack.c.b16 %v3231, %v3218
    %v3986 = vpack.c.b16 %v3232, %v3219
    %v3987 = vpack.c.b16 %v3233, %v3220
    %v3988 = vpack.c.b16 %v3234, %v3221
    %v3989 = vpack.c.b16 %v3248, %v3235
    %v3990 = vpack.c.b16 %v3249, %v3236
    %v3991 = vpack.c.b16 %v3250, %v3237
    %v3992 = vpack.c.b16 %v3251, %v3238
    %v3993 = vpack.c.b16 %v3252, %v3239
    %v3994 = vpack.c.b16 %v3253, %v3240
    %v3995 = vpack.c.b16 %v3254, %v3241
    %v3996 = vpack.c.b16 %v3255, %v3242
    %v3997 = vpack.c.b16 %v3256, %v3243
    %v3998 = vpack.c.b16 %v3257, %v3244
    %v3999 = vpack.c.b16 %v3258, %v3245
    %v4000 = vpack.c.b16 %v3259, %v3246
    %v4001 = vpack.c.b16 %v3260, %v3247
    %v4002 = vpack.c.b16 %v3274, %v3261
    %v4003 = vpack.c.b16 %v3275, %v3262
    %v4004 = vpack.c.b16 %v3276, %v3263
    %v4005 = vpack.c.b16 %v3277, %v3264
    %v4006 = vpack.c.b16 %v3278, %v3265
    %v4007 = vpack.c.b16 %v3279, %v3266
    %v4008 = vpack.c.b16 %v3280, %v3267
    %v4009 = vpack.c.b16 %v3281, %v3268
    %v4010 = vpack.c.b16 %v3282, %v3269
    %v4011 = vpack.c.b16 %v3283, %v3270
    %v4012 = vpack.c.b16 %v3284, %v3271
    %v4013 = vpack.c.b16 %v3285, %v3272
    %v4014 = vpack.c.b16 %v3286, %v3273
    %4743 = vmatprep.subr.bf16.mxu0 %v3379
    %4744 = vmatpush1.bf16.msra.mxu0 %v3378
    %4745 = vmatprep.subr.bf16.mxu0 %v3366
    %4746 = vmatpush1.bf16.msra.mxu0 %v3365
    %4747 = vmatprep.subr.bf16.mxu0 %v3353
    %4748 = vmatpush1.bf16.msra.mxu0 %v3352
    %4749 = vmatprep.subr.bf16.mxu0 %v3340
    %4750 = vmatpush1.bf16.msra.mxu0 %v3339
    %4751 = vmatprep.subr.bf16.mxu0 %v3327
    %4752 = vmatpush1.bf16.msra.mxu0 %v3326
    %4753 = vmatprep.subr.bf16.mxu0 %v3314
    %4754 = vmatpush1.bf16.msra.mxu0 %v3313
    %4755 = vmatprep.subr.bf16.mxu0 %v3301
    %4756 = vmatpush1.bf16.msra.mxu0 %v3300
    %4757 = vmatprep.subr.bf16.mxu0 %v3288
    %4758 = vmatpush1.bf16.msra.mxu0 %v3287
    %4759 = vmatprep.subr.bf16.mxu0 %v3483
    %4760 = vmatpush2.bf16.msra.mxu0 %v3482
    %4761 = vmatprep.subr.bf16.mxu0 %v3470
    %4762 = vmatpush2.bf16.msra.mxu0 %v3469
    %4763 = vmatprep.subr.bf16.mxu0 %v3457
    %4764 = vmatpush2.bf16.msra.mxu0 %v3456
    %4765 = vmatprep.subr.bf16.mxu0 %v3444
    %4766 = vmatpush2.bf16.msra.mxu0 %v3443
    %4767 = vmatprep.subr.bf16.mxu0 %v3431
    %4768 = vmatpush2.bf16.msra.mxu0 %v3430
    %4769 = vmatprep.subr.bf16.mxu0 %v3418
    %4770 = vmatpush2.bf16.msra.mxu0 %v3417
    %4771 = vmatprep.subr.bf16.mxu0 %v3405
    %4772 = vmatpush2.bf16.msra.mxu0 %v3404
    %4773 = vmatprep.subr.bf16.mxu0 %v3392
    %4774 = vmatpush2.bf16.msra.mxu0 %v3391
    %4775 = vmatprep.mubr.bf16.mxu0 %v1034
    %4776 = vmatmul.mubr.bf16.gmra.mxu0 %v1033
    %v4777 = vpop.f32.mrf.mxu0
    %v4778 = vadd.f32 %v960, %v4777
    %v4779 = vpop.f32.mrf.mxu0
    %v4780 = vadd.f32 %v964, %v4779
    %v4781 = vpop.f32.mrf.mxu0
    %v4782 = vpop.f32.mrf.mxu0
    %4783 = vdwg.mxu0
    %4784 = vmatprep.subr.bf16.mxu0 %v3587
    %4785 = vmatpush1.bf16.msra.mxu0 %v3586
    %4786 = vmatprep.subr.bf16.mxu0 %v3574
    %4787 = vmatpush1.bf16.msra.mxu0 %v3573
    %4788 = vmatprep.subr.bf16.mxu0 %v3561
    %4789 = vmatpush1.bf16.msra.mxu0 %v3560
    %4790 = vmatprep.subr.bf16.mxu0 %v3548
    %4791 = vmatpush1.bf16.msra.mxu0 %v3547
    %4792 = vmatprep.subr.bf16.mxu0 %v3535
    %4793 = vmatpush1.bf16.msra.mxu0 %v3534
    %4794 = vmatprep.subr.bf16.mxu0 %v3522
    %4795 = vmatpush1.bf16.msra.mxu0 %v3521
    %4796 = vmatprep.subr.bf16.mxu0 %v3509
    %4797 = vmatpush1.bf16.msra.mxu0 %v3508
    %4798 = vmatprep.subr.bf16.mxu0 %v3496
    %4799 = vmatpush1.bf16.msra.mxu0 %v3495
    %4800 = vmatprep.subr.bf16.mxu0 %v3691
    %4801 = vmatpush2.bf16.msra.mxu0 %v3690
    %4802 = vmatprep.subr.bf16.mxu0 %v3678
    %4803 = vmatpush2.bf16.msra.mxu0 %v3677
    %4804 = vmatprep.subr.bf16.mxu0 %v3665
    %4805 = vmatpush2.bf16.msra.mxu0 %v3664
    %4806 = vmatprep.subr.bf16.mxu0 %v3652
    %4807 = vmatpush2.bf16.msra.mxu0 %v3651
    %4808 = vmatprep.subr.bf16.mxu0 %v3639
    %4809 = vmatpush2.bf16.msra.mxu0 %v3638
    %4810 = vmatprep.subr.bf16.mxu0 %v3626
    %4811 = vmatpush2.bf16.msra.mxu0 %v3625
    %4812 = vmatprep.subr.bf16.mxu0 %v3613
    %4813 = vmatpush2.bf16.msra.mxu0 %v3612
    %4814 = vmatprep.subr.bf16.mxu0 %v3600
    %4815 = vmatpush2.bf16.msra.mxu0 %v3599
    %4816 = vmatprep.mubr.bf16.mxu0 %v1036
    %4817 = vmatmul.mubr.bf16.gmra.mxu0 %v1035
    %v4818 = vpop.f32.mrf.mxu0
    %v4819 = vadd.f32 %v4778, %v4818
    %v4820 = vpop.f32.mrf.mxu0
    %v4821 = vadd.f32 %v4780, %v4820
    %v4822 = vpop.f32.mrf.mxu0
    %v4823 = vpop.f32.mrf.mxu0
    %4824 = vdwg.mxu0
    %4825 = vmatprep.subr.bf16.mxu0 %v3795
    %4826 = vmatpush1.bf16.msra.mxu0 %v3794
    %4827 = vmatprep.subr.bf16.mxu0 %v3782
    %4828 = vmatpush1.bf16.msra.mxu0 %v3781
    %4829 = vmatprep.subr.bf16.mxu0 %v3769
    %4830 = vmatpush1.bf16.msra.mxu0 %v3768
    %4831 = vmatprep.subr.bf16.mxu0 %v3756
    %4832 = vmatpush1.bf16.msra.mxu0 %v3755
    %4833 = vmatprep.subr.bf16.mxu0 %v3743
    %4834 = vmatpush1.bf16.msra.mxu0 %v3742
    %4835 = vmatprep.subr.bf16.mxu0 %v3730
    %4836 = vmatpush1.bf16.msra.mxu0 %v3729
    %4837 = vmatprep.subr.bf16.mxu0 %v3717
    %4838 = vmatpush1.bf16.msra.mxu0 %v3716
    %4839 = vmatprep.subr.bf16.mxu0 %v3704
    %4840 = vmatpush1.bf16.msra.mxu0 %v3703
    %4841 = vmatprep.subr.bf16.mxu0 %v3899
    %4842 = vmatpush2.bf16.msra.mxu0 %v3898
    %4843 = vmatprep.subr.bf16.mxu0 %v3886
    %4844 = vmatpush2.bf16.msra.mxu0 %v3885
    %4845 = vmatprep.subr.bf16.mxu0 %v3873
    %4846 = vmatpush2.bf16.msra.mxu0 %v3872
    %4847 = vmatprep.subr.bf16.mxu0 %v3860
    %4848 = vmatpush2.bf16.msra.mxu0 %v3859
    %4849 = vmatprep.subr.bf16.mxu0 %v3847
    %4850 = vmatpush2.bf16.msra.mxu0 %v3846
    %4851 = vmatprep.subr.bf16.mxu0 %v3834
    %4852 = vmatpush2.bf16.msra.mxu0 %v3833
    %4853 = vmatprep.subr.bf16.mxu0 %v3821
    %4854 = vmatpush2.bf16.msra.mxu0 %v3820
    %4855 = vmatprep.subr.bf16.mxu0 %v3808
    %4856 = vmatpush2.bf16.msra.mxu0 %v3807
    %4857 = vmatprep.mubr.bf16.mxu0 %v1038
    %4858 = vmatmul.mubr.bf16.gmra.mxu0 %v1037
    %v4859 = vpop.f32.mrf.mxu0
    %v4860 = vadd.f32 %v4819, %v4859
    %v4861 = vpop.f32.mrf.mxu0
    %v4862 = vadd.f32 %v4821, %v4861
    %v4863 = vpop.f32.mrf.mxu0
    %v4864 = vpop.f32.mrf.mxu0
    %4865 = vdwg.mxu0
    %4866 = vmatprep.subr.bf16.mxu0 %v4003
    %4867 = vmatpush1.bf16.msra.mxu0 %v4002
    %4868 = vmatprep.subr.bf16.mxu0 %v3990
    %4869 = vmatpush1.bf16.msra.mxu0 %v3989
    %4870 = vmatprep.subr.bf16.mxu0 %v3977
    %4871 = vmatpush1.bf16.msra.mxu0 %v3976
    %4872 = vmatprep.subr.bf16.mxu0 %v3964
    %4873 = vmatpush1.bf16.msra.mxu0 %v3963
    %4874 = vmatprep.subr.bf16.mxu0 %v3951
    %4875 = vmatpush1.bf16.msra.mxu0 %v3950
    %4876 = vmatprep.subr.bf16.mxu0 %v3938
    %4877 = vmatpush1.bf16.msra.mxu0 %v3937
    %4878 = vmatprep.subr.bf16.mxu0 %v3925
    %4879 = vmatpush1.bf16.msra.mxu0 %v3924
    %4880 = vmatprep.subr.bf16.mxu0 %v3912
    %4881 = vmatpush1.bf16.msra.mxu0 %v3911
    %4882 = vmatprep.subr.bf16.mxu0 0
    %4883 = vmatpush2.bf16.msra.mxu0 0
    %4884 = vmatprep.subr.bf16.mxu0 0
    %4885 = vmatpush2.bf16.msra.mxu0 0
    %4886 = vmatprep.subr.bf16.mxu0 0
    %4887 = vmatpush2.bf16.msra.mxu0 0
    %4888 = vmatprep.subr.bf16.mxu0 0
    %4889 = vmatpush2.bf16.msra.mxu0 0
    %4890 = vmatprep.subr.bf16.mxu0 0
    %4891 = vmatpush2.bf16.msra.mxu0 0
    %4892 = vmatprep.subr.bf16.mxu0 0
    %4893 = vmatpush2.bf16.msra.mxu0 0
    %4894 = vmatprep.subr.bf16.mxu0 0
    %4895 = vmatpush2.bf16.msra.mxu0 0
    %4896 = vmatprep.subr.bf16.mxu0 0
    %4897 = vmatpush2.bf16.msra.mxu0 0
    %4898 = vmatprep.mubr.bf16.mxu0 0
    %4899 = vmatmul.mubr.bf16.gmra.mxu0 %v1039
    %v4900 = vpop.f32.mrf.mxu0
    %v4901 = vadd.f32 %v4860, %v4900
    %v4902 = vpop.f32.mrf.mxu0
    %v4903 = vadd.f32 %v4862, %v4902
    %v4904 = vpop.f32.mrf.mxu0
    %v4905 = vpop.f32.mrf.mxu0
    %4906 = vdwg.mxu0
    %4907 = vmatprep.subr.bf16.mxu0 %v3381
    %4908 = vmatpush1.bf16.msra.mxu0 %v3380
    %4909 = vmatprep.subr.bf16.mxu0 %v3368
    %4910 = vmatpush1.bf16.msra.mxu0 %v3367
    %4911 = vmatprep.subr.bf16.mxu0 %v3355
    %4912 = vmatpush1.bf16.msra.mxu0 %v3354
    %4913 = vmatprep.subr.bf16.mxu0 %v3342
    %4914 = vmatpush1.bf16.msra.mxu0 %v3341
    %4915 = vmatprep.subr.bf16.mxu0 %v3329
    %4916 = vmatpush1.bf16.msra.mxu0 %v3328
    %4917 = vmatprep.subr.bf16.mxu0 %v3316
    %4918 = vmatpush1.bf16.msra.mxu0 %v3315
    %4919 = vmatprep.subr.bf16.mxu0 %v3303
    %4920 = vmatpush1.bf16.msra.mxu0 %v3302
    %4921 = vmatprep.subr.bf16.mxu0 %v3290
    %4922 = vmatpush1.bf16.msra.mxu0 %v3289
    %4923 = vmatprep.subr.bf16.mxu0 %v3485
    %4924 = vmatpush2.bf16.msra.mxu0 %v3484
    %4925 = vmatprep.subr.bf16.mxu0 %v3472
    %4926 = vmatpush2.bf16.msra.mxu0 %v3471
    %4927 = vmatprep.subr.bf16.mxu0 %v3459
    %4928 = vmatpush2.bf16.msra.mxu0 %v3458
    %4929 = vmatprep.subr.bf16.mxu0 %v3446
    %4930 = vmatpush2.bf16.msra.mxu0 %v3445
    %4931 = vmatprep.subr.bf16.mxu0 %v3433
    %4932 = vmatpush2.bf16.msra.mxu0 %v3432
    %4933 = vmatprep.subr.bf16.mxu0 %v3420
    %4934 = vmatpush2.bf16.msra.mxu0 %v3419
    %4935 = vmatprep.subr.bf16.mxu0 %v3407
    %4936 = vmatpush2.bf16.msra.mxu0 %v3406
    %4937 = vmatprep.subr.bf16.mxu0 %v3394
    %4938 = vmatpush2.bf16.msra.mxu0 %v3393
    %4939 = vmatprep.mubr.bf16.mxu0 %v1034
    %4940 = vmatmul.mubr.bf16.gmra.mxu0 %v1033
    %v4941 = vpop.f32.mrf.mxu0
    %v4942 = vadd.f32 %v968, %v4941
    %v4943 = vpop.f32.mrf.mxu0
    %v4944 = vadd.f32 %v972, %v4943
    %v4945 = vpop.f32.mrf.mxu0
    %v4946 = vpop.f32.mrf.mxu0
    %4947 = vdwg.mxu0
    %4948 = vmatprep.subr.bf16.mxu0 %v3589
    %4949 = vmatpush1.bf16.msra.mxu0 %v3588
    %4950 = vmatprep.subr.bf16.mxu0 %v3576
    %4951 = vmatpush1.bf16.msra.mxu0 %v3575
    %4952 = vmatprep.subr.bf16.mxu0 %v3563
    %4953 = vmatpush1.bf16.msra.mxu0 %v3562
    %4954 = vmatprep.subr.bf16.mxu0 %v3550
    %4955 = vmatpush1.bf16.msra.mxu0 %v3549
    %4956 = vmatprep.subr.bf16.mxu0 %v3537
    %4957 = vmatpush1.bf16.msra.mxu0 %v3536
    %4958 = vmatprep.subr.bf16.mxu0 %v3524
    %4959 = vmatpush1.bf16.msra.mxu0 %v3523
    %4960 = vmatprep.subr.bf16.mxu0 %v3511
    %4961 = vmatpush1.bf16.msra.mxu0 %v3510
    %4962 = vmatprep.subr.bf16.mxu0 %v3498
    %4963 = vmatpush1.bf16.msra.mxu0 %v3497
    %4964 = vmatprep.subr.bf16.mxu0 %v3693
    %4965 = vmatpush2.bf16.msra.mxu0 %v3692
    %4966 = vmatprep.subr.bf16.mxu0 %v3680
    %4967 = vmatpush2.bf16.msra.mxu0 %v3679
    %4968 = vmatprep.subr.bf16.mxu0 %v3667
    %4969 = vmatpush2.bf16.msra.mxu0 %v3666
    %4970 = vmatprep.subr.bf16.mxu0 %v3654
    %4971 = vmatpush2.bf16.msra.mxu0 %v3653
    %4972 = vmatprep.subr.bf16.mxu0 %v3641
    %4973 = vmatpush2.bf16.msra.mxu0 %v3640
    %4974 = vmatprep.subr.bf16.mxu0 %v3628
    %4975 = vmatpush2.bf16.msra.mxu0 %v3627
    %4976 = vmatprep.subr.bf16.mxu0 %v3615
    %4977 = vmatpush2.bf16.msra.mxu0 %v3614
    %4978 = vmatprep.subr.bf16.mxu0 %v3602
    %4979 = vmatpush2.bf16.msra.mxu0 %v3601
    %4980 = vmatprep.mubr.bf16.mxu0 %v1036
    %4981 = vmatmul.mubr.bf16.gmra.mxu0 %v1035
    %v4982 = vpop.f32.mrf.mxu0
    %v4983 = vadd.f32 %v4942, %v4982
    %v4984 = vpop.f32.mrf.mxu0
    %v4985 = vadd.f32 %v4944, %v4984
    %v4986 = vpop.f32.mrf.mxu0
    %v4987 = vpop.f32.mrf.mxu0
    %4988 = vdwg.mxu0
    %4989 = vmatprep.subr.bf16.mxu0 %v3797
    %4990 = vmatpush1.bf16.msra.mxu0 %v3796
    %4991 = vmatprep.subr.bf16.mxu0 %v3784
    %4992 = vmatpush1.bf16.msra.mxu0 %v3783
    %4993 = vmatprep.subr.bf16.mxu0 %v3771
    %4994 = vmatpush1.bf16.msra.mxu0 %v3770
    %4995 = vmatprep.subr.bf16.mxu0 %v3758
    %4996 = vmatpush1.bf16.msra.mxu0 %v3757
    %4997 = vmatprep.subr.bf16.mxu0 %v3745
    %4998 = vmatpush1.bf16.msra.mxu0 %v3744
    %4999 = vmatprep.subr.bf16.mxu0 %v3732
    %5000 = vmatpush1.bf16.msra.mxu0 %v3731
    %5001 = vmatprep.subr.bf16.mxu0 %v3719
    %5002 = vmatpush1.bf16.msra.mxu0 %v3718
    %5003 = vmatprep.subr.bf16.mxu0 %v3706
    %5004 = vmatpush1.bf16.msra.mxu0 %v3705
    %5005 = vmatprep.subr.bf16.mxu0 %v3901
    %5006 = vmatpush2.bf16.msra.mxu0 %v3900
    %5007 = vmatprep.subr.bf16.mxu0 %v3888
    %5008 = vmatpush2.bf16.msra.mxu0 %v3887
    %5009 = vmatprep.subr.bf16.mxu0 %v3875
    %5010 = vmatpush2.bf16.msra.mxu0 %v3874
    %5011 = vmatprep.subr.bf16.mxu0 %v3862
    %5012 = vmatpush2.bf16.msra.mxu0 %v3861
    %5013 = vmatprep.subr.bf16.mxu0 %v3849
    %5014 = vmatpush2.bf16.msra.mxu0 %v3848
    %5015 = vmatprep.subr.bf16.mxu0 %v3836
    %5016 = vmatpush2.bf16.msra.mxu0 %v3835
    %5017 = vmatprep.subr.bf16.mxu0 %v3823
    %5018 = vmatpush2.bf16.msra.mxu0 %v3822
    %5019 = vmatprep.subr.bf16.mxu0 %v3810
    %5020 = vmatpush2.bf16.msra.mxu0 %v3809
    %5021 = vmatprep.mubr.bf16.mxu0 %v1038
    %5022 = vmatmul.mubr.bf16.gmra.mxu0 %v1037
    %v5023 = vpop.f32.mrf.mxu0
    %v5024 = vadd.f32 %v4983, %v5023
    %v5025 = vpop.f32.mrf.mxu0
    %v5026 = vadd.f32 %v4985, %v5025
    %v5027 = vpop.f32.mrf.mxu0
    %v5028 = vpop.f32.mrf.mxu0
    %5029 = vdwg.mxu0
    %5030 = vmatprep.subr.bf16.mxu0 %v4005
    %5031 = vmatpush1.bf16.msra.mxu0 %v4004
    %5032 = vmatprep.subr.bf16.mxu0 %v3992
    %5033 = vmatpush1.bf16.msra.mxu0 %v3991
    %5034 = vmatprep.subr.bf16.mxu0 %v3979
    %5035 = vmatpush1.bf16.msra.mxu0 %v3978
    %5036 = vmatprep.subr.bf16.mxu0 %v3966
    %5037 = vmatpush1.bf16.msra.mxu0 %v3965
    %5038 = vmatprep.subr.bf16.mxu0 %v3953
    %5039 = vmatpush1.bf16.msra.mxu0 %v3952
    %5040 = vmatprep.subr.bf16.mxu0 %v3940
    %5041 = vmatpush1.bf16.msra.mxu0 %v3939
    %5042 = vmatprep.subr.bf16.mxu0 %v3927
    %5043 = vmatpush1.bf16.msra.mxu0 %v3926
    %5044 = vmatprep.subr.bf16.mxu0 %v3914
    %5045 = vmatpush1.bf16.msra.mxu0 %v3913
    %5046 = vmatprep.subr.bf16.mxu0 0
    %5047 = vmatpush2.bf16.msra.mxu0 0
    %5048 = vmatprep.subr.bf16.mxu0 0
    %5049 = vmatpush2.bf16.msra.mxu0 0
    %5050 = vmatprep.subr.bf16.mxu0 0
    %5051 = vmatpush2.bf16.msra.mxu0 0
    %5052 = vmatprep.subr.bf16.mxu0 0
    %5053 = vmatpush2.bf16.msra.mxu0 0
    %5054 = vmatprep.subr.bf16.mxu0 0
    %5055 = vmatpush2.bf16.msra.mxu0 0
    %5056 = vmatprep.subr.bf16.mxu0 0
    %5057 = vmatpush2.bf16.msra.mxu0 0
    %5058 = vmatprep.subr.bf16.mxu0 0
    %5059 = vmatpush2.bf16.msra.mxu0 0
    %5060 = vmatprep.subr.bf16.mxu0 0
    %5061 = vmatpush2.bf16.msra.mxu0 0
    %5062 = vmatprep.mubr.bf16.mxu0 0
    %5063 = vmatmul.mubr.bf16.gmra.mxu0 %v1039
    %v5064 = vpop.f32.mrf.mxu0
    %v5065 = vadd.f32 %v5024, %v5064
    %v5066 = vpop.f32.mrf.mxu0
    %v5067 = vadd.f32 %v5026, %v5066
    %v5068 = vpop.f32.mrf.mxu0
    %v5069 = vpop.f32.mrf.mxu0
    %5070 = vdwg.mxu0
    %5071 = vmatprep.subr.bf16.mxu0 %v3383
    %5072 = vmatpush1.bf16.msra.mxu0 %v3382
    %5073 = vmatprep.subr.bf16.mxu0 %v3370
    %5074 = vmatpush1.bf16.msra.mxu0 %v3369
    %5075 = vmatprep.subr.bf16.mxu0 %v3357
    %5076 = vmatpush1.bf16.msra.mxu0 %v3356
    %5077 = vmatprep.subr.bf16.mxu0 %v3344
    %5078 = vmatpush1.bf16.msra.mxu0 %v3343
    %5079 = vmatprep.subr.bf16.mxu0 %v3331
    %5080 = vmatpush1.bf16.msra.mxu0 %v3330
    %5081 = vmatprep.subr.bf16.mxu0 %v3318
    %5082 = vmatpush1.bf16.msra.mxu0 %v3317
    %5083 = vmatprep.subr.bf16.mxu0 %v3305
    %5084 = vmatpush1.bf16.msra.mxu0 %v3304
    %5085 = vmatprep.subr.bf16.mxu0 %v3292
    %5086 = vmatpush1.bf16.msra.mxu0 %v3291
    %5087 = vmatprep.subr.bf16.mxu0 %v3487
    %5088 = vmatpush2.bf16.msra.mxu0 %v3486
    %5089 = vmatprep.subr.bf16.mxu0 %v3474
    %5090 = vmatpush2.bf16.msra.mxu0 %v3473
    %5091 = vmatprep.subr.bf16.mxu0 %v3461
    %5092 = vmatpush2.bf16.msra.mxu0 %v3460
    %5093 = vmatprep.subr.bf16.mxu0 %v3448
    %5094 = vmatpush2.bf16.msra.mxu0 %v3447
    %5095 = vmatprep.subr.bf16.mxu0 %v3435
    %5096 = vmatpush2.bf16.msra.mxu0 %v3434
    %5097 = vmatprep.subr.bf16.mxu0 %v3422
    %5098 = vmatpush2.bf16.msra.mxu0 %v3421
    %5099 = vmatprep.subr.bf16.mxu0 %v3409
    %5100 = vmatpush2.bf16.msra.mxu0 %v3408
    %5101 = vmatprep.subr.bf16.mxu0 %v3396
    %5102 = vmatpush2.bf16.msra.mxu0 %v3395
    %5103 = vmatprep.mubr.bf16.mxu0 %v1034
    %5104 = vmatmul.mubr.bf16.gmra.mxu0 %v1033
    %v5105 = vpop.f32.mrf.mxu0
    %v5106 = vadd.f32 %v976, %v5105
    %v5107 = vpop.f32.mrf.mxu0
    %v5108 = vadd.f32 %v980, %v5107
    %v5109 = vpop.f32.mrf.mxu0
    %v5110 = vpop.f32.mrf.mxu0
    %5111 = vdwg.mxu0
    %5112 = vmatprep.subr.bf16.mxu0 %v3591
    %5113 = vmatpush1.bf16.msra.mxu0 %v3590
    %5114 = vmatprep.subr.bf16.mxu0 %v3578
    %5115 = vmatpush1.bf16.msra.mxu0 %v3577
    %5116 = vmatprep.subr.bf16.mxu0 %v3565
    %5117 = vmatpush1.bf16.msra.mxu0 %v3564
    %5118 = vmatprep.subr.bf16.mxu0 %v3552
    %5119 = vmatpush1.bf16.msra.mxu0 %v3551
    %5120 = vmatprep.subr.bf16.mxu0 %v3539
    %5121 = vmatpush1.bf16.msra.mxu0 %v3538
    %5122 = vmatprep.subr.bf16.mxu0 %v3526
    %5123 = vmatpush1.bf16.msra.mxu0 %v3525
    %5124 = vmatprep.subr.bf16.mxu0 %v3513
    %5125 = vmatpush1.bf16.msra.mxu0 %v3512
    %5126 = vmatprep.subr.bf16.mxu0 %v3500
    %5127 = vmatpush1.bf16.msra.mxu0 %v3499
    %5128 = vmatprep.subr.bf16.mxu0 %v3695
    %5129 = vmatpush2.bf16.msra.mxu0 %v3694
    %5130 = vmatprep.subr.bf16.mxu0 %v3682
    %5131 = vmatpush2.bf16.msra.mxu0 %v3681
    %5132 = vmatprep.subr.bf16.mxu0 %v3669
    %5133 = vmatpush2.bf16.msra.mxu0 %v3668
    %5134 = vmatprep.subr.bf16.mxu0 %v3656
    %5135 = vmatpush2.bf16.msra.mxu0 %v3655
    %5136 = vmatprep.subr.bf16.mxu0 %v3643
    %5137 = vmatpush2.bf16.msra.mxu0 %v3642
    %5138 = vmatprep.subr.bf16.mxu0 %v3630
    %5139 = vmatpush2.bf16.msra.mxu0 %v3629
    %5140 = vmatprep.subr.bf16.mxu0 %v3617
    %5141 = vmatpush2.bf16.msra.mxu0 %v3616
    %5142 = vmatprep.subr.bf16.mxu0 %v3604
    %5143 = vmatpush2.bf16.msra.mxu0 %v3603
    %5144 = vmatprep.mubr.bf16.mxu0 %v1036
    %5145 = vmatmul.mubr.bf16.gmra.mxu0 %v1035
    %v5146 = vpop.f32.mrf.mxu0
    %v5147 = vadd.f32 %v5106, %v5146
    %v5148 = vpop.f32.mrf.mxu0
    %v5149 = vadd.f32 %v5108, %v5148
    %v5150 = vpop.f32.mrf.mxu0
    %v5151 = vpop.f32.mrf.mxu0
    %5152 = vdwg.mxu0
    %5153 = vmatprep.subr.bf16.mxu0 %v3799
    %5154 = vmatpush1.bf16.msra.mxu0 %v3798
    %5155 = vmatprep.subr.bf16.mxu0 %v3786
    %5156 = vmatpush1.bf16.msra.mxu0 %v3785
    %5157 = vmatprep.subr.bf16.mxu0 %v3773
    %5158 = vmatpush1.bf16.msra.mxu0 %v3772
    %5159 = vmatprep.subr.bf16.mxu0 %v3760
    %5160 = vmatpush1.bf16.msra.mxu0 %v3759
    %5161 = vmatprep.subr.bf16.mxu0 %v3747
    %5162 = vmatpush1.bf16.msra.mxu0 %v3746
    %5163 = vmatprep.subr.bf16.mxu0 %v3734
    %5164 = vmatpush1.bf16.msra.mxu0 %v3733
    %5165 = vmatprep.subr.bf16.mxu0 %v3721
    %5166 = vmatpush1.bf16.msra.mxu0 %v3720
    %5167 = vmatprep.subr.bf16.mxu0 %v3708
    %5168 = vmatpush1.bf16.msra.mxu0 %v3707
    %5169 = vmatprep.subr.bf16.mxu0 %v3903
    %5170 = vmatpush2.bf16.msra.mxu0 %v3902
    %5171 = vmatprep.subr.bf16.mxu0 %v3890
    %5172 = vmatpush2.bf16.msra.mxu0 %v3889
    %5173 = vmatprep.subr.bf16.mxu0 %v3877
    %5174 = vmatpush2.bf16.msra.mxu0 %v3876
    %5175 = vmatprep.subr.bf16.mxu0 %v3864
    %5176 = vmatpush2.bf16.msra.mxu0 %v3863
    %5177 = vmatprep.subr.bf16.mxu0 %v3851
    %5178 = vmatpush2.bf16.msra.mxu0 %v3850
    %5179 = vmatprep.subr.bf16.mxu0 %v3838
    %5180 = vmatpush2.bf16.msra.mxu0 %v3837
    %5181 = vmatprep.subr.bf16.mxu0 %v3825
    %5182 = vmatpush2.bf16.msra.mxu0 %v3824
    %5183 = vmatprep.subr.bf16.mxu0 %v3812
    %5184 = vmatpush2.bf16.msra.mxu0 %v3811
    %5185 = vmatprep.mubr.bf16.mxu0 %v1038
    %5186 = vmatmul.mubr.bf16.gmra.mxu0 %v1037
    %v5187 = vpop.f32.mrf.mxu0
    %v5188 = vadd.f32 %v5147, %v5187
    %v5189 = vpop.f32.mrf.mxu0
    %v5190 = vadd.f32 %v5149, %v5189
    %v5191 = vpop.f32.mrf.mxu0
    %v5192 = vpop.f32.mrf.mxu0
    %5193 = vdwg.mxu0
    %5194 = vmatprep.subr.bf16.mxu0 %v4007
    %5195 = vmatpush1.bf16.msra.mxu0 %v4006
    %5196 = vmatprep.subr.bf16.mxu0 %v3994
    %5197 = vmatpush1.bf16.msra.mxu0 %v3993
    %5198 = vmatprep.subr.bf16.mxu0 %v3981
    %5199 = vmatpush1.bf16.msra.mxu0 %v3980
    %5200 = vmatprep.subr.bf16.mxu0 %v3968
    %5201 = vmatpush1.bf16.msra.mxu0 %v3967
    %5202 = vmatprep.subr.bf16.mxu0 %v3955
    %5203 = vmatpush1.bf16.msra.mxu0 %v3954
    %5204 = vmatprep.subr.bf16.mxu0 %v3942
    %5205 = vmatpush1.bf16.msra.mxu0 %v3941
    %5206 = vmatprep.subr.bf16.mxu0 %v3929
    %5207 = vmatpush1.bf16.msra.mxu0 %v3928
    %5208 = vmatprep.subr.bf16.mxu0 %v3916
    %5209 = vmatpush1.bf16.msra.mxu0 %v3915
    %5210 = vmatprep.subr.bf16.mxu0 0
    %5211 = vmatpush2.bf16.msra.mxu0 0
    %5212 = vmatprep.subr.bf16.mxu0 0
    %5213 = vmatpush2.bf16.msra.mxu0 0
    %5214 = vmatprep.subr.bf16.mxu0 0
    %5215 = vmatpush2.bf16.msra.mxu0 0
    %5216 = vmatprep.subr.bf16.mxu0 0
    %5217 = vmatpush2.bf16.msra.mxu0 0
    %5218 = vmatprep.subr.bf16.mxu0 0
    %5219 = vmatpush2.bf16.msra.mxu0 0
    %5220 = vmatprep.subr.bf16.mxu0 0
    %5221 = vmatpush2.bf16.msra.mxu0 0
    %5222 = vmatprep.subr.bf16.mxu0 0
    %5223 = vmatpush2.bf16.msra.mxu0 0
    %5224 = vmatprep.subr.bf16.mxu0 0
    %5225 = vmatpush2.bf16.msra.mxu0 0
    %5226 = vmatprep.mubr.bf16.mxu0 0
    %5227 = vmatmul.mubr.bf16.gmra.mxu0 %v1039
    %v5228 = vpop.f32.mrf.mxu0
    %v5229 = vadd.f32 %v5188, %v5228
    %v5230 = vpop.f32.mrf.mxu0
    %v5231 = vadd.f32 %v5190, %v5230
    %v5232 = vpop.f32.mrf.mxu0
    %v5233 = vpop.f32.mrf.mxu0
    %5234 = vdwg.mxu0
    %5235 = vmatprep.subr.bf16.mxu0 %v3385
    %5236 = vmatpush1.bf16.msra.mxu0 %v3384
    %5237 = vmatprep.subr.bf16.mxu0 %v3372
    %5238 = vmatpush1.bf16.msra.mxu0 %v3371
    %5239 = vmatprep.subr.bf16.mxu0 %v3359
    %5240 = vmatpush1.bf16.msra.mxu0 %v3358
    %5241 = vmatprep.subr.bf16.mxu0 %v3346
    %5242 = vmatpush1.bf16.msra.mxu0 %v3345
    %5243 = vmatprep.subr.bf16.mxu0 %v3333
    %5244 = vmatpush1.bf16.msra.mxu0 %v3332
    %5245 = vmatprep.subr.bf16.mxu0 %v3320
    %5246 = vmatpush1.bf16.msra.mxu0 %v3319
    %5247 = vmatprep.subr.bf16.mxu0 %v3307
    %5248 = vmatpush1.bf16.msra.mxu0 %v3306
    %5249 = vmatprep.subr.bf16.mxu0 %v3294
    %5250 = vmatpush1.bf16.msra.mxu0 %v3293
    %5251 = vmatprep.subr.bf16.mxu0 %v3489
    %5252 = vmatpush2.bf16.msra.mxu0 %v3488
    %5253 = vmatprep.subr.bf16.mxu0 %v3476
    %5254 = vmatpush2.bf16.msra.mxu0 %v3475
    %5255 = vmatprep.subr.bf16.mxu0 %v3463
    %5256 = vmatpush2.bf16.msra.mxu0 %v3462
    %5257 = vmatprep.subr.bf16.mxu0 %v3450
    %5258 = vmatpush2.bf16.msra.mxu0 %v3449
    %5259 = vmatprep.subr.bf16.mxu0 %v3437
    %5260 = vmatpush2.bf16.msra.mxu0 %v3436
    %5261 = vmatprep.subr.bf16.mxu0 %v3424
    %5262 = vmatpush2.bf16.msra.mxu0 %v3423
    %5263 = vmatprep.subr.bf16.mxu0 %v3411
    %5264 = vmatpush2.bf16.msra.mxu0 %v3410
    %5265 = vmatprep.subr.bf16.mxu0 %v3398
    %5266 = vmatpush2.bf16.msra.mxu0 %v3397
    %5267 = vmatprep.mubr.bf16.mxu0 %v1034
    %5268 = vmatmul.mubr.bf16.gmra.mxu0 %v1033
    %v5269 = vpop.f32.mrf.mxu0
    %v5270 = vadd.f32 %v984, %v5269
    %v5271 = vpop.f32.mrf.mxu0
    %v5272 = vadd.f32 %v988, %v5271
    %v5273 = vpop.f32.mrf.mxu0
    %v5274 = vpop.f32.mrf.mxu0
    %5275 = vdwg.mxu0
    %5276 = vmatprep.subr.bf16.mxu0 %v3593
    %5277 = vmatpush1.bf16.msra.mxu0 %v3592
    %5278 = vmatprep.subr.bf16.mxu0 %v3580
    %5279 = vmatpush1.bf16.msra.mxu0 %v3579
    %5280 = vmatprep.subr.bf16.mxu0 %v3567
    %5281 = vmatpush1.bf16.msra.mxu0 %v3566
    %5282 = vmatprep.subr.bf16.mxu0 %v3554
    %5283 = vmatpush1.bf16.msra.mxu0 %v3553
    %5284 = vmatprep.subr.bf16.mxu0 %v3541
    %5285 = vmatpush1.bf16.msra.mxu0 %v3540
    %5286 = vmatprep.subr.bf16.mxu0 %v3528
    %5287 = vmatpush1.bf16.msra.mxu0 %v3527
    %5288 = vmatprep.subr.bf16.mxu0 %v3515
    %5289 = vmatpush1.bf16.msra.mxu0 %v3514
    %5290 = vmatprep.subr.bf16.mxu0 %v3502
    %5291 = vmatpush1.bf16.msra.mxu0 %v3501
    %5292 = vmatprep.subr.bf16.mxu0 %v3697
    %5293 = vmatpush2.bf16.msra.mxu0 %v3696
    %5294 = vmatprep.subr.bf16.mxu0 %v3684
    %5295 = vmatpush2.bf16.msra.mxu0 %v3683
    %5296 = vmatprep.subr.bf16.mxu0 %v3671
    %5297 = vmatpush2.bf16.msra.mxu0 %v3670
    %5298 = vmatprep.subr.bf16.mxu0 %v3658
    %5299 = vmatpush2.bf16.msra.mxu0 %v3657
    %5300 = vmatprep.subr.bf16.mxu0 %v3645
    %5301 = vmatpush2.bf16.msra.mxu0 %v3644
    %5302 = vmatprep.subr.bf16.mxu0 %v3632
    %5303 = vmatpush2.bf16.msra.mxu0 %v3631
    %5304 = vmatprep.subr.bf16.mxu0 %v3619
    %5305 = vmatpush2.bf16.msra.mxu0 %v3618
    %5306 = vmatprep.subr.bf16.mxu0 %v3606
    %5307 = vmatpush2.bf16.msra.mxu0 %v3605
    %5308 = vmatprep.mubr.bf16.mxu0 %v1036
    %5309 = vmatmul.mubr.bf16.gmra.mxu0 %v1035
    %v5310 = vpop.f32.mrf.mxu0
    %v5311 = vadd.f32 %v5270, %v5310
    %v5312 = vpop.f32.mrf.mxu0
    %v5313 = vadd.f32 %v5272, %v5312
    %v5314 = vpop.f32.mrf.mxu0
    %v5315 = vpop.f32.mrf.mxu0
    %5316 = vdwg.mxu0
    %5317 = vmatprep.subr.bf16.mxu0 %v3801
    %5318 = vmatpush1.bf16.msra.mxu0 %v3800
    %5319 = vmatprep.subr.bf16.mxu0 %v3788
    %5320 = vmatpush1.bf16.msra.mxu0 %v3787
    %5321 = vmatprep.subr.bf16.mxu0 %v3775
    %5322 = vmatpush1.bf16.msra.mxu0 %v3774
    %5323 = vmatprep.subr.bf16.mxu0 %v3762
    %5324 = vmatpush1.bf16.msra.mxu0 %v3761
    %5325 = vmatprep.subr.bf16.mxu0 %v3749
    %5326 = vmatpush1.bf16.msra.mxu0 %v3748
    %5327 = vmatprep.subr.bf16.mxu0 %v3736
    %5328 = vmatpush1.bf16.msra.mxu0 %v3735
    %5329 = vmatprep.subr.bf16.mxu0 %v3723
    %5330 = vmatpush1.bf16.msra.mxu0 %v3722
    %5331 = vmatprep.subr.bf16.mxu0 %v3710
    %5332 = vmatpush1.bf16.msra.mxu0 %v3709
    %5333 = vmatprep.subr.bf16.mxu0 %v3905
    %5334 = vmatpush2.bf16.msra.mxu0 %v3904
    %5335 = vmatprep.subr.bf16.mxu0 %v3892
    %5336 = vmatpush2.bf16.msra.mxu0 %v3891
    %5337 = vmatprep.subr.bf16.mxu0 %v3879
    %5338 = vmatpush2.bf16.msra.mxu0 %v3878
    %5339 = vmatprep.subr.bf16.mxu0 %v3866
    %5340 = vmatpush2.bf16.msra.mxu0 %v3865
    %5341 = vmatprep.subr.bf16.mxu0 %v3853
    %5342 = vmatpush2.bf16.msra.mxu0 %v3852
    %5343 = vmatprep.subr.bf16.mxu0 %v3840
    %5344 = vmatpush2.bf16.msra.mxu0 %v3839
    %5345 = vmatprep.subr.bf16.mxu0 %v3827
    %5346 = vmatpush2.bf16.msra.mxu0 %v3826
    %5347 = vmatprep.subr.bf16.mxu0 %v3814
    %5348 = vmatpush2.bf16.msra.mxu0 %v3813
    %5349 = vmatprep.mubr.bf16.mxu0 %v1038
    %5350 = vmatmul.mubr.bf16.gmra.mxu0 %v1037
    %v5351 = vpop.f32.mrf.mxu0
    %v5352 = vadd.f32 %v5311, %v5351
    %v5353 = vpop.f32.mrf.mxu0
    %v5354 = vadd.f32 %v5313, %v5353
    %v5355 = vpop.f32.mrf.mxu0
    %v5356 = vpop.f32.mrf.mxu0
    %5357 = vdwg.mxu0
    %5358 = vmatprep.subr.bf16.mxu0 %v4009
    %5359 = vmatpush1.bf16.msra.mxu0 %v4008
    %5360 = vmatprep.subr.bf16.mxu0 %v3996
    %5361 = vmatpush1.bf16.msra.mxu0 %v3995
    %5362 = vmatprep.subr.bf16.mxu0 %v3983
    %5363 = vmatpush1.bf16.msra.mxu0 %v3982
    %5364 = vmatprep.subr.bf16.mxu0 %v3970
    %5365 = vmatpush1.bf16.msra.mxu0 %v3969
    %5366 = vmatprep.subr.bf16.mxu0 %v3957
    %5367 = vmatpush1.bf16.msra.mxu0 %v3956
    %5368 = vmatprep.subr.bf16.mxu0 %v3944
    %5369 = vmatpush1.bf16.msra.mxu0 %v3943
    %5370 = vmatprep.subr.bf16.mxu0 %v3931
    %5371 = vmatpush1.bf16.msra.mxu0 %v3930
    %5372 = vmatprep.subr.bf16.mxu0 %v3918
    %5373 = vmatpush1.bf16.msra.mxu0 %v3917
    %5374 = vmatprep.subr.bf16.mxu0 0
    %5375 = vmatpush2.bf16.msra.mxu0 0
    %5376 = vmatprep.subr.bf16.mxu0 0
    %5377 = vmatpush2.bf16.msra.mxu0 0
    %5378 = vmatprep.subr.bf16.mxu0 0
    %5379 = vmatpush2.bf16.msra.mxu0 0
    %5380 = vmatprep.subr.bf16.mxu0 0
    %5381 = vmatpush2.bf16.msra.mxu0 0
    %5382 = vmatprep.subr.bf16.mxu0 0
    %5383 = vmatpush2.bf16.msra.mxu0 0
    %5384 = vmatprep.subr.bf16.mxu0 0
    %5385 = vmatpush2.bf16.msra.mxu0 0
    %5386 = vmatprep.subr.bf16.mxu0 0
    %5387 = vmatpush2.bf16.msra.mxu0 0
    %5388 = vmatprep.subr.bf16.mxu0 0
    %5389 = vmatpush2.bf16.msra.mxu0 0
    %5390 = vmatprep.mubr.bf16.mxu0 0
    %5391 = vmatmul.mubr.bf16.gmra.mxu0 %v1039
    %v5392 = vpop.f32.mrf.mxu0
    %v5393 = vadd.f32 %v5352, %v5392
    %v5394 = vpop.f32.mrf.mxu0
    %v5395 = vadd.f32 %v5354, %v5394
    %v5396 = vpop.f32.mrf.mxu0
    %v5397 = vpop.f32.mrf.mxu0
    %5398 = vdwg.mxu0
    %5399 = vmatprep.subr.bf16.mxu0 %v3387
    %5400 = vmatpush1.bf16.msra.mxu0 %v3386
    %5401 = vmatprep.subr.bf16.mxu0 %v3374
    %5402 = vmatpush1.bf16.msra.mxu0 %v3373
    %5403 = vmatprep.subr.bf16.mxu0 %v3361
    %5404 = vmatpush1.bf16.msra.mxu0 %v3360
    %5405 = vmatprep.subr.bf16.mxu0 %v3348
    %5406 = vmatpush1.bf16.msra.mxu0 %v3347
    %5407 = vmatprep.subr.bf16.mxu0 %v3335
    %5408 = vmatpush1.bf16.msra.mxu0 %v3334
    %5409 = vmatprep.subr.bf16.mxu0 %v3322
    %5410 = vmatpush1.bf16.msra.mxu0 %v3321
    %5411 = vmatprep.subr.bf16.mxu0 %v3309
    %5412 = vmatpush1.bf16.msra.mxu0 %v3308
    %5413 = vmatprep.subr.bf16.mxu0 %v3296
    %5414 = vmatpush1.bf16.msra.mxu0 %v3295
    %5415 = vmatprep.subr.bf16.mxu0 %v3491
    %5416 = vmatpush2.bf16.msra.mxu0 %v3490
    %5417 = vmatprep.subr.bf16.mxu0 %v3478
    %5418 = vmatpush2.bf16.msra.mxu0 %v3477
    %5419 = vmatprep.subr.bf16.mxu0 %v3465
    %5420 = vmatpush2.bf16.msra.mxu0 %v3464
    %5421 = vmatprep.subr.bf16.mxu0 %v3452
    %5422 = vmatpush2.bf16.msra.mxu0 %v3451
    %5423 = vmatprep.subr.bf16.mxu0 %v3439
    %5424 = vmatpush2.bf16.msra.mxu0 %v3438
    %5425 = vmatprep.subr.bf16.mxu0 %v3426
    %5426 = vmatpush2.bf16.msra.mxu0 %v3425
    %5427 = vmatprep.subr.bf16.mxu0 %v3413
    %5428 = vmatpush2.bf16.msra.mxu0 %v3412
    %5429 = vmatprep.subr.bf16.mxu0 %v3400
    %5430 = vmatpush2.bf16.msra.mxu0 %v3399
    %5431 = vmatprep.mubr.bf16.mxu0 %v1034
    %5432 = vmatmul.mubr.bf16.gmra.mxu0 %v1033
    %v5433 = vpop.f32.mrf.mxu0
    %v5434 = vadd.f32 %v992, %v5433
    %v5435 = vpop.f32.mrf.mxu0
    %v5436 = vadd.f32 %v996, %v5435
    %v5437 = vpop.f32.mrf.mxu0
    %v5438 = vpop.f32.mrf.mxu0
    %5439 = vdwg.mxu0
    %5440 = vmatprep.subr.bf16.mxu0 %v3595
    %5441 = vmatpush1.bf16.msra.mxu0 %v3594
    %5442 = vmatprep.subr.bf16.mxu0 %v3582
    %5443 = vmatpush1.bf16.msra.mxu0 %v3581
    %5444 = vmatprep.subr.bf16.mxu0 %v3569
    %5445 = vmatpush1.bf16.msra.mxu0 %v3568
    %5446 = vmatprep.subr.bf16.mxu0 %v3556
    %5447 = vmatpush1.bf16.msra.mxu0 %v3555
    %5448 = vmatprep.subr.bf16.mxu0 %v3543
    %5449 = vmatpush1.bf16.msra.mxu0 %v3542
    %5450 = vmatprep.subr.bf16.mxu0 %v3530
    %5451 = vmatpush1.bf16.msra.mxu0 %v3529
    %5452 = vmatprep.subr.bf16.mxu0 %v3517
    %5453 = vmatpush1.bf16.msra.mxu0 %v3516
    %5454 = vmatprep.subr.bf16.mxu0 %v3504
    %5455 = vmatpush1.bf16.msra.mxu0 %v3503
    %5456 = vmatprep.subr.bf16.mxu0 %v3699
    %5457 = vmatpush2.bf16.msra.mxu0 %v3698
    %5458 = vmatprep.subr.bf16.mxu0 %v3686
    %5459 = vmatpush2.bf16.msra.mxu0 %v3685
    %5460 = vmatprep.subr.bf16.mxu0 %v3673
    %5461 = vmatpush2.bf16.msra.mxu0 %v3672
    %5462 = vmatprep.subr.bf16.mxu0 %v3660
    %5463 = vmatpush2.bf16.msra.mxu0 %v3659
    %5464 = vmatprep.subr.bf16.mxu0 %v3647
    %5465 = vmatpush2.bf16.msra.mxu0 %v3646
    %5466 = vmatprep.subr.bf16.mxu0 %v3634
    %5467 = vmatpush2.bf16.msra.mxu0 %v3633
    %5468 = vmatprep.subr.bf16.mxu0 %v3621
    %5469 = vmatpush2.bf16.msra.mxu0 %v3620
    %5470 = vmatprep.subr.bf16.mxu0 %v3608
    %5471 = vmatpush2.bf16.msra.mxu0 %v3607
    %5472 = vmatprep.mubr.bf16.mxu0 %v1036
    %5473 = vmatmul.mubr.bf16.gmra.mxu0 %v1035
    %v5474 = vpop.f32.mrf.mxu0
    %v5475 = vadd.f32 %v5434, %v5474
    %v5476 = vpop.f32.mrf.mxu0
    %v5477 = vadd.f32 %v5436, %v5476
    %v5478 = vpop.f32.mrf.mxu0
    %v5479 = vpop.f32.mrf.mxu0
    %5480 = vdwg.mxu0
    %5481 = vmatprep.subr.bf16.mxu0 %v3803
    %5482 = vmatpush1.bf16.msra.mxu0 %v3802
    %5483 = vmatprep.subr.bf16.mxu0 %v3790
    %5484 = vmatpush1.bf16.msra.mxu0 %v3789
    %5485 = vmatprep.subr.bf16.mxu0 %v3777
    %5486 = vmatpush1.bf16.msra.mxu0 %v3776
    %5487 = vmatprep.subr.bf16.mxu0 %v3764
    %5488 = vmatpush1.bf16.msra.mxu0 %v3763
    %5489 = vmatprep.subr.bf16.mxu0 %v3751
    %5490 = vmatpush1.bf16.msra.mxu0 %v3750
    %5491 = vmatprep.subr.bf16.mxu0 %v3738
    %5492 = vmatpush1.bf16.msra.mxu0 %v3737
    %5493 = vmatprep.subr.bf16.mxu0 %v3725
    %5494 = vmatpush1.bf16.msra.mxu0 %v3724
    %5495 = vmatprep.subr.bf16.mxu0 %v3712
    %5496 = vmatpush1.bf16.msra.mxu0 %v3711
    %5497 = vmatprep.subr.bf16.mxu0 %v3907
    %5498 = vmatpush2.bf16.msra.mxu0 %v3906
    %5499 = vmatprep.subr.bf16.mxu0 %v3894
    %5500 = vmatpush2.bf16.msra.mxu0 %v3893
    %5501 = vmatprep.subr.bf16.mxu0 %v3881
    %5502 = vmatpush2.bf16.msra.mxu0 %v3880
    %5503 = vmatprep.subr.bf16.mxu0 %v3868
    %5504 = vmatpush2.bf16.msra.mxu0 %v3867
    %5505 = vmatprep.subr.bf16.mxu0 %v3855
    %5506 = vmatpush2.bf16.msra.mxu0 %v3854
    %5507 = vmatprep.subr.bf16.mxu0 %v3842
    %5508 = vmatpush2.bf16.msra.mxu0 %v3841
    %5509 = vmatprep.subr.bf16.mxu0 %v3829
    %5510 = vmatpush2.bf16.msra.mxu0 %v3828
    %5511 = vmatprep.subr.bf16.mxu0 %v3816
    %5512 = vmatpush2.bf16.msra.mxu0 %v3815
    %5513 = vmatprep.mubr.bf16.mxu0 %v1038
    %5514 = vmatmul.mubr.bf16.gmra.mxu0 %v1037
    %v5515 = vpop.f32.mrf.mxu0
    %v5516 = vadd.f32 %v5475, %v5515
    %v5517 = vpop.f32.mrf.mxu0
    %v5518 = vadd.f32 %v5477, %v5517
    %v5519 = vpop.f32.mrf.mxu0
    %v5520 = vpop.f32.mrf.mxu0
    %5521 = vdwg.mxu0
    %5522 = vmatprep.subr.bf16.mxu0 %v4011
    %5523 = vmatpush1.bf16.msra.mxu0 %v4010
    %5524 = vmatprep.subr.bf16.mxu0 %v3998
    %5525 = vmatpush1.bf16.msra.mxu0 %v3997
    %5526 = vmatprep.subr.bf16.mxu0 %v3985
    %5527 = vmatpush1.bf16.msra.mxu0 %v3984
    %5528 = vmatprep.subr.bf16.mxu0 %v3972
    %5529 = vmatpush1.bf16.msra.mxu0 %v3971
    %5530 = vmatprep.subr.bf16.mxu0 %v3959
    %5531 = vmatpush1.bf16.msra.mxu0 %v3958
    %5532 = vmatprep.subr.bf16.mxu0 %v3946
    %5533 = vmatpush1.bf16.msra.mxu0 %v3945
    %5534 = vmatprep.subr.bf16.mxu0 %v3933
    %5535 = vmatpush1.bf16.msra.mxu0 %v3932
    %5536 = vmatprep.subr.bf16.mxu0 %v3920
    %5537 = vmatpush1.bf16.msra.mxu0 %v3919
    %5538 = vmatprep.subr.bf16.mxu0 0
    %5539 = vmatpush2.bf16.msra.mxu0 0
    %5540 = vmatprep.subr.bf16.mxu0 0
    %5541 = vmatpush2.bf16.msra.mxu0 0
    %5542 = vmatprep.subr.bf16.mxu0 0
    %5543 = vmatpush2.bf16.msra.mxu0 0
    %5544 = vmatprep.subr.bf16.mxu0 0
    %5545 = vmatpush2.bf16.msra.mxu0 0
    %5546 = vmatprep.subr.bf16.mxu0 0
    %5547 = vmatpush2.bf16.msra.mxu0 0
    %5548 = vmatprep.subr.bf16.mxu0 0
    %5549 = vmatpush2.bf16.msra.mxu0 0
    %5550 = vmatprep.subr.bf16.mxu0 0
    %5551 = vmatpush2.bf16.msra.mxu0 0
    %5552 = vmatprep.subr.bf16.mxu0 0
    %5553 = vmatpush2.bf16.msra.mxu0 0
    %5554 = vmatprep.mubr.bf16.mxu0 0
    %5555 = vmatmul.mubr.bf16.gmra.mxu0 %v1039
    %v5556 = vpop.f32.mrf.mxu0
    %v5557 = vadd.f32 %v5516, %v5556
    %v5558 = vpop.f32.mrf.mxu0
    %v5559 = vadd.f32 %v5518, %v5558
    %v5560 = vpop.f32.mrf.mxu0
    %v5561 = vpop.f32.mrf.mxu0
    %5562 = vdwg.mxu0
    %5563 = vmatprep.subr.bf16.mxu0 %v3389
    %5564 = vmatpush1.bf16.msra.mxu0 %v3388
    %5565 = vmatprep.subr.bf16.mxu0 %v3376
    %5566 = vmatpush1.bf16.msra.mxu0 %v3375
    %5567 = vmatprep.subr.bf16.mxu0 %v3363
    %5568 = vmatpush1.bf16.msra.mxu0 %v3362
    %5569 = vmatprep.subr.bf16.mxu0 %v3350
    %5570 = vmatpush1.bf16.msra.mxu0 %v3349
    %5571 = vmatprep.subr.bf16.mxu0 %v3337
    %5572 = vmatpush1.bf16.msra.mxu0 %v3336
    %5573 = vmatprep.subr.bf16.mxu0 %v3324
    %5574 = vmatpush1.bf16.msra.mxu0 %v3323
    %5575 = vmatprep.subr.bf16.mxu0 %v3311
    %5576 = vmatpush1.bf16.msra.mxu0 %v3310
    %5577 = vmatprep.subr.bf16.mxu0 %v3298
    %5578 = vmatpush1.bf16.msra.mxu0 %v3297
    %5579 = vmatprep.subr.bf16.mxu0 %v3493
    %5580 = vmatpush2.bf16.msra.mxu0 %v3492
    %5581 = vmatprep.subr.bf16.mxu0 %v3480
    %5582 = vmatpush2.bf16.msra.mxu0 %v3479
    %5583 = vmatprep.subr.bf16.mxu0 %v3467
    %5584 = vmatpush2.bf16.msra.mxu0 %v3466
    %5585 = vmatprep.subr.bf16.mxu0 %v3454
    %5586 = vmatpush2.bf16.msra.mxu0 %v3453
    %5587 = vmatprep.subr.bf16.mxu0 %v3441
    %5588 = vmatpush2.bf16.msra.mxu0 %v3440
    %5589 = vmatprep.subr.bf16.mxu0 %v3428
    %5590 = vmatpush2.bf16.msra.mxu0 %v3427
    %5591 = vmatprep.subr.bf16.mxu0 %v3415
    %5592 = vmatpush2.bf16.msra.mxu0 %v3414
    %5593 = vmatprep.subr.bf16.mxu0 %v3402
    %5594 = vmatpush2.bf16.msra.mxu0 %v3401
    %5595 = vmatprep.mubr.bf16.mxu0 %v1034
    %5596 = vmatmul.mubr.bf16.gmra.mxu0 %v1033
    %v5597 = vpop.f32.mrf.mxu0
    %v5598 = vadd.f32 %v1000, %v5597
    %v5599 = vpop.f32.mrf.mxu0
    %v5600 = vadd.f32 %v1004, %v5599
    %v5601 = vpop.f32.mrf.mxu0
    %v5602 = vpop.f32.mrf.mxu0
    %5603 = vdwg.mxu0
    %5604 = vmatprep.subr.bf16.mxu0 %v3597
    %5605 = vmatpush1.bf16.msra.mxu0 %v3596
    %5606 = vmatprep.subr.bf16.mxu0 %v3584
    %5607 = vmatpush1.bf16.msra.mxu0 %v3583
    %5608 = vmatprep.subr.bf16.mxu0 %v3571
    %5609 = vmatpush1.bf16.msra.mxu0 %v3570
    %5610 = vmatprep.subr.bf16.mxu0 %v3558
    %5611 = vmatpush1.bf16.msra.mxu0 %v3557
    %5612 = vmatprep.subr.bf16.mxu0 %v3545
    %5613 = vmatpush1.bf16.msra.mxu0 %v3544
    %5614 = vmatprep.subr.bf16.mxu0 %v3532
    %5615 = vmatpush1.bf16.msra.mxu0 %v3531
    %5616 = vmatprep.subr.bf16.mxu0 %v3519
    %5617 = vmatpush1.bf16.msra.mxu0 %v3518
    %5618 = vmatprep.subr.bf16.mxu0 %v3506
    %5619 = vmatpush1.bf16.msra.mxu0 %v3505
    %5620 = vmatprep.subr.bf16.mxu0 %v3701
    %5621 = vmatpush2.bf16.msra.mxu0 %v3700
    %5622 = vmatprep.subr.bf16.mxu0 %v3688
    %5623 = vmatpush2.bf16.msra.mxu0 %v3687
    %5624 = vmatprep.subr.bf16.mxu0 %v3675
    %5625 = vmatpush2.bf16.msra.mxu0 %v3674
    %5626 = vmatprep.subr.bf16.mxu0 %v3662
    %5627 = vmatpush2.bf16.msra.mxu0 %v3661
    %5628 = vmatprep.subr.bf16.mxu0 %v3649
    %5629 = vmatpush2.bf16.msra.mxu0 %v3648
    %5630 = vmatprep.subr.bf16.mxu0 %v3636
    %5631 = vmatpush2.bf16.msra.mxu0 %v3635
    %5632 = vmatprep.subr.bf16.mxu0 %v3623
    %5633 = vmatpush2.bf16.msra.mxu0 %v3622
    %5634 = vmatprep.subr.bf16.mxu0 %v3610
    %5635 = vmatpush2.bf16.msra.mxu0 %v3609
    %5636 = vmatprep.mubr.bf16.mxu0 %v1036
    %5637 = vmatmul.mubr.bf16.gmra.mxu0 %v1035
    %v5638 = vpop.f32.mrf.mxu0
    %v5639 = vadd.f32 %v5598, %v5638
    %v5640 = vpop.f32.mrf.mxu0
    %v5641 = vadd.f32 %v5600, %v5640
    %v5642 = vpop.f32.mrf.mxu0
    %v5643 = vpop.f32.mrf.mxu0
    %5644 = vdwg.mxu0
    %5645 = vmatprep.subr.bf16.mxu0 %v3805
    %5646 = vmatpush1.bf16.msra.mxu0 %v3804
    %5647 = vmatprep.subr.bf16.mxu0 %v3792
    %5648 = vmatpush1.bf16.msra.mxu0 %v3791
    %5649 = vmatprep.subr.bf16.mxu0 %v3779
    %5650 = vmatpush1.bf16.msra.mxu0 %v3778
    %5651 = vmatprep.subr.bf16.mxu0 %v3766
    %5652 = vmatpush1.bf16.msra.mxu0 %v3765
    %5653 = vmatprep.subr.bf16.mxu0 %v3753
    %5654 = vmatpush1.bf16.msra.mxu0 %v3752
    %5655 = vmatprep.subr.bf16.mxu0 %v3740
    %5656 = vmatpush1.bf16.msra.mxu0 %v3739
    %5657 = vmatprep.subr.bf16.mxu0 %v3727
    %5658 = vmatpush1.bf16.msra.mxu0 %v3726
    %5659 = vmatprep.subr.bf16.mxu0 %v3714
    %5660 = vmatpush1.bf16.msra.mxu0 %v3713
    %5661 = vmatprep.subr.bf16.mxu0 %v3909
    %5662 = vmatpush2.bf16.msra.mxu0 %v3908
    %5663 = vmatprep.subr.bf16.mxu0 %v3896
    %5664 = vmatpush2.bf16.msra.mxu0 %v3895
    %5665 = vmatprep.subr.bf16.mxu0 %v3883
    %5666 = vmatpush2.bf16.msra.mxu0 %v3882
    %5667 = vmatprep.subr.bf16.mxu0 %v3870
    %5668 = vmatpush2.bf16.msra.mxu0 %v3869
    %5669 = vmatprep.subr.bf16.mxu0 %v3857
    %5670 = vmatpush2.bf16.msra.mxu0 %v3856
    %5671 = vmatprep.subr.bf16.mxu0 %v3844
    %5672 = vmatpush2.bf16.msra.mxu0 %v3843
    %5673 = vmatprep.subr.bf16.mxu0 %v3831
    %5674 = vmatpush2.bf16.msra.mxu0 %v3830
    %5675 = vmatprep.subr.bf16.mxu0 %v3818
    %5676 = vmatpush2.bf16.msra.mxu0 %v3817
    %5677 = vmatprep.mubr.bf16.mxu0 %v1038
    %5678 = vmatmul.mubr.bf16.gmra.mxu0 %v1037
    %v5679 = vpop.f32.mrf.mxu0
    %v5680 = vadd.f32 %v5639, %v5679
    %v5681 = vpop.f32.mrf.mxu0
    %v5682 = vadd.f32 %v5641, %v5681
    %v5683 = vpop.f32.mrf.mxu0
    %v5684 = vpop.f32.mrf.mxu0
    %5685 = vdwg.mxu0
    %5686 = vmatprep.subr.bf16.mxu0 %v4013
    %5687 = vmatpush1.bf16.msra.mxu0 %v4012
    %5688 = vmatprep.subr.bf16.mxu0 %v4000
    %5689 = vmatpush1.bf16.msra.mxu0 %v3999
    %5690 = vmatprep.subr.bf16.mxu0 %v3987
    %5691 = vmatpush1.bf16.msra.mxu0 %v3986
    %5692 = vmatprep.subr.bf16.mxu0 %v3974
    %5693 = vmatpush1.bf16.msra.mxu0 %v3973
    %5694 = vmatprep.subr.bf16.mxu0 %v3961
    %5695 = vmatpush1.bf16.msra.mxu0 %v3960
    %5696 = vmatprep.subr.bf16.mxu0 %v3948
    %5697 = vmatpush1.bf16.msra.mxu0 %v3947
    %5698 = vmatprep.subr.bf16.mxu0 %v3935
    %5699 = vmatpush1.bf16.msra.mxu0 %v3934
    %5700 = vmatprep.subr.bf16.mxu0 %v3922
    %5701 = vmatpush1.bf16.msra.mxu0 %v3921
    %5702 = vmatprep.subr.bf16.mxu0 0
    %5703 = vmatpush2.bf16.msra.mxu0 0
    %5704 = vmatprep.subr.bf16.mxu0 0
    %5705 = vmatpush2.bf16.msra.mxu0 0
    %5706 = vmatprep.subr.bf16.mxu0 0
    %5707 = vmatpush2.bf16.msra.mxu0 0
    %5708 = vmatprep.subr.bf16.mxu0 0
    %5709 = vmatpush2.bf16.msra.mxu0 0
    %5710 = vmatprep.subr.bf16.mxu0 0
    %5711 = vmatpush2.bf16.msra.mxu0 0
    %5712 = vmatprep.subr.bf16.mxu0 0
    %5713 = vmatpush2.bf16.msra.mxu0 0
    %5714 = vmatprep.subr.bf16.mxu0 0
    %5715 = vmatpush2.bf16.msra.mxu0 0
    %5716 = vmatprep.subr.bf16.mxu0 0
    %5717 = vmatpush2.bf16.msra.mxu0 0
    %5718 = vmatprep.mubr.bf16.mxu0 0
    %5719 = vmatmul.mubr.bf16.gmra.mxu0 %v1039
    %v5720 = vpop.f32.mrf.mxu0
    %v5721 = vadd.f32 %v5680, %v5720
    %v5722 = vpop.f32.mrf.mxu0
    %v5723 = vadd.f32 %v5682, %v5722
    %v5724 = vpop.f32.mrf.mxu0
    %v5725 = vpop.f32.mrf.mxu0
    %5726 = vdwg.mxu0
    %5727 = vmatprep.subr.bf16.mxu0 0
    %5728 = vmatpush1.bf16.msra.mxu0 %v3390
    %5729 = vmatprep.subr.bf16.mxu0 0
    %5730 = vmatpush1.bf16.msra.mxu0 %v3377
    %5731 = vmatprep.subr.bf16.mxu0 0
    %5732 = vmatpush1.bf16.msra.mxu0 %v3364
    %5733 = vmatprep.subr.bf16.mxu0 0
    %5734 = vmatpush1.bf16.msra.mxu0 %v3351
    %5735 = vmatprep.subr.bf16.mxu0 0
    %5736 = vmatpush1.bf16.msra.mxu0 %v3338
    %5737 = vmatprep.subr.bf16.mxu0 0
    %5738 = vmatpush1.bf16.msra.mxu0 %v3325
    %5739 = vmatprep.subr.bf16.mxu0 0
    %5740 = vmatpush1.bf16.msra.mxu0 %v3312
    %5741 = vmatprep.subr.bf16.mxu0 0
    %5742 = vmatpush1.bf16.msra.mxu0 %v3299
    %5743 = vmatprep.subr.bf16.mxu0 0
    %5744 = vmatpush2.bf16.msra.mxu0 %v3494
    %5745 = vmatprep.subr.bf16.mxu0 0
    %5746 = vmatpush2.bf16.msra.mxu0 %v3481
    %5747 = vmatprep.subr.bf16.mxu0 0
    %5748 = vmatpush2.bf16.msra.mxu0 %v3468
    %5749 = vmatprep.subr.bf16.mxu0 0
    %5750 = vmatpush2.bf16.msra.mxu0 %v3455
    %5751 = vmatprep.subr.bf16.mxu0 0
    %5752 = vmatpush2.bf16.msra.mxu0 %v3442
    %5753 = vmatprep.subr.bf16.mxu0 0
    %5754 = vmatpush2.bf16.msra.mxu0 %v3429
    %5755 = vmatprep.subr.bf16.mxu0 0
    %5756 = vmatpush2.bf16.msra.mxu0 %v3416
    %5757 = vmatprep.subr.bf16.mxu0 0
    %5758 = vmatpush2.bf16.msra.mxu0 %v3403
    %5759 = vmatprep.mubr.bf16.mxu0 %v1034
    %5760 = vmatmul.mubr.bf16.gmra.mxu0 %v1033
    %v5761 = vpop.f32.mrf.mxu0
    %v5762 = vadd.f32 %v1008, %v5761
    %v5763 = vpop.f32.mrf.mxu0
    %v5764 = vpop.f32.mrf.mxu0
    %v5765 = vpop.f32.mrf.mxu0
    %5766 = vdwg.mxu0
    %5767 = vmatprep.subr.bf16.mxu0 0
    %5768 = vmatpush1.bf16.msra.mxu0 %v3598
    %5769 = vmatprep.subr.bf16.mxu0 0
    %5770 = vmatpush1.bf16.msra.mxu0 %v3585
    %5771 = vmatprep.subr.bf16.mxu0 0
    %5772 = vmatpush1.bf16.msra.mxu0 %v3572
    %5773 = vmatprep.subr.bf16.mxu0 0
    %5774 = vmatpush1.bf16.msra.mxu0 %v3559
    %5775 = vmatprep.subr.bf16.mxu0 0
    %5776 = vmatpush1.bf16.msra.mxu0 %v3546
    %5777 = vmatprep.subr.bf16.mxu0 0
    %5778 = vmatpush1.bf16.msra.mxu0 %v3533
    %5779 = vmatprep.subr.bf16.mxu0 0
    %5780 = vmatpush1.bf16.msra.mxu0 %v3520
    %5781 = vmatprep.subr.bf16.mxu0 0
    %5782 = vmatpush1.bf16.msra.mxu0 %v3507
    %5783 = vmatprep.subr.bf16.mxu0 0
    %5784 = vmatpush2.bf16.msra.mxu0 %v3702
    %5785 = vmatprep.subr.bf16.mxu0 0
    %5786 = vmatpush2.bf16.msra.mxu0 %v3689
    %5787 = vmatprep.subr.bf16.mxu0 0
    %5788 = vmatpush2.bf16.msra.mxu0 %v3676
    %5789 = vmatprep.subr.bf16.mxu0 0
    %5790 = vmatpush2.bf16.msra.mxu0 %v3663
    %5791 = vmatprep.subr.bf16.mxu0 0
    %5792 = vmatpush2.bf16.msra.mxu0 %v3650
    %5793 = vmatprep.subr.bf16.mxu0 0
    %5794 = vmatpush2.bf16.msra.mxu0 %v3637
    %5795 = vmatprep.subr.bf16.mxu0 0
    %5796 = vmatpush2.bf16.msra.mxu0 %v3624
    %5797 = vmatprep.subr.bf16.mxu0 0
    %5798 = vmatpush2.bf16.msra.mxu0 %v3611
    %5799 = vmatprep.mubr.bf16.mxu0 %v1036
    %5800 = vmatmul.mubr.bf16.gmra.mxu0 %v1035
    %v5801 = vpop.f32.mrf.mxu0
    %v5802 = vadd.f32 %v5762, %v5801
    %v5803 = vpop.f32.mrf.mxu0
    %v5804 = vpop.f32.mrf.mxu0
    %v5805 = vpop.f32.mrf.mxu0
    %5806 = vdwg.mxu0
    %5807 = vmatprep.subr.bf16.mxu0 0
    %5808 = vmatpush1.bf16.msra.mxu0 %v3806
    %5809 = vmatprep.subr.bf16.mxu0 0
    %5810 = vmatpush1.bf16.msra.mxu0 %v3793
    %5811 = vmatprep.subr.bf16.mxu0 0
    %5812 = vmatpush1.bf16.msra.mxu0 %v3780
    %5813 = vmatprep.subr.bf16.mxu0 0
    %5814 = vmatpush1.bf16.msra.mxu0 %v3767
    %5815 = vmatprep.subr.bf16.mxu0 0
    %5816 = vmatpush1.bf16.msra.mxu0 %v3754
    %5817 = vmatprep.subr.bf16.mxu0 0
    %5818 = vmatpush1.bf16.msra.mxu0 %v3741
    %5819 = vmatprep.subr.bf16.mxu0 0
    %5820 = vmatpush1.bf16.msra.mxu0 %v3728
    %5821 = vmatprep.subr.bf16.mxu0 0
    %5822 = vmatpush1.bf16.msra.mxu0 %v3715
    %5823 = vmatprep.subr.bf16.mxu0 0
    %5824 = vmatpush2.bf16.msra.mxu0 %v3910
    %5825 = vmatprep.subr.bf16.mxu0 0
    %5826 = vmatpush2.bf16.msra.mxu0 %v3897
    %5827 = vmatprep.subr.bf16.mxu0 0
    %5828 = vmatpush2.bf16.msra.mxu0 %v3884
    %5829 = vmatprep.subr.bf16.mxu0 0
    %5830 = vmatpush2.bf16.msra.mxu0 %v3871
    %5831 = vmatprep.subr.bf16.mxu0 0
    %5832 = vmatpush2.bf16.msra.mxu0 %v3858
    %5833 = vmatprep.subr.bf16.mxu0 0
    %5834 = vmatpush2.bf16.msra.mxu0 %v3845
    %5835 = vmatprep.subr.bf16.mxu0 0
    %5836 = vmatpush2.bf16.msra.mxu0 %v3832
    %5837 = vmatprep.subr.bf16.mxu0 0
    %5838 = vmatpush2.bf16.msra.mxu0 %v3819
    %5839 = vmatprep.mubr.bf16.mxu0 %v1038
    %5840 = vmatmul.mubr.bf16.gmra.mxu0 %v1037
    %v5841 = vpop.f32.mrf.mxu0
    %v5842 = vadd.f32 %v5802, %v5841
    %v5843 = vpop.f32.mrf.mxu0
    %v5844 = vpop.f32.mrf.mxu0
    %v5845 = vpop.f32.mrf.mxu0
    %5846 = vdwg.mxu0
    %5847 = vmatprep.subr.bf16.mxu0 0
    %5848 = vmatpush1.bf16.msra.mxu0 %v4014
    %5849 = vmatprep.subr.bf16.mxu0 0
    %5850 = vmatpush1.bf16.msra.mxu0 %v4001
    %5851 = vmatprep.subr.bf16.mxu0 0
    %5852 = vmatpush1.bf16.msra.mxu0 %v3988
    %5853 = vmatprep.subr.bf16.mxu0 0
    %5854 = vmatpush1.bf16.msra.mxu0 %v3975
    %5855 = vmatprep.subr.bf16.mxu0 0
    %5856 = vmatpush1.bf16.msra.mxu0 %v3962
    %5857 = vmatprep.subr.bf16.mxu0 0
    %5858 = vmatpush1.bf16.msra.mxu0 %v3949
    %5859 = vmatprep.subr.bf16.mxu0 0
    %5860 = vmatpush1.bf16.msra.mxu0 %v3936
    %5861 = vmatprep.subr.bf16.mxu0 0
    %5862 = vmatpush1.bf16.msra.mxu0 %v3923
    %5863 = vmatprep.subr.bf16.mxu0 0
    %5864 = vmatpush2.bf16.msra.mxu0 0
    %5865 = vmatprep.subr.bf16.mxu0 0
    %5866 = vmatpush2.bf16.msra.mxu0 0
    %5867 = vmatprep.subr.bf16.mxu0 0
    %5868 = vmatpush2.bf16.msra.mxu0 0
    %5869 = vmatprep.subr.bf16.mxu0 0
    %5870 = vmatpush2.bf16.msra.mxu0 0
    %5871 = vmatprep.subr.bf16.mxu0 0
    %5872 = vmatpush2.bf16.msra.mxu0 0
    %5873 = vmatprep.subr.bf16.mxu0 0
    %5874 = vmatpush2.bf16.msra.mxu0 0
    %5875 = vmatprep.subr.bf16.mxu0 0
    %5876 = vmatpush2.bf16.msra.mxu0 0
    %5877 = vmatprep.subr.bf16.mxu0 0
    %5878 = vmatpush2.bf16.msra.mxu0 0
    %5879 = vmatprep.mubr.bf16.mxu0 0
    %5880 = vmatmul.mubr.bf16.gmra.mxu0 %v1039
    %v5881 = vpop.f32.mrf.mxu0
    %v5882 = vadd.f32 %v5842, %v5881
    %v5883 = vpop.f32.mrf.mxu0
    %v5884 = vpop.f32.mrf.mxu0
    %v5885 = vpop.f32.mrf.mxu0
    %5886 = vdwg.mxu0
    %v5887 = vmax.f32 %v4901, 0.0
    %v5888 = vmax.f32 %v4903, 0.0
    %v5889 = vmax.f32 %v5065, 0.0
    %v5890 = vmax.f32 %v5067, 0.0
    %v5891 = vmax.f32 %v5229, 0.0
    %v5892 = vmax.f32 %v5231, 0.0
    %v5893 = vmax.f32 %v5393, 0.0
    %v5894 = vmax.f32 %v5395, 0.0
    %v5895 = vmax.f32 %v5557, 0.0
    %v5896 = vmax.f32 %v5559, 0.0
    %v5897 = vmax.f32 %v5721, 0.0
    %v5898 = vmax.f32 %v5723, 0.0
    %v5899 = vmax.f32 %v5882, 0.0
    %v5900 = vpack.c.bf16 %v5887, %v5887
    %v5901 = vpack.c.bf16 %v5888, %v5888
    %v5902 = vpack.c.bf16 %v5889, %v5889
    %v5903 = vpack.c.bf16 %v5890, %v5890
    %v5904 = vpack.c.bf16 %v5891, %v5891
    %v5905 = vpack.c.bf16 %v5892, %v5892
    %v5906 = vpack.c.bf16 %v5893, %v5893
    %v5907 = vpack.c.bf16 %v5894, %v5894
    %v5908 = vpack.c.bf16 %v5895, %v5895
    %v5909 = vpack.c.bf16 %v5896, %v5896
    %v5910 = vpack.c.bf16 %v5897, %v5897
    %v5911 = vpack.c.bf16 %v5898, %v5898
    %v5912 = vpack.c.bf16 %v5899, %v5899
    %v5913 = vld [vmem:[#allocation6] sm:$0xff]
    %v5914 = vld [vmem:[#allocation6 + $0x8] sm:$0xff]
    %v5915 = vld [vmem:[#allocation6 + $0x10] sm:$0xff]
    %v5916 = vld [vmem:[#allocation6 + $0x18] sm:$0xf]
    %v5917 = vld [vmem:[#allocation6 + $0x1c] sm:$0xff]
    %v5918 = vld [vmem:[#allocation6 + $0x24] sm:$0xff]
    %v5919 = vld [vmem:[#allocation6 + $0x2c] sm:$0xff]
    %v5920 = vld [vmem:[#allocation6 + $0x34] sm:$0xf]
    %v5921 = vld [vmem:[#allocation6 + $0x38] sm:$0xff]
    %v5922 = vld [vmem:[#allocation6 + $0x40] sm:$0xff]
    %v5923 = vld [vmem:[#allocation6 + $0x48] sm:$0xff]
    %v5924 = vld [vmem:[#allocation6 + $0x50] sm:$0xf]
    %v5925 = vld [vmem:[#allocation6 + $0x54] sm:$0xff]
    %v5926 = vld [vmem:[#allocation6 + $0x5c] sm:$0xff]
    %v5927 = vld [vmem:[#allocation6 + $0x64] sm:$0xff]
    %v5928 = vld [vmem:[#allocation6 + $0x6c] sm:$0xf]
    %v5929 = vld [vmem:[#allocation6 + $0x70] sm:$0xff]
    %v5930 = vld [vmem:[#allocation6 + $0x78] sm:$0xff]
    %v5931 = vld [vmem:[#allocation6 + $0x80] sm:$0xff]
    %v5932 = vld [vmem:[#allocation6 + $0x88] sm:$0xf]
    %v5933 = vld [vmem:[#allocation6 + $0x8c] sm:$0xff]
    %v5934 = vld [vmem:[#allocation6 + $0x94] sm:$0xff]
    %v5935 = vld [vmem:[#allocation6 + $0x9c] sm:$0xff]
    %v5936 = vld [vmem:[#allocation6 + $0xa4] sm:$0xf]
    %v5937 = vld [vmem:[#allocation6 + $0xa8] sm:$0xff]
    %v5938 = vld [vmem:[#allocation6 + $0xb0] sm:$0xff]
    %v5939 = vld [vmem:[#allocation6 + $0xb8] sm:$0xff]
    %v5940 = vld [vmem:[#allocation6 + $0xc0] sm:$0xf]
    %v5941 = vld [vmem:[#allocation6 + $0xc4] sm:$0xff]
    %v5942 = vld [vmem:[#allocation6 + $0xcc] sm:$0xff]
    %v5943 = vld [vmem:[#allocation6 + $0xd4] sm:$0xff]
    %v5944 = vld [vmem:[#allocation6 + $0xdc] sm:$0xf]
    %v5945 = vld [vmem:[#allocation6 + $0xe0] sm:$0xff]
    %v5946 = vld [vmem:[#allocation6 + $0xe8] sm:$0xff]
    %v5947 = vld [vmem:[#allocation6 + $0xf0] sm:$0xff]
    %v5948 = vld [vmem:[#allocation6 + $0xf8] sm:$0xf]
    %v5949 = vld [vmem:[#allocation6 + $0xfc] sm:$0xff]
    %v5950 = vld [vmem:[#allocation6 + $0x104] sm:$0xff]
    %v5951 = vld [vmem:[#allocation6 + $0x10c] sm:$0xff]
    %v5952 = vld [vmem:[#allocation6 + $0x114] sm:$0xf]
    %v5953 = vld [vmem:[#allocation6 + $0x118] sm:$0xff]
    %v5954 = vld [vmem:[#allocation6 + $0x120] sm:$0xff]
    %v5955 = vld [vmem:[#allocation6 + $0x128] sm:$0xff]
    %v5956 = vld [vmem:[#allocation6 + $0x130] sm:$0xf]
    %v5957 = vld [vmem:[#allocation6 + $0x134] sm:$0xff]
    %v5958 = vld [vmem:[#allocation6 + $0x13c] sm:$0xff]
    %v5959 = vld [vmem:[#allocation6 + $0x144] sm:$0xff]
    %v5960 = vld [vmem:[#allocation6 + $0x14c] sm:$0xf]
    %v5961 = vld [vmem:[#allocation6 + $0x150] sm:$0xff]
    %v5962 = vld [vmem:[#allocation6 + $0x158] sm:$0xff]
    %v5963 = vld [vmem:[#allocation6 + $0x160] sm:$0xff]
    %v5964 = vld [vmem:[#allocation6 + $0x168] sm:$0xf]
    %v5965 = vld [vmem:[#allocation6 + $0x16c] sm:$0xff]
    %v5966 = vld [vmem:[#allocation6 + $0x174] sm:$0xff]
    %v5967 = vld [vmem:[#allocation6 + $0x17c] sm:$0xff]
    %v5968 = vld [vmem:[#allocation6 + $0x184] sm:$0xf]
    %v5969 = vld [vmem:[#allocation6 + $0x188] sm:$0xff]
    %v5970 = vld [vmem:[#allocation6 + $0x190] sm:$0xff]
    %v5971 = vld [vmem:[#allocation6 + $0x198] sm:$0xff]
    %v5972 = vld [vmem:[#allocation6 + $0x1a0] sm:$0xf]
    %v5973 = vld [vmem:[#allocation6 + $0x1a4] sm:$0xff]
    %v5974 = vld [vmem:[#allocation6 + $0x1ac] sm:$0xff]
    %v5975 = vld [vmem:[#allocation6 + $0x1b4] sm:$0xff]
    %v5976 = vld [vmem:[#allocation6 + $0x1bc] sm:$0xf]
    %v5977 = vld [vmem:[#allocation6 + $0x1c0] sm:$0xff]
    %v5978 = vld [vmem:[#allocation6 + $0x1c8] sm:$0xff]
    %v5979 = vld [vmem:[#allocation6 + $0x1d0] sm:$0xff]
    %v5980 = vld [vmem:[#allocation6 + $0x1d8] sm:$0xf]
    %v5981 = vld [vmem:[#allocation6 + $0x1dc] sm:$0xff]
    %v5982 = vld [vmem:[#allocation6 + $0x1e4] sm:$0xff]
    %v5983 = vld [vmem:[#allocation6 + $0x1ec] sm:$0xff]
    %v5984 = vld [vmem:[#allocation6 + $0x1f4] sm:$0xf]
    %v5985 = vld [vmem:[#allocation6 + $0x1f8] sm:$0xff]
    %v5986 = vld [vmem:[#allocation6 + $0x200] sm:$0xff]
    %v5987 = vld [vmem:[#allocation6 + $0x208] sm:$0xff]
    %v5988 = vld [vmem:[#allocation6 + $0x210] sm:$0xf]
    %v5989 = vld [vmem:[#allocation6 + $0x214] sm:$0xff]
    %v5990 = vld [vmem:[#allocation6 + $0x21c] sm:$0xff]
    %v5991 = vld [vmem:[#allocation6 + $0x224] sm:$0xff]
    %v5992 = vld [vmem:[#allocation6 + $0x22c] sm:$0xf]
    %v5993 = vld [vmem:[#allocation6 + $0x230] sm:$0xff]
    %v5994 = vld [vmem:[#allocation6 + $0x238] sm:$0xff]
    %v5995 = vld [vmem:[#allocation6 + $0x240] sm:$0xff]
    %v5996 = vld [vmem:[#allocation6 + $0x248] sm:$0xf]
    %v5997 = vld [vmem:[#allocation6 + $0x24c] sm:$0xff]
    %v5998 = vld [vmem:[#allocation6 + $0x254] sm:$0xff]
    %v5999 = vld [vmem:[#allocation6 + $0x25c] sm:$0xff]
    %v6000 = vld [vmem:[#allocation6 + $0x264] sm:$0xf]
    %v6001 = vld [vmem:[#allocation6 + $0x268] sm:$0xff]
    %v6002 = vld [vmem:[#allocation6 + $0x270] sm:$0xff]
    %v6003 = vld [vmem:[#allocation6 + $0x278] sm:$0xff]
    %v6004 = vld [vmem:[#allocation6 + $0x280] sm:$0xf]
    %v6005 = vld [vmem:[#allocation6 + $0x284] sm:$0xff]
    %v6006 = vld [vmem:[#allocation6 + $0x28c] sm:$0xff]
    %v6007 = vld [vmem:[#allocation6 + $0x294] sm:$0xff]
    %v6008 = vld [vmem:[#allocation6 + $0x29c] sm:$0xf]
    %v6009 = vld [vmem:[#allocation6 + $0x2a0] sm:$0xff]
    %v6010 = vld [vmem:[#allocation6 + $0x2a8] sm:$0xff]
    %v6011 = vld [vmem:[#allocation6 + $0x2b0] sm:$0xff]
    %v6012 = vld [vmem:[#allocation6 + $0x2b8] sm:$0xf]
    %v6013 = vld [vmem:[#allocation6 + $0x2bc] sm:$0xff]
    %v6014 = vld [vmem:[#allocation6 + $0x2c4] sm:$0xff]
    %v6015 = vld [vmem:[#allocation6 + $0x2cc] sm:$0xff]
    %v6016 = vld [vmem:[#allocation6 + $0x2d4] sm:$0xf]
    %v6017 = vld [vmem:[#allocation6 + $0x2d8] sm:$0xff]
    %v6018 = vld [vmem:[#allocation6 + $0x2e0] sm:$0xff]
    %v6019 = vld [vmem:[#allocation6 + $0x2e8] sm:$0xff]
    %v6020 = vld [vmem:[#allocation6 + $0x2f0] sm:$0xf]
    %v6021 = vld [vmem:[#allocation6 + $0x2f4] sm:$0xff]
    %v6022 = vld [vmem:[#allocation6 + $0x2fc] sm:$0xff]
    %v6023 = vld [vmem:[#allocation6 + $0x304] sm:$0xff]
    %v6024 = vld [vmem:[#allocation6 + $0x30c] sm:$0xf]
    %v6025 = vld [vmem:[#allocation6 + $0x310] sm:$0xff]
    %v6026 = vld [vmem:[#allocation6 + $0x318] sm:$0xff]
    %v6027 = vld [vmem:[#allocation6 + $0x320] sm:$0xff]
    %v6028 = vld [vmem:[#allocation6 + $0x328] sm:$0xf]
    %v6029 = vld [vmem:[#allocation6 + $0x32c] sm:$0xff]
    %v6030 = vld [vmem:[#allocation6 + $0x334] sm:$0xff]
    %v6031 = vld [vmem:[#allocation6 + $0x33c] sm:$0xff]
    %v6032 = vld [vmem:[#allocation6 + $0x344] sm:$0xf]
    %v6033 = vld [vmem:[#allocation6 + $0x348] sm:$0xff]
    %v6034 = vld [vmem:[#allocation6 + $0x350] sm:$0xff]
    %v6035 = vld [vmem:[#allocation6 + $0x358] sm:$0xff]
    %v6036 = vld [vmem:[#allocation6 + $0x360] sm:$0xf]
    %v6037 = vld [vmem:[#allocation6 + $0x364] sm:$0xff]
    %v6038 = vld [vmem:[#allocation6 + $0x36c] sm:$0xff]
    %v6039 = vld [vmem:[#allocation6 + $0x374] sm:$0xff]
    %v6040 = vld [vmem:[#allocation6 + $0x37c] sm:$0xf]
    %v6041 = vld [vmem:[#allocation6 + $0x380] sm:$0xff]
    %v6042 = vld [vmem:[#allocation6 + $0x388] sm:$0xff]
    %v6043 = vld [vmem:[#allocation6 + $0x390] sm:$0xff]
    %v6044 = vld [vmem:[#allocation6 + $0x398] sm:$0xf]
    %v6045 = vld [vmem:[#allocation6 + $0x39c] sm:$0xff]
    %v6046 = vld [vmem:[#allocation6 + $0x3a4] sm:$0xff]
    %v6047 = vld [vmem:[#allocation6 + $0x3ac] sm:$0xff]
    %v6048 = vld [vmem:[#allocation6 + $0x3b4] sm:$0xf]
    %v6049 = vld [vmem:[#allocation6 + $0x3b8] sm:$0xff]
    %v6050 = vld [vmem:[#allocation6 + $0x3c0] sm:$0xff]
    %v6051 = vld [vmem:[#allocation6 + $0x3c8] sm:$0xff]
    %v6052 = vld [vmem:[#allocation6 + $0x3d0] sm:$0xf]
    %v6053 = vld [vmem:[#allocation6 + $0x3d4] sm:$0xff]
    %v6054 = vld [vmem:[#allocation6 + $0x3dc] sm:$0xff]
    %v6055 = vld [vmem:[#allocation6 + $0x3e4] sm:$0xff]
    %v6056 = vld [vmem:[#allocation6 + $0x3ec] sm:$0xf]
    %v6057 = vld [vmem:[#allocation6 + $0x3f0] sm:$0xff]
    %v6058 = vld [vmem:[#allocation6 + $0x3f8] sm:$0xff]
    %v6059 = vld [vmem:[#allocation6 + $0x400] sm:$0xff]
    %v6060 = vld [vmem:[#allocation6 + $0x408] sm:$0xf]
    %v6061 = vld [vmem:[#allocation6 + $0x40c] sm:$0xff]
    %v6062 = vld [vmem:[#allocation6 + $0x414] sm:$0xff]
    %v6063 = vld [vmem:[#allocation6 + $0x41c] sm:$0xff]
    %v6064 = vld [vmem:[#allocation6 + $0x424] sm:$0xf]
    %v6065 = vld [vmem:[#allocation6 + $0x428] sm:$0xff]
    %v6066 = vld [vmem:[#allocation6 + $0x430] sm:$0xff]
    %v6067 = vld [vmem:[#allocation6 + $0x438] sm:$0xff]
    %v6068 = vld [vmem:[#allocation6 + $0x440] sm:$0xf]
    %v6069 = vld [vmem:[#allocation6 + $0x444] sm:$0xff]
    %v6070 = vld [vmem:[#allocation6 + $0x44c] sm:$0xff]
    %v6071 = vld [vmem:[#allocation6 + $0x454] sm:$0xff]
    %v6072 = vld [vmem:[#allocation6 + $0x45c] sm:$0xf]
    %v6073 = vld [vmem:[#allocation6 + $0x460] sm:$0xff]
    %v6074 = vld [vmem:[#allocation6 + $0x468] sm:$0xff]
    %v6075 = vld [vmem:[#allocation6 + $0x470] sm:$0xff]
    %v6076 = vld [vmem:[#allocation6 + $0x478] sm:$0xf]
    %v6077 = vld [vmem:[#allocation6 + $0x47c] sm:$0xff]
    %v6078 = vld [vmem:[#allocation6 + $0x484] sm:$0xff]
    %v6079 = vld [vmem:[#allocation6 + $0x48c] sm:$0xff]
    %v6080 = vld [vmem:[#allocation6 + $0x494] sm:$0xf]
    %v6081 = vld [vmem:[#allocation6 + $0x498] sm:$0xff]
    %v6082 = vld [vmem:[#allocation6 + $0x4a0] sm:$0xff]
    %v6083 = vld [vmem:[#allocation6 + $0x4a8] sm:$0xff]
    %v6084 = vld [vmem:[#allocation6 + $0x4b0] sm:$0xf]
    %v6085 = vld [vmem:[#allocation6 + $0x4b4] sm:$0xff]
    %v6086 = vld [vmem:[#allocation6 + $0x4bc] sm:$0xff]
    %v6087 = vld [vmem:[#allocation6 + $0x4c4] sm:$0xff]
    %v6088 = vld [vmem:[#allocation6 + $0x4cc] sm:$0xf]
    %v6089 = vld [vmem:[#allocation6 + $0x4d0] sm:$0xff]
    %v6090 = vld [vmem:[#allocation6 + $0x4d8] sm:$0xff]
    %v6091 = vld [vmem:[#allocation6 + $0x4e0] sm:$0xff]
    %v6092 = vld [vmem:[#allocation6 + $0x4e8] sm:$0xf]
    %v6093 = vld [vmem:[#allocation6 + $0x4ec] sm:$0xff]
    %v6094 = vld [vmem:[#allocation6 + $0x4f4] sm:$0xff]
    %v6095 = vld [vmem:[#allocation6 + $0x4fc] sm:$0xff]
    %v6096 = vld [vmem:[#allocation6 + $0x504] sm:$0xf]
    %v6097 = vld [vmem:[#allocation6 + $0x508] sm:$0xff]
    %v6098 = vld [vmem:[#allocation6 + $0x510] sm:$0xff]
    %v6099 = vld [vmem:[#allocation6 + $0x518] sm:$0xff]
    %v6100 = vld [vmem:[#allocation6 + $0x520] sm:$0xf]
    %v6101 = vld [vmem:[#allocation6 + $0x524] sm:$0xff]
    %v6102 = vld [vmem:[#allocation6 + $0x52c] sm:$0xff]
    %v6103 = vld [vmem:[#allocation6 + $0x534] sm:$0xff]
    %v6104 = vld [vmem:[#allocation6 + $0x53c] sm:$0xf]
    %v6105 = vld [vmem:[#allocation6 + $0x540] sm:$0xff]
    %v6106 = vld [vmem:[#allocation6 + $0x548] sm:$0xff]
    %v6107 = vld [vmem:[#allocation6 + $0x550] sm:$0xff]
    %v6108 = vld [vmem:[#allocation6 + $0x558] sm:$0xf]
    %v6109 = vld [vmem:[#allocation6 + $0x55c] sm:$0xff]
    %v6110 = vld [vmem:[#allocation6 + $0x564] sm:$0xff]
    %v6111 = vld [vmem:[#allocation6 + $0x56c] sm:$0xff]
    %v6112 = vld [vmem:[#allocation6 + $0x574] sm:$0xf]
    %v6113 = vld [vmem:[#allocation6 + $0x578] sm:$0xff]
    %v6114 = vld [vmem:[#allocation6 + $0x580] sm:$0xff]
    %v6115 = vld [vmem:[#allocation6 + $0x588] sm:$0xff]
    %v6116 = vld [vmem:[#allocation6 + $0x590] sm:$0xf]
    %v6117 = vld [vmem:[#allocation6 + $0x594] sm:$0xff]
    %v6118 = vld [vmem:[#allocation6 + $0x59c] sm:$0xff]
    %v6119 = vld [vmem:[#allocation6 + $0x5a4] sm:$0xff]
    %v6120 = vld [vmem:[#allocation6 + $0x5ac] sm:$0xf]
    %v6121 = vld [vmem:[#allocation6 + $0x5b0] sm:$0xff]
    %v6122 = vld [vmem:[#allocation6 + $0x5b8] sm:$0xff]
    %v6123 = vld [vmem:[#allocation6 + $0x5c0] sm:$0xff]
    %v6124 = vld [vmem:[#allocation6 + $0x5c8] sm:$0xf]
    %v6125 = vld [vmem:[#allocation6 + $0x5cc] sm:$0xff]
    %v6126 = vld [vmem:[#allocation6 + $0x5d4] sm:$0xff]
    %v6127 = vld [vmem:[#allocation6 + $0x5dc] sm:$0xff]
    %v6128 = vld [vmem:[#allocation6 + $0x5e4] sm:$0xf]
    %v6129 = vld [vmem:[#allocation6 + $0x5e8] sm:$0xff]
    %v6130 = vld [vmem:[#allocation6 + $0x5f0] sm:$0xff]
    %v6131 = vld [vmem:[#allocation6 + $0x5f8] sm:$0xff]
    %v6132 = vld [vmem:[#allocation6 + $0x600] sm:$0xf]
    %v6133 = vld [vmem:[#allocation6 + $0x604] sm:$0xff]
    %v6134 = vld [vmem:[#allocation6 + $0x60c] sm:$0xff]
    %v6135 = vld [vmem:[#allocation6 + $0x614] sm:$0xff]
    %v6136 = vld [vmem:[#allocation6 + $0x61c] sm:$0xf]
    %v6137 = vld [vmem:[#allocation6 + $0x620] sm:$0xff]
    %v6138 = vld [vmem:[#allocation6 + $0x628] sm:$0xff]
    %v6139 = vld [vmem:[#allocation6 + $0x630] sm:$0xff]
    %v6140 = vld [vmem:[#allocation6 + $0x638] sm:$0xf]
    %v6141 = vld [vmem:[#allocation6 + $0x63c] sm:$0xff]
    %v6142 = vld [vmem:[#allocation6 + $0x644] sm:$0xff]
    %v6143 = vld [vmem:[#allocation6 + $0x64c] sm:$0xff]
    %v6144 = vld [vmem:[#allocation6 + $0x654] sm:$0xf]
    %v6145 = vld [vmem:[#allocation6 + $0x658] sm:$0xff]
    %v6146 = vld [vmem:[#allocation6 + $0x660] sm:$0xff]
    %v6147 = vld [vmem:[#allocation6 + $0x668] sm:$0xff]
    %v6148 = vld [vmem:[#allocation6 + $0x670] sm:$0xf]
    %v6149 = vld [vmem:[#allocation6 + $0x674] sm:$0xff]
    %v6150 = vld [vmem:[#allocation6 + $0x67c] sm:$0xff]
    %v6151 = vld [vmem:[#allocation6 + $0x684] sm:$0xff]
    %v6152 = vld [vmem:[#allocation6 + $0x68c] sm:$0xf]
    %v6153 = vld [vmem:[#allocation6 + $0x690] sm:$0xff]
    %v6154 = vld [vmem:[#allocation6 + $0x698] sm:$0xff]
    %v6155 = vld [vmem:[#allocation6 + $0x6a0] sm:$0xff]
    %v6156 = vld [vmem:[#allocation6 + $0x6a8] sm:$0xf]
    %v6157 = vld [vmem:[#allocation6 + $0x6ac] sm:$0xff]
    %v6158 = vld [vmem:[#allocation6 + $0x6b4] sm:$0xff]
    %v6159 = vld [vmem:[#allocation6 + $0x6bc] sm:$0xff]
    %v6160 = vld [vmem:[#allocation6 + $0x6c4] sm:$0xf]
    %v6161 = vld [vmem:[#allocation6 + $0x6c8] sm:$0xff]
    %v6162 = vld [vmem:[#allocation6 + $0x6d0] sm:$0xff]
    %v6163 = vld [vmem:[#allocation6 + $0x6d8] sm:$0xff]
    %v6164 = vld [vmem:[#allocation6 + $0x6e0] sm:$0xf]
    %v6165 = vld [vmem:[#allocation6 + $0x6e4] sm:$0xff]
    %v6166 = vld [vmem:[#allocation6 + $0x6ec] sm:$0xff]
    %v6167 = vld [vmem:[#allocation6 + $0x6f4] sm:$0xff]
    %v6168 = vld [vmem:[#allocation6 + $0x6fc] sm:$0xf]
    %v6169 = vld [vmem:[#allocation6 + $0x700] sm:$0xff]
    %v6170 = vld [vmem:[#allocation6 + $0x708] sm:$0xff]
    %v6171 = vld [vmem:[#allocation6 + $0x710] sm:$0xff]
    %v6172 = vld [vmem:[#allocation6 + $0x718] sm:$0xf]
    %v6173 = vld [vmem:[#allocation6 + $0x71c] sm:$0xff]
    %v6174 = vld [vmem:[#allocation6 + $0x724] sm:$0xff]
    %v6175 = vld [vmem:[#allocation6 + $0x72c] sm:$0xff]
    %v6176 = vld [vmem:[#allocation6 + $0x734] sm:$0xf]
    %v6177 = vld [vmem:[#allocation6 + $0x738] sm:$0xff]
    %v6178 = vld [vmem:[#allocation6 + $0x740] sm:$0xff]
    %v6179 = vld [vmem:[#allocation6 + $0x748] sm:$0xff]
    %v6180 = vld [vmem:[#allocation6 + $0x750] sm:$0xf]
    %v6181 = vld [vmem:[#allocation6 + $0x754] sm:$0xff]
    %v6182 = vld [vmem:[#allocation6 + $0x75c] sm:$0xff]
    %v6183 = vld [vmem:[#allocation6 + $0x764] sm:$0xff]
    %v6184 = vld [vmem:[#allocation6 + $0x76c] sm:$0xf]
    %v6185 = vld [vmem:[#allocation6 + $0x770] sm:$0xff]
    %v6186 = vld [vmem:[#allocation6 + $0x778] sm:$0xff]
    %v6187 = vld [vmem:[#allocation6 + $0x780] sm:$0xff]
    %v6188 = vld [vmem:[#allocation6 + $0x788] sm:$0xf]
    %v6189 = vld [vmem:[#allocation6 + $0x78c] sm:$0xff]
    %v6190 = vld [vmem:[#allocation6 + $0x794] sm:$0xff]
    %v6191 = vld [vmem:[#allocation6 + $0x79c] sm:$0xff]
    %v6192 = vld [vmem:[#allocation6 + $0x7a4] sm:$0xf]
    %v6193 = vld [vmem:[#allocation6 + $0x7a8] sm:$0xff]
    %v6194 = vld [vmem:[#allocation6 + $0x7b0] sm:$0xff]
    %v6195 = vld [vmem:[#allocation6 + $0x7b8] sm:$0xff]
    %v6196 = vld [vmem:[#allocation6 + $0x7c0] sm:$0xf]
    %v6197 = vld [vmem:[#allocation6 + $0x7c4] sm:$0xff]
    %v6198 = vld [vmem:[#allocation6 + $0x7cc] sm:$0xff]
    %v6199 = vld [vmem:[#allocation6 + $0x7d4] sm:$0xff]
    %v6200 = vld [vmem:[#allocation6 + $0x7dc] sm:$0xf]
    %v6201 = vld [vmem:[#allocation6 + $0x7e0] sm:$0xff]
    %v6202 = vld [vmem:[#allocation6 + $0x7e8] sm:$0xff]
    %v6203 = vld [vmem:[#allocation6 + $0x7f0] sm:$0xff]
    %v6204 = vld [vmem:[#allocation6 + $0x7f8] sm:$0xf]
    %v6205 = vld [vmem:[#allocation6 + $0x7fc] sm:$0xff]
    %v6206 = vld [vmem:[#allocation6 + $0x804] sm:$0xff]
    %v6207 = vld [vmem:[#allocation6 + $0x80c] sm:$0xff]
    %v6208 = vld [vmem:[#allocation6 + $0x814] sm:$0xf]
    %v6209 = vld [vmem:[#allocation6 + $0x818] sm:$0xff]
    %v6210 = vld [vmem:[#allocation6 + $0x820] sm:$0xff]
    %v6211 = vld [vmem:[#allocation6 + $0x828] sm:$0xff]
    %v6212 = vld [vmem:[#allocation6 + $0x830] sm:$0xf]
    %v6213 = vld [vmem:[#allocation6 + $0x834] sm:$0xff]
    %v6214 = vld [vmem:[#allocation6 + $0x83c] sm:$0xff]
    %v6215 = vld [vmem:[#allocation6 + $0x844] sm:$0xff]
    %v6216 = vld [vmem:[#allocation6 + $0x84c] sm:$0xf]
    %v6217 = vld [vmem:[#allocation6 + $0x850] sm:$0xff]
    %v6218 = vld [vmem:[#allocation6 + $0x858] sm:$0xff]
    %v6219 = vld [vmem:[#allocation6 + $0x860] sm:$0xff]
    %v6220 = vld [vmem:[#allocation6 + $0x868] sm:$0xf]
    %v6221 = vld [vmem:[#allocation6 + $0x86c] sm:$0xff]
    %v6222 = vld [vmem:[#allocation6 + $0x874] sm:$0xff]
    %v6223 = vld [vmem:[#allocation6 + $0x87c] sm:$0xff]
    %v6224 = vld [vmem:[#allocation6 + $0x884] sm:$0xf]
    %v6225 = vld [vmem:[#allocation6 + $0x888] sm:$0xff]
    %v6226 = vld [vmem:[#allocation6 + $0x890] sm:$0xff]
    %v6227 = vld [vmem:[#allocation6 + $0x898] sm:$0xff]
    %v6228 = vld [vmem:[#allocation6 + $0x8a0] sm:$0xf]
    %v6229 = vld [vmem:[#allocation6 + $0x8a4] sm:$0xff]
    %v6230 = vld [vmem:[#allocation6 + $0x8ac] sm:$0xff]
    %v6231 = vld [vmem:[#allocation6 + $0x8b4] sm:$0xff]
    %v6232 = vld [vmem:[#allocation6 + $0x8bc] sm:$0xf]
    %v6233 = vld [vmem:[#allocation6 + $0x8c0] sm:$0xff]
    %v6234 = vld [vmem:[#allocation6 + $0x8c8] sm:$0xff]
    %v6235 = vld [vmem:[#allocation6 + $0x8d0] sm:$0xff]
    %v6236 = vld [vmem:[#allocation6 + $0x8d8] sm:$0xf]
    %v6237 = vld [vmem:[#allocation6 + $0x8dc] sm:$0xff]
    %v6238 = vld [vmem:[#allocation6 + $0x8e4] sm:$0xff]
    %v6239 = vld [vmem:[#allocation6 + $0x8ec] sm:$0xff]
    %v6240 = vld [vmem:[#allocation6 + $0x8f4] sm:$0xf]
    %v6241 = vld [vmem:[#allocation6 + $0x8f8] sm:$0xff]
    %v6242 = vld [vmem:[#allocation6 + $0x900] sm:$0xff]
    %v6243 = vld [vmem:[#allocation6 + $0x908] sm:$0xff]
    %v6244 = vld [vmem:[#allocation6 + $0x910] sm:$0xf]
    %v6245 = vld [vmem:[#allocation6 + $0x914] sm:$0xff]
    %v6246 = vld [vmem:[#allocation6 + $0x91c] sm:$0xff]
    %v6247 = vld [vmem:[#allocation6 + $0x924] sm:$0xff]
    %v6248 = vld [vmem:[#allocation6 + $0x92c] sm:$0xf]
    %v6249 = vld [vmem:[#allocation6 + $0x930] sm:$0xff]
    %v6250 = vld [vmem:[#allocation6 + $0x938] sm:$0xff]
    %v6251 = vld [vmem:[#allocation6 + $0x940] sm:$0xff]
    %v6252 = vld [vmem:[#allocation6 + $0x948] sm:$0xf]
    %v6253 = vld [vmem:[#allocation6 + $0x94c] sm:$0xff]
    %v6254 = vld [vmem:[#allocation6 + $0x954] sm:$0xff]
    %v6255 = vld [vmem:[#allocation6 + $0x95c] sm:$0xff]
    %v6256 = vld [vmem:[#allocation6 + $0x964] sm:$0xf]
    %v6257 = vld [vmem:[#allocation6 + $0x968] sm:$0xff]
    %v6258 = vld [vmem:[#allocation6 + $0x970] sm:$0xff]
    %v6259 = vld [vmem:[#allocation6 + $0x978] sm:$0xff]
    %v6260 = vld [vmem:[#allocation6 + $0x980] sm:$0xf]
    %v6261 = vld [vmem:[#allocation6 + $0x984] sm:$0xff]
    %v6262 = vld [vmem:[#allocation6 + $0x98c] sm:$0xff]
    %v6263 = vld [vmem:[#allocation6 + $0x994] sm:$0xff]
    %v6264 = vld [vmem:[#allocation6 + $0x99c] sm:$0xf]
    %v6265 = vld [vmem:[#allocation6 + $0x9a0] sm:$0xff]
    %v6266 = vld [vmem:[#allocation6 + $0x9a8] sm:$0xff]
    %v6267 = vld [vmem:[#allocation6 + $0x9b0] sm:$0xff]
    %v6268 = vld [vmem:[#allocation6 + $0x9b8] sm:$0xf]
    %v6269 = vld [vmem:[#allocation6 + $0x9bc] sm:$0xff]
    %v6270 = vld [vmem:[#allocation6 + $0x9c4] sm:$0xff]
    %v6271 = vld [vmem:[#allocation6 + $0x9cc] sm:$0xff]
    %v6272 = vld [vmem:[#allocation6 + $0x9d4] sm:$0xf]
    %v6273 = vld [vmem:[#allocation6 + $0x9d8] sm:$0xff]
    %v6274 = vld [vmem:[#allocation6 + $0x9e0] sm:$0xff]
    %v6275 = vld [vmem:[#allocation6 + $0x9e8] sm:$0xff]
    %v6276 = vld [vmem:[#allocation6 + $0x9f0] sm:$0xf]
    %v6277 = vld [vmem:[#allocation6 + $0x9f4] sm:$0xff]
    %v6278 = vld [vmem:[#allocation6 + $0x9fc] sm:$0xff]
    %v6279 = vld [vmem:[#allocation6 + $0xa04] sm:$0xff]
    %v6280 = vld [vmem:[#allocation6 + $0xa0c] sm:$0xf]
    %v6281 = vld [vmem:[#allocation6 + $0xa10] sm:$0xff]
    %v6282 = vld [vmem:[#allocation6 + $0xa18] sm:$0xff]
    %v6283 = vld [vmem:[#allocation6 + $0xa20] sm:$0xff]
    %v6284 = vld [vmem:[#allocation6 + $0xa28] sm:$0xf]
    %v6285 = vld [vmem:[#allocation6 + $0xa2c] sm:$0xff]
    %v6286 = vld [vmem:[#allocation6 + $0xa34] sm:$0xff]
    %v6287 = vld [vmem:[#allocation6 + $0xa3c] sm:$0xff]
    %v6288 = vld [vmem:[#allocation6 + $0xa44] sm:$0xf]
    %v6289 = vld [vmem:[#allocation6 + $0xa48] sm:$0xff]
    %v6290 = vld [vmem:[#allocation6 + $0xa50] sm:$0xff]
    %v6291 = vld [vmem:[#allocation6 + $0xa58] sm:$0xff]
    %v6292 = vld [vmem:[#allocation6 + $0xa60] sm:$0xf]
    %v6293 = vld [vmem:[#allocation6 + $0xa64] sm:$0xff]
    %v6294 = vld [vmem:[#allocation6 + $0xa6c] sm:$0xff]
    %v6295 = vld [vmem:[#allocation6 + $0xa74] sm:$0xff]
    %v6296 = vld [vmem:[#allocation6 + $0xa7c] sm:$0xf]
    %v6297 = vld [vmem:[#allocation6 + $0xa80] sm:$0xff]
    %v6298 = vld [vmem:[#allocation6 + $0xa88] sm:$0xff]
    %v6299 = vld [vmem:[#allocation6 + $0xa90] sm:$0xff]
    %v6300 = vld [vmem:[#allocation6 + $0xa98] sm:$0xf]
    %v6301 = vld [vmem:[#allocation6 + $0xa9c] sm:$0xff]
    %v6302 = vld [vmem:[#allocation6 + $0xaa4] sm:$0xff]
    %v6303 = vld [vmem:[#allocation6 + $0xaac] sm:$0xff]
    %v6304 = vld [vmem:[#allocation6 + $0xab4] sm:$0xf]
    %v6305 = vld [vmem:[#allocation6 + $0xab8] sm:$0xff]
    %v6306 = vld [vmem:[#allocation6 + $0xac0] sm:$0xff]
    %v6307 = vld [vmem:[#allocation6 + $0xac8] sm:$0xff]
    %v6308 = vld [vmem:[#allocation6 + $0xad0] sm:$0xf]
    %v6309 = vld [vmem:[#allocation6 + $0xad4] sm:$0xff]
    %v6310 = vld [vmem:[#allocation6 + $0xadc] sm:$0xff]
    %v6311 = vld [vmem:[#allocation6 + $0xae4] sm:$0xff]
    %v6312 = vld [vmem:[#allocation6 + $0xaec] sm:$0xf]
    %v6313 = vld [vmem:[#allocation6 + $0xaf0] sm:$0xff]
    %v6314 = vld [vmem:[#allocation6 + $0xaf8] sm:$0xff]
    %v6315 = vld [vmem:[#allocation6 + $0xb00] sm:$0xff]
    %v6316 = vld [vmem:[#allocation6 + $0xb08] sm:$0xf]
    %v6317 = vld [vmem:[#allocation6 + $0xb0c] sm:$0xff]
    %v6318 = vld [vmem:[#allocation6 + $0xb14] sm:$0xff]
    %v6319 = vld [vmem:[#allocation6 + $0xb1c] sm:$0xff]
    %v6320 = vld [vmem:[#allocation6 + $0xb24] sm:$0xf]
    %v6321 = vld [vmem:[#allocation6 + $0xb28] sm:$0xff]
    %v6322 = vld [vmem:[#allocation6 + $0xb30] sm:$0xff]
    %v6323 = vld [vmem:[#allocation6 + $0xb38] sm:$0xff]
    %v6324 = vld [vmem:[#allocation6 + $0xb40] sm:$0xf]
    %v6325 = vld [vmem:[#allocation6 + $0xb44] sm:$0xff]
    %v6326 = vld [vmem:[#allocation6 + $0xb4c] sm:$0xff]
    %v6327 = vld [vmem:[#allocation6 + $0xb54] sm:$0xff]
    %v6328 = vld [vmem:[#allocation6 + $0xb5c] sm:$0xf]
    %v6329 = vld [vmem:[#allocation6 + $0xb60] sm:$0xff]
    %v6330 = vld [vmem:[#allocation6 + $0xb68] sm:$0xff]
    %v6331 = vld [vmem:[#allocation6 + $0xb70] sm:$0xff]
    %v6332 = vld [vmem:[#allocation6 + $0xb78] sm:$0xf]
    %v6333 = vld [vmem:[#allocation6 + $0xb7c] sm:$0xff]
    %v6334 = vld [vmem:[#allocation6 + $0xb84] sm:$0xff]
    %v6335 = vld [vmem:[#allocation6 + $0xb8c] sm:$0xff]
    %v6336 = vld [vmem:[#allocation6 + $0xb94] sm:$0xf]
    %v6337 = vld [vmem:[#allocation6 + $0xb98] sm:$0xff]
    %v6338 = vld [vmem:[#allocation6 + $0xba0] sm:$0xff]
    %v6339 = vld [vmem:[#allocation6 + $0xba8] sm:$0xff]
    %v6340 = vld [vmem:[#allocation6 + $0xbb0] sm:$0xf]
    %v6341 = vld [vmem:[#allocation6 + $0xbb4] sm:$0xff]
    %v6342 = vld [vmem:[#allocation6 + $0xbbc] sm:$0xff]
    %v6343 = vld [vmem:[#allocation6 + $0xbc4] sm:$0xff]
    %v6344 = vld [vmem:[#allocation6 + $0xbcc] sm:$0xf]
    %v6345 = vld [vmem:[#allocation6 + $0xbd0] sm:$0xff]
    %v6346 = vld [vmem:[#allocation6 + $0xbd8] sm:$0xff]
    %v6347 = vld [vmem:[#allocation6 + $0xbe0] sm:$0xff]
    %v6348 = vld [vmem:[#allocation6 + $0xbe8] sm:$0xf]
    %v6349 = vld [vmem:[#allocation6 + $0xbec] sm:$0xff]
    %v6350 = vld [vmem:[#allocation6 + $0xbf4] sm:$0xff]
    %v6351 = vld [vmem:[#allocation6 + $0xbfc] sm:$0xff]
    %v6352 = vld [vmem:[#allocation6 + $0xc04] sm:$0xf]
    %v6353 = vld [vmem:[#allocation6 + $0xc08] sm:$0xff]
    %v6354 = vld [vmem:[#allocation6 + $0xc10] sm:$0xff]
    %v6355 = vld [vmem:[#allocation6 + $0xc18] sm:$0xff]
    %v6356 = vld [vmem:[#allocation6 + $0xc20] sm:$0xf]
    %v6357 = vld [vmem:[#allocation6 + $0xc24] sm:$0xff]
    %v6358 = vld [vmem:[#allocation6 + $0xc2c] sm:$0xff]
    %v6359 = vld [vmem:[#allocation6 + $0xc34] sm:$0xff]
    %v6360 = vld [vmem:[#allocation6 + $0xc3c] sm:$0xf]
    %v6361 = vld [vmem:[#allocation6 + $0xc40] sm:$0xff]
    %v6362 = vld [vmem:[#allocation6 + $0xc48] sm:$0xff]
    %v6363 = vld [vmem:[#allocation6 + $0xc50] sm:$0xff]
    %v6364 = vld [vmem:[#allocation6 + $0xc58] sm:$0xf]
    %v6365 = vld [vmem:[#allocation6 + $0xc5c] sm:$0xff]
    %v6366 = vld [vmem:[#allocation6 + $0xc64] sm:$0xff]
    %v6367 = vld [vmem:[#allocation6 + $0xc6c] sm:$0xff]
    %v6368 = vld [vmem:[#allocation6 + $0xc74] sm:$0xf]
    %v6369 = vld [vmem:[#allocation6 + $0xc78] sm:$0xff]
    %v6370 = vld [vmem:[#allocation6 + $0xc80] sm:$0xff]
    %v6371 = vld [vmem:[#allocation6 + $0xc88] sm:$0xff]
    %v6372 = vld [vmem:[#allocation6 + $0xc90] sm:$0xf]
    %v6373 = vld [vmem:[#allocation6 + $0xc94] sm:$0xff]
    %v6374 = vld [vmem:[#allocation6 + $0xc9c] sm:$0xff]
    %v6375 = vld [vmem:[#allocation6 + $0xca4] sm:$0xff]
    %v6376 = vld [vmem:[#allocation6 + $0xcac] sm:$0xf]
    %v6377 = vld [vmem:[#allocation6 + $0xcb0] sm:$0xff]
    %v6378 = vld [vmem:[#allocation6 + $0xcb8] sm:$0xff]
    %v6379 = vld [vmem:[#allocation6 + $0xcc0] sm:$0xff]
    %v6380 = vld [vmem:[#allocation6 + $0xcc8] sm:$0xf]
    %v6381 = vld [vmem:[#allocation6 + $0xccc] sm:$0xff]
    %v6382 = vld [vmem:[#allocation6 + $0xcd4] sm:$0xff]
    %v6383 = vld [vmem:[#allocation6 + $0xcdc] sm:$0xff]
    %v6384 = vld [vmem:[#allocation6 + $0xce4] sm:$0xf]
    %v6385 = vld [vmem:[#allocation6 + $0xce8] sm:$0xff]
    %v6386 = vld [vmem:[#allocation6 + $0xcf0] sm:$0xff]
    %v6387 = vld [vmem:[#allocation6 + $0xcf8] sm:$0xff]
    %v6388 = vld [vmem:[#allocation6 + $0xd00] sm:$0xf]
    %v6389 = vld [vmem:[#allocation6 + $0xd04] sm:$0xff]
    %v6390 = vld [vmem:[#allocation6 + $0xd0c] sm:$0xff]
    %v6391 = vld [vmem:[#allocation6 + $0xd14] sm:$0xff]
    %v6392 = vld [vmem:[#allocation6 + $0xd1c] sm:$0xf]
    %v6393 = vld [vmem:[#allocation6 + $0xd20] sm:$0xff]
    %v6394 = vld [vmem:[#allocation6 + $0xd28] sm:$0xff]
    %v6395 = vld [vmem:[#allocation6 + $0xd30] sm:$0xff]
    %v6396 = vld [vmem:[#allocation6 + $0xd38] sm:$0xf]
    %v6397 = vld [vmem:[#allocation6 + $0xd3c] sm:$0xff]
    %v6398 = vld [vmem:[#allocation6 + $0xd44] sm:$0xff]
    %v6399 = vld [vmem:[#allocation6 + $0xd4c] sm:$0xff]
    %v6400 = vld [vmem:[#allocation6 + $0xd54] sm:$0xf]
    %v6401 = vld [vmem:[#allocation6 + $0xd58] sm:$0xff]
    %v6402 = vld [vmem:[#allocation6 + $0xd60] sm:$0xff]
    %v6403 = vld [vmem:[#allocation6 + $0xd68] sm:$0xff]
    %v6404 = vld [vmem:[#allocation6 + $0xd70] sm:$0xf]
    %v6405 = vld [vmem:[#allocation6 + $0xd74] sm:$0xff]
    %v6406 = vld [vmem:[#allocation6 + $0xd7c] sm:$0xff]
    %v6407 = vld [vmem:[#allocation6 + $0xd84] sm:$0xff]
    %v6408 = vld [vmem:[#allocation6 + $0xd8c] sm:$0xf]
    %v6409 = vld [vmem:[#allocation6 + $0xd90] sm:$0xff]
    %v6410 = vld [vmem:[#allocation6 + $0xd98] sm:$0xff]
    %v6411 = vld [vmem:[#allocation6 + $0xda0] sm:$0xff]
    %v6412 = vld [vmem:[#allocation6 + $0xda8] sm:$0xf]
    %v6413 = vld [vmem:[#allocation6 + $0xdac] sm:$0xff]
    %v6414 = vld [vmem:[#allocation6 + $0xdb4] sm:$0xff]
    %v6415 = vld [vmem:[#allocation6 + $0xdbc] sm:$0xff]
    %v6416 = vld [vmem:[#allocation6 + $0xdc4] sm:$0xf]
    %v6417 = vld [vmem:[#allocation6 + $0xdc8] sm:$0xff]
    %v6418 = vld [vmem:[#allocation6 + $0xdd0] sm:$0xff]
    %v6419 = vld [vmem:[#allocation6 + $0xdd8] sm:$0xff]
    %v6420 = vld [vmem:[#allocation6 + $0xde0] sm:$0xf]
    %v6421 = vld [vmem:[#allocation6 + $0xde4] sm:$0xff]
    %v6422 = vld [vmem:[#allocation6 + $0xdec] sm:$0xff]
    %v6423 = vld [vmem:[#allocation6 + $0xdf4] sm:$0xff]
    %v6424 = vld [vmem:[#allocation6 + $0xdfc] sm:$0xf]
    %v6425 = vld [vmem:[#allocation6 + $0xe00] sm:$0xff]
    %v6426 = vld [vmem:[#allocation6 + $0xe08] sm:$0xff]
    %v6427 = vld [vmem:[#allocation6 + $0xe10] sm:$0xff]
    %v6428 = vld [vmem:[#allocation6 + $0xe18] sm:$0xf]
    %v6429 = vld [vmem:[#allocation6 + $0xe1c] sm:$0xff]
    %v6430 = vld [vmem:[#allocation6 + $0xe24] sm:$0xff]
    %v6431 = vld [vmem:[#allocation6 + $0xe2c] sm:$0xff]
    %v6432 = vld [vmem:[#allocation6 + $0xe34] sm:$0xf]
    %v6433 = vld [vmem:[#allocation6 + $0xe38] sm:$0xff]
    %v6434 = vld [vmem:[#allocation6 + $0xe40] sm:$0xff]
    %v6435 = vld [vmem:[#allocation6 + $0xe48] sm:$0xff]
    %v6436 = vld [vmem:[#allocation6 + $0xe50] sm:$0xf]
    %v6437 = vld [vmem:[#allocation6 + $0xe54] sm:$0xff]
    %v6438 = vld [vmem:[#allocation6 + $0xe5c] sm:$0xff]
    %v6439 = vld [vmem:[#allocation6 + $0xe64] sm:$0xff]
    %v6440 = vld [vmem:[#allocation6 + $0xe6c] sm:$0xf]
    %v6441 = vld [vmem:[#allocation6 + $0xe70] sm:$0xff]
    %v6442 = vld [vmem:[#allocation6 + $0xe78] sm:$0xff]
    %v6443 = vld [vmem:[#allocation6 + $0xe80] sm:$0xff]
    %v6444 = vld [vmem:[#allocation6 + $0xe88] sm:$0xf]
    %v6445 = vld [vmem:[#allocation6 + $0xe8c] sm:$0xff]
    %v6446 = vld [vmem:[#allocation6 + $0xe94] sm:$0xff]
    %v6447 = vld [vmem:[#allocation6 + $0xe9c] sm:$0xff]
    %v6448 = vld [vmem:[#allocation6 + $0xea4] sm:$0xf]
    %v6449 = vld [vmem:[#allocation6 + $0xea8] sm:$0xff]
    %v6450 = vld [vmem:[#allocation6 + $0xeb0] sm:$0xff]
    %v6451 = vld [vmem:[#allocation6 + $0xeb8] sm:$0xff]
    %v6452 = vld [vmem:[#allocation6 + $0xec0] sm:$0xf]
    %v6453 = vld [vmem:[#allocation6 + $0xec4] sm:$0xff]
    %v6454 = vld [vmem:[#allocation6 + $0xecc] sm:$0xff]
    %v6455 = vld [vmem:[#allocation6 + $0xed4] sm:$0xff]
    %v6456 = vld [vmem:[#allocation6 + $0xedc] sm:$0xf]
    %v6457 = vld [vmem:[#allocation6 + $0xee0] sm:$0xff]
    %v6458 = vld [vmem:[#allocation6 + $0xee8] sm:$0xff]
    %v6459 = vld [vmem:[#allocation6 + $0xef0] sm:$0xff]
    %v6460 = vld [vmem:[#allocation6 + $0xef8] sm:$0xf]
    %v6461 = vld [vmem:[#allocation6 + $0xefc] sm:$0xff]
    %v6462 = vld [vmem:[#allocation6 + $0xf04] sm:$0xff]
    %v6463 = vld [vmem:[#allocation6 + $0xf0c] sm:$0xff]
    %v6464 = vld [vmem:[#allocation6 + $0xf14] sm:$0xf]
    %v6465 = vld [vmem:[#allocation6 + $0xf18] sm:$0xff]
    %v6466 = vld [vmem:[#allocation6 + $0xf20] sm:$0xff]
    %v6467 = vld [vmem:[#allocation6 + $0xf28] sm:$0xff]
    %v6468 = vld [vmem:[#allocation6 + $0xf30] sm:$0xf]
    %v6469 = vld [vmem:[#allocation6 + $0xf34] sm:$0xff]
    %v6470 = vld [vmem:[#allocation6 + $0xf3c] sm:$0xff]
    %v6471 = vld [vmem:[#allocation6 + $0xf44] sm:$0xff]
    %v6472 = vld [vmem:[#allocation6 + $0xf4c] sm:$0xf]
    %v6473 = vld [vmem:[#allocation6 + $0xf50] sm:$0xff]
    %v6474 = vld [vmem:[#allocation6 + $0xf58] sm:$0xff]
    %v6475 = vld [vmem:[#allocation6 + $0xf60] sm:$0xff]
    %v6476 = vld [vmem:[#allocation6 + $0xf68] sm:$0xf]
    %v6477 = vld [vmem:[#allocation6 + $0xf6c] sm:$0xff]
    %v6478 = vld [vmem:[#allocation6 + $0xf74] sm:$0xff]
    %v6479 = vld [vmem:[#allocation6 + $0xf7c] sm:$0xff]
    %v6480 = vld [vmem:[#allocation6 + $0xf84] sm:$0xf]
    %v6481 = vld [vmem:[#allocation6 + $0xf88] sm:$0xff]
    %v6482 = vld [vmem:[#allocation6 + $0xf90] sm:$0xff]
    %v6483 = vld [vmem:[#allocation6 + $0xf98] sm:$0xff]
    %v6484 = vld [vmem:[#allocation6 + $0xfa0] sm:$0xf]
    %v6485 = vld [vmem:[#allocation6 + $0xfa4] sm:$0xff]
    %v6486 = vld [vmem:[#allocation6 + $0xfac] sm:$0xff]
    %v6487 = vld [vmem:[#allocation6 + $0xfb4] sm:$0xff]
    %v6488 = vld [vmem:[#allocation6 + $0xfbc] sm:$0xf]
    %v6489 = vld [vmem:[#allocation6 + $0xfc0] sm:$0xff]
    %v6490 = vld [vmem:[#allocation6 + $0xfc8] sm:$0xff]
    %v6491 = vld [vmem:[#allocation6 + $0xfd0] sm:$0xff]
    %v6492 = vld [vmem:[#allocation6 + $0xfd8] sm:$0xf]
    %v6493 = vld [vmem:[#allocation6 + $0xfdc] sm:$0xff]
    %v6494 = vld [vmem:[#allocation6 + $0xfe4] sm:$0xff]
    %v6495 = vld [vmem:[#allocation6 + $0xfec] sm:$0xff]
    %v6496 = vld [vmem:[#allocation6 + $0xff4] sm:$0xf]
    %v6497 = vld [vmem:[#allocation6 + $0xff8] sm:$0xff]
    %v6498 = vld [vmem:[#allocation6 + $0x1000] sm:$0xff]
    %v6499 = vld [vmem:[#allocation6 + $0x1008] sm:$0xff]
    %v6500 = vld [vmem:[#allocation6 + $0x1010] sm:$0xf]
    %v6501 = vld [vmem:[#allocation6 + $0x1014] sm:$0xff]
    %v6502 = vld [vmem:[#allocation6 + $0x101c] sm:$0xff]
    %v6503 = vld [vmem:[#allocation6 + $0x1024] sm:$0xff]
    %v6504 = vld [vmem:[#allocation6 + $0x102c] sm:$0xf]
    %v6505 = vld [vmem:[#allocation6 + $0x1030] sm:$0xff]
    %v6506 = vld [vmem:[#allocation6 + $0x1038] sm:$0xff]
    %v6507 = vld [vmem:[#allocation6 + $0x1040] sm:$0xff]
    %v6508 = vld [vmem:[#allocation6 + $0x1048] sm:$0xf]
    %v6509 = vld [vmem:[#allocation6 + $0x104c] sm:$0xff]
    %v6510 = vld [vmem:[#allocation6 + $0x1054] sm:$0xff]
    %v6511 = vld [vmem:[#allocation6 + $0x105c] sm:$0xff]
    %v6512 = vld [vmem:[#allocation6 + $0x1064] sm:$0xf]
    %v6513 = vld [vmem:[#allocation6 + $0x1068] sm:$0xff]
    %v6514 = vld [vmem:[#allocation6 + $0x1070] sm:$0xff]
    %v6515 = vld [vmem:[#allocation6 + $0x1078] sm:$0xff]
    %v6516 = vld [vmem:[#allocation6 + $0x1080] sm:$0xf]
    %v6517 = vld [vmem:[#allocation6 + $0x1084] sm:$0xff]
    %v6518 = vld [vmem:[#allocation6 + $0x108c] sm:$0xff]
    %v6519 = vld [vmem:[#allocation6 + $0x1094] sm:$0xff]
    %v6520 = vld [vmem:[#allocation6 + $0x109c] sm:$0xf]
    %v6521 = vld [vmem:[#allocation6 + $0x10a0] sm:$0xff]
    %v6522 = vld [vmem:[#allocation6 + $0x10a8] sm:$0xff]
    %v6523 = vld [vmem:[#allocation6 + $0x10b0] sm:$0xff]
    %v6524 = vld [vmem:[#allocation6 + $0x10b8] sm:$0xf]
    %v6525 = vld [vmem:[#allocation6 + $0x10bc] sm:$0xff]
    %v6526 = vld [vmem:[#allocation6 + $0x10c4] sm:$0xff]
    %v6527 = vld [vmem:[#allocation6 + $0x10cc] sm:$0xff]
    %v6528 = vld [vmem:[#allocation6 + $0x10d4] sm:$0xf]
    %v6529 = vld [vmem:[#allocation6 + $0x10d8] sm:$0xff]
    %v6530 = vld [vmem:[#allocation6 + $0x10e0] sm:$0xff]
    %v6531 = vld [vmem:[#allocation6 + $0x10e8] sm:$0xff]
    %v6532 = vld [vmem:[#allocation6 + $0x10f0] sm:$0xf]
    %v6533 = vld [vmem:[#allocation6 + $0x10f4] sm:$0xff]
    %v6534 = vld [vmem:[#allocation6 + $0x10fc] sm:$0xff]
    %v6535 = vld [vmem:[#allocation6 + $0x1104] sm:$0xff]
    %v6536 = vld [vmem:[#allocation6 + $0x110c] sm:$0xf]
    %v6537 = vld [vmem:[#allocation6 + $0x1110] sm:$0xff]
    %v6538 = vld [vmem:[#allocation6 + $0x1118] sm:$0xff]
    %v6539 = vld [vmem:[#allocation6 + $0x1120] sm:$0xff]
    %v6540 = vld [vmem:[#allocation6 + $0x1128] sm:$0xf]
    %v6541 = vld [vmem:[#allocation6 + $0x112c] sm:$0xff]
    %v6542 = vld [vmem:[#allocation6 + $0x1134] sm:$0xff]
    %v6543 = vld [vmem:[#allocation6 + $0x113c] sm:$0xff]
    %v6544 = vld [vmem:[#allocation6 + $0x1144] sm:$0xf]
    %v6545 = vld [vmem:[#allocation6 + $0x1148] sm:$0xff]
    %v6546 = vld [vmem:[#allocation6 + $0x1150] sm:$0xff]
    %v6547 = vld [vmem:[#allocation6 + $0x1158] sm:$0xff]
    %v6548 = vld [vmem:[#allocation6 + $0x1160] sm:$0xf]
    %v6549 = vld [vmem:[#allocation6 + $0x1164] sm:$0xff]
    %v6550 = vld [vmem:[#allocation6 + $0x116c] sm:$0xff]
    %v6551 = vld [vmem:[#allocation6 + $0x1174] sm:$0xff]
    %v6552 = vld [vmem:[#allocation6 + $0x117c] sm:$0xf]
    %v6553 = vld [vmem:[#allocation6 + $0x1180] sm:$0xff]
    %v6554 = vld [vmem:[#allocation6 + $0x1188] sm:$0xff]
    %v6555 = vld [vmem:[#allocation6 + $0x1190] sm:$0xff]
    %v6556 = vld [vmem:[#allocation6 + $0x1198] sm:$0xf]
    %v6557 = vld [vmem:[#allocation6 + $0x119c] sm:$0xff]
    %v6558 = vld [vmem:[#allocation6 + $0x11a4] sm:$0xff]
    %v6559 = vld [vmem:[#allocation6 + $0x11ac] sm:$0xff]
    %v6560 = vld [vmem:[#allocation6 + $0x11b4] sm:$0xf]
    %v6561 = vld [vmem:[#allocation6 + $0x11b8] sm:$0xff]
    %v6562 = vld [vmem:[#allocation6 + $0x11c0] sm:$0xff]
    %v6563 = vld [vmem:[#allocation6 + $0x11c8] sm:$0xff]
    %v6564 = vld [vmem:[#allocation6 + $0x11d0] sm:$0xf]
    %v6565 = vld [vmem:[#allocation6 + $0x11d4] sm:$0xff]
    %v6566 = vld [vmem:[#allocation6 + $0x11dc] sm:$0xff]
    %v6567 = vld [vmem:[#allocation6 + $0x11e4] sm:$0xff]
    %v6568 = vld [vmem:[#allocation6 + $0x11ec] sm:$0xf]
    %v6569 = vld [vmem:[#allocation6 + $0x11f0] sm:$0xff]
    %v6570 = vld [vmem:[#allocation6 + $0x11f8] sm:$0xff]
    %v6571 = vld [vmem:[#allocation6 + $0x1200] sm:$0xff]
    %v6572 = vld [vmem:[#allocation6 + $0x1208] sm:$0xf]
    %v6573 = vld [vmem:[#allocation6 + $0x120c] sm:$0xff]
    %v6574 = vld [vmem:[#allocation6 + $0x1214] sm:$0xff]
    %v6575 = vld [vmem:[#allocation6 + $0x121c] sm:$0xff]
    %v6576 = vld [vmem:[#allocation6 + $0x1224] sm:$0xf]
    %v6577 = vld [vmem:[#allocation6 + $0x1228] sm:$0xff]
    %v6578 = vld [vmem:[#allocation6 + $0x1230] sm:$0xff]
    %v6579 = vld [vmem:[#allocation6 + $0x1238] sm:$0xff]
    %v6580 = vld [vmem:[#allocation6 + $0x1240] sm:$0xf]
    %v6581 = vld [vmem:[#allocation6 + $0x1244] sm:$0xff]
    %v6582 = vld [vmem:[#allocation6 + $0x124c] sm:$0xff]
    %v6583 = vld [vmem:[#allocation6 + $0x1254] sm:$0xff]
    %v6584 = vld [vmem:[#allocation6 + $0x125c] sm:$0xf]
    %v6585 = vld [vmem:[#allocation6 + $0x1260] sm:$0xff]
    %v6586 = vld [vmem:[#allocation6 + $0x1268] sm:$0xff]
    %v6587 = vld [vmem:[#allocation6 + $0x1270] sm:$0xff]
    %v6588 = vld [vmem:[#allocation6 + $0x1278] sm:$0xf]
    %v6589 = vld [vmem:[#allocation6 + $0x127c] sm:$0xff]
    %v6590 = vld [vmem:[#allocation6 + $0x1284] sm:$0xff]
    %v6591 = vld [vmem:[#allocation6 + $0x128c] sm:$0xff]
    %v6592 = vld [vmem:[#allocation6 + $0x1294] sm:$0xf]
    %v6593 = vld [vmem:[#allocation6 + $0x1298] sm:$0xff]
    %v6594 = vld [vmem:[#allocation6 + $0x12a0] sm:$0xff]
    %v6595 = vld [vmem:[#allocation6 + $0x12a8] sm:$0xff]
    %v6596 = vld [vmem:[#allocation6 + $0x12b0] sm:$0xf]
    %v6597 = vld [vmem:[#allocation6 + $0x12b4] sm:$0xff]
    %v6598 = vld [vmem:[#allocation6 + $0x12bc] sm:$0xff]
    %v6599 = vld [vmem:[#allocation6 + $0x12c4] sm:$0xff]
    %v6600 = vld [vmem:[#allocation6 + $0x12cc] sm:$0xf]
    %v6601 = vld [vmem:[#allocation6 + $0x12d0] sm:$0xff]
    %v6602 = vld [vmem:[#allocation6 + $0x12d8] sm:$0xff]
    %v6603 = vld [vmem:[#allocation6 + $0x12e0] sm:$0xff]
    %v6604 = vld [vmem:[#allocation6 + $0x12e8] sm:$0xf]
    %v6605 = vld [vmem:[#allocation6 + $0x12ec] sm:$0xff]
    %v6606 = vld [vmem:[#allocation6 + $0x12f4] sm:$0xff]
    %v6607 = vld [vmem:[#allocation6 + $0x12fc] sm:$0xff]
    %v6608 = vld [vmem:[#allocation6 + $0x1304] sm:$0xf]
    %v6609 = vld [vmem:[#allocation6 + $0x1308] sm:$0xff]
    %v6610 = vld [vmem:[#allocation6 + $0x1310] sm:$0xff]
    %v6611 = vld [vmem:[#allocation6 + $0x1318] sm:$0xff]
    %v6612 = vld [vmem:[#allocation6 + $0x1320] sm:$0xf]
    %v6613 = vld [vmem:[#allocation6 + $0x1324] sm:$0xff]
    %v6614 = vld [vmem:[#allocation6 + $0x132c] sm:$0xff]
    %v6615 = vld [vmem:[#allocation6 + $0x1334] sm:$0xff]
    %v6616 = vld [vmem:[#allocation6 + $0x133c] sm:$0xf]
    %v6617 = vld [vmem:[#allocation6 + $0x1340] sm:$0xff]
    %v6618 = vld [vmem:[#allocation6 + $0x1348] sm:$0xff]
    %v6619 = vld [vmem:[#allocation6 + $0x1350] sm:$0xff]
    %v6620 = vld [vmem:[#allocation6 + $0x1358] sm:$0xf]
    %v6621 = vld [vmem:[#allocation6 + $0x135c] sm:$0xff]
    %v6622 = vld [vmem:[#allocation6 + $0x1364] sm:$0xff]
    %v6623 = vld [vmem:[#allocation6 + $0x136c] sm:$0xff]
    %v6624 = vld [vmem:[#allocation6 + $0x1374] sm:$0xf]
    %v6625 = vld [vmem:[#allocation6 + $0x1378] sm:$0xff]
    %v6626 = vld [vmem:[#allocation6 + $0x1380] sm:$0xff]
    %v6627 = vld [vmem:[#allocation6 + $0x1388] sm:$0xff]
    %v6628 = vld [vmem:[#allocation6 + $0x1390] sm:$0xf]
    %v6629 = vld [vmem:[#allocation6 + $0x1394] sm:$0xff]
    %v6630 = vld [vmem:[#allocation6 + $0x139c] sm:$0xff]
    %v6631 = vld [vmem:[#allocation6 + $0x13a4] sm:$0xff]
    %v6632 = vld [vmem:[#allocation6 + $0x13ac] sm:$0xf]
    %v6633 = vld [vmem:[#allocation6 + $0x13b0] sm:$0xff]
    %v6634 = vld [vmem:[#allocation6 + $0x13b8] sm:$0xff]
    %v6635 = vld [vmem:[#allocation6 + $0x13c0] sm:$0xff]
    %v6636 = vld [vmem:[#allocation6 + $0x13c8] sm:$0xf]
    %v6637 = vld [vmem:[#allocation6 + $0x13cc] sm:$0xff]
    %v6638 = vld [vmem:[#allocation6 + $0x13d4] sm:$0xff]
    %v6639 = vld [vmem:[#allocation6 + $0x13dc] sm:$0xff]
    %v6640 = vld [vmem:[#allocation6 + $0x13e4] sm:$0xf]
    %v6641 = vld [vmem:[#allocation6 + $0x13e8] sm:$0xff]
    %v6642 = vld [vmem:[#allocation6 + $0x13f0] sm:$0xff]
    %v6643 = vld [vmem:[#allocation6 + $0x13f8] sm:$0xff]
    %v6644 = vld [vmem:[#allocation6 + $0x1400] sm:$0xf]
    %v6645 = vld [vmem:[#allocation6 + $0x1404] sm:$0xff]
    %v6646 = vld [vmem:[#allocation6 + $0x140c] sm:$0xff]
    %v6647 = vld [vmem:[#allocation6 + $0x1414] sm:$0xff]
    %v6648 = vld [vmem:[#allocation6 + $0x141c] sm:$0xf]
    %v6649 = vld [vmem:[#allocation6 + $0x1420] sm:$0xff]
    %v6650 = vld [vmem:[#allocation6 + $0x1428] sm:$0xff]
    %v6651 = vld [vmem:[#allocation6 + $0x1430] sm:$0xff]
    %v6652 = vld [vmem:[#allocation6 + $0x1438] sm:$0xf]
    %v6653 = vld [vmem:[#allocation6 + $0x143c] sm:$0xff]
    %v6654 = vld [vmem:[#allocation6 + $0x1444] sm:$0xff]
    %v6655 = vld [vmem:[#allocation6 + $0x144c] sm:$0xff]
    %v6656 = vld [vmem:[#allocation6 + $0x1454] sm:$0xf]
    %v6657 = vld [vmem:[#allocation6 + $0x1458] sm:$0xff]
    %v6658 = vld [vmem:[#allocation6 + $0x1460] sm:$0xff]
    %v6659 = vld [vmem:[#allocation6 + $0x1468] sm:$0xff]
    %v6660 = vld [vmem:[#allocation6 + $0x1470] sm:$0xf]
    %v6661 = vld [vmem:[#allocation6 + $0x1474] sm:$0xff]
    %v6662 = vld [vmem:[#allocation6 + $0x147c] sm:$0xff]
    %v6663 = vld [vmem:[#allocation6 + $0x1484] sm:$0xff]
    %v6664 = vld [vmem:[#allocation6 + $0x148c] sm:$0xf]
    %v6665 = vld [vmem:[#allocation6 + $0x1490] sm:$0xff]
    %v6666 = vld [vmem:[#allocation6 + $0x1498] sm:$0xff]
    %v6667 = vld [vmem:[#allocation6 + $0x14a0] sm:$0xff]
    %v6668 = vld [vmem:[#allocation6 + $0x14a8] sm:$0xf]
    %v6669 = vld [vmem:[#allocation6 + $0x14ac] sm:$0xff]
    %v6670 = vld [vmem:[#allocation6 + $0x14b4] sm:$0xff]
    %v6671 = vld [vmem:[#allocation6 + $0x14bc] sm:$0xff]
    %v6672 = vld [vmem:[#allocation6 + $0x14c4] sm:$0xf]
    %v6673 = vld [vmem:[#allocation6 + $0x14c8] sm:$0xff]
    %v6674 = vld [vmem:[#allocation6 + $0x14d0] sm:$0xff]
    %v6675 = vld [vmem:[#allocation6 + $0x14d8] sm:$0xff]
    %v6676 = vld [vmem:[#allocation6 + $0x14e0] sm:$0xf]
    %v6677 = vld [vmem:[#allocation6 + $0x14e4] sm:$0xff]
    %v6678 = vld [vmem:[#allocation6 + $0x14ec] sm:$0xff]
    %v6679 = vld [vmem:[#allocation6 + $0x14f4] sm:$0xff]
    %v6680 = vld [vmem:[#allocation6 + $0x14fc] sm:$0xf]
    %v6681 = vld [vmem:[#allocation6 + $0x1500] sm:$0xff]
    %v6682 = vld [vmem:[#allocation6 + $0x1508] sm:$0xff]
    %v6683 = vld [vmem:[#allocation6 + $0x1510] sm:$0xff]
    %v6684 = vld [vmem:[#allocation6 + $0x1518] sm:$0xf]
    %v6685 = vld [vmem:[#allocation6 + $0x151c] sm:$0xff]
    %v6686 = vld [vmem:[#allocation6 + $0x1524] sm:$0xff]
    %v6687 = vld [vmem:[#allocation6 + $0x152c] sm:$0xff]
    %v6688 = vld [vmem:[#allocation6 + $0x1534] sm:$0xf]
    %v6689 = vld [vmem:[#allocation6 + $0x1538] sm:$0xff]
    %v6690 = vld [vmem:[#allocation6 + $0x1540] sm:$0xff]
    %v6691 = vld [vmem:[#allocation6 + $0x1548] sm:$0xff]
    %v6692 = vld [vmem:[#allocation6 + $0x1550] sm:$0xf]
    %v6693 = vld [vmem:[#allocation6 + $0x1554] sm:$0xff]
    %v6694 = vld [vmem:[#allocation6 + $0x155c] sm:$0xff]
    %v6695 = vld [vmem:[#allocation6 + $0x1564] sm:$0xff]
    %v6696 = vld [vmem:[#allocation6 + $0x156c] sm:$0xf]
    %v6697 = vld [vmem:[#allocation6 + $0x1570] sm:$0xff]
    %v6698 = vld [vmem:[#allocation6 + $0x1578] sm:$0xff]
    %v6699 = vld [vmem:[#allocation6 + $0x1580] sm:$0xff]
    %v6700 = vld [vmem:[#allocation6 + $0x1588] sm:$0xf]
    %v6701 = vld [vmem:[#allocation6 + $0x158c] sm:$0xff]
    %v6702 = vld [vmem:[#allocation6 + $0x1594] sm:$0xff]
    %v6703 = vld [vmem:[#allocation6 + $0x159c] sm:$0xff]
    %v6704 = vld [vmem:[#allocation6 + $0x15a4] sm:$0xf]
    %v6705 = vld [vmem:[#allocation6 + $0x15a8] sm:$0xff]
    %v6706 = vld [vmem:[#allocation6 + $0x15b0] sm:$0xff]
    %v6707 = vld [vmem:[#allocation6 + $0x15b8] sm:$0xff]
    %v6708 = vld [vmem:[#allocation6 + $0x15c0] sm:$0xf]
    %v6709 = vld [vmem:[#allocation6 + $0x15c4] sm:$0xff]
    %v6710 = vld [vmem:[#allocation6 + $0x15cc] sm:$0xff]
    %v6711 = vld [vmem:[#allocation6 + $0x15d4] sm:$0xff]
    %v6712 = vld [vmem:[#allocation6 + $0x15dc] sm:$0xf]
    %v6713 = vld [vmem:[#allocation6 + $0x15e0] sm:$0xff]
    %v6714 = vld [vmem:[#allocation6 + $0x15e8] sm:$0xff]
    %v6715 = vld [vmem:[#allocation6 + $0x15f0] sm:$0xff]
    %v6716 = vld [vmem:[#allocation6 + $0x15f8] sm:$0xf]
    %v6717 = vld [vmem:[#allocation6 + $0x15fc] sm:$0xff]
    %v6718 = vld [vmem:[#allocation6 + $0x1604] sm:$0xff]
    %v6719 = vld [vmem:[#allocation6 + $0x160c] sm:$0xff]
    %v6720 = vld [vmem:[#allocation6 + $0x1614] sm:$0xf]
    %v6721 = vld [vmem:[#allocation6 + $0x1618] sm:$0xff]
    %v6722 = vld [vmem:[#allocation6 + $0x1620] sm:$0xff]
    %v6723 = vld [vmem:[#allocation6 + $0x1628] sm:$0xff]
    %v6724 = vld [vmem:[#allocation6 + $0x1630] sm:$0xf]
    %v6725 = vld [vmem:[#allocation6 + $0x1634] sm:$0xff]
    %v6726 = vld [vmem:[#allocation6 + $0x163c] sm:$0xff]
    %v6727 = vld [vmem:[#allocation6 + $0x1644] sm:$0xff]
    %v6728 = vld [vmem:[#allocation6 + $0x164c] sm:$0xf]
    %v6729 = vld [vmem:[#allocation6 + $0x1650] sm:$0xff]
    %v6730 = vld [vmem:[#allocation6 + $0x1658] sm:$0xff]
    %v6731 = vld [vmem:[#allocation6 + $0x1660] sm:$0xff]
    %v6732 = vld [vmem:[#allocation6 + $0x1668] sm:$0xf]
    %v6733 = vld [vmem:[#allocation6 + $0x166c] sm:$0xff]
    %v6734 = vld [vmem:[#allocation6 + $0x1674] sm:$0xff]
    %v6735 = vld [vmem:[#allocation6 + $0x167c] sm:$0xff]
    %v6736 = vld [vmem:[#allocation6 + $0x1684] sm:$0xf]
    %v6737 = vld [vmem:[#allocation6 + $0x1688] sm:$0xff]
    %v6738 = vld [vmem:[#allocation6 + $0x1690] sm:$0xff]
    %v6739 = vld [vmem:[#allocation6 + $0x1698] sm:$0xff]
    %v6740 = vld [vmem:[#allocation6 + $0x16a0] sm:$0xf]
    %v6741 = vld [vmem:[#allocation6 + $0x16a4] sm:$0xff]
    %v6742 = vld [vmem:[#allocation6 + $0x16ac] sm:$0xff]
    %v6743 = vld [vmem:[#allocation6 + $0x16b4] sm:$0xff]
    %v6744 = vld [vmem:[#allocation6 + $0x16bc] sm:$0xf]
    %v6745 = vld [vmem:[#allocation7] sm:$0xff]
    %v6747 = vlaneseq
    %v6748 = vshrl.u32 %v6747, 7
    %v6749 = vsub.s32 0, %v6748
    %v6750 = vrot.slane %v6745, %v6749
    %v6751 = vlaneseq
    %v6752 = vshrl.u32 %v6751, 7
    %v6753 = vsub.s32 1, %v6752
    %v6754 = vrot.slane %v6745, %v6753
    %v6755 = vlaneseq
    %v6756 = vshrl.u32 %v6755, 7
    %v6757 = vsub.s32 2, %v6756
    %v6758 = vrot.slane %v6745, %v6757
    %v6759 = vlaneseq
    %v6760 = vshrl.u32 %v6759, 7
    %v6761 = vsub.s32 3, %v6760
    %v6762 = vrot.slane %v6745, %v6761
    %v6763 = vlaneseq
    %v6764 = vshrl.u32 %v6763, 7
    %v6765 = vsub.s32 4, %v6764
    %v6766 = vrot.slane %v6745, %v6765
    %v6767 = vlaneseq
    %v6768 = vshrl.u32 %v6767, 7
    %v6769 = vsub.s32 5, %v6768
    %v6770 = vrot.slane %v6745, %v6769
    %v6771 = vlaneseq
    %v6772 = vshrl.u32 %v6771, 7
    %v6773 = vsub.s32 6, %v6772
    %v6774 = vrot.slane %v6745, %v6773
    %v7614 = vunpack.c.l.b16 %v5913
    %v7615 = vunpack.c.h.b16 %v5913
    %v7616 = vunpack.c.l.b16 %v5914
    %v7617 = vunpack.c.h.b16 %v5914
    %v7618 = vunpack.c.l.b16 %v5915
    %v7619 = vunpack.c.h.b16 %v5915
    %v7620 = vunpack.c.l.b16 %v5916
    %v7621 = vunpack.c.l.b16 %v5917
    %v7622 = vunpack.c.h.b16 %v5917
    %v7623 = vunpack.c.l.b16 %v5918
    %v7624 = vunpack.c.h.b16 %v5918
    %v7625 = vunpack.c.l.b16 %v5919
    %v7626 = vunpack.c.h.b16 %v5919
    %v7627 = vunpack.c.l.b16 %v5920
    %v7628 = vunpack.c.l.b16 %v5921
    %v7629 = vunpack.c.h.b16 %v5921
    %v7630 = vunpack.c.l.b16 %v5922
    %v7631 = vunpack.c.h.b16 %v5922
    %v7632 = vunpack.c.l.b16 %v5923
    %v7633 = vunpack.c.h.b16 %v5923
    %v7634 = vunpack.c.l.b16 %v5924
    %v7635 = vunpack.c.l.b16 %v5925
    %v7636 = vunpack.c.h.b16 %v5925
    %v7637 = vunpack.c.l.b16 %v5926
    %v7638 = vunpack.c.h.b16 %v5926
    %v7639 = vunpack.c.l.b16 %v5927
    %v7640 = vunpack.c.h.b16 %v5927
    %v7641 = vunpack.c.l.b16 %v5928
    %v7642 = vunpack.c.l.b16 %v5929
    %v7643 = vunpack.c.h.b16 %v5929
    %v7644 = vunpack.c.l.b16 %v5930
    %v7645 = vunpack.c.h.b16 %v5930
    %v7646 = vunpack.c.l.b16 %v5931
    %v7647 = vunpack.c.h.b16 %v5931
    %v7648 = vunpack.c.l.b16 %v5932
    %v7649 = vunpack.c.l.b16 %v5933
    %v7650 = vunpack.c.h.b16 %v5933
    %v7651 = vunpack.c.l.b16 %v5934
    %v7652 = vunpack.c.h.b16 %v5934
    %v7653 = vunpack.c.l.b16 %v5935
    %v7654 = vunpack.c.h.b16 %v5935
    %v7655 = vunpack.c.l.b16 %v5936
    %v7656 = vunpack.c.l.b16 %v5937
    %v7657 = vunpack.c.h.b16 %v5937
    %v7658 = vunpack.c.l.b16 %v5938
    %v7659 = vunpack.c.h.b16 %v5938
    %v7660 = vunpack.c.l.b16 %v5939
    %v7661 = vunpack.c.h.b16 %v5939
    %v7662 = vunpack.c.l.b16 %v5940
    %v7663 = vunpack.c.l.b16 %v5941
    %v7664 = vunpack.c.h.b16 %v5941
    %v7665 = vunpack.c.l.b16 %v5942
    %v7666 = vunpack.c.h.b16 %v5942
    %v7667 = vunpack.c.l.b16 %v5943
    %v7668 = vunpack.c.h.b16 %v5943
    %v7669 = vunpack.c.l.b16 %v5944
    %v7670 = vunpack.c.l.b16 %v5945
    %v7671 = vunpack.c.h.b16 %v5945
    %v7672 = vunpack.c.l.b16 %v5946
    %v7673 = vunpack.c.h.b16 %v5946
    %v7674 = vunpack.c.l.b16 %v5947
    %v7675 = vunpack.c.h.b16 %v5947
    %v7676 = vunpack.c.l.b16 %v5948
    %v7677 = vunpack.c.l.b16 %v5949
    %v7678 = vunpack.c.h.b16 %v5949
    %v7679 = vunpack.c.l.b16 %v5950
    %v7680 = vunpack.c.h.b16 %v5950
    %v7681 = vunpack.c.l.b16 %v5951
    %v7682 = vunpack.c.h.b16 %v5951
    %v7683 = vunpack.c.l.b16 %v5952
    %v7684 = vunpack.c.l.b16 %v5953
    %v7685 = vunpack.c.h.b16 %v5953
    %v7686 = vunpack.c.l.b16 %v5954
    %v7687 = vunpack.c.h.b16 %v5954
    %v7688 = vunpack.c.l.b16 %v5955
    %v7689 = vunpack.c.h.b16 %v5955
    %v7690 = vunpack.c.l.b16 %v5956
    %v7691 = vunpack.c.l.b16 %v5957
    %v7692 = vunpack.c.h.b16 %v5957
    %v7693 = vunpack.c.l.b16 %v5958
    %v7694 = vunpack.c.h.b16 %v5958
    %v7695 = vunpack.c.l.b16 %v5959
    %v7696 = vunpack.c.h.b16 %v5959
    %v7697 = vunpack.c.l.b16 %v5960
    %v7698 = vunpack.c.l.b16 %v5961
    %v7699 = vunpack.c.h.b16 %v5961
    %v7700 = vunpack.c.l.b16 %v5962
    %v7701 = vunpack.c.h.b16 %v5962
    %v7702 = vunpack.c.l.b16 %v5963
    %v7703 = vunpack.c.h.b16 %v5963
    %v7704 = vunpack.c.l.b16 %v5964
    %v7705 = vunpack.c.l.b16 %v5965
    %v7706 = vunpack.c.h.b16 %v5965
    %v7707 = vunpack.c.l.b16 %v5966
    %v7708 = vunpack.c.h.b16 %v5966
    %v7709 = vunpack.c.l.b16 %v5967
    %v7710 = vunpack.c.h.b16 %v5967
    %v7711 = vunpack.c.l.b16 %v5968
    %v7712 = vunpack.c.l.b16 %v5969
    %v7713 = vunpack.c.h.b16 %v5969
    %v7714 = vunpack.c.l.b16 %v5970
    %v7715 = vunpack.c.h.b16 %v5970
    %v7716 = vunpack.c.l.b16 %v5971
    %v7717 = vunpack.c.h.b16 %v5971
    %v7718 = vunpack.c.l.b16 %v5972
    %v7719 = vunpack.c.l.b16 %v5973
    %v7720 = vunpack.c.h.b16 %v5973
    %v7721 = vunpack.c.l.b16 %v5974
    %v7722 = vunpack.c.h.b16 %v5974
    %v7723 = vunpack.c.l.b16 %v5975
    %v7724 = vunpack.c.h.b16 %v5975
    %v7725 = vunpack.c.l.b16 %v5976
    %v7726 = vunpack.c.l.b16 %v5977
    %v7727 = vunpack.c.h.b16 %v5977
    %v7728 = vunpack.c.l.b16 %v5978
    %v7729 = vunpack.c.h.b16 %v5978
    %v7730 = vunpack.c.l.b16 %v5979
    %v7731 = vunpack.c.h.b16 %v5979
    %v7732 = vunpack.c.l.b16 %v5980
    %v7733 = vunpack.c.l.b16 %v5981
    %v7734 = vunpack.c.h.b16 %v5981
    %v7735 = vunpack.c.l.b16 %v5982
    %v7736 = vunpack.c.h.b16 %v5982
    %v7737 = vunpack.c.l.b16 %v5983
    %v7738 = vunpack.c.h.b16 %v5983
    %v7739 = vunpack.c.l.b16 %v5984
    %v7740 = vunpack.c.l.b16 %v5985
    %v7741 = vunpack.c.h.b16 %v5985
    %v7742 = vunpack.c.l.b16 %v5986
    %v7743 = vunpack.c.h.b16 %v5986
    %v7744 = vunpack.c.l.b16 %v5987
    %v7745 = vunpack.c.h.b16 %v5987
    %v7746 = vunpack.c.l.b16 %v5988
    %v7747 = vunpack.c.l.b16 %v5989
    %v7748 = vunpack.c.h.b16 %v5989
    %v7749 = vunpack.c.l.b16 %v5990
    %v7750 = vunpack.c.h.b16 %v5990
    %v7751 = vunpack.c.l.b16 %v5991
    %v7752 = vunpack.c.h.b16 %v5991
    %v7753 = vunpack.c.l.b16 %v5992
    %v7754 = vunpack.c.l.b16 %v5993
    %v7755 = vunpack.c.h.b16 %v5993
    %v7756 = vunpack.c.l.b16 %v5994
    %v7757 = vunpack.c.h.b16 %v5994
    %v7758 = vunpack.c.l.b16 %v5995
    %v7759 = vunpack.c.h.b16 %v5995
    %v7760 = vunpack.c.l.b16 %v5996
    %v7761 = vunpack.c.l.b16 %v5997
    %v7762 = vunpack.c.h.b16 %v5997
    %v7763 = vunpack.c.l.b16 %v5998
    %v7764 = vunpack.c.h.b16 %v5998
    %v7765 = vunpack.c.l.b16 %v5999
    %v7766 = vunpack.c.h.b16 %v5999
    %v7767 = vunpack.c.l.b16 %v6000
    %v7768 = vunpack.c.l.b16 %v6001
    %v7769 = vunpack.c.h.b16 %v6001
    %v7770 = vunpack.c.l.b16 %v6002
    %v7771 = vunpack.c.h.b16 %v6002
    %v7772 = vunpack.c.l.b16 %v6003
    %v7773 = vunpack.c.h.b16 %v6003
    %v7774 = vunpack.c.l.b16 %v6004
    %v7775 = vunpack.c.l.b16 %v6005
    %v7776 = vunpack.c.h.b16 %v6005
    %v7777 = vunpack.c.l.b16 %v6006
    %v7778 = vunpack.c.h.b16 %v6006
    %v7779 = vunpack.c.l.b16 %v6007
    %v7780 = vunpack.c.h.b16 %v6007
    %v7781 = vunpack.c.l.b16 %v6008
    %v7782 = vunpack.c.l.b16 %v6009
    %v7783 = vunpack.c.h.b16 %v6009
    %v7784 = vunpack.c.l.b16 %v6010
    %v7785 = vunpack.c.h.b16 %v6010
    %v7786 = vunpack.c.l.b16 %v6011
    %v7787 = vunpack.c.h.b16 %v6011
    %v7788 = vunpack.c.l.b16 %v6012
    %v7789 = vunpack.c.l.b16 %v6013
    %v7790 = vunpack.c.h.b16 %v6013
    %v7791 = vunpack.c.l.b16 %v6014
    %v7792 = vunpack.c.h.b16 %v6014
    %v7793 = vunpack.c.l.b16 %v6015
    %v7794 = vunpack.c.h.b16 %v6015
    %v7795 = vunpack.c.l.b16 %v6016
    %v7796 = vunpack.c.l.b16 %v6017
    %v7797 = vunpack.c.h.b16 %v6017
    %v7798 = vunpack.c.l.b16 %v6018
    %v7799 = vunpack.c.h.b16 %v6018
    %v7800 = vunpack.c.l.b16 %v6019
    %v7801 = vunpack.c.h.b16 %v6019
    %v7802 = vunpack.c.l.b16 %v6020
    %v7803 = vunpack.c.l.b16 %v6021
    %v7804 = vunpack.c.h.b16 %v6021
    %v7805 = vunpack.c.l.b16 %v6022
    %v7806 = vunpack.c.h.b16 %v6022
    %v7807 = vunpack.c.l.b16 %v6023
    %v7808 = vunpack.c.h.b16 %v6023
    %v7809 = vunpack.c.l.b16 %v6024
    %v7810 = vunpack.c.l.b16 %v6025
    %v7811 = vunpack.c.h.b16 %v6025
    %v7812 = vunpack.c.l.b16 %v6026
    %v7813 = vunpack.c.h.b16 %v6026
    %v7814 = vunpack.c.l.b16 %v6027
    %v7815 = vunpack.c.h.b16 %v6027
    %v7816 = vunpack.c.l.b16 %v6028
    %v7817 = vunpack.c.l.b16 %v6029
    %v7818 = vunpack.c.h.b16 %v6029
    %v7819 = vunpack.c.l.b16 %v6030
    %v7820 = vunpack.c.h.b16 %v6030
    %v7821 = vunpack.c.l.b16 %v6031
    %v7822 = vunpack.c.h.b16 %v6031
    %v7823 = vunpack.c.l.b16 %v6032
    %v7824 = vunpack.c.l.b16 %v6033
    %v7825 = vunpack.c.h.b16 %v6033
    %v7826 = vunpack.c.l.b16 %v6034
    %v7827 = vunpack.c.h.b16 %v6034
    %v7828 = vunpack.c.l.b16 %v6035
    %v7829 = vunpack.c.h.b16 %v6035
    %v7830 = vunpack.c.l.b16 %v6036
    %v7831 = vunpack.c.l.b16 %v6037
    %v7832 = vunpack.c.h.b16 %v6037
    %v7833 = vunpack.c.l.b16 %v6038
    %v7834 = vunpack.c.h.b16 %v6038
    %v7835 = vunpack.c.l.b16 %v6039
    %v7836 = vunpack.c.h.b16 %v6039
    %v7837 = vunpack.c.l.b16 %v6040
    %v7838 = vunpack.c.l.b16 %v6041
    %v7839 = vunpack.c.h.b16 %v6041
    %v7840 = vunpack.c.l.b16 %v6042
    %v7841 = vunpack.c.h.b16 %v6042
    %v7842 = vunpack.c.l.b16 %v6043
    %v7843 = vunpack.c.h.b16 %v6043
    %v7844 = vunpack.c.l.b16 %v6044
    %v7845 = vunpack.c.l.b16 %v6045
    %v7846 = vunpack.c.h.b16 %v6045
    %v7847 = vunpack.c.l.b16 %v6046
    %v7848 = vunpack.c.h.b16 %v6046
    %v7849 = vunpack.c.l.b16 %v6047
    %v7850 = vunpack.c.h.b16 %v6047
    %v7851 = vunpack.c.l.b16 %v6048
    %v7852 = vunpack.c.l.b16 %v6049
    %v7853 = vunpack.c.h.b16 %v6049
    %v7854 = vunpack.c.l.b16 %v6050
    %v7855 = vunpack.c.h.b16 %v6050
    %v7856 = vunpack.c.l.b16 %v6051
    %v7857 = vunpack.c.h.b16 %v6051
    %v7858 = vunpack.c.l.b16 %v6052
    %v7859 = vunpack.c.l.b16 %v6053
    %v7860 = vunpack.c.h.b16 %v6053
    %v7861 = vunpack.c.l.b16 %v6054
    %v7862 = vunpack.c.h.b16 %v6054
    %v7863 = vunpack.c.l.b16 %v6055
    %v7864 = vunpack.c.h.b16 %v6055
    %v7865 = vunpack.c.l.b16 %v6056
    %v7866 = vunpack.c.l.b16 %v6057
    %v7867 = vunpack.c.h.b16 %v6057
    %v7868 = vunpack.c.l.b16 %v6058
    %v7869 = vunpack.c.h.b16 %v6058
    %v7870 = vunpack.c.l.b16 %v6059
    %v7871 = vunpack.c.h.b16 %v6059
    %v7872 = vunpack.c.l.b16 %v6060
    %v7873 = vunpack.c.l.b16 %v6061
    %v7874 = vunpack.c.h.b16 %v6061
    %v7875 = vunpack.c.l.b16 %v6062
    %v7876 = vunpack.c.h.b16 %v6062
    %v7877 = vunpack.c.l.b16 %v6063
    %v7878 = vunpack.c.h.b16 %v6063
    %v7879 = vunpack.c.l.b16 %v6064
    %v7880 = vunpack.c.l.b16 %v6065
    %v7881 = vunpack.c.h.b16 %v6065
    %v7882 = vunpack.c.l.b16 %v6066
    %v7883 = vunpack.c.h.b16 %v6066
    %v7884 = vunpack.c.l.b16 %v6067
    %v7885 = vunpack.c.h.b16 %v6067
    %v7886 = vunpack.c.l.b16 %v6068
    %v7887 = vunpack.c.l.b16 %v6069
    %v7888 = vunpack.c.h.b16 %v6069
    %v7889 = vunpack.c.l.b16 %v6070
    %v7890 = vunpack.c.h.b16 %v6070
    %v7891 = vunpack.c.l.b16 %v6071
    %v7892 = vunpack.c.h.b16 %v6071
    %v7893 = vunpack.c.l.b16 %v6072
    %v7894 = vunpack.c.l.b16 %v6073
    %v7895 = vunpack.c.h.b16 %v6073
    %v7896 = vunpack.c.l.b16 %v6074
    %v7897 = vunpack.c.h.b16 %v6074
    %v7898 = vunpack.c.l.b16 %v6075
    %v7899 = vunpack.c.h.b16 %v6075
    %v7900 = vunpack.c.l.b16 %v6076
    %v7901 = vunpack.c.l.b16 %v6077
    %v7902 = vunpack.c.h.b16 %v6077
    %v7903 = vunpack.c.l.b16 %v6078
    %v7904 = vunpack.c.h.b16 %v6078
    %v7905 = vunpack.c.l.b16 %v6079
    %v7906 = vunpack.c.h.b16 %v6079
    %v7907 = vunpack.c.l.b16 %v6080
    %v7908 = vunpack.c.l.b16 %v6081
    %v7909 = vunpack.c.h.b16 %v6081
    %v7910 = vunpack.c.l.b16 %v6082
    %v7911 = vunpack.c.h.b16 %v6082
    %v7912 = vunpack.c.l.b16 %v6083
    %v7913 = vunpack.c.h.b16 %v6083
    %v7914 = vunpack.c.l.b16 %v6084
    %v7915 = vunpack.c.l.b16 %v6085
    %v7916 = vunpack.c.h.b16 %v6085
    %v7917 = vunpack.c.l.b16 %v6086
    %v7918 = vunpack.c.h.b16 %v6086
    %v7919 = vunpack.c.l.b16 %v6087
    %v7920 = vunpack.c.h.b16 %v6087
    %v7921 = vunpack.c.l.b16 %v6088
    %v7922 = vunpack.c.l.b16 %v6089
    %v7923 = vunpack.c.h.b16 %v6089
    %v7924 = vunpack.c.l.b16 %v6090
    %v7925 = vunpack.c.h.b16 %v6090
    %v7926 = vunpack.c.l.b16 %v6091
    %v7927 = vunpack.c.h.b16 %v6091
    %v7928 = vunpack.c.l.b16 %v6092
    %v7929 = vunpack.c.l.b16 %v6093
    %v7930 = vunpack.c.h.b16 %v6093
    %v7931 = vunpack.c.l.b16 %v6094
    %v7932 = vunpack.c.h.b16 %v6094
    %v7933 = vunpack.c.l.b16 %v6095
    %v7934 = vunpack.c.h.b16 %v6095
    %v7935 = vunpack.c.l.b16 %v6096
    %v7936 = vunpack.c.l.b16 %v6097
    %v7937 = vunpack.c.h.b16 %v6097
    %v7938 = vunpack.c.l.b16 %v6098
    %v7939 = vunpack.c.h.b16 %v6098
    %v7940 = vunpack.c.l.b16 %v6099
    %v7941 = vunpack.c.h.b16 %v6099
    %v7942 = vunpack.c.l.b16 %v6100
    %v7943 = vunpack.c.l.b16 %v6101
    %v7944 = vunpack.c.h.b16 %v6101
    %v7945 = vunpack.c.l.b16 %v6102
    %v7946 = vunpack.c.h.b16 %v6102
    %v7947 = vunpack.c.l.b16 %v6103
    %v7948 = vunpack.c.h.b16 %v6103
    %v7949 = vunpack.c.l.b16 %v6104
    %v7950 = vunpack.c.l.b16 %v6105
    %v7951 = vunpack.c.h.b16 %v6105
    %v7952 = vunpack.c.l.b16 %v6106
    %v7953 = vunpack.c.h.b16 %v6106
    %v7954 = vunpack.c.l.b16 %v6107
    %v7955 = vunpack.c.h.b16 %v6107
    %v7956 = vunpack.c.l.b16 %v6108
    %v7957 = vunpack.c.l.b16 %v6109
    %v7958 = vunpack.c.h.b16 %v6109
    %v7959 = vunpack.c.l.b16 %v6110
    %v7960 = vunpack.c.h.b16 %v6110
    %v7961 = vunpack.c.l.b16 %v6111
    %v7962 = vunpack.c.h.b16 %v6111
    %v7963 = vunpack.c.l.b16 %v6112
    %v7964 = vunpack.c.l.b16 %v6113
    %v7965 = vunpack.c.h.b16 %v6113
    %v7966 = vunpack.c.l.b16 %v6114
    %v7967 = vunpack.c.h.b16 %v6114
    %v7968 = vunpack.c.l.b16 %v6115
    %v7969 = vunpack.c.h.b16 %v6115
    %v7970 = vunpack.c.l.b16 %v6116
    %v7971 = vunpack.c.l.b16 %v6117
    %v7972 = vunpack.c.h.b16 %v6117
    %v7973 = vunpack.c.l.b16 %v6118
    %v7974 = vunpack.c.h.b16 %v6118
    %v7975 = vunpack.c.l.b16 %v6119
    %v7976 = vunpack.c.h.b16 %v6119
    %v7977 = vunpack.c.l.b16 %v6120
    %v7978 = vunpack.c.l.b16 %v6121
    %v7979 = vunpack.c.h.b16 %v6121
    %v7980 = vunpack.c.l.b16 %v6122
    %v7981 = vunpack.c.h.b16 %v6122
    %v7982 = vunpack.c.l.b16 %v6123
    %v7983 = vunpack.c.h.b16 %v6123
    %v7984 = vunpack.c.l.b16 %v6124
    %v7985 = vunpack.c.l.b16 %v6125
    %v7986 = vunpack.c.h.b16 %v6125
    %v7987 = vunpack.c.l.b16 %v6126
    %v7988 = vunpack.c.h.b16 %v6126
    %v7989 = vunpack.c.l.b16 %v6127
    %v7990 = vunpack.c.h.b16 %v6127
    %v7991 = vunpack.c.l.b16 %v6128
    %v7992 = vunpack.c.l.b16 %v6129
    %v7993 = vunpack.c.h.b16 %v6129
    %v7994 = vunpack.c.l.b16 %v6130
    %v7995 = vunpack.c.h.b16 %v6130
    %v7996 = vunpack.c.l.b16 %v6131
    %v7997 = vunpack.c.h.b16 %v6131
    %v7998 = vunpack.c.l.b16 %v6132
    %v7999 = vunpack.c.l.b16 %v6133
    %v8000 = vunpack.c.h.b16 %v6133
    %v8001 = vunpack.c.l.b16 %v6134
    %v8002 = vunpack.c.h.b16 %v6134
    %v8003 = vunpack.c.l.b16 %v6135
    %v8004 = vunpack.c.h.b16 %v6135
    %v8005 = vunpack.c.l.b16 %v6136
    %v8006 = vunpack.c.l.b16 %v6137
    %v8007 = vunpack.c.h.b16 %v6137
    %v8008 = vunpack.c.l.b16 %v6138
    %v8009 = vunpack.c.h.b16 %v6138
    %v8010 = vunpack.c.l.b16 %v6139
    %v8011 = vunpack.c.h.b16 %v6139
    %v8012 = vunpack.c.l.b16 %v6140
    %v8013 = vunpack.c.l.b16 %v6141
    %v8014 = vunpack.c.h.b16 %v6141
    %v8015 = vunpack.c.l.b16 %v6142
    %v8016 = vunpack.c.h.b16 %v6142
    %v8017 = vunpack.c.l.b16 %v6143
    %v8018 = vunpack.c.h.b16 %v6143
    %v8019 = vunpack.c.l.b16 %v6144
    %v8020 = vunpack.c.l.b16 %v6145
    %v8021 = vunpack.c.h.b16 %v6145
    %v8022 = vunpack.c.l.b16 %v6146
    %v8023 = vunpack.c.h.b16 %v6146
    %v8024 = vunpack.c.l.b16 %v6147
    %v8025 = vunpack.c.h.b16 %v6147
    %v8026 = vunpack.c.l.b16 %v6148
    %v8027 = vunpack.c.l.b16 %v6149
    %v8028 = vunpack.c.h.b16 %v6149
    %v8029 = vunpack.c.l.b16 %v6150
    %v8030 = vunpack.c.h.b16 %v6150
    %v8031 = vunpack.c.l.b16 %v6151
    %v8032 = vunpack.c.h.b16 %v6151
    %v8033 = vunpack.c.l.b16 %v6152
    %v8034 = vunpack.c.l.b16 %v6153
    %v8035 = vunpack.c.h.b16 %v6153
    %v8036 = vunpack.c.l.b16 %v6154
    %v8037 = vunpack.c.h.b16 %v6154
    %v8038 = vunpack.c.l.b16 %v6155
    %v8039 = vunpack.c.h.b16 %v6155
    %v8040 = vunpack.c.l.b16 %v6156
    %v8041 = vunpack.c.l.b16 %v6157
    %v8042 = vunpack.c.h.b16 %v6157
    %v8043 = vunpack.c.l.b16 %v6158
    %v8044 = vunpack.c.h.b16 %v6158
    %v8045 = vunpack.c.l.b16 %v6159
    %v8046 = vunpack.c.h.b16 %v6159
    %v8047 = vunpack.c.l.b16 %v6160
    %v8048 = vunpack.c.l.b16 %v6161
    %v8049 = vunpack.c.h.b16 %v6161
    %v8050 = vunpack.c.l.b16 %v6162
    %v8051 = vunpack.c.h.b16 %v6162
    %v8052 = vunpack.c.l.b16 %v6163
    %v8053 = vunpack.c.h.b16 %v6163
    %v8054 = vunpack.c.l.b16 %v6164
    %v8055 = vunpack.c.l.b16 %v6165
    %v8056 = vunpack.c.h.b16 %v6165
    %v8057 = vunpack.c.l.b16 %v6166
    %v8058 = vunpack.c.h.b16 %v6166
    %v8059 = vunpack.c.l.b16 %v6167
    %v8060 = vunpack.c.h.b16 %v6167
    %v8061 = vunpack.c.l.b16 %v6168
    %v8062 = vunpack.c.l.b16 %v6169
    %v8063 = vunpack.c.h.b16 %v6169
    %v8064 = vunpack.c.l.b16 %v6170
    %v8065 = vunpack.c.h.b16 %v6170
    %v8066 = vunpack.c.l.b16 %v6171
    %v8067 = vunpack.c.h.b16 %v6171
    %v8068 = vunpack.c.l.b16 %v6172
    %v8069 = vunpack.c.l.b16 %v6173
    %v8070 = vunpack.c.h.b16 %v6173
    %v8071 = vunpack.c.l.b16 %v6174
    %v8072 = vunpack.c.h.b16 %v6174
    %v8073 = vunpack.c.l.b16 %v6175
    %v8074 = vunpack.c.h.b16 %v6175
    %v8075 = vunpack.c.l.b16 %v6176
    %v8076 = vunpack.c.l.b16 %v6177
    %v8077 = vunpack.c.h.b16 %v6177
    %v8078 = vunpack.c.l.b16 %v6178
    %v8079 = vunpack.c.h.b16 %v6178
    %v8080 = vunpack.c.l.b16 %v6179
    %v8081 = vunpack.c.h.b16 %v6179
    %v8082 = vunpack.c.l.b16 %v6180
    %v8083 = vunpack.c.l.b16 %v6181
    %v8084 = vunpack.c.h.b16 %v6181
    %v8085 = vunpack.c.l.b16 %v6182
    %v8086 = vunpack.c.h.b16 %v6182
    %v8087 = vunpack.c.l.b16 %v6183
    %v8088 = vunpack.c.h.b16 %v6183
    %v8089 = vunpack.c.l.b16 %v6184
    %v8090 = vunpack.c.l.b16 %v6185
    %v8091 = vunpack.c.h.b16 %v6185
    %v8092 = vunpack.c.l.b16 %v6186
    %v8093 = vunpack.c.h.b16 %v6186
    %v8094 = vunpack.c.l.b16 %v6187
    %v8095 = vunpack.c.h.b16 %v6187
    %v8096 = vunpack.c.l.b16 %v6188
    %v8097 = vunpack.c.l.b16 %v6189
    %v8098 = vunpack.c.h.b16 %v6189
    %v8099 = vunpack.c.l.b16 %v6190
    %v8100 = vunpack.c.h.b16 %v6190
    %v8101 = vunpack.c.l.b16 %v6191
    %v8102 = vunpack.c.h.b16 %v6191
    %v8103 = vunpack.c.l.b16 %v6192
    %v8104 = vunpack.c.l.b16 %v6193
    %v8105 = vunpack.c.h.b16 %v6193
    %v8106 = vunpack.c.l.b16 %v6194
    %v8107 = vunpack.c.h.b16 %v6194
    %v8108 = vunpack.c.l.b16 %v6195
    %v8109 = vunpack.c.h.b16 %v6195
    %v8110 = vunpack.c.l.b16 %v6196
    %v8111 = vunpack.c.l.b16 %v6197
    %v8112 = vunpack.c.h.b16 %v6197
    %v8113 = vunpack.c.l.b16 %v6198
    %v8114 = vunpack.c.h.b16 %v6198
    %v8115 = vunpack.c.l.b16 %v6199
    %v8116 = vunpack.c.h.b16 %v6199
    %v8117 = vunpack.c.l.b16 %v6200
    %v8118 = vunpack.c.l.b16 %v6201
    %v8119 = vunpack.c.h.b16 %v6201
    %v8120 = vunpack.c.l.b16 %v6202
    %v8121 = vunpack.c.h.b16 %v6202
    %v8122 = vunpack.c.l.b16 %v6203
    %v8123 = vunpack.c.h.b16 %v6203
    %v8124 = vunpack.c.l.b16 %v6204
    %v8125 = vunpack.c.l.b16 %v6205
    %v8126 = vunpack.c.h.b16 %v6205
    %v8127 = vunpack.c.l.b16 %v6206
    %v8128 = vunpack.c.h.b16 %v6206
    %v8129 = vunpack.c.l.b16 %v6207
    %v8130 = vunpack.c.h.b16 %v6207
    %v8131 = vunpack.c.l.b16 %v6208
    %v8132 = vunpack.c.l.b16 %v6209
    %v8133 = vunpack.c.h.b16 %v6209
    %v8134 = vunpack.c.l.b16 %v6210
    %v8135 = vunpack.c.h.b16 %v6210
    %v8136 = vunpack.c.l.b16 %v6211
    %v8137 = vunpack.c.h.b16 %v6211
    %v8138 = vunpack.c.l.b16 %v6212
    %v8139 = vunpack.c.l.b16 %v6213
    %v8140 = vunpack.c.h.b16 %v6213
    %v8141 = vunpack.c.l.b16 %v6214
    %v8142 = vunpack.c.h.b16 %v6214
    %v8143 = vunpack.c.l.b16 %v6215
    %v8144 = vunpack.c.h.b16 %v6215
    %v8145 = vunpack.c.l.b16 %v6216
    %v8146 = vunpack.c.l.b16 %v6217
    %v8147 = vunpack.c.h.b16 %v6217
    %v8148 = vunpack.c.l.b16 %v6218
    %v8149 = vunpack.c.h.b16 %v6218
    %v8150 = vunpack.c.l.b16 %v6219
    %v8151 = vunpack.c.h.b16 %v6219
    %v8152 = vunpack.c.l.b16 %v6220
    %v8153 = vunpack.c.l.b16 %v6221
    %v8154 = vunpack.c.h.b16 %v6221
    %v8155 = vunpack.c.l.b16 %v6222
    %v8156 = vunpack.c.h.b16 %v6222
    %v8157 = vunpack.c.l.b16 %v6223
    %v8158 = vunpack.c.h.b16 %v6223
    %v8159 = vunpack.c.l.b16 %v6224
    %v8160 = vunpack.c.l.b16 %v6225
    %v8161 = vunpack.c.h.b16 %v6225
    %v8162 = vunpack.c.l.b16 %v6226
    %v8163 = vunpack.c.h.b16 %v6226
    %v8164 = vunpack.c.l.b16 %v6227
    %v8165 = vunpack.c.h.b16 %v6227
    %v8166 = vunpack.c.l.b16 %v6228
    %v8167 = vunpack.c.l.b16 %v6229
    %v8168 = vunpack.c.h.b16 %v6229
    %v8169 = vunpack.c.l.b16 %v6230
    %v8170 = vunpack.c.h.b16 %v6230
    %v8171 = vunpack.c.l.b16 %v6231
    %v8172 = vunpack.c.h.b16 %v6231
    %v8173 = vunpack.c.l.b16 %v6232
    %v8174 = vunpack.c.l.b16 %v6233
    %v8175 = vunpack.c.h.b16 %v6233
    %v8176 = vunpack.c.l.b16 %v6234
    %v8177 = vunpack.c.h.b16 %v6234
    %v8178 = vunpack.c.l.b16 %v6235
    %v8179 = vunpack.c.h.b16 %v6235
    %v8180 = vunpack.c.l.b16 %v6236
    %v8181 = vunpack.c.l.b16 %v6237
    %v8182 = vunpack.c.h.b16 %v6237
    %v8183 = vunpack.c.l.b16 %v6238
    %v8184 = vunpack.c.h.b16 %v6238
    %v8185 = vunpack.c.l.b16 %v6239
    %v8186 = vunpack.c.h.b16 %v6239
    %v8187 = vunpack.c.l.b16 %v6240
    %v8188 = vunpack.c.l.b16 %v6241
    %v8189 = vunpack.c.h.b16 %v6241
    %v8190 = vunpack.c.l.b16 %v6242
    %v8191 = vunpack.c.h.b16 %v6242
    %v8192 = vunpack.c.l.b16 %v6243
    %v8193 = vunpack.c.h.b16 %v6243
    %v8194 = vunpack.c.l.b16 %v6244
    %v8195 = vunpack.c.l.b16 %v6245
    %v8196 = vunpack.c.h.b16 %v6245
    %v8197 = vunpack.c.l.b16 %v6246
    %v8198 = vunpack.c.h.b16 %v6246
    %v8199 = vunpack.c.l.b16 %v6247
    %v8200 = vunpack.c.h.b16 %v6247
    %v8201 = vunpack.c.l.b16 %v6248
    %v8202 = vunpack.c.l.b16 %v6249
    %v8203 = vunpack.c.h.b16 %v6249
    %v8204 = vunpack.c.l.b16 %v6250
    %v8205 = vunpack.c.h.b16 %v6250
    %v8206 = vunpack.c.l.b16 %v6251
    %v8207 = vunpack.c.h.b16 %v6251
    %v8208 = vunpack.c.l.b16 %v6252
    %v8209 = vunpack.c.l.b16 %v6253
    %v8210 = vunpack.c.h.b16 %v6253
    %v8211 = vunpack.c.l.b16 %v6254
    %v8212 = vunpack.c.h.b16 %v6254
    %v8213 = vunpack.c.l.b16 %v6255
    %v8214 = vunpack.c.h.b16 %v6255
    %v8215 = vunpack.c.l.b16 %v6256
    %v8216 = vunpack.c.l.b16 %v6257
    %v8217 = vunpack.c.h.b16 %v6257
    %v8218 = vunpack.c.l.b16 %v6258
    %v8219 = vunpack.c.h.b16 %v6258
    %v8220 = vunpack.c.l.b16 %v6259
    %v8221 = vunpack.c.h.b16 %v6259
    %v8222 = vunpack.c.l.b16 %v6260
    %v8223 = vunpack.c.l.b16 %v6261
    %v8224 = vunpack.c.h.b16 %v6261
    %v8225 = vunpack.c.l.b16 %v6262
    %v8226 = vunpack.c.h.b16 %v6262
    %v8227 = vunpack.c.l.b16 %v6263
    %v8228 = vunpack.c.h.b16 %v6263
    %v8229 = vunpack.c.l.b16 %v6264
    %v8230 = vunpack.c.l.b16 %v6265
    %v8231 = vunpack.c.h.b16 %v6265
    %v8232 = vunpack.c.l.b16 %v6266
    %v8233 = vunpack.c.h.b16 %v6266
    %v8234 = vunpack.c.l.b16 %v6267
    %v8235 = vunpack.c.h.b16 %v6267
    %v8236 = vunpack.c.l.b16 %v6268
    %v8237 = vunpack.c.l.b16 %v6269
    %v8238 = vunpack.c.h.b16 %v6269
    %v8239 = vunpack.c.l.b16 %v6270
    %v8240 = vunpack.c.h.b16 %v6270
    %v8241 = vunpack.c.l.b16 %v6271
    %v8242 = vunpack.c.h.b16 %v6271
    %v8243 = vunpack.c.l.b16 %v6272
    %v8244 = vunpack.c.l.b16 %v6273
    %v8245 = vunpack.c.h.b16 %v6273
    %v8246 = vunpack.c.l.b16 %v6274
    %v8247 = vunpack.c.h.b16 %v6274
    %v8248 = vunpack.c.l.b16 %v6275
    %v8249 = vunpack.c.h.b16 %v6275
    %v8250 = vunpack.c.l.b16 %v6276
    %v8251 = vunpack.c.l.b16 %v6277
    %v8252 = vunpack.c.h.b16 %v6277
    %v8253 = vunpack.c.l.b16 %v6278
    %v8254 = vunpack.c.h.b16 %v6278
    %v8255 = vunpack.c.l.b16 %v6279
    %v8256 = vunpack.c.h.b16 %v6279
    %v8257 = vunpack.c.l.b16 %v6280
    %v8258 = vunpack.c.l.b16 %v6281
    %v8259 = vunpack.c.h.b16 %v6281
    %v8260 = vunpack.c.l.b16 %v6282
    %v8261 = vunpack.c.h.b16 %v6282
    %v8262 = vunpack.c.l.b16 %v6283
    %v8263 = vunpack.c.h.b16 %v6283
    %v8264 = vunpack.c.l.b16 %v6284
    %v8265 = vunpack.c.l.b16 %v6285
    %v8266 = vunpack.c.h.b16 %v6285
    %v8267 = vunpack.c.l.b16 %v6286
    %v8268 = vunpack.c.h.b16 %v6286
    %v8269 = vunpack.c.l.b16 %v6287
    %v8270 = vunpack.c.h.b16 %v6287
    %v8271 = vunpack.c.l.b16 %v6288
    %v8272 = vunpack.c.l.b16 %v6289
    %v8273 = vunpack.c.h.b16 %v6289
    %v8274 = vunpack.c.l.b16 %v6290
    %v8275 = vunpack.c.h.b16 %v6290
    %v8276 = vunpack.c.l.b16 %v6291
    %v8277 = vunpack.c.h.b16 %v6291
    %v8278 = vunpack.c.l.b16 %v6292
    %v8279 = vunpack.c.l.b16 %v6293
    %v8280 = vunpack.c.h.b16 %v6293
    %v8281 = vunpack.c.l.b16 %v6294
    %v8282 = vunpack.c.h.b16 %v6294
    %v8283 = vunpack.c.l.b16 %v6295
    %v8284 = vunpack.c.h.b16 %v6295
    %v8285 = vunpack.c.l.b16 %v6296
    %v8286 = vunpack.c.l.b16 %v6297
    %v8287 = vunpack.c.h.b16 %v6297
    %v8288 = vunpack.c.l.b16 %v6298
    %v8289 = vunpack.c.h.b16 %v6298
    %v8290 = vunpack.c.l.b16 %v6299
    %v8291 = vunpack.c.h.b16 %v6299
    %v8292 = vunpack.c.l.b16 %v6300
    %v8293 = vunpack.c.l.b16 %v6301
    %v8294 = vunpack.c.h.b16 %v6301
    %v8295 = vunpack.c.l.b16 %v6302
    %v8296 = vunpack.c.h.b16 %v6302
    %v8297 = vunpack.c.l.b16 %v6303
    %v8298 = vunpack.c.h.b16 %v6303
    %v8299 = vunpack.c.l.b16 %v6304
    %v8300 = vunpack.c.l.b16 %v6305
    %v8301 = vunpack.c.h.b16 %v6305
    %v8302 = vunpack.c.l.b16 %v6306
    %v8303 = vunpack.c.h.b16 %v6306
    %v8304 = vunpack.c.l.b16 %v6307
    %v8305 = vunpack.c.h.b16 %v6307
    %v8306 = vunpack.c.l.b16 %v6308
    %v8307 = vunpack.c.l.b16 %v6309
    %v8308 = vunpack.c.h.b16 %v6309
    %v8309 = vunpack.c.l.b16 %v6310
    %v8310 = vunpack.c.h.b16 %v6310
    %v8311 = vunpack.c.l.b16 %v6311
    %v8312 = vunpack.c.h.b16 %v6311
    %v8313 = vunpack.c.l.b16 %v6312
    %v8314 = vunpack.c.l.b16 %v6313
    %v8315 = vunpack.c.h.b16 %v6313
    %v8316 = vunpack.c.l.b16 %v6314
    %v8317 = vunpack.c.h.b16 %v6314
    %v8318 = vunpack.c.l.b16 %v6315
    %v8319 = vunpack.c.h.b16 %v6315
    %v8320 = vunpack.c.l.b16 %v6316
    %v8321 = vunpack.c.l.b16 %v6317
    %v8322 = vunpack.c.h.b16 %v6317
    %v8323 = vunpack.c.l.b16 %v6318
    %v8324 = vunpack.c.h.b16 %v6318
    %v8325 = vunpack.c.l.b16 %v6319
    %v8326 = vunpack.c.h.b16 %v6319
    %v8327 = vunpack.c.l.b16 %v6320
    %v8328 = vunpack.c.l.b16 %v6321
    %v8329 = vunpack.c.h.b16 %v6321
    %v8330 = vunpack.c.l.b16 %v6322
    %v8331 = vunpack.c.h.b16 %v6322
    %v8332 = vunpack.c.l.b16 %v6323
    %v8333 = vunpack.c.h.b16 %v6323
    %v8334 = vunpack.c.l.b16 %v6324
    %v8335 = vunpack.c.l.b16 %v6325
    %v8336 = vunpack.c.h.b16 %v6325
    %v8337 = vunpack.c.l.b16 %v6326
    %v8338 = vunpack.c.h.b16 %v6326
    %v8339 = vunpack.c.l.b16 %v6327
    %v8340 = vunpack.c.h.b16 %v6327
    %v8341 = vunpack.c.l.b16 %v6328
    %v8342 = vunpack.c.l.b16 %v6329
    %v8343 = vunpack.c.h.b16 %v6329
    %v8344 = vunpack.c.l.b16 %v6330
    %v8345 = vunpack.c.h.b16 %v6330
    %v8346 = vunpack.c.l.b16 %v6331
    %v8347 = vunpack.c.h.b16 %v6331
    %v8348 = vunpack.c.l.b16 %v6332
    %v8349 = vunpack.c.l.b16 %v6333
    %v8350 = vunpack.c.h.b16 %v6333
    %v8351 = vunpack.c.l.b16 %v6334
    %v8352 = vunpack.c.h.b16 %v6334
    %v8353 = vunpack.c.l.b16 %v6335
    %v8354 = vunpack.c.h.b16 %v6335
    %v8355 = vunpack.c.l.b16 %v6336
    %v8356 = vunpack.c.l.b16 %v6337
    %v8357 = vunpack.c.h.b16 %v6337
    %v8358 = vunpack.c.l.b16 %v6338
    %v8359 = vunpack.c.h.b16 %v6338
    %v8360 = vunpack.c.l.b16 %v6339
    %v8361 = vunpack.c.h.b16 %v6339
    %v8362 = vunpack.c.l.b16 %v6340
    %v8363 = vunpack.c.l.b16 %v6341
    %v8364 = vunpack.c.h.b16 %v6341
    %v8365 = vunpack.c.l.b16 %v6342
    %v8366 = vunpack.c.h.b16 %v6342
    %v8367 = vunpack.c.l.b16 %v6343
    %v8368 = vunpack.c.h.b16 %v6343
    %v8369 = vunpack.c.l.b16 %v6344
    %v8370 = vunpack.c.l.b16 %v6345
    %v8371 = vunpack.c.h.b16 %v6345
    %v8372 = vunpack.c.l.b16 %v6346
    %v8373 = vunpack.c.h.b16 %v6346
    %v8374 = vunpack.c.l.b16 %v6347
    %v8375 = vunpack.c.h.b16 %v6347
    %v8376 = vunpack.c.l.b16 %v6348
    %v8377 = vunpack.c.l.b16 %v6349
    %v8378 = vunpack.c.h.b16 %v6349
    %v8379 = vunpack.c.l.b16 %v6350
    %v8380 = vunpack.c.h.b16 %v6350
    %v8381 = vunpack.c.l.b16 %v6351
    %v8382 = vunpack.c.h.b16 %v6351
    %v8383 = vunpack.c.l.b16 %v6352
    %v8384 = vunpack.c.l.b16 %v6353
    %v8385 = vunpack.c.h.b16 %v6353
    %v8386 = vunpack.c.l.b16 %v6354
    %v8387 = vunpack.c.h.b16 %v6354
    %v8388 = vunpack.c.l.b16 %v6355
    %v8389 = vunpack.c.h.b16 %v6355
    %v8390 = vunpack.c.l.b16 %v6356
    %v8391 = vunpack.c.l.b16 %v6357
    %v8392 = vunpack.c.h.b16 %v6357
    %v8393 = vunpack.c.l.b16 %v6358
    %v8394 = vunpack.c.h.b16 %v6358
    %v8395 = vunpack.c.l.b16 %v6359
    %v8396 = vunpack.c.h.b16 %v6359
    %v8397 = vunpack.c.l.b16 %v6360
    %v8398 = vunpack.c.l.b16 %v6361
    %v8399 = vunpack.c.h.b16 %v6361
    %v8400 = vunpack.c.l.b16 %v6362
    %v8401 = vunpack.c.h.b16 %v6362
    %v8402 = vunpack.c.l.b16 %v6363
    %v8403 = vunpack.c.h.b16 %v6363
    %v8404 = vunpack.c.l.b16 %v6364
    %v8405 = vunpack.c.l.b16 %v6365
    %v8406 = vunpack.c.h.b16 %v6365
    %v8407 = vunpack.c.l.b16 %v6366
    %v8408 = vunpack.c.h.b16 %v6366
    %v8409 = vunpack.c.l.b16 %v6367
    %v8410 = vunpack.c.h.b16 %v6367
    %v8411 = vunpack.c.l.b16 %v6368
    %v8412 = vunpack.c.l.b16 %v6369
    %v8413 = vunpack.c.h.b16 %v6369
    %v8414 = vunpack.c.l.b16 %v6370
    %v8415 = vunpack.c.h.b16 %v6370
    %v8416 = vunpack.c.l.b16 %v6371
    %v8417 = vunpack.c.h.b16 %v6371
    %v8418 = vunpack.c.l.b16 %v6372
    %v8419 = vunpack.c.l.b16 %v6373
    %v8420 = vunpack.c.h.b16 %v6373
    %v8421 = vunpack.c.l.b16 %v6374
    %v8422 = vunpack.c.h.b16 %v6374
    %v8423 = vunpack.c.l.b16 %v6375
    %v8424 = vunpack.c.h.b16 %v6375
    %v8425 = vunpack.c.l.b16 %v6376
    %v8426 = vunpack.c.l.b16 %v6377
    %v8427 = vunpack.c.h.b16 %v6377
    %v8428 = vunpack.c.l.b16 %v6378
    %v8429 = vunpack.c.h.b16 %v6378
    %v8430 = vunpack.c.l.b16 %v6379
    %v8431 = vunpack.c.h.b16 %v6379
    %v8432 = vunpack.c.l.b16 %v6380
    %v8433 = vunpack.c.l.b16 %v6381
    %v8434 = vunpack.c.h.b16 %v6381
    %v8435 = vunpack.c.l.b16 %v6382
    %v8436 = vunpack.c.h.b16 %v6382
    %v8437 = vunpack.c.l.b16 %v6383
    %v8438 = vunpack.c.h.b16 %v6383
    %v8439 = vunpack.c.l.b16 %v6384
    %v8440 = vunpack.c.l.b16 %v6385
    %v8441 = vunpack.c.h.b16 %v6385
    %v8442 = vunpack.c.l.b16 %v6386
    %v8443 = vunpack.c.h.b16 %v6386
    %v8444 = vunpack.c.l.b16 %v6387
    %v8445 = vunpack.c.h.b16 %v6387
    %v8446 = vunpack.c.l.b16 %v6388
    %v8447 = vunpack.c.l.b16 %v6389
    %v8448 = vunpack.c.h.b16 %v6389
    %v8449 = vunpack.c.l.b16 %v6390
    %v8450 = vunpack.c.h.b16 %v6390
    %v8451 = vunpack.c.l.b16 %v6391
    %v8452 = vunpack.c.h.b16 %v6391
    %v8453 = vunpack.c.l.b16 %v6392
    %v8454 = vunpack.c.l.b16 %v6393
    %v8455 = vunpack.c.h.b16 %v6393
    %v8456 = vunpack.c.l.b16 %v6394
    %v8457 = vunpack.c.h.b16 %v6394
    %v8458 = vunpack.c.l.b16 %v6395
    %v8459 = vunpack.c.h.b16 %v6395
    %v8460 = vunpack.c.l.b16 %v6396
    %v8461 = vunpack.c.l.b16 %v6397
    %v8462 = vunpack.c.h.b16 %v6397
    %v8463 = vunpack.c.l.b16 %v6398
    %v8464 = vunpack.c.h.b16 %v6398
    %v8465 = vunpack.c.l.b16 %v6399
    %v8466 = vunpack.c.h.b16 %v6399
    %v8467 = vunpack.c.l.b16 %v6400
    %v8468 = vunpack.c.l.b16 %v6401
    %v8469 = vunpack.c.h.b16 %v6401
    %v8470 = vunpack.c.l.b16 %v6402
    %v8471 = vunpack.c.h.b16 %v6402
    %v8472 = vunpack.c.l.b16 %v6403
    %v8473 = vunpack.c.h.b16 %v6403
    %v8474 = vunpack.c.l.b16 %v6404
    %v8475 = vunpack.c.l.b16 %v6405
    %v8476 = vunpack.c.h.b16 %v6405
    %v8477 = vunpack.c.l.b16 %v6406
    %v8478 = vunpack.c.h.b16 %v6406
    %v8479 = vunpack.c.l.b16 %v6407
    %v8480 = vunpack.c.h.b16 %v6407
    %v8481 = vunpack.c.l.b16 %v6408
    %v8482 = vunpack.c.l.b16 %v6409
    %v8483 = vunpack.c.h.b16 %v6409
    %v8484 = vunpack.c.l.b16 %v6410
    %v8485 = vunpack.c.h.b16 %v6410
    %v8486 = vunpack.c.l.b16 %v6411
    %v8487 = vunpack.c.h.b16 %v6411
    %v8488 = vunpack.c.l.b16 %v6412
    %v8489 = vunpack.c.l.b16 %v6413
    %v8490 = vunpack.c.h.b16 %v6413
    %v8491 = vunpack.c.l.b16 %v6414
    %v8492 = vunpack.c.h.b16 %v6414
    %v8493 = vunpack.c.l.b16 %v6415
    %v8494 = vunpack.c.h.b16 %v6415
    %v8495 = vunpack.c.l.b16 %v6416
    %v8496 = vunpack.c.l.b16 %v6417
    %v8497 = vunpack.c.h.b16 %v6417
    %v8498 = vunpack.c.l.b16 %v6418
    %v8499 = vunpack.c.h.b16 %v6418
    %v8500 = vunpack.c.l.b16 %v6419
    %v8501 = vunpack.c.h.b16 %v6419
    %v8502 = vunpack.c.l.b16 %v6420
    %v8503 = vunpack.c.l.b16 %v6421
    %v8504 = vunpack.c.h.b16 %v6421
    %v8505 = vunpack.c.l.b16 %v6422
    %v8506 = vunpack.c.h.b16 %v6422
    %v8507 = vunpack.c.l.b16 %v6423
    %v8508 = vunpack.c.h.b16 %v6423
    %v8509 = vunpack.c.l.b16 %v6424
    %v8510 = vunpack.c.l.b16 %v6425
    %v8511 = vunpack.c.h.b16 %v6425
    %v8512 = vunpack.c.l.b16 %v6426
    %v8513 = vunpack.c.h.b16 %v6426
    %v8514 = vunpack.c.l.b16 %v6427
    %v8515 = vunpack.c.h.b16 %v6427
    %v8516 = vunpack.c.l.b16 %v6428
    %v8517 = vunpack.c.l.b16 %v6429
    %v8518 = vunpack.c.h.b16 %v6429
    %v8519 = vunpack.c.l.b16 %v6430
    %v8520 = vunpack.c.h.b16 %v6430
    %v8521 = vunpack.c.l.b16 %v6431
    %v8522 = vunpack.c.h.b16 %v6431
    %v8523 = vunpack.c.l.b16 %v6432
    %v8524 = vunpack.c.l.b16 %v6433
    %v8525 = vunpack.c.h.b16 %v6433
    %v8526 = vunpack.c.l.b16 %v6434
    %v8527 = vunpack.c.h.b16 %v6434
    %v8528 = vunpack.c.l.b16 %v6435
    %v8529 = vunpack.c.h.b16 %v6435
    %v8530 = vunpack.c.l.b16 %v6436
    %v8531 = vunpack.c.l.b16 %v6437
    %v8532 = vunpack.c.h.b16 %v6437
    %v8533 = vunpack.c.l.b16 %v6438
    %v8534 = vunpack.c.h.b16 %v6438
    %v8535 = vunpack.c.l.b16 %v6439
    %v8536 = vunpack.c.h.b16 %v6439
    %v8537 = vunpack.c.l.b16 %v6440
    %v8538 = vunpack.c.l.b16 %v6441
    %v8539 = vunpack.c.h.b16 %v6441
    %v8540 = vunpack.c.l.b16 %v6442
    %v8541 = vunpack.c.h.b16 %v6442
    %v8542 = vunpack.c.l.b16 %v6443
    %v8543 = vunpack.c.h.b16 %v6443
    %v8544 = vunpack.c.l.b16 %v6444
    %v8545 = vunpack.c.l.b16 %v6445
    %v8546 = vunpack.c.h.b16 %v6445
    %v8547 = vunpack.c.l.b16 %v6446
    %v8548 = vunpack.c.h.b16 %v6446
    %v8549 = vunpack.c.l.b16 %v6447
    %v8550 = vunpack.c.h.b16 %v6447
    %v8551 = vunpack.c.l.b16 %v6448
    %v8552 = vunpack.c.l.b16 %v6449
    %v8553 = vunpack.c.h.b16 %v6449
    %v8554 = vunpack.c.l.b16 %v6450
    %v8555 = vunpack.c.h.b16 %v6450
    %v8556 = vunpack.c.l.b16 %v6451
    %v8557 = vunpack.c.h.b16 %v6451
    %v8558 = vunpack.c.l.b16 %v6452
    %v8559 = vunpack.c.l.b16 %v6453
    %v8560 = vunpack.c.h.b16 %v6453
    %v8561 = vunpack.c.l.b16 %v6454
    %v8562 = vunpack.c.h.b16 %v6454
    %v8563 = vunpack.c.l.b16 %v6455
    %v8564 = vunpack.c.h.b16 %v6455
    %v8565 = vunpack.c.l.b16 %v6456
    %v8566 = vunpack.c.l.b16 %v6457
    %v8567 = vunpack.c.h.b16 %v6457
    %v8568 = vunpack.c.l.b16 %v6458
    %v8569 = vunpack.c.h.b16 %v6458
    %v8570 = vunpack.c.l.b16 %v6459
    %v8571 = vunpack.c.h.b16 %v6459
    %v8572 = vunpack.c.l.b16 %v6460
    %v8573 = vunpack.c.l.b16 %v6461
    %v8574 = vunpack.c.h.b16 %v6461
    %v8575 = vunpack.c.l.b16 %v6462
    %v8576 = vunpack.c.h.b16 %v6462
    %v8577 = vunpack.c.l.b16 %v6463
    %v8578 = vunpack.c.h.b16 %v6463
    %v8579 = vunpack.c.l.b16 %v6464
    %v8580 = vunpack.c.l.b16 %v6465
    %v8581 = vunpack.c.h.b16 %v6465
    %v8582 = vunpack.c.l.b16 %v6466
    %v8583 = vunpack.c.h.b16 %v6466
    %v8584 = vunpack.c.l.b16 %v6467
    %v8585 = vunpack.c.h.b16 %v6467
    %v8586 = vunpack.c.l.b16 %v6468
    %v8587 = vunpack.c.l.b16 %v6469
    %v8588 = vunpack.c.h.b16 %v6469
    %v8589 = vunpack.c.l.b16 %v6470
    %v8590 = vunpack.c.h.b16 %v6470
    %v8591 = vunpack.c.l.b16 %v6471
    %v8592 = vunpack.c.h.b16 %v6471
    %v8593 = vunpack.c.l.b16 %v6472
    %v8594 = vunpack.c.l.b16 %v6473
    %v8595 = vunpack.c.h.b16 %v6473
    %v8596 = vunpack.c.l.b16 %v6474
    %v8597 = vunpack.c.h.b16 %v6474
    %v8598 = vunpack.c.l.b16 %v6475
    %v8599 = vunpack.c.h.b16 %v6475
    %v8600 = vunpack.c.l.b16 %v6476
    %v8601 = vunpack.c.l.b16 %v6477
    %v8602 = vunpack.c.h.b16 %v6477
    %v8603 = vunpack.c.l.b16 %v6478
    %v8604 = vunpack.c.h.b16 %v6478
    %v8605 = vunpack.c.l.b16 %v6479
    %v8606 = vunpack.c.h.b16 %v6479
    %v8607 = vunpack.c.l.b16 %v6480
    %v8608 = vunpack.c.l.b16 %v6481
    %v8609 = vunpack.c.h.b16 %v6481
    %v8610 = vunpack.c.l.b16 %v6482
    %v8611 = vunpack.c.h.b16 %v6482
    %v8612 = vunpack.c.l.b16 %v6483
    %v8613 = vunpack.c.h.b16 %v6483
    %v8614 = vunpack.c.l.b16 %v6484
    %v8615 = vunpack.c.l.b16 %v6485
    %v8616 = vunpack.c.h.b16 %v6485
    %v8617 = vunpack.c.l.b16 %v6486
    %v8618 = vunpack.c.h.b16 %v6486
    %v8619 = vunpack.c.l.b16 %v6487
    %v8620 = vunpack.c.h.b16 %v6487
    %v8621 = vunpack.c.l.b16 %v6488
    %v8622 = vunpack.c.l.b16 %v6489
    %v8623 = vunpack.c.h.b16 %v6489
    %v8624 = vunpack.c.l.b16 %v6490
    %v8625 = vunpack.c.h.b16 %v6490
    %v8626 = vunpack.c.l.b16 %v6491
    %v8627 = vunpack.c.h.b16 %v6491
    %v8628 = vunpack.c.l.b16 %v6492
    %v8629 = vunpack.c.l.b16 %v6493
    %v8630 = vunpack.c.h.b16 %v6493
    %v8631 = vunpack.c.l.b16 %v6494
    %v8632 = vunpack.c.h.b16 %v6494
    %v8633 = vunpack.c.l.b16 %v6495
    %v8634 = vunpack.c.h.b16 %v6495
    %v8635 = vunpack.c.l.b16 %v6496
    %v8636 = vunpack.c.l.b16 %v6497
    %v8637 = vunpack.c.h.b16 %v6497
    %v8638 = vunpack.c.l.b16 %v6498
    %v8639 = vunpack.c.h.b16 %v6498
    %v8640 = vunpack.c.l.b16 %v6499
    %v8641 = vunpack.c.h.b16 %v6499
    %v8642 = vunpack.c.l.b16 %v6500
    %v8643 = vunpack.c.l.b16 %v6501
    %v8644 = vunpack.c.h.b16 %v6501
    %v8645 = vunpack.c.l.b16 %v6502
    %v8646 = vunpack.c.h.b16 %v6502
    %v8647 = vunpack.c.l.b16 %v6503
    %v8648 = vunpack.c.h.b16 %v6503
    %v8649 = vunpack.c.l.b16 %v6504
    %v8650 = vunpack.c.l.b16 %v6505
    %v8651 = vunpack.c.h.b16 %v6505
    %v8652 = vunpack.c.l.b16 %v6506
    %v8653 = vunpack.c.h.b16 %v6506
    %v8654 = vunpack.c.l.b16 %v6507
    %v8655 = vunpack.c.h.b16 %v6507
    %v8656 = vunpack.c.l.b16 %v6508
    %v8657 = vunpack.c.l.b16 %v6509
    %v8658 = vunpack.c.h.b16 %v6509
    %v8659 = vunpack.c.l.b16 %v6510
    %v8660 = vunpack.c.h.b16 %v6510
    %v8661 = vunpack.c.l.b16 %v6511
    %v8662 = vunpack.c.h.b16 %v6511
    %v8663 = vunpack.c.l.b16 %v6512
    %v8664 = vunpack.c.l.b16 %v6513
    %v8665 = vunpack.c.h.b16 %v6513
    %v8666 = vunpack.c.l.b16 %v6514
    %v8667 = vunpack.c.h.b16 %v6514
    %v8668 = vunpack.c.l.b16 %v6515
    %v8669 = vunpack.c.h.b16 %v6515
    %v8670 = vunpack.c.l.b16 %v6516
    %v8671 = vunpack.c.l.b16 %v6517
    %v8672 = vunpack.c.h.b16 %v6517
    %v8673 = vunpack.c.l.b16 %v6518
    %v8674 = vunpack.c.h.b16 %v6518
    %v8675 = vunpack.c.l.b16 %v6519
    %v8676 = vunpack.c.h.b16 %v6519
    %v8677 = vunpack.c.l.b16 %v6520
    %v8678 = vunpack.c.l.b16 %v6521
    %v8679 = vunpack.c.h.b16 %v6521
    %v8680 = vunpack.c.l.b16 %v6522
    %v8681 = vunpack.c.h.b16 %v6522
    %v8682 = vunpack.c.l.b16 %v6523
    %v8683 = vunpack.c.h.b16 %v6523
    %v8684 = vunpack.c.l.b16 %v6524
    %v8685 = vunpack.c.l.b16 %v6525
    %v8686 = vunpack.c.h.b16 %v6525
    %v8687 = vunpack.c.l.b16 %v6526
    %v8688 = vunpack.c.h.b16 %v6526
    %v8689 = vunpack.c.l.b16 %v6527
    %v8690 = vunpack.c.h.b16 %v6527
    %v8691 = vunpack.c.l.b16 %v6528
    %v8692 = vunpack.c.l.b16 %v6529
    %v8693 = vunpack.c.h.b16 %v6529
    %v8694 = vunpack.c.l.b16 %v6530
    %v8695 = vunpack.c.h.b16 %v6530
    %v8696 = vunpack.c.l.b16 %v6531
    %v8697 = vunpack.c.h.b16 %v6531
    %v8698 = vunpack.c.l.b16 %v6532
    %v8699 = vunpack.c.l.b16 %v6533
    %v8700 = vunpack.c.h.b16 %v6533
    %v8701 = vunpack.c.l.b16 %v6534
    %v8702 = vunpack.c.h.b16 %v6534
    %v8703 = vunpack.c.l.b16 %v6535
    %v8704 = vunpack.c.h.b16 %v6535
    %v8705 = vunpack.c.l.b16 %v6536
    %v8706 = vunpack.c.l.b16 %v6537
    %v8707 = vunpack.c.h.b16 %v6537
    %v8708 = vunpack.c.l.b16 %v6538
    %v8709 = vunpack.c.h.b16 %v6538
    %v8710 = vunpack.c.l.b16 %v6539
    %v8711 = vunpack.c.h.b16 %v6539
    %v8712 = vunpack.c.l.b16 %v6540
    %v8713 = vunpack.c.l.b16 %v6541
    %v8714 = vunpack.c.h.b16 %v6541
    %v8715 = vunpack.c.l.b16 %v6542
    %v8716 = vunpack.c.h.b16 %v6542
    %v8717 = vunpack.c.l.b16 %v6543
    %v8718 = vunpack.c.h.b16 %v6543
    %v8719 = vunpack.c.l.b16 %v6544
    %v8720 = vunpack.c.l.b16 %v6545
    %v8721 = vunpack.c.h.b16 %v6545
    %v8722 = vunpack.c.l.b16 %v6546
    %v8723 = vunpack.c.h.b16 %v6546
    %v8724 = vunpack.c.l.b16 %v6547
    %v8725 = vunpack.c.h.b16 %v6547
    %v8726 = vunpack.c.l.b16 %v6548
    %v8727 = vunpack.c.l.b16 %v6549
    %v8728 = vunpack.c.h.b16 %v6549
    %v8729 = vunpack.c.l.b16 %v6550
    %v8730 = vunpack.c.h.b16 %v6550
    %v8731 = vunpack.c.l.b16 %v6551
    %v8732 = vunpack.c.h.b16 %v6551
    %v8733 = vunpack.c.l.b16 %v6552
    %v8734 = vunpack.c.l.b16 %v6553
    %v8735 = vunpack.c.h.b16 %v6553
    %v8736 = vunpack.c.l.b16 %v6554
    %v8737 = vunpack.c.h.b16 %v6554
    %v8738 = vunpack.c.l.b16 %v6555
    %v8739 = vunpack.c.h.b16 %v6555
    %v8740 = vunpack.c.l.b16 %v6556
    %v8741 = vunpack.c.l.b16 %v6557
    %v8742 = vunpack.c.h.b16 %v6557
    %v8743 = vunpack.c.l.b16 %v6558
    %v8744 = vunpack.c.h.b16 %v6558
    %v8745 = vunpack.c.l.b16 %v6559
    %v8746 = vunpack.c.h.b16 %v6559
    %v8747 = vunpack.c.l.b16 %v6560
    %v8748 = vunpack.c.l.b16 %v6561
    %v8749 = vunpack.c.h.b16 %v6561
    %v8750 = vunpack.c.l.b16 %v6562
    %v8751 = vunpack.c.h.b16 %v6562
    %v8752 = vunpack.c.l.b16 %v6563
    %v8753 = vunpack.c.h.b16 %v6563
    %v8754 = vunpack.c.l.b16 %v6564
    %v8755 = vunpack.c.l.b16 %v6565
    %v8756 = vunpack.c.h.b16 %v6565
    %v8757 = vunpack.c.l.b16 %v6566
    %v8758 = vunpack.c.h.b16 %v6566
    %v8759 = vunpack.c.l.b16 %v6567
    %v8760 = vunpack.c.h.b16 %v6567
    %v8761 = vunpack.c.l.b16 %v6568
    %v8762 = vunpack.c.l.b16 %v6569
    %v8763 = vunpack.c.h.b16 %v6569
    %v8764 = vunpack.c.l.b16 %v6570
    %v8765 = vunpack.c.h.b16 %v6570
    %v8766 = vunpack.c.l.b16 %v6571
    %v8767 = vunpack.c.h.b16 %v6571
    %v8768 = vunpack.c.l.b16 %v6572
    %v8769 = vunpack.c.l.b16 %v6573
    %v8770 = vunpack.c.h.b16 %v6573
    %v8771 = vunpack.c.l.b16 %v6574
    %v8772 = vunpack.c.h.b16 %v6574
    %v8773 = vunpack.c.l.b16 %v6575
    %v8774 = vunpack.c.h.b16 %v6575
    %v8775 = vunpack.c.l.b16 %v6576
    %v8776 = vunpack.c.l.b16 %v6577
    %v8777 = vunpack.c.h.b16 %v6577
    %v8778 = vunpack.c.l.b16 %v6578
    %v8779 = vunpack.c.h.b16 %v6578
    %v8780 = vunpack.c.l.b16 %v6579
    %v8781 = vunpack.c.h.b16 %v6579
    %v8782 = vunpack.c.l.b16 %v6580
    %v8783 = vunpack.c.l.b16 %v6581
    %v8784 = vunpack.c.h.b16 %v6581
    %v8785 = vunpack.c.l.b16 %v6582
    %v8786 = vunpack.c.h.b16 %v6582
    %v8787 = vunpack.c.l.b16 %v6583
    %v8788 = vunpack.c.h.b16 %v6583
    %v8789 = vunpack.c.l.b16 %v6584
    %v8790 = vunpack.c.l.b16 %v6585
    %v8791 = vunpack.c.h.b16 %v6585
    %v8792 = vunpack.c.l.b16 %v6586
    %v8793 = vunpack.c.h.b16 %v6586
    %v8794 = vunpack.c.l.b16 %v6587
    %v8795 = vunpack.c.h.b16 %v6587
    %v8796 = vunpack.c.l.b16 %v6588
    %v8797 = vunpack.c.l.b16 %v6589
    %v8798 = vunpack.c.h.b16 %v6589
    %v8799 = vunpack.c.l.b16 %v6590
    %v8800 = vunpack.c.h.b16 %v6590
    %v8801 = vunpack.c.l.b16 %v6591
    %v8802 = vunpack.c.h.b16 %v6591
    %v8803 = vunpack.c.l.b16 %v6592
    %v8804 = vunpack.c.l.b16 %v6593
    %v8805 = vunpack.c.h.b16 %v6593
    %v8806 = vunpack.c.l.b16 %v6594
    %v8807 = vunpack.c.h.b16 %v6594
    %v8808 = vunpack.c.l.b16 %v6595
    %v8809 = vunpack.c.h.b16 %v6595
    %v8810 = vunpack.c.l.b16 %v6596
    %v8811 = vunpack.c.l.b16 %v6597
    %v8812 = vunpack.c.h.b16 %v6597
    %v8813 = vunpack.c.l.b16 %v6598
    %v8814 = vunpack.c.h.b16 %v6598
    %v8815 = vunpack.c.l.b16 %v6599
    %v8816 = vunpack.c.h.b16 %v6599
    %v8817 = vunpack.c.l.b16 %v6600
    %v8818 = vunpack.c.l.b16 %v6601
    %v8819 = vunpack.c.h.b16 %v6601
    %v8820 = vunpack.c.l.b16 %v6602
    %v8821 = vunpack.c.h.b16 %v6602
    %v8822 = vunpack.c.l.b16 %v6603
    %v8823 = vunpack.c.h.b16 %v6603
    %v8824 = vunpack.c.l.b16 %v6604
    %v8825 = vunpack.c.l.b16 %v6605
    %v8826 = vunpack.c.h.b16 %v6605
    %v8827 = vunpack.c.l.b16 %v6606
    %v8828 = vunpack.c.h.b16 %v6606
    %v8829 = vunpack.c.l.b16 %v6607
    %v8830 = vunpack.c.h.b16 %v6607
    %v8831 = vunpack.c.l.b16 %v6608
    %v8832 = vunpack.c.l.b16 %v6609
    %v8833 = vunpack.c.h.b16 %v6609
    %v8834 = vunpack.c.l.b16 %v6610
    %v8835 = vunpack.c.h.b16 %v6610
    %v8836 = vunpack.c.l.b16 %v6611
    %v8837 = vunpack.c.h.b16 %v6611
    %v8838 = vunpack.c.l.b16 %v6612
    %v8839 = vunpack.c.l.b16 %v6613
    %v8840 = vunpack.c.h.b16 %v6613
    %v8841 = vunpack.c.l.b16 %v6614
    %v8842 = vunpack.c.h.b16 %v6614
    %v8843 = vunpack.c.l.b16 %v6615
    %v8844 = vunpack.c.h.b16 %v6615
    %v8845 = vunpack.c.l.b16 %v6616
    %v8846 = vunpack.c.l.b16 %v6617
    %v8847 = vunpack.c.h.b16 %v6617
    %v8848 = vunpack.c.l.b16 %v6618
    %v8849 = vunpack.c.h.b16 %v6618
    %v8850 = vunpack.c.l.b16 %v6619
    %v8851 = vunpack.c.h.b16 %v6619
    %v8852 = vunpack.c.l.b16 %v6620
    %v8853 = vunpack.c.l.b16 %v6621
    %v8854 = vunpack.c.h.b16 %v6621
    %v8855 = vunpack.c.l.b16 %v6622
    %v8856 = vunpack.c.h.b16 %v6622
    %v8857 = vunpack.c.l.b16 %v6623
    %v8858 = vunpack.c.h.b16 %v6623
    %v8859 = vunpack.c.l.b16 %v6624
    %v8860 = vunpack.c.l.b16 %v6625
    %v8861 = vunpack.c.h.b16 %v6625
    %v8862 = vunpack.c.l.b16 %v6626
    %v8863 = vunpack.c.h.b16 %v6626
    %v8864 = vunpack.c.l.b16 %v6627
    %v8865 = vunpack.c.h.b16 %v6627
    %v8866 = vunpack.c.l.b16 %v6628
    %v8867 = vunpack.c.l.b16 %v6629
    %v8868 = vunpack.c.h.b16 %v6629
    %v8869 = vunpack.c.l.b16 %v6630
    %v8870 = vunpack.c.h.b16 %v6630
    %v8871 = vunpack.c.l.b16 %v6631
    %v8872 = vunpack.c.h.b16 %v6631
    %v8873 = vunpack.c.l.b16 %v6632
    %v8874 = vunpack.c.l.b16 %v6633
    %v8875 = vunpack.c.h.b16 %v6633
    %v8876 = vunpack.c.l.b16 %v6634
    %v8877 = vunpack.c.h.b16 %v6634
    %v8878 = vunpack.c.l.b16 %v6635
    %v8879 = vunpack.c.h.b16 %v6635
    %v8880 = vunpack.c.l.b16 %v6636
    %v8881 = vunpack.c.l.b16 %v6637
    %v8882 = vunpack.c.h.b16 %v6637
    %v8883 = vunpack.c.l.b16 %v6638
    %v8884 = vunpack.c.h.b16 %v6638
    %v8885 = vunpack.c.l.b16 %v6639
    %v8886 = vunpack.c.h.b16 %v6639
    %v8887 = vunpack.c.l.b16 %v6640
    %v8888 = vunpack.c.l.b16 %v6641
    %v8889 = vunpack.c.h.b16 %v6641
    %v8890 = vunpack.c.l.b16 %v6642
    %v8891 = vunpack.c.h.b16 %v6642
    %v8892 = vunpack.c.l.b16 %v6643
    %v8893 = vunpack.c.h.b16 %v6643
    %v8894 = vunpack.c.l.b16 %v6644
    %v8895 = vunpack.c.l.b16 %v6645
    %v8896 = vunpack.c.h.b16 %v6645
    %v8897 = vunpack.c.l.b16 %v6646
    %v8898 = vunpack.c.h.b16 %v6646
    %v8899 = vunpack.c.l.b16 %v6647
    %v8900 = vunpack.c.h.b16 %v6647
    %v8901 = vunpack.c.l.b16 %v6648
    %v8902 = vunpack.c.l.b16 %v6649
    %v8903 = vunpack.c.h.b16 %v6649
    %v8904 = vunpack.c.l.b16 %v6650
    %v8905 = vunpack.c.h.b16 %v6650
    %v8906 = vunpack.c.l.b16 %v6651
    %v8907 = vunpack.c.h.b16 %v6651
    %v8908 = vunpack.c.l.b16 %v6652
    %v8909 = vunpack.c.l.b16 %v6653
    %v8910 = vunpack.c.h.b16 %v6653
    %v8911 = vunpack.c.l.b16 %v6654
    %v8912 = vunpack.c.h.b16 %v6654
    %v8913 = vunpack.c.l.b16 %v6655
    %v8914 = vunpack.c.h.b16 %v6655
    %v8915 = vunpack.c.l.b16 %v6656
    %v8916 = vunpack.c.l.b16 %v6657
    %v8917 = vunpack.c.h.b16 %v6657
    %v8918 = vunpack.c.l.b16 %v6658
    %v8919 = vunpack.c.h.b16 %v6658
    %v8920 = vunpack.c.l.b16 %v6659
    %v8921 = vunpack.c.h.b16 %v6659
    %v8922 = vunpack.c.l.b16 %v6660
    %v8923 = vunpack.c.l.b16 %v6661
    %v8924 = vunpack.c.h.b16 %v6661
    %v8925 = vunpack.c.l.b16 %v6662
    %v8926 = vunpack.c.h.b16 %v6662
    %v8927 = vunpack.c.l.b16 %v6663
    %v8928 = vunpack.c.h.b16 %v6663
    %v8929 = vunpack.c.l.b16 %v6664
    %v8930 = vunpack.c.l.b16 %v6665
    %v8931 = vunpack.c.h.b16 %v6665
    %v8932 = vunpack.c.l.b16 %v6666
    %v8933 = vunpack.c.h.b16 %v6666
    %v8934 = vunpack.c.l.b16 %v6667
    %v8935 = vunpack.c.h.b16 %v6667
    %v8936 = vunpack.c.l.b16 %v6668
    %v8937 = vunpack.c.l.b16 %v6669
    %v8938 = vunpack.c.h.b16 %v6669
    %v8939 = vunpack.c.l.b16 %v6670
    %v8940 = vunpack.c.h.b16 %v6670
    %v8941 = vunpack.c.l.b16 %v6671
    %v8942 = vunpack.c.h.b16 %v6671
    %v8943 = vunpack.c.l.b16 %v6672
    %v8944 = vunpack.c.l.b16 %v6673
    %v8945 = vunpack.c.h.b16 %v6673
    %v8946 = vunpack.c.l.b16 %v6674
    %v8947 = vunpack.c.h.b16 %v6674
    %v8948 = vunpack.c.l.b16 %v6675
    %v8949 = vunpack.c.h.b16 %v6675
    %v8950 = vunpack.c.l.b16 %v6676
    %v8951 = vunpack.c.l.b16 %v6677
    %v8952 = vunpack.c.h.b16 %v6677
    %v8953 = vunpack.c.l.b16 %v6678
    %v8954 = vunpack.c.h.b16 %v6678
    %v8955 = vunpack.c.l.b16 %v6679
    %v8956 = vunpack.c.h.b16 %v6679
    %v8957 = vunpack.c.l.b16 %v6680
    %v8958 = vunpack.c.l.b16 %v6681
    %v8959 = vunpack.c.h.b16 %v6681
    %v8960 = vunpack.c.l.b16 %v6682
    %v8961 = vunpack.c.h.b16 %v6682
    %v8962 = vunpack.c.l.b16 %v6683
    %v8963 = vunpack.c.h.b16 %v6683
    %v8964 = vunpack.c.l.b16 %v6684
    %v8965 = vunpack.c.l.b16 %v6685
    %v8966 = vunpack.c.h.b16 %v6685
    %v8967 = vunpack.c.l.b16 %v6686
    %v8968 = vunpack.c.h.b16 %v6686
    %v8969 = vunpack.c.l.b16 %v6687
    %v8970 = vunpack.c.h.b16 %v6687
    %v8971 = vunpack.c.l.b16 %v6688
    %v8972 = vunpack.c.l.b16 %v6689
    %v8973 = vunpack.c.h.b16 %v6689
    %v8974 = vunpack.c.l.b16 %v6690
    %v8975 = vunpack.c.h.b16 %v6690
    %v8976 = vunpack.c.l.b16 %v6691
    %v8977 = vunpack.c.h.b16 %v6691
    %v8978 = vunpack.c.l.b16 %v6692
    %v8979 = vunpack.c.l.b16 %v6693
    %v8980 = vunpack.c.h.b16 %v6693
    %v8981 = vunpack.c.l.b16 %v6694
    %v8982 = vunpack.c.h.b16 %v6694
    %v8983 = vunpack.c.l.b16 %v6695
    %v8984 = vunpack.c.h.b16 %v6695
    %v8985 = vunpack.c.l.b16 %v6696
    %v8986 = vunpack.c.l.b16 %v6697
    %v8987 = vunpack.c.h.b16 %v6697
    %v8988 = vunpack.c.l.b16 %v6698
    %v8989 = vunpack.c.h.b16 %v6698
    %v8990 = vunpack.c.l.b16 %v6699
    %v8991 = vunpack.c.h.b16 %v6699
    %v8992 = vunpack.c.l.b16 %v6700
    %v8993 = vunpack.c.l.b16 %v6701
    %v8994 = vunpack.c.h.b16 %v6701
    %v8995 = vunpack.c.l.b16 %v6702
    %v8996 = vunpack.c.h.b16 %v6702
    %v8997 = vunpack.c.l.b16 %v6703
    %v8998 = vunpack.c.h.b16 %v6703
    %v8999 = vunpack.c.l.b16 %v6704
    %v9000 = vunpack.c.l.b16 %v6705
    %v9001 = vunpack.c.h.b16 %v6705
    %v9002 = vunpack.c.l.b16 %v6706
    %v9003 = vunpack.c.h.b16 %v6706
    %v9004 = vunpack.c.l.b16 %v6707
    %v9005 = vunpack.c.h.b16 %v6707
    %v9006 = vunpack.c.l.b16 %v6708
    %v9007 = vunpack.c.l.b16 %v6709
    %v9008 = vunpack.c.h.b16 %v6709
    %v9009 = vunpack.c.l.b16 %v6710
    %v9010 = vunpack.c.h.b16 %v6710
    %v9011 = vunpack.c.l.b16 %v6711
    %v9012 = vunpack.c.h.b16 %v6711
    %v9013 = vunpack.c.l.b16 %v6712
    %v9014 = vunpack.c.l.b16 %v6713
    %v9015 = vunpack.c.h.b16 %v6713
    %v9016 = vunpack.c.l.b16 %v6714
    %v9017 = vunpack.c.h.b16 %v6714
    %v9018 = vunpack.c.l.b16 %v6715
    %v9019 = vunpack.c.h.b16 %v6715
    %v9020 = vunpack.c.l.b16 %v6716
    %v9021 = vunpack.c.l.b16 %v6717
    %v9022 = vunpack.c.h.b16 %v6717
    %v9023 = vunpack.c.l.b16 %v6718
    %v9024 = vunpack.c.h.b16 %v6718
    %v9025 = vunpack.c.l.b16 %v6719
    %v9026 = vunpack.c.h.b16 %v6719
    %v9027 = vunpack.c.l.b16 %v6720
    %v9028 = vunpack.c.l.b16 %v6721
    %v9029 = vunpack.c.h.b16 %v6721
    %v9030 = vunpack.c.l.b16 %v6722
    %v9031 = vunpack.c.h.b16 %v6722
    %v9032 = vunpack.c.l.b16 %v6723
    %v9033 = vunpack.c.h.b16 %v6723
    %v9034 = vunpack.c.l.b16 %v6724
    %v9035 = vunpack.c.l.b16 %v6725
    %v9036 = vunpack.c.h.b16 %v6725
    %v9037 = vunpack.c.l.b16 %v6726
    %v9038 = vunpack.c.h.b16 %v6726
    %v9039 = vunpack.c.l.b16 %v6727
    %v9040 = vunpack.c.h.b16 %v6727
    %v9041 = vunpack.c.l.b16 %v6728
    %v9042 = vunpack.c.l.b16 %v6729
    %v9043 = vunpack.c.h.b16 %v6729
    %v9044 = vunpack.c.l.b16 %v6730
    %v9045 = vunpack.c.h.b16 %v6730
    %v9046 = vunpack.c.l.b16 %v6731
    %v9047 = vunpack.c.h.b16 %v6731
    %v9048 = vunpack.c.l.b16 %v6732
    %v9049 = vunpack.c.l.b16 %v6733
    %v9050 = vunpack.c.h.b16 %v6733
    %v9051 = vunpack.c.l.b16 %v6734
    %v9052 = vunpack.c.h.b16 %v6734
    %v9053 = vunpack.c.l.b16 %v6735
    %v9054 = vunpack.c.h.b16 %v6735
    %v9055 = vunpack.c.l.b16 %v6736
    %v9056 = vunpack.c.l.b16 %v6737
    %v9057 = vunpack.c.h.b16 %v6737
    %v9058 = vunpack.c.l.b16 %v6738
    %v9059 = vunpack.c.h.b16 %v6738
    %v9060 = vunpack.c.l.b16 %v6739
    %v9061 = vunpack.c.h.b16 %v6739
    %v9062 = vunpack.c.l.b16 %v6740
    %v9063 = vunpack.c.l.b16 %v6741
    %v9064 = vunpack.c.h.b16 %v6741
    %v9065 = vunpack.c.l.b16 %v6742
    %v9066 = vunpack.c.h.b16 %v6742
    %v9067 = vunpack.c.l.b16 %v6743
    %v9068 = vunpack.c.h.b16 %v6743
    %v9069 = vunpack.c.l.b16 %v6744
    %v9070 = vpack.c.b16 %v7621, %v7614
    %v9071 = vpack.c.b16 %v7622, %v7615
    %v9072 = vpack.c.b16 %v7623, %v7616
    %v9073 = vpack.c.b16 %v7624, %v7617
    %v9074 = vpack.c.b16 %v7625, %v7618
    %v9075 = vpack.c.b16 %v7626, %v7619
    %v9076 = vpack.c.b16 %v7627, %v7620
    %v9077 = vpack.c.b16 %v7635, %v7628
    %v9078 = vpack.c.b16 %v7636, %v7629
    %v9079 = vpack.c.b16 %v7637, %v7630
    %v9080 = vpack.c.b16 %v7638, %v7631
    %v9081 = vpack.c.b16 %v7639, %v7632
    %v9082 = vpack.c.b16 %v7640, %v7633
    %v9083 = vpack.c.b16 %v7641, %v7634
    %v9084 = vpack.c.b16 %v7649, %v7642
    %v9085 = vpack.c.b16 %v7650, %v7643
    %v9086 = vpack.c.b16 %v7651, %v7644
    %v9087 = vpack.c.b16 %v7652, %v7645
    %v9088 = vpack.c.b16 %v7653, %v7646
    %v9089 = vpack.c.b16 %v7654, %v7647
    %v9090 = vpack.c.b16 %v7655, %v7648
    %v9091 = vpack.c.b16 %v7663, %v7656
    %v9092 = vpack.c.b16 %v7664, %v7657
    %v9093 = vpack.c.b16 %v7665, %v7658
    %v9094 = vpack.c.b16 %v7666, %v7659
    %v9095 = vpack.c.b16 %v7667, %v7660
    %v9096 = vpack.c.b16 %v7668, %v7661
    %v9097 = vpack.c.b16 %v7669, %v7662
    %v9098 = vpack.c.b16 %v7677, %v7670
    %v9099 = vpack.c.b16 %v7678, %v7671
    %v9100 = vpack.c.b16 %v7679, %v7672
    %v9101 = vpack.c.b16 %v7680, %v7673
    %v9102 = vpack.c.b16 %v7681, %v7674
    %v9103 = vpack.c.b16 %v7682, %v7675
    %v9104 = vpack.c.b16 %v7683, %v7676
    %v9105 = vpack.c.b16 %v7691, %v7684
    %v9106 = vpack.c.b16 %v7692, %v7685
    %v9107 = vpack.c.b16 %v7693, %v7686
    %v9108 = vpack.c.b16 %v7694, %v7687
    %v9109 = vpack.c.b16 %v7695, %v7688
    %v9110 = vpack.c.b16 %v7696, %v7689
    %v9111 = vpack.c.b16 %v7697, %v7690
    %v9112 = vpack.c.b16 %v7705, %v7698
    %v9113 = vpack.c.b16 %v7706, %v7699
    %v9114 = vpack.c.b16 %v7707, %v7700
    %v9115 = vpack.c.b16 %v7708, %v7701
    %v9116 = vpack.c.b16 %v7709, %v7702
    %v9117 = vpack.c.b16 %v7710, %v7703
    %v9118 = vpack.c.b16 %v7711, %v7704
    %v9119 = vpack.c.b16 %v7719, %v7712
    %v9120 = vpack.c.b16 %v7720, %v7713
    %v9121 = vpack.c.b16 %v7721, %v7714
    %v9122 = vpack.c.b16 %v7722, %v7715
    %v9123 = vpack.c.b16 %v7723, %v7716
    %v9124 = vpack.c.b16 %v7724, %v7717
    %v9125 = vpack.c.b16 %v7725, %v7718
    %v9126 = vpack.c.b16 %v7733, %v7726
    %v9127 = vpack.c.b16 %v7734, %v7727
    %v9128 = vpack.c.b16 %v7735, %v7728
    %v9129 = vpack.c.b16 %v7736, %v7729
    %v9130 = vpack.c.b16 %v7737, %v7730
    %v9131 = vpack.c.b16 %v7738, %v7731
    %v9132 = vpack.c.b16 %v7739, %v7732
    %v9133 = vpack.c.b16 %v7747, %v7740
    %v9134 = vpack.c.b16 %v7748, %v7741
    %v9135 = vpack.c.b16 %v7749, %v7742
    %v9136 = vpack.c.b16 %v7750, %v7743
    %v9137 = vpack.c.b16 %v7751, %v7744
    %v9138 = vpack.c.b16 %v7752, %v7745
    %v9139 = vpack.c.b16 %v7753, %v7746
    %v9140 = vpack.c.b16 %v7761, %v7754
    %v9141 = vpack.c.b16 %v7762, %v7755
    %v9142 = vpack.c.b16 %v7763, %v7756
    %v9143 = vpack.c.b16 %v7764, %v7757
    %v9144 = vpack.c.b16 %v7765, %v7758
    %v9145 = vpack.c.b16 %v7766, %v7759
    %v9146 = vpack.c.b16 %v7767, %v7760
    %v9147 = vpack.c.b16 %v7775, %v7768
    %v9148 = vpack.c.b16 %v7776, %v7769
    %v9149 = vpack.c.b16 %v7777, %v7770
    %v9150 = vpack.c.b16 %v7778, %v7771
    %v9151 = vpack.c.b16 %v7779, %v7772
    %v9152 = vpack.c.b16 %v7780, %v7773
    %v9153 = vpack.c.b16 %v7781, %v7774
    %v9154 = vpack.c.b16 %v7789, %v7782
    %v9155 = vpack.c.b16 %v7790, %v7783
    %v9156 = vpack.c.b16 %v7791, %v7784
    %v9157 = vpack.c.b16 %v7792, %v7785
    %v9158 = vpack.c.b16 %v7793, %v7786
    %v9159 = vpack.c.b16 %v7794, %v7787
    %v9160 = vpack.c.b16 %v7795, %v7788
    %v9161 = vpack.c.b16 %v7803, %v7796
    %v9162 = vpack.c.b16 %v7804, %v7797
    %v9163 = vpack.c.b16 %v7805, %v7798
    %v9164 = vpack.c.b16 %v7806, %v7799
    %v9165 = vpack.c.b16 %v7807, %v7800
    %v9166 = vpack.c.b16 %v7808, %v7801
    %v9167 = vpack.c.b16 %v7809, %v7802
    %v9168 = vpack.c.b16 %v7817, %v7810
    %v9169 = vpack.c.b16 %v7818, %v7811
    %v9170 = vpack.c.b16 %v7819, %v7812
    %v9171 = vpack.c.b16 %v7820, %v7813
    %v9172 = vpack.c.b16 %v7821, %v7814
    %v9173 = vpack.c.b16 %v7822, %v7815
    %v9174 = vpack.c.b16 %v7823, %v7816
    %v9175 = vpack.c.b16 %v7831, %v7824
    %v9176 = vpack.c.b16 %v7832, %v7825
    %v9177 = vpack.c.b16 %v7833, %v7826
    %v9178 = vpack.c.b16 %v7834, %v7827
    %v9179 = vpack.c.b16 %v7835, %v7828
    %v9180 = vpack.c.b16 %v7836, %v7829
    %v9181 = vpack.c.b16 %v7837, %v7830
    %v9182 = vpack.c.b16 %v7845, %v7838
    %v9183 = vpack.c.b16 %v7846, %v7839
    %v9184 = vpack.c.b16 %v7847, %v7840
    %v9185 = vpack.c.b16 %v7848, %v7841
    %v9186 = vpack.c.b16 %v7849, %v7842
    %v9187 = vpack.c.b16 %v7850, %v7843
    %v9188 = vpack.c.b16 %v7851, %v7844
    %v9189 = vpack.c.b16 %v7859, %v7852
    %v9190 = vpack.c.b16 %v7860, %v7853
    %v9191 = vpack.c.b16 %v7861, %v7854
    %v9192 = vpack.c.b16 %v7862, %v7855
    %v9193 = vpack.c.b16 %v7863, %v7856
    %v9194 = vpack.c.b16 %v7864, %v7857
    %v9195 = vpack.c.b16 %v7865, %v7858
    %v9196 = vpack.c.b16 %v7873, %v7866
    %v9197 = vpack.c.b16 %v7874, %v7867
    %v9198 = vpack.c.b16 %v7875, %v7868
    %v9199 = vpack.c.b16 %v7876, %v7869
    %v9200 = vpack.c.b16 %v7877, %v7870
    %v9201 = vpack.c.b16 %v7878, %v7871
    %v9202 = vpack.c.b16 %v7879, %v7872
    %v9203 = vpack.c.b16 %v7887, %v7880
    %v9204 = vpack.c.b16 %v7888, %v7881
    %v9205 = vpack.c.b16 %v7889, %v7882
    %v9206 = vpack.c.b16 %v7890, %v7883
    %v9207 = vpack.c.b16 %v7891, %v7884
    %v9208 = vpack.c.b16 %v7892, %v7885
    %v9209 = vpack.c.b16 %v7893, %v7886
    %v9210 = vpack.c.b16 %v7901, %v7894
    %v9211 = vpack.c.b16 %v7902, %v7895
    %v9212 = vpack.c.b16 %v7903, %v7896
    %v9213 = vpack.c.b16 %v7904, %v7897
    %v9214 = vpack.c.b16 %v7905, %v7898
    %v9215 = vpack.c.b16 %v7906, %v7899
    %v9216 = vpack.c.b16 %v7907, %v7900
    %v9217 = vpack.c.b16 %v7915, %v7908
    %v9218 = vpack.c.b16 %v7916, %v7909
    %v9219 = vpack.c.b16 %v7917, %v7910
    %v9220 = vpack.c.b16 %v7918, %v7911
    %v9221 = vpack.c.b16 %v7919, %v7912
    %v9222 = vpack.c.b16 %v7920, %v7913
    %v9223 = vpack.c.b16 %v7921, %v7914
    %v9224 = vpack.c.b16 %v7929, %v7922
    %v9225 = vpack.c.b16 %v7930, %v7923
    %v9226 = vpack.c.b16 %v7931, %v7924
    %v9227 = vpack.c.b16 %v7932, %v7925
    %v9228 = vpack.c.b16 %v7933, %v7926
    %v9229 = vpack.c.b16 %v7934, %v7927
    %v9230 = vpack.c.b16 %v7935, %v7928
    %v9231 = vpack.c.b16 %v7943, %v7936
    %v9232 = vpack.c.b16 %v7944, %v7937
    %v9233 = vpack.c.b16 %v7945, %v7938
    %v9234 = vpack.c.b16 %v7946, %v7939
    %v9235 = vpack.c.b16 %v7947, %v7940
    %v9236 = vpack.c.b16 %v7948, %v7941
    %v9237 = vpack.c.b16 %v7949, %v7942
    %v9238 = vpack.c.b16 %v7957, %v7950
    %v9239 = vpack.c.b16 %v7958, %v7951
    %v9240 = vpack.c.b16 %v7959, %v7952
    %v9241 = vpack.c.b16 %v7960, %v7953
    %v9242 = vpack.c.b16 %v7961, %v7954
    %v9243 = vpack.c.b16 %v7962, %v7955
    %v9244 = vpack.c.b16 %v7963, %v7956
    %v9245 = vpack.c.b16 %v7971, %v7964
    %v9246 = vpack.c.b16 %v7972, %v7965
    %v9247 = vpack.c.b16 %v7973, %v7966
    %v9248 = vpack.c.b16 %v7974, %v7967
    %v9249 = vpack.c.b16 %v7975, %v7968
    %v9250 = vpack.c.b16 %v7976, %v7969
    %v9251 = vpack.c.b16 %v7977, %v7970
    %v9252 = vpack.c.b16 %v7985, %v7978
    %v9253 = vpack.c.b16 %v7986, %v7979
    %v9254 = vpack.c.b16 %v7987, %v7980
    %v9255 = vpack.c.b16 %v7988, %v7981
    %v9256 = vpack.c.b16 %v7989, %v7982
    %v9257 = vpack.c.b16 %v7990, %v7983
    %v9258 = vpack.c.b16 %v7991, %v7984
    %v9259 = vpack.c.b16 %v7999, %v7992
    %v9260 = vpack.c.b16 %v8000, %v7993
    %v9261 = vpack.c.b16 %v8001, %v7994
    %v9262 = vpack.c.b16 %v8002, %v7995
    %v9263 = vpack.c.b16 %v8003, %v7996
    %v9264 = vpack.c.b16 %v8004, %v7997
    %v9265 = vpack.c.b16 %v8005, %v7998
    %v9266 = vpack.c.b16 %v8013, %v8006
    %v9267 = vpack.c.b16 %v8014, %v8007
    %v9268 = vpack.c.b16 %v8015, %v8008
    %v9269 = vpack.c.b16 %v8016, %v8009
    %v9270 = vpack.c.b16 %v8017, %v8010
    %v9271 = vpack.c.b16 %v8018, %v8011
    %v9272 = vpack.c.b16 %v8019, %v8012
    %v9273 = vpack.c.b16 %v8027, %v8020
    %v9274 = vpack.c.b16 %v8028, %v8021
    %v9275 = vpack.c.b16 %v8029, %v8022
    %v9276 = vpack.c.b16 %v8030, %v8023
    %v9277 = vpack.c.b16 %v8031, %v8024
    %v9278 = vpack.c.b16 %v8032, %v8025
    %v9279 = vpack.c.b16 %v8033, %v8026
    %v9280 = vpack.c.b16 %v8041, %v8034
    %v9281 = vpack.c.b16 %v8042, %v8035
    %v9282 = vpack.c.b16 %v8043, %v8036
    %v9283 = vpack.c.b16 %v8044, %v8037
    %v9284 = vpack.c.b16 %v8045, %v8038
    %v9285 = vpack.c.b16 %v8046, %v8039
    %v9286 = vpack.c.b16 %v8047, %v8040
    %v9287 = vpack.c.b16 %v8055, %v8048
    %v9288 = vpack.c.b16 %v8056, %v8049
    %v9289 = vpack.c.b16 %v8057, %v8050
    %v9290 = vpack.c.b16 %v8058, %v8051
    %v9291 = vpack.c.b16 %v8059, %v8052
    %v9292 = vpack.c.b16 %v8060, %v8053
    %v9293 = vpack.c.b16 %v8061, %v8054
    %v9294 = vpack.c.b16 %v8069, %v8062
    %v9295 = vpack.c.b16 %v8070, %v8063
    %v9296 = vpack.c.b16 %v8071, %v8064
    %v9297 = vpack.c.b16 %v8072, %v8065
    %v9298 = vpack.c.b16 %v8073, %v8066
    %v9299 = vpack.c.b16 %v8074, %v8067
    %v9300 = vpack.c.b16 %v8075, %v8068
    %v9301 = vpack.c.b16 %v8083, %v8076
    %v9302 = vpack.c.b16 %v8084, %v8077
    %v9303 = vpack.c.b16 %v8085, %v8078
    %v9304 = vpack.c.b16 %v8086, %v8079
    %v9305 = vpack.c.b16 %v8087, %v8080
    %v9306 = vpack.c.b16 %v8088, %v8081
    %v9307 = vpack.c.b16 %v8089, %v8082
    %v9308 = vpack.c.b16 %v8097, %v8090
    %v9309 = vpack.c.b16 %v8098, %v8091
    %v9310 = vpack.c.b16 %v8099, %v8092
    %v9311 = vpack.c.b16 %v8100, %v8093
    %v9312 = vpack.c.b16 %v8101, %v8094
    %v9313 = vpack.c.b16 %v8102, %v8095
    %v9314 = vpack.c.b16 %v8103, %v8096
    %v9315 = vpack.c.b16 %v8111, %v8104
    %v9316 = vpack.c.b16 %v8112, %v8105
    %v9317 = vpack.c.b16 %v8113, %v8106
    %v9318 = vpack.c.b16 %v8114, %v8107
    %v9319 = vpack.c.b16 %v8115, %v8108
    %v9320 = vpack.c.b16 %v8116, %v8109
    %v9321 = vpack.c.b16 %v8117, %v8110
    %v9322 = vpack.c.b16 %v8125, %v8118
    %v9323 = vpack.c.b16 %v8126, %v8119
    %v9324 = vpack.c.b16 %v8127, %v8120
    %v9325 = vpack.c.b16 %v8128, %v8121
    %v9326 = vpack.c.b16 %v8129, %v8122
    %v9327 = vpack.c.b16 %v8130, %v8123
    %v9328 = vpack.c.b16 %v8131, %v8124
    %v9329 = vpack.c.b16 %v8139, %v8132
    %v9330 = vpack.c.b16 %v8140, %v8133
    %v9331 = vpack.c.b16 %v8141, %v8134
    %v9332 = vpack.c.b16 %v8142, %v8135
    %v9333 = vpack.c.b16 %v8143, %v8136
    %v9334 = vpack.c.b16 %v8144, %v8137
    %v9335 = vpack.c.b16 %v8145, %v8138
    %v9336 = vpack.c.b16 %v8153, %v8146
    %v9337 = vpack.c.b16 %v8154, %v8147
    %v9338 = vpack.c.b16 %v8155, %v8148
    %v9339 = vpack.c.b16 %v8156, %v8149
    %v9340 = vpack.c.b16 %v8157, %v8150
    %v9341 = vpack.c.b16 %v8158, %v8151
    %v9342 = vpack.c.b16 %v8159, %v8152
    %v9343 = vpack.c.b16 %v8167, %v8160
    %v9344 = vpack.c.b16 %v8168, %v8161
    %v9345 = vpack.c.b16 %v8169, %v8162
    %v9346 = vpack.c.b16 %v8170, %v8163
    %v9347 = vpack.c.b16 %v8171, %v8164
    %v9348 = vpack.c.b16 %v8172, %v8165
    %v9349 = vpack.c.b16 %v8173, %v8166
    %v9350 = vpack.c.b16 %v8181, %v8174
    %v9351 = vpack.c.b16 %v8182, %v8175
    %v9352 = vpack.c.b16 %v8183, %v8176
    %v9353 = vpack.c.b16 %v8184, %v8177
    %v9354 = vpack.c.b16 %v8185, %v8178
    %v9355 = vpack.c.b16 %v8186, %v8179
    %v9356 = vpack.c.b16 %v8187, %v8180
    %v9357 = vpack.c.b16 %v8195, %v8188
    %v9358 = vpack.c.b16 %v8196, %v8189
    %v9359 = vpack.c.b16 %v8197, %v8190
    %v9360 = vpack.c.b16 %v8198, %v8191
    %v9361 = vpack.c.b16 %v8199, %v8192
    %v9362 = vpack.c.b16 %v8200, %v8193
    %v9363 = vpack.c.b16 %v8201, %v8194
    %v9364 = vpack.c.b16 %v8209, %v8202
    %v9365 = vpack.c.b16 %v8210, %v8203
    %v9366 = vpack.c.b16 %v8211, %v8204
    %v9367 = vpack.c.b16 %v8212, %v8205
    %v9368 = vpack.c.b16 %v8213, %v8206
    %v9369 = vpack.c.b16 %v8214, %v8207
    %v9370 = vpack.c.b16 %v8215, %v8208
    %v9371 = vpack.c.b16 %v8223, %v8216
    %v9372 = vpack.c.b16 %v8224, %v8217
    %v9373 = vpack.c.b16 %v8225, %v8218
    %v9374 = vpack.c.b16 %v8226, %v8219
    %v9375 = vpack.c.b16 %v8227, %v8220
    %v9376 = vpack.c.b16 %v8228, %v8221
    %v9377 = vpack.c.b16 %v8229, %v8222
    %v9378 = vpack.c.b16 %v8237, %v8230
    %v9379 = vpack.c.b16 %v8238, %v8231
    %v9380 = vpack.c.b16 %v8239, %v8232
    %v9381 = vpack.c.b16 %v8240, %v8233
    %v9382 = vpack.c.b16 %v8241, %v8234
    %v9383 = vpack.c.b16 %v8242, %v8235
    %v9384 = vpack.c.b16 %v8243, %v8236
    %v9385 = vpack.c.b16 %v8251, %v8244
    %v9386 = vpack.c.b16 %v8252, %v8245
    %v9387 = vpack.c.b16 %v8253, %v8246
    %v9388 = vpack.c.b16 %v8254, %v8247
    %v9389 = vpack.c.b16 %v8255, %v8248
    %v9390 = vpack.c.b16 %v8256, %v8249
    %v9391 = vpack.c.b16 %v8257, %v8250
    %v9392 = vpack.c.b16 %v8265, %v8258
    %v9393 = vpack.c.b16 %v8266, %v8259
    %v9394 = vpack.c.b16 %v8267, %v8260
    %v9395 = vpack.c.b16 %v8268, %v8261
    %v9396 = vpack.c.b16 %v8269, %v8262
    %v9397 = vpack.c.b16 %v8270, %v8263
    %v9398 = vpack.c.b16 %v8271, %v8264
    %v9399 = vpack.c.b16 %v8279, %v8272
    %v9400 = vpack.c.b16 %v8280, %v8273
    %v9401 = vpack.c.b16 %v8281, %v8274
    %v9402 = vpack.c.b16 %v8282, %v8275
    %v9403 = vpack.c.b16 %v8283, %v8276
    %v9404 = vpack.c.b16 %v8284, %v8277
    %v9405 = vpack.c.b16 %v8285, %v8278
    %v9406 = vpack.c.b16 %v8293, %v8286
    %v9407 = vpack.c.b16 %v8294, %v8287
    %v9408 = vpack.c.b16 %v8295, %v8288
    %v9409 = vpack.c.b16 %v8296, %v8289
    %v9410 = vpack.c.b16 %v8297, %v8290
    %v9411 = vpack.c.b16 %v8298, %v8291
    %v9412 = vpack.c.b16 %v8299, %v8292
    %v9413 = vpack.c.b16 %v8307, %v8300
    %v9414 = vpack.c.b16 %v8308, %v8301
    %v9415 = vpack.c.b16 %v8309, %v8302
    %v9416 = vpack.c.b16 %v8310, %v8303
    %v9417 = vpack.c.b16 %v8311, %v8304
    %v9418 = vpack.c.b16 %v8312, %v8305
    %v9419 = vpack.c.b16 %v8313, %v8306
    %v9420 = vpack.c.b16 %v8321, %v8314
    %v9421 = vpack.c.b16 %v8322, %v8315
    %v9422 = vpack.c.b16 %v8323, %v8316
    %v9423 = vpack.c.b16 %v8324, %v8317
    %v9424 = vpack.c.b16 %v8325, %v8318
    %v9425 = vpack.c.b16 %v8326, %v8319
    %v9426 = vpack.c.b16 %v8327, %v8320
    %v9427 = vpack.c.b16 %v8335, %v8328
    %v9428 = vpack.c.b16 %v8336, %v8329
    %v9429 = vpack.c.b16 %v8337, %v8330
    %v9430 = vpack.c.b16 %v8338, %v8331
    %v9431 = vpack.c.b16 %v8339, %v8332
    %v9432 = vpack.c.b16 %v8340, %v8333
    %v9433 = vpack.c.b16 %v8341, %v8334
    %v9434 = vpack.c.b16 %v8349, %v8342
    %v9435 = vpack.c.b16 %v8350, %v8343
    %v9436 = vpack.c.b16 %v8351, %v8344
    %v9437 = vpack.c.b16 %v8352, %v8345
    %v9438 = vpack.c.b16 %v8353, %v8346
    %v9439 = vpack.c.b16 %v8354, %v8347
    %v9440 = vpack.c.b16 %v8355, %v8348
    %v9441 = vpack.c.b16 %v8363, %v8356
    %v9442 = vpack.c.b16 %v8364, %v8357
    %v9443 = vpack.c.b16 %v8365, %v8358
    %v9444 = vpack.c.b16 %v8366, %v8359
    %v9445 = vpack.c.b16 %v8367, %v8360
    %v9446 = vpack.c.b16 %v8368, %v8361
    %v9447 = vpack.c.b16 %v8369, %v8362
    %v9448 = vpack.c.b16 %v8377, %v8370
    %v9449 = vpack.c.b16 %v8378, %v8371
    %v9450 = vpack.c.b16 %v8379, %v8372
    %v9451 = vpack.c.b16 %v8380, %v8373
    %v9452 = vpack.c.b16 %v8381, %v8374
    %v9453 = vpack.c.b16 %v8382, %v8375
    %v9454 = vpack.c.b16 %v8383, %v8376
    %v9455 = vpack.c.b16 %v8391, %v8384
    %v9456 = vpack.c.b16 %v8392, %v8385
    %v9457 = vpack.c.b16 %v8393, %v8386
    %v9458 = vpack.c.b16 %v8394, %v8387
    %v9459 = vpack.c.b16 %v8395, %v8388
    %v9460 = vpack.c.b16 %v8396, %v8389
    %v9461 = vpack.c.b16 %v8397, %v8390
    %v9462 = vpack.c.b16 %v8405, %v8398
    %v9463 = vpack.c.b16 %v8406, %v8399
    %v9464 = vpack.c.b16 %v8407, %v8400
    %v9465 = vpack.c.b16 %v8408, %v8401
    %v9466 = vpack.c.b16 %v8409, %v8402
    %v9467 = vpack.c.b16 %v8410, %v8403
    %v9468 = vpack.c.b16 %v8411, %v8404
    %v9469 = vpack.c.b16 %v8419, %v8412
    %v9470 = vpack.c.b16 %v8420, %v8413
    %v9471 = vpack.c.b16 %v8421, %v8414
    %v9472 = vpack.c.b16 %v8422, %v8415
    %v9473 = vpack.c.b16 %v8423, %v8416
    %v9474 = vpack.c.b16 %v8424, %v8417
    %v9475 = vpack.c.b16 %v8425, %v8418
    %v9476 = vpack.c.b16 %v8433, %v8426
    %v9477 = vpack.c.b16 %v8434, %v8427
    %v9478 = vpack.c.b16 %v8435, %v8428
    %v9479 = vpack.c.b16 %v8436, %v8429
    %v9480 = vpack.c.b16 %v8437, %v8430
    %v9481 = vpack.c.b16 %v8438, %v8431
    %v9482 = vpack.c.b16 %v8439, %v8432
    %v9483 = vpack.c.b16 %v8447, %v8440
    %v9484 = vpack.c.b16 %v8448, %v8441
    %v9485 = vpack.c.b16 %v8449, %v8442
    %v9486 = vpack.c.b16 %v8450, %v8443
    %v9487 = vpack.c.b16 %v8451, %v8444
    %v9488 = vpack.c.b16 %v8452, %v8445
    %v9489 = vpack.c.b16 %v8453, %v8446
    %v9490 = vpack.c.b16 %v8461, %v8454
    %v9491 = vpack.c.b16 %v8462, %v8455
    %v9492 = vpack.c.b16 %v8463, %v8456
    %v9493 = vpack.c.b16 %v8464, %v8457
    %v9494 = vpack.c.b16 %v8465, %v8458
    %v9495 = vpack.c.b16 %v8466, %v8459
    %v9496 = vpack.c.b16 %v8467, %v8460
    %v9497 = vpack.c.b16 %v8475, %v8468
    %v9498 = vpack.c.b16 %v8476, %v8469
    %v9499 = vpack.c.b16 %v8477, %v8470
    %v9500 = vpack.c.b16 %v8478, %v8471
    %v9501 = vpack.c.b16 %v8479, %v8472
    %v9502 = vpack.c.b16 %v8480, %v8473
    %v9503 = vpack.c.b16 %v8481, %v8474
    %v9504 = vpack.c.b16 %v8489, %v8482
    %v9505 = vpack.c.b16 %v8490, %v8483
    %v9506 = vpack.c.b16 %v8491, %v8484
    %v9507 = vpack.c.b16 %v8492, %v8485
    %v9508 = vpack.c.b16 %v8493, %v8486
    %v9509 = vpack.c.b16 %v8494, %v8487
    %v9510 = vpack.c.b16 %v8495, %v8488
    %v9511 = vpack.c.b16 %v8503, %v8496
    %v9512 = vpack.c.b16 %v8504, %v8497
    %v9513 = vpack.c.b16 %v8505, %v8498
    %v9514 = vpack.c.b16 %v8506, %v8499
    %v9515 = vpack.c.b16 %v8507, %v8500
    %v9516 = vpack.c.b16 %v8508, %v8501
    %v9517 = vpack.c.b16 %v8509, %v8502
    %v9518 = vpack.c.b16 %v8517, %v8510
    %v9519 = vpack.c.b16 %v8518, %v8511
    %v9520 = vpack.c.b16 %v8519, %v8512
    %v9521 = vpack.c.b16 %v8520, %v8513
    %v9522 = vpack.c.b16 %v8521, %v8514
    %v9523 = vpack.c.b16 %v8522, %v8515
    %v9524 = vpack.c.b16 %v8523, %v8516
    %v9525 = vpack.c.b16 %v8531, %v8524
    %v9526 = vpack.c.b16 %v8532, %v8525
    %v9527 = vpack.c.b16 %v8533, %v8526
    %v9528 = vpack.c.b16 %v8534, %v8527
    %v9529 = vpack.c.b16 %v8535, %v8528
    %v9530 = vpack.c.b16 %v8536, %v8529
    %v9531 = vpack.c.b16 %v8537, %v8530
    %v9532 = vpack.c.b16 %v8545, %v8538
    %v9533 = vpack.c.b16 %v8546, %v8539
    %v9534 = vpack.c.b16 %v8547, %v8540
    %v9535 = vpack.c.b16 %v8548, %v8541
    %v9536 = vpack.c.b16 %v8549, %v8542
    %v9537 = vpack.c.b16 %v8550, %v8543
    %v9538 = vpack.c.b16 %v8551, %v8544
    %v9539 = vpack.c.b16 %v8559, %v8552
    %v9540 = vpack.c.b16 %v8560, %v8553
    %v9541 = vpack.c.b16 %v8561, %v8554
    %v9542 = vpack.c.b16 %v8562, %v8555
    %v9543 = vpack.c.b16 %v8563, %v8556
    %v9544 = vpack.c.b16 %v8564, %v8557
    %v9545 = vpack.c.b16 %v8565, %v8558
    %v9546 = vpack.c.b16 %v8573, %v8566
    %v9547 = vpack.c.b16 %v8574, %v8567
    %v9548 = vpack.c.b16 %v8575, %v8568
    %v9549 = vpack.c.b16 %v8576, %v8569
    %v9550 = vpack.c.b16 %v8577, %v8570
    %v9551 = vpack.c.b16 %v8578, %v8571
    %v9552 = vpack.c.b16 %v8579, %v8572
    %v9553 = vpack.c.b16 %v8587, %v8580
    %v9554 = vpack.c.b16 %v8588, %v8581
    %v9555 = vpack.c.b16 %v8589, %v8582
    %v9556 = vpack.c.b16 %v8590, %v8583
    %v9557 = vpack.c.b16 %v8591, %v8584
    %v9558 = vpack.c.b16 %v8592, %v8585
    %v9559 = vpack.c.b16 %v8593, %v8586
    %v9560 = vpack.c.b16 %v8601, %v8594
    %v9561 = vpack.c.b16 %v8602, %v8595
    %v9562 = vpack.c.b16 %v8603, %v8596
    %v9563 = vpack.c.b16 %v8604, %v8597
    %v9564 = vpack.c.b16 %v8605, %v8598
    %v9565 = vpack.c.b16 %v8606, %v8599
    %v9566 = vpack.c.b16 %v8607, %v8600
    %v9567 = vpack.c.b16 %v8615, %v8608
    %v9568 = vpack.c.b16 %v8616, %v8609
    %v9569 = vpack.c.b16 %v8617, %v8610
    %v9570 = vpack.c.b16 %v8618, %v8611
    %v9571 = vpack.c.b16 %v8619, %v8612
    %v9572 = vpack.c.b16 %v8620, %v8613
    %v9573 = vpack.c.b16 %v8621, %v8614
    %v9574 = vpack.c.b16 %v8629, %v8622
    %v9575 = vpack.c.b16 %v8630, %v8623
    %v9576 = vpack.c.b16 %v8631, %v8624
    %v9577 = vpack.c.b16 %v8632, %v8625
    %v9578 = vpack.c.b16 %v8633, %v8626
    %v9579 = vpack.c.b16 %v8634, %v8627
    %v9580 = vpack.c.b16 %v8635, %v8628
    %v9581 = vpack.c.b16 %v8643, %v8636
    %v9582 = vpack.c.b16 %v8644, %v8637
    %v9583 = vpack.c.b16 %v8645, %v8638
    %v9584 = vpack.c.b16 %v8646, %v8639
    %v9585 = vpack.c.b16 %v8647, %v8640
    %v9586 = vpack.c.b16 %v8648, %v8641
    %v9587 = vpack.c.b16 %v8649, %v8642
    %v9588 = vpack.c.b16 %v8657, %v8650
    %v9589 = vpack.c.b16 %v8658, %v8651
    %v9590 = vpack.c.b16 %v8659, %v8652
    %v9591 = vpack.c.b16 %v8660, %v8653
    %v9592 = vpack.c.b16 %v8661, %v8654
    %v9593 = vpack.c.b16 %v8662, %v8655
    %v9594 = vpack.c.b16 %v8663, %v8656
    %v9595 = vpack.c.b16 %v8671, %v8664
    %v9596 = vpack.c.b16 %v8672, %v8665
    %v9597 = vpack.c.b16 %v8673, %v8666
    %v9598 = vpack.c.b16 %v8674, %v8667
    %v9599 = vpack.c.b16 %v8675, %v8668
    %v9600 = vpack.c.b16 %v8676, %v8669
    %v9601 = vpack.c.b16 %v8677, %v8670
    %v9602 = vpack.c.b16 %v8685, %v8678
    %v9603 = vpack.c.b16 %v8686, %v8679
    %v9604 = vpack.c.b16 %v8687, %v8680
    %v9605 = vpack.c.b16 %v8688, %v8681
    %v9606 = vpack.c.b16 %v8689, %v8682
    %v9607 = vpack.c.b16 %v8690, %v8683
    %v9608 = vpack.c.b16 %v8691, %v8684
    %v9609 = vpack.c.b16 %v8699, %v8692
    %v9610 = vpack.c.b16 %v8700, %v8693
    %v9611 = vpack.c.b16 %v8701, %v8694
    %v9612 = vpack.c.b16 %v8702, %v8695
    %v9613 = vpack.c.b16 %v8703, %v8696
    %v9614 = vpack.c.b16 %v8704, %v8697
    %v9615 = vpack.c.b16 %v8705, %v8698
    %v9616 = vpack.c.b16 %v8713, %v8706
    %v9617 = vpack.c.b16 %v8714, %v8707
    %v9618 = vpack.c.b16 %v8715, %v8708
    %v9619 = vpack.c.b16 %v8716, %v8709
    %v9620 = vpack.c.b16 %v8717, %v8710
    %v9621 = vpack.c.b16 %v8718, %v8711
    %v9622 = vpack.c.b16 %v8719, %v8712
    %v9623 = vpack.c.b16 %v8727, %v8720
    %v9624 = vpack.c.b16 %v8728, %v8721
    %v9625 = vpack.c.b16 %v8729, %v8722
    %v9626 = vpack.c.b16 %v8730, %v8723
    %v9627 = vpack.c.b16 %v8731, %v8724
    %v9628 = vpack.c.b16 %v8732, %v8725
    %v9629 = vpack.c.b16 %v8733, %v8726
    %v9630 = vpack.c.b16 %v8741, %v8734
    %v9631 = vpack.c.b16 %v8742, %v8735
    %v9632 = vpack.c.b16 %v8743, %v8736
    %v9633 = vpack.c.b16 %v8744, %v8737
    %v9634 = vpack.c.b16 %v8745, %v8738
    %v9635 = vpack.c.b16 %v8746, %v8739
    %v9636 = vpack.c.b16 %v8747, %v8740
    %v9637 = vpack.c.b16 %v8755, %v8748
    %v9638 = vpack.c.b16 %v8756, %v8749
    %v9639 = vpack.c.b16 %v8757, %v8750
    %v9640 = vpack.c.b16 %v8758, %v8751
    %v9641 = vpack.c.b16 %v8759, %v8752
    %v9642 = vpack.c.b16 %v8760, %v8753
    %v9643 = vpack.c.b16 %v8761, %v8754
    %v9644 = vpack.c.b16 %v8769, %v8762
    %v9645 = vpack.c.b16 %v8770, %v8763
    %v9646 = vpack.c.b16 %v8771, %v8764
    %v9647 = vpack.c.b16 %v8772, %v8765
    %v9648 = vpack.c.b16 %v8773, %v8766
    %v9649 = vpack.c.b16 %v8774, %v8767
    %v9650 = vpack.c.b16 %v8775, %v8768
    %v9651 = vpack.c.b16 %v8783, %v8776
    %v9652 = vpack.c.b16 %v8784, %v8777
    %v9653 = vpack.c.b16 %v8785, %v8778
    %v9654 = vpack.c.b16 %v8786, %v8779
    %v9655 = vpack.c.b16 %v8787, %v8780
    %v9656 = vpack.c.b16 %v8788, %v8781
    %v9657 = vpack.c.b16 %v8789, %v8782
    %v9658 = vpack.c.b16 %v8797, %v8790
    %v9659 = vpack.c.b16 %v8798, %v8791
    %v9660 = vpack.c.b16 %v8799, %v8792
    %v9661 = vpack.c.b16 %v8800, %v8793
    %v9662 = vpack.c.b16 %v8801, %v8794
    %v9663 = vpack.c.b16 %v8802, %v8795
    %v9664 = vpack.c.b16 %v8803, %v8796
    %v9665 = vpack.c.b16 %v8811, %v8804
    %v9666 = vpack.c.b16 %v8812, %v8805
    %v9667 = vpack.c.b16 %v8813, %v8806
    %v9668 = vpack.c.b16 %v8814, %v8807
    %v9669 = vpack.c.b16 %v8815, %v8808
    %v9670 = vpack.c.b16 %v8816, %v8809
    %v9671 = vpack.c.b16 %v8817, %v8810
    %v9672 = vpack.c.b16 %v8825, %v8818
    %v9673 = vpack.c.b16 %v8826, %v8819
    %v9674 = vpack.c.b16 %v8827, %v8820
    %v9675 = vpack.c.b16 %v8828, %v8821
    %v9676 = vpack.c.b16 %v8829, %v8822
    %v9677 = vpack.c.b16 %v8830, %v8823
    %v9678 = vpack.c.b16 %v8831, %v8824
    %v9679 = vpack.c.b16 %v8839, %v8832
    %v9680 = vpack.c.b16 %v8840, %v8833
    %v9681 = vpack.c.b16 %v8841, %v8834
    %v9682 = vpack.c.b16 %v8842, %v8835
    %v9683 = vpack.c.b16 %v8843, %v8836
    %v9684 = vpack.c.b16 %v8844, %v8837
    %v9685 = vpack.c.b16 %v8845, %v8838
    %v9686 = vpack.c.b16 %v8853, %v8846
    %v9687 = vpack.c.b16 %v8854, %v8847
    %v9688 = vpack.c.b16 %v8855, %v8848
    %v9689 = vpack.c.b16 %v8856, %v8849
    %v9690 = vpack.c.b16 %v8857, %v8850
    %v9691 = vpack.c.b16 %v8858, %v8851
    %v9692 = vpack.c.b16 %v8859, %v8852
    %v9693 = vpack.c.b16 %v8867, %v8860
    %v9694 = vpack.c.b16 %v8868, %v8861
    %v9695 = vpack.c.b16 %v8869, %v8862
    %v9696 = vpack.c.b16 %v8870, %v8863
    %v9697 = vpack.c.b16 %v8871, %v8864
    %v9698 = vpack.c.b16 %v8872, %v8865
    %v9699 = vpack.c.b16 %v8873, %v8866
    %v9700 = vpack.c.b16 %v8881, %v8874
    %v9701 = vpack.c.b16 %v8882, %v8875
    %v9702 = vpack.c.b16 %v8883, %v8876
    %v9703 = vpack.c.b16 %v8884, %v8877
    %v9704 = vpack.c.b16 %v8885, %v8878
    %v9705 = vpack.c.b16 %v8886, %v8879
    %v9706 = vpack.c.b16 %v8887, %v8880
    %v9707 = vpack.c.b16 %v8895, %v8888
    %v9708 = vpack.c.b16 %v8896, %v8889
    %v9709 = vpack.c.b16 %v8897, %v8890
    %v9710 = vpack.c.b16 %v8898, %v8891
    %v9711 = vpack.c.b16 %v8899, %v8892
    %v9712 = vpack.c.b16 %v8900, %v8893
    %v9713 = vpack.c.b16 %v8901, %v8894
    %v9714 = vpack.c.b16 %v8909, %v8902
    %v9715 = vpack.c.b16 %v8910, %v8903
    %v9716 = vpack.c.b16 %v8911, %v8904
    %v9717 = vpack.c.b16 %v8912, %v8905
    %v9718 = vpack.c.b16 %v8913, %v8906
    %v9719 = vpack.c.b16 %v8914, %v8907
    %v9720 = vpack.c.b16 %v8915, %v8908
    %v9721 = vpack.c.b16 %v8923, %v8916
    %v9722 = vpack.c.b16 %v8924, %v8917
    %v9723 = vpack.c.b16 %v8925, %v8918
    %v9724 = vpack.c.b16 %v8926, %v8919
    %v9725 = vpack.c.b16 %v8927, %v8920
    %v9726 = vpack.c.b16 %v8928, %v8921
    %v9727 = vpack.c.b16 %v8929, %v8922
    %v9728 = vpack.c.b16 %v8937, %v8930
    %v9729 = vpack.c.b16 %v8938, %v8931
    %v9730 = vpack.c.b16 %v8939, %v8932
    %v9731 = vpack.c.b16 %v8940, %v8933
    %v9732 = vpack.c.b16 %v8941, %v8934
    %v9733 = vpack.c.b16 %v8942, %v8935
    %v9734 = vpack.c.b16 %v8943, %v8936
    %v9735 = vpack.c.b16 %v8951, %v8944
    %v9736 = vpack.c.b16 %v8952, %v8945
    %v9737 = vpack.c.b16 %v8953, %v8946
    %v9738 = vpack.c.b16 %v8954, %v8947
    %v9739 = vpack.c.b16 %v8955, %v8948
    %v9740 = vpack.c.b16 %v8956, %v8949
    %v9741 = vpack.c.b16 %v8957, %v8950
    %v9742 = vpack.c.b16 %v8965, %v8958
    %v9743 = vpack.c.b16 %v8966, %v8959
    %v9744 = vpack.c.b16 %v8967, %v8960
    %v9745 = vpack.c.b16 %v8968, %v8961
    %v9746 = vpack.c.b16 %v8969, %v8962
    %v9747 = vpack.c.b16 %v8970, %v8963
    %v9748 = vpack.c.b16 %v8971, %v8964
    %v9749 = vpack.c.b16 %v8979, %v8972
    %v9750 = vpack.c.b16 %v8980, %v8973
    %v9751 = vpack.c.b16 %v8981, %v8974
    %v9752 = vpack.c.b16 %v8982, %v8975
    %v9753 = vpack.c.b16 %v8983, %v8976
    %v9754 = vpack.c.b16 %v8984, %v8977
    %v9755 = vpack.c.b16 %v8985, %v8978
    %v9756 = vpack.c.b16 %v8993, %v8986
    %v9757 = vpack.c.b16 %v8994, %v8987
    %v9758 = vpack.c.b16 %v8995, %v8988
    %v9759 = vpack.c.b16 %v8996, %v8989
    %v9760 = vpack.c.b16 %v8997, %v8990
    %v9761 = vpack.c.b16 %v8998, %v8991
    %v9762 = vpack.c.b16 %v8999, %v8992
    %v9763 = vpack.c.b16 %v9007, %v9000
    %v9764 = vpack.c.b16 %v9008, %v9001
    %v9765 = vpack.c.b16 %v9009, %v9002
    %v9766 = vpack.c.b16 %v9010, %v9003
    %v9767 = vpack.c.b16 %v9011, %v9004
    %v9768 = vpack.c.b16 %v9012, %v9005
    %v9769 = vpack.c.b16 %v9013, %v9006
    %v9770 = vpack.c.b16 %v9021, %v9014
    %v9771 = vpack.c.b16 %v9022, %v9015
    %v9772 = vpack.c.b16 %v9023, %v9016
    %v9773 = vpack.c.b16 %v9024, %v9017
    %v9774 = vpack.c.b16 %v9025, %v9018
    %v9775 = vpack.c.b16 %v9026, %v9019
    %v9776 = vpack.c.b16 %v9027, %v9020
    %v9777 = vpack.c.b16 %v9035, %v9028
    %v9778 = vpack.c.b16 %v9036, %v9029
    %v9779 = vpack.c.b16 %v9037, %v9030
    %v9780 = vpack.c.b16 %v9038, %v9031
    %v9781 = vpack.c.b16 %v9039, %v9032
    %v9782 = vpack.c.b16 %v9040, %v9033
    %v9783 = vpack.c.b16 %v9041, %v9034
    %v9784 = vpack.c.b16 %v9049, %v9042
    %v9785 = vpack.c.b16 %v9050, %v9043
    %v9786 = vpack.c.b16 %v9051, %v9044
    %v9787 = vpack.c.b16 %v9052, %v9045
    %v9788 = vpack.c.b16 %v9053, %v9046
    %v9789 = vpack.c.b16 %v9054, %v9047
    %v9790 = vpack.c.b16 %v9055, %v9048
    %v9791 = vpack.c.b16 %v9063, %v9056
    %v9792 = vpack.c.b16 %v9064, %v9057
    %v9793 = vpack.c.b16 %v9065, %v9058
    %v9794 = vpack.c.b16 %v9066, %v9059
    %v9795 = vpack.c.b16 %v9067, %v9060
    %v9796 = vpack.c.b16 %v9068, %v9061
    %v9797 = vpack.c.b16 %v9069, %v9062
    %10526 = vmatprep.subr.bf16.mxu0 %v9120
    %10527 = vmatpush1.bf16.msra.mxu0 %v9119
    %10528 = vmatprep.subr.bf16.mxu0 %v9113
    %10529 = vmatpush1.bf16.msra.mxu0 %v9112
    %10530 = vmatprep.subr.bf16.mxu0 %v9106
    %10531 = vmatpush1.bf16.msra.mxu0 %v9105
    %10532 = vmatprep.subr.bf16.mxu0 %v9099
    %10533 = vmatpush1.bf16.msra.mxu0 %v9098
    %10534 = vmatprep.subr.bf16.mxu0 %v9092
    %10535 = vmatpush1.bf16.msra.mxu0 %v9091
    %10536 = vmatprep.subr.bf16.mxu0 %v9085
    %10537 = vmatpush1.bf16.msra.mxu0 %v9084
    %10538 = vmatprep.subr.bf16.mxu0 %v9078
    %10539 = vmatpush1.bf16.msra.mxu0 %v9077
    %10540 = vmatprep.subr.bf16.mxu0 %v9071
    %10541 = vmatpush1.bf16.msra.mxu0 %v9070
    %10542 = vmatprep.subr.bf16.mxu0 %v9176
    %10543 = vmatpush2.bf16.msra.mxu0 %v9175
    %10544 = vmatprep.subr.bf16.mxu0 %v9169
    %10545 = vmatpush2.bf16.msra.mxu0 %v9168
    %10546 = vmatprep.subr.bf16.mxu0 %v9162
    %10547 = vmatpush2.bf16.msra.mxu0 %v9161
    %10548 = vmatprep.subr.bf16.mxu0 %v9155
    %10549 = vmatpush2.bf16.msra.mxu0 %v9154
    %10550 = vmatprep.subr.bf16.mxu0 %v9148
    %10551 = vmatpush2.bf16.msra.mxu0 %v9147
    %10552 = vmatprep.subr.bf16.mxu0 %v9141
    %10553 = vmatpush2.bf16.msra.mxu0 %v9140
    %10554 = vmatprep.subr.bf16.mxu0 %v9134
    %10555 = vmatpush2.bf16.msra.mxu0 %v9133
    %10556 = vmatprep.subr.bf16.mxu0 %v9127
    %10557 = vmatpush2.bf16.msra.mxu0 %v9126
    %10558 = vmatprep.mubr.bf16.mxu0 %v5901
    %10559 = vmatmul.mubr.bf16.gmra.mxu0 %v5900
    %v10560 = vpop.f32.mrf.mxu0
    %v10561 = vadd.f32 %v6750, %v10560
    %v10562 = vpop.f32.mrf.mxu0
    %v10563 = vadd.f32 %v6754, %v10562
    %v10564 = vpop.f32.mrf.mxu0
    %v10565 = vpop.f32.mrf.mxu0
    %10566 = vdwg.mxu0
    %10567 = vmatprep.subr.bf16.mxu0 %v9232
    %10568 = vmatpush1.bf16.msra.mxu0 %v9231
    %10569 = vmatprep.subr.bf16.mxu0 %v9225
    %10570 = vmatpush1.bf16.msra.mxu0 %v9224
    %10571 = vmatprep.subr.bf16.mxu0 %v9218
    %10572 = vmatpush1.bf16.msra.mxu0 %v9217
    %10573 = vmatprep.subr.bf16.mxu0 %v9211
    %10574 = vmatpush1.bf16.msra.mxu0 %v9210
    %10575 = vmatprep.subr.bf16.mxu0 %v9204
    %10576 = vmatpush1.bf16.msra.mxu0 %v9203
    %10577 = vmatprep.subr.bf16.mxu0 %v9197
    %10578 = vmatpush1.bf16.msra.mxu0 %v9196
    %10579 = vmatprep.subr.bf16.mxu0 %v9190
    %10580 = vmatpush1.bf16.msra.mxu0 %v9189
    %10581 = vmatprep.subr.bf16.mxu0 %v9183
    %10582 = vmatpush1.bf16.msra.mxu0 %v9182
    %10583 = vmatprep.subr.bf16.mxu0 %v9288
    %10584 = vmatpush2.bf16.msra.mxu0 %v9287
    %10585 = vmatprep.subr.bf16.mxu0 %v9281
    %10586 = vmatpush2.bf16.msra.mxu0 %v9280
    %10587 = vmatprep.subr.bf16.mxu0 %v9274
    %10588 = vmatpush2.bf16.msra.mxu0 %v9273
    %10589 = vmatprep.subr.bf16.mxu0 %v9267
    %10590 = vmatpush2.bf16.msra.mxu0 %v9266
    %10591 = vmatprep.subr.bf16.mxu0 %v9260
    %10592 = vmatpush2.bf16.msra.mxu0 %v9259
    %10593 = vmatprep.subr.bf16.mxu0 %v9253
    %10594 = vmatpush2.bf16.msra.mxu0 %v9252
    %10595 = vmatprep.subr.bf16.mxu0 %v9246
    %10596 = vmatpush2.bf16.msra.mxu0 %v9245
    %10597 = vmatprep.subr.bf16.mxu0 %v9239
    %10598 = vmatpush2.bf16.msra.mxu0 %v9238
    %10599 = vmatprep.mubr.bf16.mxu0 %v5903
    %10600 = vmatmul.mubr.bf16.gmra.mxu0 %v5902
    %v10601 = vpop.f32.mrf.mxu0
    %v10602 = vadd.f32 %v10561, %v10601
    %v10603 = vpop.f32.mrf.mxu0
    %v10604 = vadd.f32 %v10563, %v10603
    %v10605 = vpop.f32.mrf.mxu0
    %v10606 = vpop.f32.mrf.mxu0
    %10607 = vdwg.mxu0
    %10608 = vmatprep.subr.bf16.mxu0 %v9344
    %10609 = vmatpush1.bf16.msra.mxu0 %v9343
    %10610 = vmatprep.subr.bf16.mxu0 %v9337
    %10611 = vmatpush1.bf16.msra.mxu0 %v9336
    %10612 = vmatprep.subr.bf16.mxu0 %v9330
    %10613 = vmatpush1.bf16.msra.mxu0 %v9329
    %10614 = vmatprep.subr.bf16.mxu0 %v9323
    %10615 = vmatpush1.bf16.msra.mxu0 %v9322
    %10616 = vmatprep.subr.bf16.mxu0 %v9316
    %10617 = vmatpush1.bf16.msra.mxu0 %v9315
    %10618 = vmatprep.subr.bf16.mxu0 %v9309
    %10619 = vmatpush1.bf16.msra.mxu0 %v9308
    %10620 = vmatprep.subr.bf16.mxu0 %v9302
    %10621 = vmatpush1.bf16.msra.mxu0 %v9301
    %10622 = vmatprep.subr.bf16.mxu0 %v9295
    %10623 = vmatpush1.bf16.msra.mxu0 %v9294
    %10624 = vmatprep.subr.bf16.mxu0 %v9400
    %10625 = vmatpush2.bf16.msra.mxu0 %v9399
    %10626 = vmatprep.subr.bf16.mxu0 %v9393
    %10627 = vmatpush2.bf16.msra.mxu0 %v9392
    %10628 = vmatprep.subr.bf16.mxu0 %v9386
    %10629 = vmatpush2.bf16.msra.mxu0 %v9385
    %10630 = vmatprep.subr.bf16.mxu0 %v9379
    %10631 = vmatpush2.bf16.msra.mxu0 %v9378
    %10632 = vmatprep.subr.bf16.mxu0 %v9372
    %10633 = vmatpush2.bf16.msra.mxu0 %v9371
    %10634 = vmatprep.subr.bf16.mxu0 %v9365
    %10635 = vmatpush2.bf16.msra.mxu0 %v9364
    %10636 = vmatprep.subr.bf16.mxu0 %v9358
    %10637 = vmatpush2.bf16.msra.mxu0 %v9357
    %10638 = vmatprep.subr.bf16.mxu0 %v9351
    %10639 = vmatpush2.bf16.msra.mxu0 %v9350
    %10640 = vmatprep.mubr.bf16.mxu0 %v5905
    %10641 = vmatmul.mubr.bf16.gmra.mxu0 %v5904
    %v10642 = vpop.f32.mrf.mxu0
    %v10643 = vadd.f32 %v10602, %v10642
    %v10644 = vpop.f32.mrf.mxu0
    %v10645 = vadd.f32 %v10604, %v10644
    %v10646 = vpop.f32.mrf.mxu0
    %v10647 = vpop.f32.mrf.mxu0
    %10648 = vdwg.mxu0
    %10649 = vmatprep.subr.bf16.mxu0 %v9456
    %10650 = vmatpush1.bf16.msra.mxu0 %v9455
    %10651 = vmatprep.subr.bf16.mxu0 %v9449
    %10652 = vmatpush1.bf16.msra.mxu0 %v9448
    %10653 = vmatprep.subr.bf16.mxu0 %v9442
    %10654 = vmatpush1.bf16.msra.mxu0 %v9441
    %10655 = vmatprep.subr.bf16.mxu0 %v9435
    %10656 = vmatpush1.bf16.msra.mxu0 %v9434
    %10657 = vmatprep.subr.bf16.mxu0 %v9428
    %10658 = vmatpush1.bf16.msra.mxu0 %v9427
    %10659 = vmatprep.subr.bf16.mxu0 %v9421
    %10660 = vmatpush1.bf16.msra.mxu0 %v9420
    %10661 = vmatprep.subr.bf16.mxu0 %v9414
    %10662 = vmatpush1.bf16.msra.mxu0 %v9413
    %10663 = vmatprep.subr.bf16.mxu0 %v9407
    %10664 = vmatpush1.bf16.msra.mxu0 %v9406
    %10665 = vmatprep.subr.bf16.mxu0 %v9512
    %10666 = vmatpush2.bf16.msra.mxu0 %v9511
    %10667 = vmatprep.subr.bf16.mxu0 %v9505
    %10668 = vmatpush2.bf16.msra.mxu0 %v9504
    %10669 = vmatprep.subr.bf16.mxu0 %v9498
    %10670 = vmatpush2.bf16.msra.mxu0 %v9497
    %10671 = vmatprep.subr.bf16.mxu0 %v9491
    %10672 = vmatpush2.bf16.msra.mxu0 %v9490
    %10673 = vmatprep.subr.bf16.mxu0 %v9484
    %10674 = vmatpush2.bf16.msra.mxu0 %v9483
    %10675 = vmatprep.subr.bf16.mxu0 %v9477
    %10676 = vmatpush2.bf16.msra.mxu0 %v9476
    %10677 = vmatprep.subr.bf16.mxu0 %v9470
    %10678 = vmatpush2.bf16.msra.mxu0 %v9469
    %10679 = vmatprep.subr.bf16.mxu0 %v9463
    %10680 = vmatpush2.bf16.msra.mxu0 %v9462
    %10681 = vmatprep.mubr.bf16.mxu0 %v5907
    %10682 = vmatmul.mubr.bf16.gmra.mxu0 %v5906
    %v10683 = vpop.f32.mrf.mxu0
    %v10684 = vadd.f32 %v10643, %v10683
    %v10685 = vpop.f32.mrf.mxu0
    %v10686 = vadd.f32 %v10645, %v10685
    %v10687 = vpop.f32.mrf.mxu0
    %v10688 = vpop.f32.mrf.mxu0
    %10689 = vdwg.mxu0
    %10690 = vmatprep.subr.bf16.mxu0 %v9568
    %10691 = vmatpush1.bf16.msra.mxu0 %v9567
    %10692 = vmatprep.subr.bf16.mxu0 %v9561
    %10693 = vmatpush1.bf16.msra.mxu0 %v9560
    %10694 = vmatprep.subr.bf16.mxu0 %v9554
    %10695 = vmatpush1.bf16.msra.mxu0 %v9553
    %10696 = vmatprep.subr.bf16.mxu0 %v9547
    %10697 = vmatpush1.bf16.msra.mxu0 %v9546
    %10698 = vmatprep.subr.bf16.mxu0 %v9540
    %10699 = vmatpush1.bf16.msra.mxu0 %v9539
    %10700 = vmatprep.subr.bf16.mxu0 %v9533
    %10701 = vmatpush1.bf16.msra.mxu0 %v9532
    %10702 = vmatprep.subr.bf16.mxu0 %v9526
    %10703 = vmatpush1.bf16.msra.mxu0 %v9525
    %10704 = vmatprep.subr.bf16.mxu0 %v9519
    %10705 = vmatpush1.bf16.msra.mxu0 %v9518
    %10706 = vmatprep.subr.bf16.mxu0 %v9624
    %10707 = vmatpush2.bf16.msra.mxu0 %v9623
    %10708 = vmatprep.subr.bf16.mxu0 %v9617
    %10709 = vmatpush2.bf16.msra.mxu0 %v9616
    %10710 = vmatprep.subr.bf16.mxu0 %v9610
    %10711 = vmatpush2.bf16.msra.mxu0 %v9609
    %10712 = vmatprep.subr.bf16.mxu0 %v9603
    %10713 = vmatpush2.bf16.msra.mxu0 %v9602
    %10714 = vmatprep.subr.bf16.mxu0 %v9596
    %10715 = vmatpush2.bf16.msra.mxu0 %v9595
    %10716 = vmatprep.subr.bf16.mxu0 %v9589
    %10717 = vmatpush2.bf16.msra.mxu0 %v9588
    %10718 = vmatprep.subr.bf16.mxu0 %v9582
    %10719 = vmatpush2.bf16.msra.mxu0 %v9581
    %10720 = vmatprep.subr.bf16.mxu0 %v9575
    %10721 = vmatpush2.bf16.msra.mxu0 %v9574
    %10722 = vmatprep.mubr.bf16.mxu0 %v5909
    %10723 = vmatmul.mubr.bf16.gmra.mxu0 %v5908
    %v10724 = vpop.f32.mrf.mxu0
    %v10725 = vadd.f32 %v10684, %v10724
    %v10726 = vpop.f32.mrf.mxu0
    %v10727 = vadd.f32 %v10686, %v10726
    %v10728 = vpop.f32.mrf.mxu0
    %v10729 = vpop.f32.mrf.mxu0
    %10730 = vdwg.mxu0
    %10731 = vmatprep.subr.bf16.mxu0 %v9680
    %10732 = vmatpush1.bf16.msra.mxu0 %v9679
    %10733 = vmatprep.subr.bf16.mxu0 %v9673
    %10734 = vmatpush1.bf16.msra.mxu0 %v9672
    %10735 = vmatprep.subr.bf16.mxu0 %v9666
    %10736 = vmatpush1.bf16.msra.mxu0 %v9665
    %10737 = vmatprep.subr.bf16.mxu0 %v9659
    %10738 = vmatpush1.bf16.msra.mxu0 %v9658
    %10739 = vmatprep.subr.bf16.mxu0 %v9652
    %10740 = vmatpush1.bf16.msra.mxu0 %v9651
    %10741 = vmatprep.subr.bf16.mxu0 %v9645
    %10742 = vmatpush1.bf16.msra.mxu0 %v9644
    %10743 = vmatprep.subr.bf16.mxu0 %v9638
    %10744 = vmatpush1.bf16.msra.mxu0 %v9637
    %10745 = vmatprep.subr.bf16.mxu0 %v9631
    %10746 = vmatpush1.bf16.msra.mxu0 %v9630
    %10747 = vmatprep.subr.bf16.mxu0 %v9736
    %10748 = vmatpush2.bf16.msra.mxu0 %v9735
    %10749 = vmatprep.subr.bf16.mxu0 %v9729
    %10750 = vmatpush2.bf16.msra.mxu0 %v9728
    %10751 = vmatprep.subr.bf16.mxu0 %v9722
    %10752 = vmatpush2.bf16.msra.mxu0 %v9721
    %10753 = vmatprep.subr.bf16.mxu0 %v9715
    %10754 = vmatpush2.bf16.msra.mxu0 %v9714
    %10755 = vmatprep.subr.bf16.mxu0 %v9708
    %10756 = vmatpush2.bf16.msra.mxu0 %v9707
    %10757 = vmatprep.subr.bf16.mxu0 %v9701
    %10758 = vmatpush2.bf16.msra.mxu0 %v9700
    %10759 = vmatprep.subr.bf16.mxu0 %v9694
    %10760 = vmatpush2.bf16.msra.mxu0 %v9693
    %10761 = vmatprep.subr.bf16.mxu0 %v9687
    %10762 = vmatpush2.bf16.msra.mxu0 %v9686
    %10763 = vmatprep.mubr.bf16.mxu0 %v5911
    %10764 = vmatmul.mubr.bf16.gmra.mxu0 %v5910
    %v10765 = vpop.f32.mrf.mxu0
    %v10766 = vadd.f32 %v10725, %v10765
    %v10767 = vpop.f32.mrf.mxu0
    %v10768 = vadd.f32 %v10727, %v10767
    %v10769 = vpop.f32.mrf.mxu0
    %v10770 = vpop.f32.mrf.mxu0
    %10771 = vdwg.mxu0
    %10772 = vmatprep.subr.bf16.mxu0 %v9792
    %10773 = vmatpush1.bf16.msra.mxu0 %v9791
    %10774 = vmatprep.subr.bf16.mxu0 %v9785
    %10775 = vmatpush1.bf16.msra.mxu0 %v9784
    %10776 = vmatprep.subr.bf16.mxu0 %v9778
    %10777 = vmatpush1.bf16.msra.mxu0 %v9777
    %10778 = vmatprep.subr.bf16.mxu0 %v9771
    %10779 = vmatpush1.bf16.msra.mxu0 %v9770
    %10780 = vmatprep.subr.bf16.mxu0 %v9764
    %10781 = vmatpush1.bf16.msra.mxu0 %v9763
    %10782 = vmatprep.subr.bf16.mxu0 %v9757
    %10783 = vmatpush1.bf16.msra.mxu0 %v9756
    %10784 = vmatprep.subr.bf16.mxu0 %v9750
    %10785 = vmatpush1.bf16.msra.mxu0 %v9749
    %10786 = vmatprep.subr.bf16.mxu0 %v9743
    %10787 = vmatpush1.bf16.msra.mxu0 %v9742
    %10788 = vmatprep.subr.bf16.mxu0 0
    %10789 = vmatpush2.bf16.msra.mxu0 0
    %10790 = vmatprep.subr.bf16.mxu0 0
    %10791 = vmatpush2.bf16.msra.mxu0 0
    %10792 = vmatprep.subr.bf16.mxu0 0
    %10793 = vmatpush2.bf16.msra.mxu0 0
    %10794 = vmatprep.subr.bf16.mxu0 0
    %10795 = vmatpush2.bf16.msra.mxu0 0
    %10796 = vmatprep.subr.bf16.mxu0 0
    %10797 = vmatpush2.bf16.msra.mxu0 0
    %10798 = vmatprep.subr.bf16.mxu0 0
    %10799 = vmatpush2.bf16.msra.mxu0 0
    %10800 = vmatprep.subr.bf16.mxu0 0
    %10801 = vmatpush2.bf16.msra.mxu0 0
    %10802 = vmatprep.subr.bf16.mxu0 0
    %10803 = vmatpush2.bf16.msra.mxu0 0
    %10804 = vmatprep.mubr.bf16.mxu0 0
    %10805 = vmatmul.mubr.bf16.gmra.mxu0 %v5912
    %v10806 = vpop.f32.mrf.mxu0
    %v10807 = vadd.f32 %v10766, %v10806
    %v10808 = vpop.f32.mrf.mxu0
    %v10809 = vadd.f32 %v10768, %v10808
    %v10810 = vpop.f32.mrf.mxu0
    %v10811 = vpop.f32.mrf.mxu0
    %10812 = vdwg.mxu0
    %10813 = vmatprep.subr.bf16.mxu0 %v9122
    %10814 = vmatpush1.bf16.msra.mxu0 %v9121
    %10815 = vmatprep.subr.bf16.mxu0 %v9115
    %10816 = vmatpush1.bf16.msra.mxu0 %v9114
    %10817 = vmatprep.subr.bf16.mxu0 %v9108
    %10818 = vmatpush1.bf16.msra.mxu0 %v9107
    %10819 = vmatprep.subr.bf16.mxu0 %v9101
    %10820 = vmatpush1.bf16.msra.mxu0 %v9100
    %10821 = vmatprep.subr.bf16.mxu0 %v9094
    %10822 = vmatpush1.bf16.msra.mxu0 %v9093
    %10823 = vmatprep.subr.bf16.mxu0 %v9087
    %10824 = vmatpush1.bf16.msra.mxu0 %v9086
    %10825 = vmatprep.subr.bf16.mxu0 %v9080
    %10826 = vmatpush1.bf16.msra.mxu0 %v9079
    %10827 = vmatprep.subr.bf16.mxu0 %v9073
    %10828 = vmatpush1.bf16.msra.mxu0 %v9072
    %10829 = vmatprep.subr.bf16.mxu0 %v9178
    %10830 = vmatpush2.bf16.msra.mxu0 %v9177
    %10831 = vmatprep.subr.bf16.mxu0 %v9171
    %10832 = vmatpush2.bf16.msra.mxu0 %v9170
    %10833 = vmatprep.subr.bf16.mxu0 %v9164
    %10834 = vmatpush2.bf16.msra.mxu0 %v9163
    %10835 = vmatprep.subr.bf16.mxu0 %v9157
    %10836 = vmatpush2.bf16.msra.mxu0 %v9156
    %10837 = vmatprep.subr.bf16.mxu0 %v9150
    %10838 = vmatpush2.bf16.msra.mxu0 %v9149
    %10839 = vmatprep.subr.bf16.mxu0 %v9143
    %10840 = vmatpush2.bf16.msra.mxu0 %v9142
    %10841 = vmatprep.subr.bf16.mxu0 %v9136
    %10842 = vmatpush2.bf16.msra.mxu0 %v9135
    %10843 = vmatprep.subr.bf16.mxu0 %v9129
    %10844 = vmatpush2.bf16.msra.mxu0 %v9128
    %10845 = vmatprep.mubr.bf16.mxu0 %v5901
    %10846 = vmatmul.mubr.bf16.gmra.mxu0 %v5900
    %v10847 = vpop.f32.mrf.mxu0
    %v10848 = vadd.f32 %v6758, %v10847
    %v10849 = vpop.f32.mrf.mxu0
    %v10850 = vadd.f32 %v6762, %v10849
    %v10851 = vpop.f32.mrf.mxu0
    %v10852 = vpop.f32.mrf.mxu0
    %10853 = vdwg.mxu0
    %10854 = vmatprep.subr.bf16.mxu0 %v9234
    %10855 = vmatpush1.bf16.msra.mxu0 %v9233
    %10856 = vmatprep.subr.bf16.mxu0 %v9227
    %10857 = vmatpush1.bf16.msra.mxu0 %v9226
    %10858 = vmatprep.subr.bf16.mxu0 %v9220
    %10859 = vmatpush1.bf16.msra.mxu0 %v9219
    %10860 = vmatprep.subr.bf16.mxu0 %v9213
    %10861 = vmatpush1.bf16.msra.mxu0 %v9212
    %10862 = vmatprep.subr.bf16.mxu0 %v9206
    %10863 = vmatpush1.bf16.msra.mxu0 %v9205
    %10864 = vmatprep.subr.bf16.mxu0 %v9199
    %10865 = vmatpush1.bf16.msra.mxu0 %v9198
    %10866 = vmatprep.subr.bf16.mxu0 %v9192
    %10867 = vmatpush1.bf16.msra.mxu0 %v9191
    %10868 = vmatprep.subr.bf16.mxu0 %v9185
    %10869 = vmatpush1.bf16.msra.mxu0 %v9184
    %10870 = vmatprep.subr.bf16.mxu0 %v9290
    %10871 = vmatpush2.bf16.msra.mxu0 %v9289
    %10872 = vmatprep.subr.bf16.mxu0 %v9283
    %10873 = vmatpush2.bf16.msra.mxu0 %v9282
    %10874 = vmatprep.subr.bf16.mxu0 %v9276
    %10875 = vmatpush2.bf16.msra.mxu0 %v9275
    %10876 = vmatprep.subr.bf16.mxu0 %v9269
    %10877 = vmatpush2.bf16.msra.mxu0 %v9268
    %10878 = vmatprep.subr.bf16.mxu0 %v9262
    %10879 = vmatpush2.bf16.msra.mxu0 %v9261
    %10880 = vmatprep.subr.bf16.mxu0 %v9255
    %10881 = vmatpush2.bf16.msra.mxu0 %v9254
    %10882 = vmatprep.subr.bf16.mxu0 %v9248
    %10883 = vmatpush2.bf16.msra.mxu0 %v9247
    %10884 = vmatprep.subr.bf16.mxu0 %v9241
    %10885 = vmatpush2.bf16.msra.mxu0 %v9240
    %10886 = vmatprep.mubr.bf16.mxu0 %v5903
    %10887 = vmatmul.mubr.bf16.gmra.mxu0 %v5902
    %v10888 = vpop.f32.mrf.mxu0
    %v10889 = vadd.f32 %v10848, %v10888
    %v10890 = vpop.f32.mrf.mxu0
    %v10891 = vadd.f32 %v10850, %v10890
    %v10892 = vpop.f32.mrf.mxu0
    %v10893 = vpop.f32.mrf.mxu0
    %10894 = vdwg.mxu0
    %10895 = vmatprep.subr.bf16.mxu0 %v9346
    %10896 = vmatpush1.bf16.msra.mxu0 %v9345
    %10897 = vmatprep.subr.bf16.mxu0 %v9339
    %10898 = vmatpush1.bf16.msra.mxu0 %v9338
    %10899 = vmatprep.subr.bf16.mxu0 %v9332
    %10900 = vmatpush1.bf16.msra.mxu0 %v9331
    %10901 = vmatprep.subr.bf16.mxu0 %v9325
    %10902 = vmatpush1.bf16.msra.mxu0 %v9324
    %10903 = vmatprep.subr.bf16.mxu0 %v9318
    %10904 = vmatpush1.bf16.msra.mxu0 %v9317
    %10905 = vmatprep.subr.bf16.mxu0 %v9311
    %10906 = vmatpush1.bf16.msra.mxu0 %v9310
    %10907 = vmatprep.subr.bf16.mxu0 %v9304
    %10908 = vmatpush1.bf16.msra.mxu0 %v9303
    %10909 = vmatprep.subr.bf16.mxu0 %v9297
    %10910 = vmatpush1.bf16.msra.mxu0 %v9296
    %10911 = vmatprep.subr.bf16.mxu0 %v9402
    %10912 = vmatpush2.bf16.msra.mxu0 %v9401
    %10913 = vmatprep.subr.bf16.mxu0 %v9395
    %10914 = vmatpush2.bf16.msra.mxu0 %v9394
    %10915 = vmatprep.subr.bf16.mxu0 %v9388
    %10916 = vmatpush2.bf16.msra.mxu0 %v9387
    %10917 = vmatprep.subr.bf16.mxu0 %v9381
    %10918 = vmatpush2.bf16.msra.mxu0 %v9380
    %10919 = vmatprep.subr.bf16.mxu0 %v9374
    %10920 = vmatpush2.bf16.msra.mxu0 %v9373
    %10921 = vmatprep.subr.bf16.mxu0 %v9367
    %10922 = vmatpush2.bf16.msra.mxu0 %v9366
    %10923 = vmatprep.subr.bf16.mxu0 %v9360
    %10924 = vmatpush2.bf16.msra.mxu0 %v9359
    %10925 = vmatprep.subr.bf16.mxu0 %v9353
    %10926 = vmatpush2.bf16.msra.mxu0 %v9352
    %10927 = vmatprep.mubr.bf16.mxu0 %v5905
    %10928 = vmatmul.mubr.bf16.gmra.mxu0 %v5904
    %v10929 = vpop.f32.mrf.mxu0
    %v10930 = vadd.f32 %v10889, %v10929
    %v10931 = vpop.f32.mrf.mxu0
    %v10932 = vadd.f32 %v10891, %v10931
    %v10933 = vpop.f32.mrf.mxu0
    %v10934 = vpop.f32.mrf.mxu0
    %10935 = vdwg.mxu0
    %10936 = vmatprep.subr.bf16.mxu0 %v9458
    %10937 = vmatpush1.bf16.msra.mxu0 %v9457
    %10938 = vmatprep.subr.bf16.mxu0 %v9451
    %10939 = vmatpush1.bf16.msra.mxu0 %v9450
    %10940 = vmatprep.subr.bf16.mxu0 %v9444
    %10941 = vmatpush1.bf16.msra.mxu0 %v9443
    %10942 = vmatprep.subr.bf16.mxu0 %v9437
    %10943 = vmatpush1.bf16.msra.mxu0 %v9436
    %10944 = vmatprep.subr.bf16.mxu0 %v9430
    %10945 = vmatpush1.bf16.msra.mxu0 %v9429
    %10946 = vmatprep.subr.bf16.mxu0 %v9423
    %10947 = vmatpush1.bf16.msra.mxu0 %v9422
    %10948 = vmatprep.subr.bf16.mxu0 %v9416
    %10949 = vmatpush1.bf16.msra.mxu0 %v9415
    %10950 = vmatprep.subr.bf16.mxu0 %v9409
    %10951 = vmatpush1.bf16.msra.mxu0 %v9408
    %10952 = vmatprep.subr.bf16.mxu0 %v9514
    %10953 = vmatpush2.bf16.msra.mxu0 %v9513
    %10954 = vmatprep.subr.bf16.mxu0 %v9507
    %10955 = vmatpush2.bf16.msra.mxu0 %v9506
    %10956 = vmatprep.subr.bf16.mxu0 %v9500
    %10957 = vmatpush2.bf16.msra.mxu0 %v9499
    %10958 = vmatprep.subr.bf16.mxu0 %v9493
    %10959 = vmatpush2.bf16.msra.mxu0 %v9492
    %10960 = vmatprep.subr.bf16.mxu0 %v9486
    %10961 = vmatpush2.bf16.msra.mxu0 %v9485
    %10962 = vmatprep.subr.bf16.mxu0 %v9479
    %10963 = vmatpush2.bf16.msra.mxu0 %v9478
    %10964 = vmatprep.subr.bf16.mxu0 %v9472
    %10965 = vmatpush2.bf16.msra.mxu0 %v9471
    %10966 = vmatprep.subr.bf16.mxu0 %v9465
    %10967 = vmatpush2.bf16.msra.mxu0 %v9464
    %10968 = vmatprep.mubr.bf16.mxu0 %v5907
    %10969 = vmatmul.mubr.bf16.gmra.mxu0 %v5906
    %v10970 = vpop.f32.mrf.mxu0
    %v10971 = vadd.f32 %v10930, %v10970
    %v10972 = vpop.f32.mrf.mxu0
    %v10973 = vadd.f32 %v10932, %v10972
    %v10974 = vpop.f32.mrf.mxu0
    %v10975 = vpop.f32.mrf.mxu0
    %10976 = vdwg.mxu0
    %10977 = vmatprep.subr.bf16.mxu0 %v9570
    %10978 = vmatpush1.bf16.msra.mxu0 %v9569
    %10979 = vmatprep.subr.bf16.mxu0 %v9563
    %10980 = vmatpush1.bf16.msra.mxu0 %v9562
    %10981 = vmatprep.subr.bf16.mxu0 %v9556
    %10982 = vmatpush1.bf16.msra.mxu0 %v9555
    %10983 = vmatprep.subr.bf16.mxu0 %v9549
    %10984 = vmatpush1.bf16.msra.mxu0 %v9548
    %10985 = vmatprep.subr.bf16.mxu0 %v9542
    %10986 = vmatpush1.bf16.msra.mxu0 %v9541
    %10987 = vmatprep.subr.bf16.mxu0 %v9535
    %10988 = vmatpush1.bf16.msra.mxu0 %v9534
    %10989 = vmatprep.subr.bf16.mxu0 %v9528
    %10990 = vmatpush1.bf16.msra.mxu0 %v9527
    %10991 = vmatprep.subr.bf16.mxu0 %v9521
    %10992 = vmatpush1.bf16.msra.mxu0 %v9520
    %10993 = vmatprep.subr.bf16.mxu0 %v9626
    %10994 = vmatpush2.bf16.msra.mxu0 %v9625
    %10995 = vmatprep.subr.bf16.mxu0 %v9619
    %10996 = vmatpush2.bf16.msra.mxu0 %v9618
    %10997 = vmatprep.subr.bf16.mxu0 %v9612
    %10998 = vmatpush2.bf16.msra.mxu0 %v9611
    %10999 = vmatprep.subr.bf16.mxu0 %v9605
    %11000 = vmatpush2.bf16.msra.mxu0 %v9604
    %11001 = vmatprep.subr.bf16.mxu0 %v9598
    %11002 = vmatpush2.bf16.msra.mxu0 %v9597
    %11003 = vmatprep.subr.bf16.mxu0 %v9591
    %11004 = vmatpush2.bf16.msra.mxu0 %v9590
    %11005 = vmatprep.subr.bf16.mxu0 %v9584
    %11006 = vmatpush2.bf16.msra.mxu0 %v9583
    %11007 = vmatprep.subr.bf16.mxu0 %v9577
    %11008 = vmatpush2.bf16.msra.mxu0 %v9576
    %11009 = vmatprep.mubr.bf16.mxu0 %v5909
    %11010 = vmatmul.mubr.bf16.gmra.mxu0 %v5908
    %v11011 = vpop.f32.mrf.mxu0
    %v11012 = vadd.f32 %v10971, %v11011
    %v11013 = vpop.f32.mrf.mxu0
    %v11014 = vadd.f32 %v10973, %v11013
    %v11015 = vpop.f32.mrf.mxu0
    %v11016 = vpop.f32.mrf.mxu0
    %11017 = vdwg.mxu0
    %11018 = vmatprep.subr.bf16.mxu0 %v9682
    %11019 = vmatpush1.bf16.msra.mxu0 %v9681
    %11020 = vmatprep.subr.bf16.mxu0 %v9675
    %11021 = vmatpush1.bf16.msra.mxu0 %v9674
    %11022 = vmatprep.subr.bf16.mxu0 %v9668
    %11023 = vmatpush1.bf16.msra.mxu0 %v9667
    %11024 = vmatprep.subr.bf16.mxu0 %v9661
    %11025 = vmatpush1.bf16.msra.mxu0 %v9660
    %11026 = vmatprep.subr.bf16.mxu0 %v9654
    %11027 = vmatpush1.bf16.msra.mxu0 %v9653
    %11028 = vmatprep.subr.bf16.mxu0 %v9647
    %11029 = vmatpush1.bf16.msra.mxu0 %v9646
    %11030 = vmatprep.subr.bf16.mxu0 %v9640
    %11031 = vmatpush1.bf16.msra.mxu0 %v9639
    %11032 = vmatprep.subr.bf16.mxu0 %v9633
    %11033 = vmatpush1.bf16.msra.mxu0 %v9632
    %11034 = vmatprep.subr.bf16.mxu0 %v9738
    %11035 = vmatpush2.bf16.msra.mxu0 %v9737
    %11036 = vmatprep.subr.bf16.mxu0 %v9731
    %11037 = vmatpush2.bf16.msra.mxu0 %v9730
    %11038 = vmatprep.subr.bf16.mxu0 %v9724
    %11039 = vmatpush2.bf16.msra.mxu0 %v9723
    %11040 = vmatprep.subr.bf16.mxu0 %v9717
    %11041 = vmatpush2.bf16.msra.mxu0 %v9716
    %11042 = vmatprep.subr.bf16.mxu0 %v9710
    %11043 = vmatpush2.bf16.msra.mxu0 %v9709
    %11044 = vmatprep.subr.bf16.mxu0 %v9703
    %11045 = vmatpush2.bf16.msra.mxu0 %v9702
    %11046 = vmatprep.subr.bf16.mxu0 %v9696
    %11047 = vmatpush2.bf16.msra.mxu0 %v9695
    %11048 = vmatprep.subr.bf16.mxu0 %v9689
    %11049 = vmatpush2.bf16.msra.mxu0 %v9688
    %11050 = vmatprep.mubr.bf16.mxu0 %v5911
    %11051 = vmatmul.mubr.bf16.gmra.mxu0 %v5910
    %v11052 = vpop.f32.mrf.mxu0
    %v11053 = vadd.f32 %v11012, %v11052
    %v11054 = vpop.f32.mrf.mxu0
    %v11055 = vadd.f32 %v11014, %v11054
    %v11056 = vpop.f32.mrf.mxu0
    %v11057 = vpop.f32.mrf.mxu0
    %11058 = vdwg.mxu0
    %11059 = vmatprep.subr.bf16.mxu0 %v9794
    %11060 = vmatpush1.bf16.msra.mxu0 %v9793
    %11061 = vmatprep.subr.bf16.mxu0 %v9787
    %11062 = vmatpush1.bf16.msra.mxu0 %v9786
    %11063 = vmatprep.subr.bf16.mxu0 %v9780
    %11064 = vmatpush1.bf16.msra.mxu0 %v9779
    %11065 = vmatprep.subr.bf16.mxu0 %v9773
    %11066 = vmatpush1.bf16.msra.mxu0 %v9772
    %11067 = vmatprep.subr.bf16.mxu0 %v9766
    %11068 = vmatpush1.bf16.msra.mxu0 %v9765
    %11069 = vmatprep.subr.bf16.mxu0 %v9759
    %11070 = vmatpush1.bf16.msra.mxu0 %v9758
    %11071 = vmatprep.subr.bf16.mxu0 %v9752
    %11072 = vmatpush1.bf16.msra.mxu0 %v9751
    %11073 = vmatprep.subr.bf16.mxu0 %v9745
    %11074 = vmatpush1.bf16.msra.mxu0 %v9744
    %11075 = vmatprep.subr.bf16.mxu0 0
    %11076 = vmatpush2.bf16.msra.mxu0 0
    %11077 = vmatprep.subr.bf16.mxu0 0
    %11078 = vmatpush2.bf16.msra.mxu0 0
    %11079 = vmatprep.subr.bf16.mxu0 0
    %11080 = vmatpush2.bf16.msra.mxu0 0
    %11081 = vmatprep.subr.bf16.mxu0 0
    %11082 = vmatpush2.bf16.msra.mxu0 0
    %11083 = vmatprep.subr.bf16.mxu0 0
    %11084 = vmatpush2.bf16.msra.mxu0 0
    %11085 = vmatprep.subr.bf16.mxu0 0
    %11086 = vmatpush2.bf16.msra.mxu0 0
    %11087 = vmatprep.subr.bf16.mxu0 0
    %11088 = vmatpush2.bf16.msra.mxu0 0
    %11089 = vmatprep.subr.bf16.mxu0 0
    %11090 = vmatpush2.bf16.msra.mxu0 0
    %11091 = vmatprep.mubr.bf16.mxu0 0
    %11092 = vmatmul.mubr.bf16.gmra.mxu0 %v5912
    %v11093 = vpop.f32.mrf.mxu0
    %v11094 = vadd.f32 %v11053, %v11093
    %v11095 = vpop.f32.mrf.mxu0
    %v11096 = vadd.f32 %v11055, %v11095
    %v11097 = vpop.f32.mrf.mxu0
    %v11098 = vpop.f32.mrf.mxu0
    %11099 = vdwg.mxu0
    %11100 = vmatprep.subr.bf16.mxu0 %v9124
    %11101 = vmatpush1.bf16.msra.mxu0 %v9123
    %11102 = vmatprep.subr.bf16.mxu0 %v9117
    %11103 = vmatpush1.bf16.msra.mxu0 %v9116
    %11104 = vmatprep.subr.bf16.mxu0 %v9110
    %11105 = vmatpush1.bf16.msra.mxu0 %v9109
    %11106 = vmatprep.subr.bf16.mxu0 %v9103
    %11107 = vmatpush1.bf16.msra.mxu0 %v9102
    %11108 = vmatprep.subr.bf16.mxu0 %v9096
    %11109 = vmatpush1.bf16.msra.mxu0 %v9095
    %11110 = vmatprep.subr.bf16.mxu0 %v9089
    %11111 = vmatpush1.bf16.msra.mxu0 %v9088
    %11112 = vmatprep.subr.bf16.mxu0 %v9082
    %11113 = vmatpush1.bf16.msra.mxu0 %v9081
    %11114 = vmatprep.subr.bf16.mxu0 %v9075
    %11115 = vmatpush1.bf16.msra.mxu0 %v9074
    %11116 = vmatprep.subr.bf16.mxu0 %v9180
    %11117 = vmatpush2.bf16.msra.mxu0 %v9179
    %11118 = vmatprep.subr.bf16.mxu0 %v9173
    %11119 = vmatpush2.bf16.msra.mxu0 %v9172
    %11120 = vmatprep.subr.bf16.mxu0 %v9166
    %11121 = vmatpush2.bf16.msra.mxu0 %v9165
    %11122 = vmatprep.subr.bf16.mxu0 %v9159
    %11123 = vmatpush2.bf16.msra.mxu0 %v9158
    %11124 = vmatprep.subr.bf16.mxu0 %v9152
    %11125 = vmatpush2.bf16.msra.mxu0 %v9151
    %11126 = vmatprep.subr.bf16.mxu0 %v9145
    %11127 = vmatpush2.bf16.msra.mxu0 %v9144
    %11128 = vmatprep.subr.bf16.mxu0 %v9138
    %11129 = vmatpush2.bf16.msra.mxu0 %v9137
    %11130 = vmatprep.subr.bf16.mxu0 %v9131
    %11131 = vmatpush2.bf16.msra.mxu0 %v9130
    %11132 = vmatprep.mubr.bf16.mxu0 %v5901
    %11133 = vmatmul.mubr.bf16.gmra.mxu0 %v5900
    %v11134 = vpop.f32.mrf.mxu0
    %v11135 = vadd.f32 %v6766, %v11134
    %v11136 = vpop.f32.mrf.mxu0
    %v11137 = vadd.f32 %v6770, %v11136
    %v11138 = vpop.f32.mrf.mxu0
    %v11139 = vpop.f32.mrf.mxu0
    %11140 = vdwg.mxu0
    %11141 = vmatprep.subr.bf16.mxu0 %v9236
    %11142 = vmatpush1.bf16.msra.mxu0 %v9235
    %11143 = vmatprep.subr.bf16.mxu0 %v9229
    %11144 = vmatpush1.bf16.msra.mxu0 %v9228
    %11145 = vmatprep.subr.bf16.mxu0 %v9222
    %11146 = vmatpush1.bf16.msra.mxu0 %v9221
    %11147 = vmatprep.subr.bf16.mxu0 %v9215
    %11148 = vmatpush1.bf16.msra.mxu0 %v9214
    %11149 = vmatprep.subr.bf16.mxu0 %v9208
    %11150 = vmatpush1.bf16.msra.mxu0 %v9207
    %11151 = vmatprep.subr.bf16.mxu0 %v9201
    %11152 = vmatpush1.bf16.msra.mxu0 %v9200
    %11153 = vmatprep.subr.bf16.mxu0 %v9194
    %11154 = vmatpush1.bf16.msra.mxu0 %v9193
    %11155 = vmatprep.subr.bf16.mxu0 %v9187
    %11156 = vmatpush1.bf16.msra.mxu0 %v9186
    %11157 = vmatprep.subr.bf16.mxu0 %v9292
    %11158 = vmatpush2.bf16.msra.mxu0 %v9291
    %11159 = vmatprep.subr.bf16.mxu0 %v9285
    %11160 = vmatpush2.bf16.msra.mxu0 %v9284
    %11161 = vmatprep.subr.bf16.mxu0 %v9278
    %11162 = vmatpush2.bf16.msra.mxu0 %v9277
    %11163 = vmatprep.subr.bf16.mxu0 %v9271
    %11164 = vmatpush2.bf16.msra.mxu0 %v9270
    %11165 = vmatprep.subr.bf16.mxu0 %v9264
    %11166 = vmatpush2.bf16.msra.mxu0 %v9263
    %11167 = vmatprep.subr.bf16.mxu0 %v9257
    %11168 = vmatpush2.bf16.msra.mxu0 %v9256
    %11169 = vmatprep.subr.bf16.mxu0 %v9250
    %11170 = vmatpush2.bf16.msra.mxu0 %v9249
    %11171 = vmatprep.subr.bf16.mxu0 %v9243
    %11172 = vmatpush2.bf16.msra.mxu0 %v9242
    %11173 = vmatprep.mubr.bf16.mxu0 %v5903
    %11174 = vmatmul.mubr.bf16.gmra.mxu0 %v5902
    %v11175 = vpop.f32.mrf.mxu0
    %v11176 = vadd.f32 %v11135, %v11175
    %v11177 = vpop.f32.mrf.mxu0
    %v11178 = vadd.f32 %v11137, %v11177
    %v11179 = vpop.f32.mrf.mxu0
    %v11180 = vpop.f32.mrf.mxu0
    %11181 = vdwg.mxu0
    %11182 = vmatprep.subr.bf16.mxu0 %v9348
    %11183 = vmatpush1.bf16.msra.mxu0 %v9347
    %11184 = vmatprep.subr.bf16.mxu0 %v9341
    %11185 = vmatpush1.bf16.msra.mxu0 %v9340
    %11186 = vmatprep.subr.bf16.mxu0 %v9334
    %11187 = vmatpush1.bf16.msra.mxu0 %v9333
    %11188 = vmatprep.subr.bf16.mxu0 %v9327
    %11189 = vmatpush1.bf16.msra.mxu0 %v9326
    %11190 = vmatprep.subr.bf16.mxu0 %v9320
    %11191 = vmatpush1.bf16.msra.mxu0 %v9319
    %11192 = vmatprep.subr.bf16.mxu0 %v9313
    %11193 = vmatpush1.bf16.msra.mxu0 %v9312
    %11194 = vmatprep.subr.bf16.mxu0 %v9306
    %11195 = vmatpush1.bf16.msra.mxu0 %v9305
    %11196 = vmatprep.subr.bf16.mxu0 %v9299
    %11197 = vmatpush1.bf16.msra.mxu0 %v9298
    %11198 = vmatprep.subr.bf16.mxu0 %v9404
    %11199 = vmatpush2.bf16.msra.mxu0 %v9403
    %11200 = vmatprep.subr.bf16.mxu0 %v9397
    %11201 = vmatpush2.bf16.msra.mxu0 %v9396
    %11202 = vmatprep.subr.bf16.mxu0 %v9390
    %11203 = vmatpush2.bf16.msra.mxu0 %v9389
    %11204 = vmatprep.subr.bf16.mxu0 %v9383
    %11205 = vmatpush2.bf16.msra.mxu0 %v9382
    %11206 = vmatprep.subr.bf16.mxu0 %v9376
    %11207 = vmatpush2.bf16.msra.mxu0 %v9375
    %11208 = vmatprep.subr.bf16.mxu0 %v9369
    %11209 = vmatpush2.bf16.msra.mxu0 %v9368
    %11210 = vmatprep.subr.bf16.mxu0 %v9362
    %11211 = vmatpush2.bf16.msra.mxu0 %v9361
    %11212 = vmatprep.subr.bf16.mxu0 %v9355
    %11213 = vmatpush2.bf16.msra.mxu0 %v9354
    %11214 = vmatprep.mubr.bf16.mxu0 %v5905
    %11215 = vmatmul.mubr.bf16.gmra.mxu0 %v5904
    %v11216 = vpop.f32.mrf.mxu0
    %v11217 = vadd.f32 %v11176, %v11216
    %v11218 = vpop.f32.mrf.mxu0
    %v11219 = vadd.f32 %v11178, %v11218
    %v11220 = vpop.f32.mrf.mxu0
    %v11221 = vpop.f32.mrf.mxu0
    %11222 = vdwg.mxu0
    %11223 = vmatprep.subr.bf16.mxu0 %v9460
    %11224 = vmatpush1.bf16.msra.mxu0 %v9459
    %11225 = vmatprep.subr.bf16.mxu0 %v9453
    %11226 = vmatpush1.bf16.msra.mxu0 %v9452
    %11227 = vmatprep.subr.bf16.mxu0 %v9446
    %11228 = vmatpush1.bf16.msra.mxu0 %v9445
    %11229 = vmatprep.subr.bf16.mxu0 %v9439
    %11230 = vmatpush1.bf16.msra.mxu0 %v9438
    %11231 = vmatprep.subr.bf16.mxu0 %v9432
    %11232 = vmatpush1.bf16.msra.mxu0 %v9431
    %11233 = vmatprep.subr.bf16.mxu0 %v9425
    %11234 = vmatpush1.bf16.msra.mxu0 %v9424
    %11235 = vmatprep.subr.bf16.mxu0 %v9418
    %11236 = vmatpush1.bf16.msra.mxu0 %v9417
    %11237 = vmatprep.subr.bf16.mxu0 %v9411
    %11238 = vmatpush1.bf16.msra.mxu0 %v9410
    %11239 = vmatprep.subr.bf16.mxu0 %v9516
    %11240 = vmatpush2.bf16.msra.mxu0 %v9515
    %11241 = vmatprep.subr.bf16.mxu0 %v9509
    %11242 = vmatpush2.bf16.msra.mxu0 %v9508
    %11243 = vmatprep.subr.bf16.mxu0 %v9502
    %11244 = vmatpush2.bf16.msra.mxu0 %v9501
    %11245 = vmatprep.subr.bf16.mxu0 %v9495
    %11246 = vmatpush2.bf16.msra.mxu0 %v9494
    %11247 = vmatprep.subr.bf16.mxu0 %v9488
    %11248 = vmatpush2.bf16.msra.mxu0 %v9487
    %11249 = vmatprep.subr.bf16.mxu0 %v9481
    %11250 = vmatpush2.bf16.msra.mxu0 %v9480
    %11251 = vmatprep.subr.bf16.mxu0 %v9474
    %11252 = vmatpush2.bf16.msra.mxu0 %v9473
    %11253 = vmatprep.subr.bf16.mxu0 %v9467
    %11254 = vmatpush2.bf16.msra.mxu0 %v9466
    %11255 = vmatprep.mubr.bf16.mxu0 %v5907
    %11256 = vmatmul.mubr.bf16.gmra.mxu0 %v5906
    %v11257 = vpop.f32.mrf.mxu0
    %v11258 = vadd.f32 %v11217, %v11257
    %v11259 = vpop.f32.mrf.mxu0
    %v11260 = vadd.f32 %v11219, %v11259
    %v11261 = vpop.f32.mrf.mxu0
    %v11262 = vpop.f32.mrf.mxu0
    %11263 = vdwg.mxu0
    %11264 = vmatprep.subr.bf16.mxu0 %v9572
    %11265 = vmatpush1.bf16.msra.mxu0 %v9571
    %11266 = vmatprep.subr.bf16.mxu0 %v9565
    %11267 = vmatpush1.bf16.msra.mxu0 %v9564
    %11268 = vmatprep.subr.bf16.mxu0 %v9558
    %11269 = vmatpush1.bf16.msra.mxu0 %v9557
    %11270 = vmatprep.subr.bf16.mxu0 %v9551
    %11271 = vmatpush1.bf16.msra.mxu0 %v9550
    %11272 = vmatprep.subr.bf16.mxu0 %v9544
    %11273 = vmatpush1.bf16.msra.mxu0 %v9543
    %11274 = vmatprep.subr.bf16.mxu0 %v9537
    %11275 = vmatpush1.bf16.msra.mxu0 %v9536
    %11276 = vmatprep.subr.bf16.mxu0 %v9530
    %11277 = vmatpush1.bf16.msra.mxu0 %v9529
    %11278 = vmatprep.subr.bf16.mxu0 %v9523
    %11279 = vmatpush1.bf16.msra.mxu0 %v9522
    %11280 = vmatprep.subr.bf16.mxu0 %v9628
    %11281 = vmatpush2.bf16.msra.mxu0 %v9627
    %11282 = vmatprep.subr.bf16.mxu0 %v9621
    %11283 = vmatpush2.bf16.msra.mxu0 %v9620
    %11284 = vmatprep.subr.bf16.mxu0 %v9614
    %11285 = vmatpush2.bf16.msra.mxu0 %v9613
    %11286 = vmatprep.subr.bf16.mxu0 %v9607
    %11287 = vmatpush2.bf16.msra.mxu0 %v9606
    %11288 = vmatprep.subr.bf16.mxu0 %v9600
    %11289 = vmatpush2.bf16.msra.mxu0 %v9599
    %11290 = vmatprep.subr.bf16.mxu0 %v9593
    %11291 = vmatpush2.bf16.msra.mxu0 %v9592
    %11292 = vmatprep.subr.bf16.mxu0 %v9586
    %11293 = vmatpush2.bf16.msra.mxu0 %v9585
    %11294 = vmatprep.subr.bf16.mxu0 %v9579
    %11295 = vmatpush2.bf16.msra.mxu0 %v9578
    %11296 = vmatprep.mubr.bf16.mxu0 %v5909
    %11297 = vmatmul.mubr.bf16.gmra.mxu0 %v5908
    %v11298 = vpop.f32.mrf.mxu0
    %v11299 = vadd.f32 %v11258, %v11298
    %v11300 = vpop.f32.mrf.mxu0
    %v11301 = vadd.f32 %v11260, %v11300
    %v11302 = vpop.f32.mrf.mxu0
    %v11303 = vpop.f32.mrf.mxu0
    %11304 = vdwg.mxu0
    %11305 = vmatprep.subr.bf16.mxu0 %v9684
    %11306 = vmatpush1.bf16.msra.mxu0 %v9683
    %11307 = vmatprep.subr.bf16.mxu0 %v9677
    %11308 = vmatpush1.bf16.msra.mxu0 %v9676
    %11309 = vmatprep.subr.bf16.mxu0 %v9670
    %11310 = vmatpush1.bf16.msra.mxu0 %v9669
    %11311 = vmatprep.subr.bf16.mxu0 %v9663
    %11312 = vmatpush1.bf16.msra.mxu0 %v9662
    %11313 = vmatprep.subr.bf16.mxu0 %v9656
    %11314 = vmatpush1.bf16.msra.mxu0 %v9655
    %11315 = vmatprep.subr.bf16.mxu0 %v9649
    %11316 = vmatpush1.bf16.msra.mxu0 %v9648
    %11317 = vmatprep.subr.bf16.mxu0 %v9642
    %11318 = vmatpush1.bf16.msra.mxu0 %v9641
    %11319 = vmatprep.subr.bf16.mxu0 %v9635
    %11320 = vmatpush1.bf16.msra.mxu0 %v9634
    %11321 = vmatprep.subr.bf16.mxu0 %v9740
    %11322 = vmatpush2.bf16.msra.mxu0 %v9739
    %11323 = vmatprep.subr.bf16.mxu0 %v9733
    %11324 = vmatpush2.bf16.msra.mxu0 %v9732
    %11325 = vmatprep.subr.bf16.mxu0 %v9726
    %11326 = vmatpush2.bf16.msra.mxu0 %v9725
    %11327 = vmatprep.subr.bf16.mxu0 %v9719
    %11328 = vmatpush2.bf16.msra.mxu0 %v9718
    %11329 = vmatprep.subr.bf16.mxu0 %v9712
    %11330 = vmatpush2.bf16.msra.mxu0 %v9711
    %11331 = vmatprep.subr.bf16.mxu0 %v9705
    %11332 = vmatpush2.bf16.msra.mxu0 %v9704
    %11333 = vmatprep.subr.bf16.mxu0 %v9698
    %11334 = vmatpush2.bf16.msra.mxu0 %v9697
    %11335 = vmatprep.subr.bf16.mxu0 %v9691
    %11336 = vmatpush2.bf16.msra.mxu0 %v9690
    %11337 = vmatprep.mubr.bf16.mxu0 %v5911
    %11338 = vmatmul.mubr.bf16.gmra.mxu0 %v5910
    %v11339 = vpop.f32.mrf.mxu0
    %v11340 = vadd.f32 %v11299, %v11339
    %v11341 = vpop.f32.mrf.mxu0
    %v11342 = vadd.f32 %v11301, %v11341
    %v11343 = vpop.f32.mrf.mxu0
    %v11344 = vpop.f32.mrf.mxu0
    %11345 = vdwg.mxu0
    %11346 = vmatprep.subr.bf16.mxu0 %v9796
    %11347 = vmatpush1.bf16.msra.mxu0 %v9795
    %11348 = vmatprep.subr.bf16.mxu0 %v9789
    %11349 = vmatpush1.bf16.msra.mxu0 %v9788
    %11350 = vmatprep.subr.bf16.mxu0 %v9782
    %11351 = vmatpush1.bf16.msra.mxu0 %v9781
    %11352 = vmatprep.subr.bf16.mxu0 %v9775
    %11353 = vmatpush1.bf16.msra.mxu0 %v9774
    %11354 = vmatprep.subr.bf16.mxu0 %v9768
    %11355 = vmatpush1.bf16.msra.mxu0 %v9767
    %11356 = vmatprep.subr.bf16.mxu0 %v9761
    %11357 = vmatpush1.bf16.msra.mxu0 %v9760
    %11358 = vmatprep.subr.bf16.mxu0 %v9754
    %11359 = vmatpush1.bf16.msra.mxu0 %v9753
    %11360 = vmatprep.subr.bf16.mxu0 %v9747
    %11361 = vmatpush1.bf16.msra.mxu0 %v9746
    %11362 = vmatprep.subr.bf16.mxu0 0
    %11363 = vmatpush2.bf16.msra.mxu0 0
    %11364 = vmatprep.subr.bf16.mxu0 0
    %11365 = vmatpush2.bf16.msra.mxu0 0
    %11366 = vmatprep.subr.bf16.mxu0 0
    %11367 = vmatpush2.bf16.msra.mxu0 0
    %11368 = vmatprep.subr.bf16.mxu0 0
    %11369 = vmatpush2.bf16.msra.mxu0 0
    %11370 = vmatprep.subr.bf16.mxu0 0
    %11371 = vmatpush2.bf16.msra.mxu0 0
    %11372 = vmatprep.subr.bf16.mxu0 0
    %11373 = vmatpush2.bf16.msra.mxu0 0
    %11374 = vmatprep.subr.bf16.mxu0 0
    %11375 = vmatpush2.bf16.msra.mxu0 0
    %11376 = vmatprep.subr.bf16.mxu0 0
    %11377 = vmatpush2.bf16.msra.mxu0 0
    %11378 = vmatprep.mubr.bf16.mxu0 0
    %11379 = vmatmul.mubr.bf16.gmra.mxu0 %v5912
    %v11380 = vpop.f32.mrf.mxu0
    %v11381 = vadd.f32 %v11340, %v11380
    %v11382 = vpop.f32.mrf.mxu0
    %v11383 = vadd.f32 %v11342, %v11382
    %v11384 = vpop.f32.mrf.mxu0
    %v11385 = vpop.f32.mrf.mxu0
    %11386 = vdwg.mxu0
    %11387 = vmatprep.subr.bf16.mxu0 0
    %11388 = vmatpush1.bf16.msra.mxu0 %v9125
    %11389 = vmatprep.subr.bf16.mxu0 0
    %11390 = vmatpush1.bf16.msra.mxu0 %v9118
    %11391 = vmatprep.subr.bf16.mxu0 0
    %11392 = vmatpush1.bf16.msra.mxu0 %v9111
    %11393 = vmatprep.subr.bf16.mxu0 0
    %11394 = vmatpush1.bf16.msra.mxu0 %v9104
    %11395 = vmatprep.subr.bf16.mxu0 0
    %11396 = vmatpush1.bf16.msra.mxu0 %v9097
    %11397 = vmatprep.subr.bf16.mxu0 0
    %11398 = vmatpush1.bf16.msra.mxu0 %v9090
    %11399 = vmatprep.subr.bf16.mxu0 0
    %11400 = vmatpush1.bf16.msra.mxu0 %v9083
    %11401 = vmatprep.subr.bf16.mxu0 0
    %11402 = vmatpush1.bf16.msra.mxu0 %v9076
    %11403 = vmatprep.subr.bf16.mxu0 0
    %11404 = vmatpush2.bf16.msra.mxu0 %v9181
    %11405 = vmatprep.subr.bf16.mxu0 0
    %11406 = vmatpush2.bf16.msra.mxu0 %v9174
    %11407 = vmatprep.subr.bf16.mxu0 0
    %11408 = vmatpush2.bf16.msra.mxu0 %v9167
    %11409 = vmatprep.subr.bf16.mxu0 0
    %11410 = vmatpush2.bf16.msra.mxu0 %v9160
    %11411 = vmatprep.subr.bf16.mxu0 0
    %11412 = vmatpush2.bf16.msra.mxu0 %v9153
    %11413 = vmatprep.subr.bf16.mxu0 0
    %11414 = vmatpush2.bf16.msra.mxu0 %v9146
    %11415 = vmatprep.subr.bf16.mxu0 0
    %11416 = vmatpush2.bf16.msra.mxu0 %v9139
    %11417 = vmatprep.subr.bf16.mxu0 0
    %11418 = vmatpush2.bf16.msra.mxu0 %v9132
    %11419 = vmatprep.mubr.bf16.mxu0 %v5901
    %11420 = vmatmul.mubr.bf16.gmra.mxu0 %v5900
    %v11421 = vpop.f32.mrf.mxu0
    %v11422 = vadd.f32 %v6774, %v11421
    %v11423 = vpop.f32.mrf.mxu0
    %v11424 = vpop.f32.mrf.mxu0
    %v11425 = vpop.f32.mrf.mxu0
    %11426 = vdwg.mxu0
    %11427 = vmatprep.subr.bf16.mxu0 0
    %11428 = vmatpush1.bf16.msra.mxu0 %v9237
    %11429 = vmatprep.subr.bf16.mxu0 0
    %11430 = vmatpush1.bf16.msra.mxu0 %v9230
    %11431 = vmatprep.subr.bf16.mxu0 0
    %11432 = vmatpush1.bf16.msra.mxu0 %v9223
    %11433 = vmatprep.subr.bf16.mxu0 0
    %11434 = vmatpush1.bf16.msra.mxu0 %v9216
    %11435 = vmatprep.subr.bf16.mxu0 0
    %11436 = vmatpush1.bf16.msra.mxu0 %v9209
    %11437 = vmatprep.subr.bf16.mxu0 0
    %11438 = vmatpush1.bf16.msra.mxu0 %v9202
    %11439 = vmatprep.subr.bf16.mxu0 0
    %11440 = vmatpush1.bf16.msra.mxu0 %v9195
    %11441 = vmatprep.subr.bf16.mxu0 0
    %11442 = vmatpush1.bf16.msra.mxu0 %v9188
    %11443 = vmatprep.subr.bf16.mxu0 0
    %11444 = vmatpush2.bf16.msra.mxu0 %v9293
    %11445 = vmatprep.subr.bf16.mxu0 0
    %11446 = vmatpush2.bf16.msra.mxu0 %v9286
    %11447 = vmatprep.subr.bf16.mxu0 0
    %11448 = vmatpush2.bf16.msra.mxu0 %v9279
    %11449 = vmatprep.subr.bf16.mxu0 0
    %11450 = vmatpush2.bf16.msra.mxu0 %v9272
    %11451 = vmatprep.subr.bf16.mxu0 0
    %11452 = vmatpush2.bf16.msra.mxu0 %v9265
    %11453 = vmatprep.subr.bf16.mxu0 0
    %11454 = vmatpush2.bf16.msra.mxu0 %v9258
    %11455 = vmatprep.subr.bf16.mxu0 0
    %11456 = vmatpush2.bf16.msra.mxu0 %v9251
    %11457 = vmatprep.subr.bf16.mxu0 0
    %11458 = vmatpush2.bf16.msra.mxu0 %v9244
    %11459 = vmatprep.mubr.bf16.mxu0 %v5903
    %11460 = vmatmul.mubr.bf16.gmra.mxu0 %v5902
    %v11461 = vpop.f32.mrf.mxu0
    %v11462 = vadd.f32 %v11422, %v11461
    %v11463 = vpop.f32.mrf.mxu0
    %v11464 = vpop.f32.mrf.mxu0
    %v11465 = vpop.f32.mrf.mxu0
    %11466 = vdwg.mxu0
    %11467 = vmatprep.subr.bf16.mxu0 0
    %11468 = vmatpush1.bf16.msra.mxu0 %v9349
    %11469 = vmatprep.subr.bf16.mxu0 0
    %11470 = vmatpush1.bf16.msra.mxu0 %v9342
    %11471 = vmatprep.subr.bf16.mxu0 0
    %11472 = vmatpush1.bf16.msra.mxu0 %v9335
    %11473 = vmatprep.subr.bf16.mxu0 0
    %11474 = vmatpush1.bf16.msra.mxu0 %v9328
    %11475 = vmatprep.subr.bf16.mxu0 0
    %11476 = vmatpush1.bf16.msra.mxu0 %v9321
    %11477 = vmatprep.subr.bf16.mxu0 0
    %11478 = vmatpush1.bf16.msra.mxu0 %v9314
    %11479 = vmatprep.subr.bf16.mxu0 0
    %11480 = vmatpush1.bf16.msra.mxu0 %v9307
    %11481 = vmatprep.subr.bf16.mxu0 0
    %11482 = vmatpush1.bf16.msra.mxu0 %v9300
    %11483 = vmatprep.subr.bf16.mxu0 0
    %11484 = vmatpush2.bf16.msra.mxu0 %v9405
    %11485 = vmatprep.subr.bf16.mxu0 0
    %11486 = vmatpush2.bf16.msra.mxu0 %v9398
    %11487 = vmatprep.subr.bf16.mxu0 0
    %11488 = vmatpush2.bf16.msra.mxu0 %v9391
    %11489 = vmatprep.subr.bf16.mxu0 0
    %11490 = vmatpush2.bf16.msra.mxu0 %v9384
    %11491 = vmatprep.subr.bf16.mxu0 0
    %11492 = vmatpush2.bf16.msra.mxu0 %v9377
    %11493 = vmatprep.subr.bf16.mxu0 0
    %11494 = vmatpush2.bf16.msra.mxu0 %v9370
    %11495 = vmatprep.subr.bf16.mxu0 0
    %11496 = vmatpush2.bf16.msra.mxu0 %v9363
    %11497 = vmatprep.subr.bf16.mxu0 0
    %11498 = vmatpush2.bf16.msra.mxu0 %v9356
    %11499 = vmatprep.mubr.bf16.mxu0 %v5905
    %11500 = vmatmul.mubr.bf16.gmra.mxu0 %v5904
    %v11501 = vpop.f32.mrf.mxu0
    %v11502 = vadd.f32 %v11462, %v11501
    %v11503 = vpop.f32.mrf.mxu0
    %v11504 = vpop.f32.mrf.mxu0
    %v11505 = vpop.f32.mrf.mxu0
    %11506 = vdwg.mxu0
    %11507 = vmatprep.subr.bf16.mxu0 0
    %11508 = vmatpush1.bf16.msra.mxu0 %v9461
    %11509 = vmatprep.subr.bf16.mxu0 0
    %11510 = vmatpush1.bf16.msra.mxu0 %v9454
    %11511 = vmatprep.subr.bf16.mxu0 0
    %11512 = vmatpush1.bf16.msra.mxu0 %v9447
    %11513 = vmatprep.subr.bf16.mxu0 0
    %11514 = vmatpush1.bf16.msra.mxu0 %v9440
    %11515 = vmatprep.subr.bf16.mxu0 0
    %11516 = vmatpush1.bf16.msra.mxu0 %v9433
    %11517 = vmatprep.subr.bf16.mxu0 0
    %11518 = vmatpush1.bf16.msra.mxu0 %v9426
    %11519 = vmatprep.subr.bf16.mxu0 0
    %11520 = vmatpush1.bf16.msra.mxu0 %v9419
    %11521 = vmatprep.subr.bf16.mxu0 0
    %11522 = vmatpush1.bf16.msra.mxu0 %v9412
    %11523 = vmatprep.subr.bf16.mxu0 0
    %11524 = vmatpush2.bf16.msra.mxu0 %v9517
    %11525 = vmatprep.subr.bf16.mxu0 0
    %11526 = vmatpush2.bf16.msra.mxu0 %v9510
    %11527 = vmatprep.subr.bf16.mxu0 0
    %11528 = vmatpush2.bf16.msra.mxu0 %v9503
    %11529 = vmatprep.subr.bf16.mxu0 0
    %11530 = vmatpush2.bf16.msra.mxu0 %v9496
    %11531 = vmatprep.subr.bf16.mxu0 0
    %11532 = vmatpush2.bf16.msra.mxu0 %v9489
    %11533 = vmatprep.subr.bf16.mxu0 0
    %11534 = vmatpush2.bf16.msra.mxu0 %v9482
    %11535 = vmatprep.subr.bf16.mxu0 0
    %11536 = vmatpush2.bf16.msra.mxu0 %v9475
    %11537 = vmatprep.subr.bf16.mxu0 0
    %11538 = vmatpush2.bf16.msra.mxu0 %v9468
    %11539 = vmatprep.mubr.bf16.mxu0 %v5907
    %11540 = vmatmul.mubr.bf16.gmra.mxu0 %v5906
    %v11541 = vpop.f32.mrf.mxu0
    %v11542 = vadd.f32 %v11502, %v11541
    %v11543 = vpop.f32.mrf.mxu0
    %v11544 = vpop.f32.mrf.mxu0
    %v11545 = vpop.f32.mrf.mxu0
    %11546 = vdwg.mxu0
    %11547 = vmatprep.subr.bf16.mxu0 0
    %11548 = vmatpush1.bf16.msra.mxu0 %v9573
    %11549 = vmatprep.subr.bf16.mxu0 0
    %11550 = vmatpush1.bf16.msra.mxu0 %v9566
    %11551 = vmatprep.subr.bf16.mxu0 0
    %11552 = vmatpush1.bf16.msra.mxu0 %v9559
    %11553 = vmatprep.subr.bf16.mxu0 0
    %11554 = vmatpush1.bf16.msra.mxu0 %v9552
    %11555 = vmatprep.subr.bf16.mxu0 0
    %11556 = vmatpush1.bf16.msra.mxu0 %v9545
    %11557 = vmatprep.subr.bf16.mxu0 0
    %11558 = vmatpush1.bf16.msra.mxu0 %v9538
    %11559 = vmatprep.subr.bf16.mxu0 0
    %11560 = vmatpush1.bf16.msra.mxu0 %v9531
    %11561 = vmatprep.subr.bf16.mxu0 0
    %11562 = vmatpush1.bf16.msra.mxu0 %v9524
    %11563 = vmatprep.subr.bf16.mxu0 0
    %11564 = vmatpush2.bf16.msra.mxu0 %v9629
    %11565 = vmatprep.subr.bf16.mxu0 0
    %11566 = vmatpush2.bf16.msra.mxu0 %v9622
    %11567 = vmatprep.subr.bf16.mxu0 0
    %11568 = vmatpush2.bf16.msra.mxu0 %v9615
    %11569 = vmatprep.subr.bf16.mxu0 0
    %11570 = vmatpush2.bf16.msra.mxu0 %v9608
    %11571 = vmatprep.subr.bf16.mxu0 0
    %11572 = vmatpush2.bf16.msra.mxu0 %v9601
    %11573 = vmatprep.subr.bf16.mxu0 0
    %11574 = vmatpush2.bf16.msra.mxu0 %v9594
    %11575 = vmatprep.subr.bf16.mxu0 0
    %11576 = vmatpush2.bf16.msra.mxu0 %v9587
    %11577 = vmatprep.subr.bf16.mxu0 0
    %11578 = vmatpush2.bf16.msra.mxu0 %v9580
    %11579 = vmatprep.mubr.bf16.mxu0 %v5909
    %11580 = vmatmul.mubr.bf16.gmra.mxu0 %v5908
    %v11581 = vpop.f32.mrf.mxu0
    %v11582 = vadd.f32 %v11542, %v11581
    %v11583 = vpop.f32.mrf.mxu0
    %v11584 = vpop.f32.mrf.mxu0
    %v11585 = vpop.f32.mrf.mxu0
    %11586 = vdwg.mxu0
    %11587 = vmatprep.subr.bf16.mxu0 0
    %11588 = vmatpush1.bf16.msra.mxu0 %v9685
    %11589 = vmatprep.subr.bf16.mxu0 0
    %11590 = vmatpush1.bf16.msra.mxu0 %v9678
    %11591 = vmatprep.subr.bf16.mxu0 0
    %11592 = vmatpush1.bf16.msra.mxu0 %v9671
    %11593 = vmatprep.subr.bf16.mxu0 0
    %11594 = vmatpush1.bf16.msra.mxu0 %v9664
    %11595 = vmatprep.subr.bf16.mxu0 0
    %11596 = vmatpush1.bf16.msra.mxu0 %v9657
    %11597 = vmatprep.subr.bf16.mxu0 0
    %11598 = vmatpush1.bf16.msra.mxu0 %v9650
    %11599 = vmatprep.subr.bf16.mxu0 0
    %11600 = vmatpush1.bf16.msra.mxu0 %v9643
    %11601 = vmatprep.subr.bf16.mxu0 0
    %11602 = vmatpush1.bf16.msra.mxu0 %v9636
    %11603 = vmatprep.subr.bf16.mxu0 0
    %11604 = vmatpush2.bf16.msra.mxu0 %v9741
    %11605 = vmatprep.subr.bf16.mxu0 0
    %11606 = vmatpush2.bf16.msra.mxu0 %v9734
    %11607 = vmatprep.subr.bf16.mxu0 0
    %11608 = vmatpush2.bf16.msra.mxu0 %v9727
    %11609 = vmatprep.subr.bf16.mxu0 0
    %11610 = vmatpush2.bf16.msra.mxu0 %v9720
    %11611 = vmatprep.subr.bf16.mxu0 0
    %11612 = vmatpush2.bf16.msra.mxu0 %v9713
    %11613 = vmatprep.subr.bf16.mxu0 0
    %11614 = vmatpush2.bf16.msra.mxu0 %v9706
    %11615 = vmatprep.subr.bf16.mxu0 0
    %11616 = vmatpush2.bf16.msra.mxu0 %v9699
    %11617 = vmatprep.subr.bf16.mxu0 0
    %11618 = vmatpush2.bf16.msra.mxu0 %v9692
    %11619 = vmatprep.mubr.bf16.mxu0 %v5911
    %11620 = vmatmul.mubr.bf16.gmra.mxu0 %v5910
    %v11621 = vpop.f32.mrf.mxu0
    %v11622 = vadd.f32 %v11582, %v11621
    %v11623 = vpop.f32.mrf.mxu0
    %v11624 = vpop.f32.mrf.mxu0
    %v11625 = vpop.f32.mrf.mxu0
    %11626 = vdwg.mxu0
    %11627 = vmatprep.subr.bf16.mxu0 0
    %11628 = vmatpush1.bf16.msra.mxu0 %v9797
    %11629 = vmatprep.subr.bf16.mxu0 0
    %11630 = vmatpush1.bf16.msra.mxu0 %v9790
    %11631 = vmatprep.subr.bf16.mxu0 0
    %11632 = vmatpush1.bf16.msra.mxu0 %v9783
    %11633 = vmatprep.subr.bf16.mxu0 0
    %11634 = vmatpush1.bf16.msra.mxu0 %v9776
    %11635 = vmatprep.subr.bf16.mxu0 0
    %11636 = vmatpush1.bf16.msra.mxu0 %v9769
    %11637 = vmatprep.subr.bf16.mxu0 0
    %11638 = vmatpush1.bf16.msra.mxu0 %v9762
    %11639 = vmatprep.subr.bf16.mxu0 0
    %11640 = vmatpush1.bf16.msra.mxu0 %v9755
    %11641 = vmatprep.subr.bf16.mxu0 0
    %11642 = vmatpush1.bf16.msra.mxu0 %v9748
    %11643 = vmatprep.subr.bf16.mxu0 0
    %11644 = vmatpush2.bf16.msra.mxu0 0
    %11645 = vmatprep.subr.bf16.mxu0 0
    %11646 = vmatpush2.bf16.msra.mxu0 0
    %11647 = vmatprep.subr.bf16.mxu0 0
    %11648 = vmatpush2.bf16.msra.mxu0 0
    %11649 = vmatprep.subr.bf16.mxu0 0
    %11650 = vmatpush2.bf16.msra.mxu0 0
    %11651 = vmatprep.subr.bf16.mxu0 0
    %11652 = vmatpush2.bf16.msra.mxu0 0
    %11653 = vmatprep.subr.bf16.mxu0 0
    %11654 = vmatpush2.bf16.msra.mxu0 0
    %11655 = vmatprep.subr.bf16.mxu0 0
    %11656 = vmatpush2.bf16.msra.mxu0 0
    %11657 = vmatprep.subr.bf16.mxu0 0
    %11658 = vmatpush2.bf16.msra.mxu0 0
    %11659 = vmatprep.mubr.bf16.mxu0 0
    %11660 = vmatmul.mubr.bf16.gmra.mxu0 %v5912
    %v11661 = vpop.f32.mrf.mxu0
    %v11662 = vadd.f32 %v11622, %v11661
    %v11663 = vpop.f32.mrf.mxu0
    %v11664 = vpop.f32.mrf.mxu0
    %v11665 = vpop.f32.mrf.mxu0
    %11666 = vdwg.mxu0
    %v11667 = vmax.f32 %v10807, 0.0
    %v11668 = vmax.f32 %v10809, 0.0
    %v11669 = vmax.f32 %v11094, 0.0
    %v11670 = vmax.f32 %v11096, 0.0
    %v11671 = vmax.f32 %v11381, 0.0
    %v11672 = vmax.f32 %v11383, 0.0
    %v11673 = vmax.f32 %v11662, 0.0
    %v11674 = vpack.c.bf16 %v11667, %v11667
    %v11675 = vpack.c.bf16 %v11668, %v11668
    %v11676 = vpack.c.bf16 %v11669, %v11669
    %v11677 = vpack.c.bf16 %v11670, %v11670
    %v11678 = vpack.c.bf16 %v11671, %v11671
    %v11679 = vpack.c.bf16 %v11672, %v11672
    %v11680 = vpack.c.bf16 %v11673, %v11673
    %v11681 = vld [vmem:[#allocation9] sm:$0xff]
    %v11682 = vld [vmem:[#allocation9 + $0x8] sm:$0xf]
    %v11683 = vld [vmem:[#allocation9 + $0xc] sm:$0xff]
    %v11684 = vld [vmem:[#allocation9 + $0x14] sm:$0xf]
    %v11685 = vld [vmem:[#allocation9 + $0x18] sm:$0xff]
    %v11686 = vld [vmem:[#allocation9 + $0x20] sm:$0xf]
    %v11687 = vld [vmem:[#allocation9 + $0x24] sm:$0xff]
    %v11688 = vld [vmem:[#allocation9 + $0x2c] sm:$0xf]
    %v11689 = vld [vmem:[#allocation9 + $0x30] sm:$0xff]
    %v11690 = vld [vmem:[#allocation9 + $0x38] sm:$0xf]
    %v11691 = vld [vmem:[#allocation9 + $0x3c] sm:$0xff]
    %v11692 = vld [vmem:[#allocation9 + $0x44] sm:$0xf]
    %v11693 = vld [vmem:[#allocation9 + $0x48] sm:$0xff]
    %v11694 = vld [vmem:[#allocation9 + $0x50] sm:$0xf]
    %v11695 = vld [vmem:[#allocation9 + $0x54] sm:$0xff]
    %v11696 = vld [vmem:[#allocation9 + $0x5c] sm:$0xf]
    %v11697 = vld [vmem:[#allocation9 + $0x60] sm:$0xff]
    %v11698 = vld [vmem:[#allocation9 + $0x68] sm:$0xf]
    %v11699 = vld [vmem:[#allocation9 + $0x6c] sm:$0xff]
    %v11700 = vld [vmem:[#allocation9 + $0x74] sm:$0xf]
    %v11701 = vld [vmem:[#allocation9 + $0x78] sm:$0xff]
    %v11702 = vld [vmem:[#allocation9 + $0x80] sm:$0xf]
    %v11703 = vld [vmem:[#allocation9 + $0x84] sm:$0xff]
    %v11704 = vld [vmem:[#allocation9 + $0x8c] sm:$0xf]
    %v11705 = vld [vmem:[#allocation9 + $0x90] sm:$0xff]
    %v11706 = vld [vmem:[#allocation9 + $0x98] sm:$0xf]
    %v11707 = vld [vmem:[#allocation9 + $0x9c] sm:$0xff]
    %v11708 = vld [vmem:[#allocation9 + $0xa4] sm:$0xf]
    %v11709 = vld [vmem:[#allocation9 + $0xa8] sm:$0xff]
    %v11710 = vld [vmem:[#allocation9 + $0xb0] sm:$0xf]
    %v11711 = vld [vmem:[#allocation9 + $0xb4] sm:$0xff]
    %v11712 = vld [vmem:[#allocation9 + $0xbc] sm:$0xf]
    %v11713 = vld [vmem:[#allocation9 + $0xc0] sm:$0xff]
    %v11714 = vld [vmem:[#allocation9 + $0xc8] sm:$0xf]
    %v11715 = vld [vmem:[#allocation9 + $0xcc] sm:$0xff]
    %v11716 = vld [vmem:[#allocation9 + $0xd4] sm:$0xf]
    %v11717 = vld [vmem:[#allocation9 + $0xd8] sm:$0xff]
    %v11718 = vld [vmem:[#allocation9 + $0xe0] sm:$0xf]
    %v11719 = vld [vmem:[#allocation9 + $0xe4] sm:$0xff]
    %v11720 = vld [vmem:[#allocation9 + $0xec] sm:$0xf]
    %v11721 = vld [vmem:[#allocation9 + $0xf0] sm:$0xff]
    %v11722 = vld [vmem:[#allocation9 + $0xf8] sm:$0xf]
    %v11723 = vld [vmem:[#allocation9 + $0xfc] sm:$0xff]
    %v11724 = vld [vmem:[#allocation9 + $0x104] sm:$0xf]
    %v11725 = vld [vmem:[#allocation9 + $0x108] sm:$0xff]
    %v11726 = vld [vmem:[#allocation9 + $0x110] sm:$0xf]
    %v11727 = vld [vmem:[#allocation9 + $0x114] sm:$0xff]
    %v11728 = vld [vmem:[#allocation9 + $0x11c] sm:$0xf]
    %v11729 = vld [vmem:[#allocation9 + $0x120] sm:$0xff]
    %v11730 = vld [vmem:[#allocation9 + $0x128] sm:$0xf]
    %v11731 = vld [vmem:[#allocation9 + $0x12c] sm:$0xff]
    %v11732 = vld [vmem:[#allocation9 + $0x134] sm:$0xf]
    %v11733 = vld [vmem:[#allocation9 + $0x138] sm:$0xff]
    %v11734 = vld [vmem:[#allocation9 + $0x140] sm:$0xf]
    %v11735 = vld [vmem:[#allocation9 + $0x144] sm:$0xff]
    %v11736 = vld [vmem:[#allocation9 + $0x14c] sm:$0xf]
    %v11737 = vld [vmem:[#allocation9 + $0x150] sm:$0xff]
    %v11738 = vld [vmem:[#allocation9 + $0x158] sm:$0xf]
    %v11739 = vld [vmem:[#allocation9 + $0x15c] sm:$0xff]
    %v11740 = vld [vmem:[#allocation9 + $0x164] sm:$0xf]
    %v11741 = vld [vmem:[#allocation9 + $0x168] sm:$0xff]
    %v11742 = vld [vmem:[#allocation9 + $0x170] sm:$0xf]
    %v11743 = vld [vmem:[#allocation9 + $0x174] sm:$0xff]
    %v11744 = vld [vmem:[#allocation9 + $0x17c] sm:$0xf]
    %v11745 = vld [vmem:[#allocation9 + $0x180] sm:$0xff]
    %v11746 = vld [vmem:[#allocation9 + $0x188] sm:$0xf]
    %v11747 = vld [vmem:[#allocation9 + $0x18c] sm:$0xff]
    %v11748 = vld [vmem:[#allocation9 + $0x194] sm:$0xf]
    %v11749 = vld [vmem:[#allocation9 + $0x198] sm:$0xff]
    %v11750 = vld [vmem:[#allocation9 + $0x1a0] sm:$0xf]
    %v11751 = vld [vmem:[#allocation9 + $0x1a4] sm:$0xff]
    %v11752 = vld [vmem:[#allocation9 + $0x1ac] sm:$0xf]
    %v11753 = vld [vmem:[#allocation9 + $0x1b0] sm:$0xff]
    %v11754 = vld [vmem:[#allocation9 + $0x1b8] sm:$0xf]
    %v11755 = vld [vmem:[#allocation9 + $0x1bc] sm:$0xff]
    %v11756 = vld [vmem:[#allocation9 + $0x1c4] sm:$0xf]
    %v11757 = vld [vmem:[#allocation9 + $0x1c8] sm:$0xff]
    %v11758 = vld [vmem:[#allocation9 + $0x1d0] sm:$0xf]
    %v11759 = vld [vmem:[#allocation9 + $0x1d4] sm:$0xff]
    %v11760 = vld [vmem:[#allocation9 + $0x1dc] sm:$0xf]
    %v11761 = vld [vmem:[#allocation9 + $0x1e0] sm:$0xff]
    %v11762 = vld [vmem:[#allocation9 + $0x1e8] sm:$0xf]
    %v11763 = vld [vmem:[#allocation9 + $0x1ec] sm:$0xff]
    %v11764 = vld [vmem:[#allocation9 + $0x1f4] sm:$0xf]
    %v11765 = vld [vmem:[#allocation9 + $0x1f8] sm:$0xff]
    %v11766 = vld [vmem:[#allocation9 + $0x200] sm:$0xf]
    %v11767 = vld [vmem:[#allocation9 + $0x204] sm:$0xff]
    %v11768 = vld [vmem:[#allocation9 + $0x20c] sm:$0xf]
    %v11769 = vld [vmem:[#allocation9 + $0x210] sm:$0xff]
    %v11770 = vld [vmem:[#allocation9 + $0x218] sm:$0xf]
    %v11771 = vld [vmem:[#allocation9 + $0x21c] sm:$0xff]
    %v11772 = vld [vmem:[#allocation9 + $0x224] sm:$0xf]
    %v11773 = vld [vmem:[#allocation9 + $0x228] sm:$0xff]
    %v11774 = vld [vmem:[#allocation9 + $0x230] sm:$0xf]
    %v11775 = vld [vmem:[#allocation9 + $0x234] sm:$0xff]
    %v11776 = vld [vmem:[#allocation9 + $0x23c] sm:$0xf]
    %v11777 = vld [vmem:[#allocation9 + $0x240] sm:$0xff]
    %v11778 = vld [vmem:[#allocation9 + $0x248] sm:$0xf]
    %v11779 = vld [vmem:[#allocation9 + $0x24c] sm:$0xff]
    %v11780 = vld [vmem:[#allocation9 + $0x254] sm:$0xf]
    %v11781 = vld [vmem:[#allocation9 + $0x258] sm:$0xff]
    %v11782 = vld [vmem:[#allocation9 + $0x260] sm:$0xf]
    %v11783 = vld [vmem:[#allocation9 + $0x264] sm:$0xff]
    %v11784 = vld [vmem:[#allocation9 + $0x26c] sm:$0xf]
    %v11785 = vld [vmem:[#allocation9 + $0x270] sm:$0xff]
    %v11786 = vld [vmem:[#allocation9 + $0x278] sm:$0xf]
    %v11787 = vld [vmem:[#allocation9 + $0x27c] sm:$0xff]
    %v11788 = vld [vmem:[#allocation9 + $0x284] sm:$0xf]
    %v11789 = vld [vmem:[#allocation9 + $0x288] sm:$0xff]
    %v11790 = vld [vmem:[#allocation9 + $0x290] sm:$0xf]
    %v11791 = vld [vmem:[#allocation9 + $0x294] sm:$0xff]
    %v11792 = vld [vmem:[#allocation9 + $0x29c] sm:$0xf]
    %v11793 = vld [vmem:[#allocation9 + $0x2a0] sm:$0xff]
    %v11794 = vld [vmem:[#allocation9 + $0x2a8] sm:$0xf]
    %v11795 = vld [vmem:[#allocation9 + $0x2ac] sm:$0xff]
    %v11796 = vld [vmem:[#allocation9 + $0x2b4] sm:$0xf]
    %v11797 = vld [vmem:[#allocation9 + $0x2b8] sm:$0xff]
    %v11798 = vld [vmem:[#allocation9 + $0x2c0] sm:$0xf]
    %v11799 = vld [vmem:[#allocation9 + $0x2c4] sm:$0xff]
    %v11800 = vld [vmem:[#allocation9 + $0x2cc] sm:$0xf]
    %v11801 = vld [vmem:[#allocation9 + $0x2d0] sm:$0xff]
    %v11802 = vld [vmem:[#allocation9 + $0x2d8] sm:$0xf]
    %v11803 = vld [vmem:[#allocation9 + $0x2dc] sm:$0xff]
    %v11804 = vld [vmem:[#allocation9 + $0x2e4] sm:$0xf]
    %v11805 = vld [vmem:[#allocation9 + $0x2e8] sm:$0xff]
    %v11806 = vld [vmem:[#allocation9 + $0x2f0] sm:$0xf]
    %v11807 = vld [vmem:[#allocation9 + $0x2f4] sm:$0xff]
    %v11808 = vld [vmem:[#allocation9 + $0x2fc] sm:$0xf]
    %v11809 = vld [vmem:[#allocation9 + $0x300] sm:$0xff]
    %v11810 = vld [vmem:[#allocation9 + $0x308] sm:$0xf]
    %v11811 = vld [vmem:[#allocation9 + $0x30c] sm:$0xff]
    %v11812 = vld [vmem:[#allocation9 + $0x314] sm:$0xf]
    %v11813 = vld [vmem:[#allocation9 + $0x318] sm:$0xff]
    %v11814 = vld [vmem:[#allocation9 + $0x320] sm:$0xf]
    %v11815 = vld [vmem:[#allocation9 + $0x324] sm:$0xff]
    %v11816 = vld [vmem:[#allocation9 + $0x32c] sm:$0xf]
    %v11817 = vld [vmem:[#allocation9 + $0x330] sm:$0xff]
    %v11818 = vld [vmem:[#allocation9 + $0x338] sm:$0xf]
    %v11819 = vld [vmem:[#allocation9 + $0x33c] sm:$0xff]
    %v11820 = vld [vmem:[#allocation9 + $0x344] sm:$0xf]
    %v11821 = vld [vmem:[#allocation9 + $0x348] sm:$0xff]
    %v11822 = vld [vmem:[#allocation9 + $0x350] sm:$0xf]
    %v11823 = vld [vmem:[#allocation9 + $0x354] sm:$0xff]
    %v11824 = vld [vmem:[#allocation9 + $0x35c] sm:$0xf]
    %v11825 = vld [vmem:[#allocation9 + $0x360] sm:$0xff]
    %v11826 = vld [vmem:[#allocation9 + $0x368] sm:$0xf]
    %v11827 = vld [vmem:[#allocation9 + $0x36c] sm:$0xff]
    %v11828 = vld [vmem:[#allocation9 + $0x374] sm:$0xf]
    %v11829 = vld [vmem:[#allocation9 + $0x378] sm:$0xff]
    %v11830 = vld [vmem:[#allocation9 + $0x380] sm:$0xf]
    %v11831 = vld [vmem:[#allocation9 + $0x384] sm:$0xff]
    %v11832 = vld [vmem:[#allocation9 + $0x38c] sm:$0xf]
    %v11833 = vld [vmem:[#allocation9 + $0x390] sm:$0xff]
    %v11834 = vld [vmem:[#allocation9 + $0x398] sm:$0xf]
    %v11835 = vld [vmem:[#allocation9 + $0x39c] sm:$0xff]
    %v11836 = vld [vmem:[#allocation9 + $0x3a4] sm:$0xf]
    %v11837 = vld [vmem:[#allocation9 + $0x3a8] sm:$0xff]
    %v11838 = vld [vmem:[#allocation9 + $0x3b0] sm:$0xf]
    %v11839 = vld [vmem:[#allocation9 + $0x3b4] sm:$0xff]
    %v11840 = vld [vmem:[#allocation9 + $0x3bc] sm:$0xf]
    %v11841 = vld [vmem:[#allocation9 + $0x3c0] sm:$0xff]
    %v11842 = vld [vmem:[#allocation9 + $0x3c8] sm:$0xf]
    %v11843 = vld [vmem:[#allocation9 + $0x3cc] sm:$0xff]
    %v11844 = vld [vmem:[#allocation9 + $0x3d4] sm:$0xf]
    %v11845 = vld [vmem:[#allocation9 + $0x3d8] sm:$0xff]
    %v11846 = vld [vmem:[#allocation9 + $0x3e0] sm:$0xf]
    %v11847 = vld [vmem:[#allocation9 + $0x3e4] sm:$0xff]
    %v11848 = vld [vmem:[#allocation9 + $0x3ec] sm:$0xf]
    %v11849 = vld [vmem:[#allocation9 + $0x3f0] sm:$0xff]
    %v11850 = vld [vmem:[#allocation9 + $0x3f8] sm:$0xf]
    %v11851 = vld [vmem:[#allocation9 + $0x3fc] sm:$0xff]
    %v11852 = vld [vmem:[#allocation9 + $0x404] sm:$0xf]
    %v11853 = vld [vmem:[#allocation9 + $0x408] sm:$0xff]
    %v11854 = vld [vmem:[#allocation9 + $0x410] sm:$0xf]
    %v11855 = vld [vmem:[#allocation9 + $0x414] sm:$0xff]
    %v11856 = vld [vmem:[#allocation9 + $0x41c] sm:$0xf]
    %v11857 = vld [vmem:[#allocation9 + $0x420] sm:$0xff]
    %v11858 = vld [vmem:[#allocation9 + $0x428] sm:$0xf]
    %v11859 = vld [vmem:[#allocation9 + $0x42c] sm:$0xff]
    %v11860 = vld [vmem:[#allocation9 + $0x434] sm:$0xf]
    %v11861 = vld [vmem:[#allocation9 + $0x438] sm:$0xff]
    %v11862 = vld [vmem:[#allocation9 + $0x440] sm:$0xf]
    %v11863 = vld [vmem:[#allocation9 + $0x444] sm:$0xff]
    %v11864 = vld [vmem:[#allocation9 + $0x44c] sm:$0xf]
    %v11865 = vld [vmem:[#allocation9 + $0x450] sm:$0xff]
    %v11866 = vld [vmem:[#allocation9 + $0x458] sm:$0xf]
    %v11867 = vld [vmem:[#allocation9 + $0x45c] sm:$0xff]
    %v11868 = vld [vmem:[#allocation9 + $0x464] sm:$0xf]
    %v11869 = vld [vmem:[#allocation9 + $0x468] sm:$0xff]
    %v11870 = vld [vmem:[#allocation9 + $0x470] sm:$0xf]
    %v11871 = vld [vmem:[#allocation9 + $0x474] sm:$0xff]
    %v11872 = vld [vmem:[#allocation9 + $0x47c] sm:$0xf]
    %v11873 = vld [vmem:[#allocation9 + $0x480] sm:$0xff]
    %v11874 = vld [vmem:[#allocation9 + $0x488] sm:$0xf]
    %v11875 = vld [vmem:[#allocation9 + $0x48c] sm:$0xff]
    %v11876 = vld [vmem:[#allocation9 + $0x494] sm:$0xf]
    %v11877 = vld [vmem:[#allocation9 + $0x498] sm:$0xff]
    %v11878 = vld [vmem:[#allocation9 + $0x4a0] sm:$0xf]
    %v11879 = vld [vmem:[#allocation9 + $0x4a4] sm:$0xff]
    %v11880 = vld [vmem:[#allocation9 + $0x4ac] sm:$0xf]
    %v11881 = vld [vmem:[#allocation9 + $0x4b0] sm:$0xff]
    %v11882 = vld [vmem:[#allocation9 + $0x4b8] sm:$0xf]
    %v11883 = vld [vmem:[#allocation9 + $0x4bc] sm:$0xff]
    %v11884 = vld [vmem:[#allocation9 + $0x4c4] sm:$0xf]
    %v11885 = vld [vmem:[#allocation9 + $0x4c8] sm:$0xff]
    %v11886 = vld [vmem:[#allocation9 + $0x4d0] sm:$0xf]
    %v11887 = vld [vmem:[#allocation9 + $0x4d4] sm:$0xff]
    %v11888 = vld [vmem:[#allocation9 + $0x4dc] sm:$0xf]
    %v11889 = vld [vmem:[#allocation9 + $0x4e0] sm:$0xff]
    %v11890 = vld [vmem:[#allocation9 + $0x4e8] sm:$0xf]
    %v11891 = vld [vmem:[#allocation9 + $0x4ec] sm:$0xff]
    %v11892 = vld [vmem:[#allocation9 + $0x4f4] sm:$0xf]
    %v11893 = vld [vmem:[#allocation9 + $0x4f8] sm:$0xff]
    %v11894 = vld [vmem:[#allocation9 + $0x500] sm:$0xf]
    %v11895 = vld [vmem:[#allocation9 + $0x504] sm:$0xff]
    %v11896 = vld [vmem:[#allocation9 + $0x50c] sm:$0xf]
    %v11897 = vld [vmem:[#allocation9 + $0x510] sm:$0xff]
    %v11898 = vld [vmem:[#allocation9 + $0x518] sm:$0xf]
    %v11899 = vld [vmem:[#allocation9 + $0x51c] sm:$0xff]
    %v11900 = vld [vmem:[#allocation9 + $0x524] sm:$0xf]
    %v11901 = vld [vmem:[#allocation9 + $0x528] sm:$0xff]
    %v11902 = vld [vmem:[#allocation9 + $0x530] sm:$0xf]
    %v11903 = vld [vmem:[#allocation9 + $0x534] sm:$0xff]
    %v11904 = vld [vmem:[#allocation9 + $0x53c] sm:$0xf]
    %v11905 = vld [vmem:[#allocation10] sm:$0x7]
    %v11907 = vlaneseq
    %v11908 = vshrl.u32 %v11907, 7
    %v11909 = vsub.s32 0, %v11908
    %v11910 = vrot.slane %v11905, %v11909
    %v11911 = vlaneseq
    %v11912 = vshrl.u32 %v11911, 7
    %v11913 = vsub.s32 1, %v11912
    %v11914 = vrot.slane %v11905, %v11913
    %v11915 = vlaneseq
    %v11916 = vshrl.u32 %v11915, 7
    %v11917 = vsub.s32 2, %v11916
    %v11918 = vrot.slane %v11905, %v11917
    %v12146 = vunpack.c.l.b16 %v11681
    %v12147 = vunpack.c.h.b16 %v11681
    %v12148 = vunpack.c.l.b16 %v11682
    %v12149 = vunpack.c.l.b16 %v11683
    %v12150 = vunpack.c.h.b16 %v11683
    %v12151 = vunpack.c.l.b16 %v11684
    %v12152 = vunpack.c.l.b16 %v11685
    %v12153 = vunpack.c.h.b16 %v11685
    %v12154 = vunpack.c.l.b16 %v11686
    %v12155 = vunpack.c.l.b16 %v11687
    %v12156 = vunpack.c.h.b16 %v11687
    %v12157 = vunpack.c.l.b16 %v11688
    %v12158 = vunpack.c.l.b16 %v11689
    %v12159 = vunpack.c.h.b16 %v11689
    %v12160 = vunpack.c.l.b16 %v11690
    %v12161 = vunpack.c.l.b16 %v11691
    %v12162 = vunpack.c.h.b16 %v11691
    %v12163 = vunpack.c.l.b16 %v11692
    %v12164 = vunpack.c.l.b16 %v11693
    %v12165 = vunpack.c.h.b16 %v11693
    %v12166 = vunpack.c.l.b16 %v11694
    %v12167 = vunpack.c.l.b16 %v11695
    %v12168 = vunpack.c.h.b16 %v11695
    %v12169 = vunpack.c.l.b16 %v11696
    %v12170 = vunpack.c.l.b16 %v11697
    %v12171 = vunpack.c.h.b16 %v11697
    %v12172 = vunpack.c.l.b16 %v11698
    %v12173 = vunpack.c.l.b16 %v11699
    %v12174 = vunpack.c.h.b16 %v11699
    %v12175 = vunpack.c.l.b16 %v11700
    %v12176 = vunpack.c.l.b16 %v11701
    %v12177 = vunpack.c.h.b16 %v11701
    %v12178 = vunpack.c.l.b16 %v11702
    %v12179 = vunpack.c.l.b16 %v11703
    %v12180 = vunpack.c.h.b16 %v11703
    %v12181 = vunpack.c.l.b16 %v11704
    %v12182 = vunpack.c.l.b16 %v11705
    %v12183 = vunpack.c.h.b16 %v11705
    %v12184 = vunpack.c.l.b16 %v11706
    %v12185 = vunpack.c.l.b16 %v11707
    %v12186 = vunpack.c.h.b16 %v11707
    %v12187 = vunpack.c.l.b16 %v11708
    %v12188 = vunpack.c.l.b16 %v11709
    %v12189 = vunpack.c.h.b16 %v11709
    %v12190 = vunpack.c.l.b16 %v11710
    %v12191 = vunpack.c.l.b16 %v11711
    %v12192 = vunpack.c.h.b16 %v11711
    %v12193 = vunpack.c.l.b16 %v11712
    %v12194 = vunpack.c.l.b16 %v11713
    %v12195 = vunpack.c.h.b16 %v11713
    %v12196 = vunpack.c.l.b16 %v11714
    %v12197 = vunpack.c.l.b16 %v11715
    %v12198 = vunpack.c.h.b16 %v11715
    %v12199 = vunpack.c.l.b16 %v11716
    %v12200 = vunpack.c.l.b16 %v11717
    %v12201 = vunpack.c.h.b16 %v11717
    %v12202 = vunpack.c.l.b16 %v11718
    %v12203 = vunpack.c.l.b16 %v11719
    %v12204 = vunpack.c.h.b16 %v11719
    %v12205 = vunpack.c.l.b16 %v11720
    %v12206 = vunpack.c.l.b16 %v11721
    %v12207 = vunpack.c.h.b16 %v11721
    %v12208 = vunpack.c.l.b16 %v11722
    %v12209 = vunpack.c.l.b16 %v11723
    %v12210 = vunpack.c.h.b16 %v11723
    %v12211 = vunpack.c.l.b16 %v11724
    %v12212 = vunpack.c.l.b16 %v11725
    %v12213 = vunpack.c.h.b16 %v11725
    %v12214 = vunpack.c.l.b16 %v11726
    %v12215 = vunpack.c.l.b16 %v11727
    %v12216 = vunpack.c.h.b16 %v11727
    %v12217 = vunpack.c.l.b16 %v11728
    %v12218 = vunpack.c.l.b16 %v11729
    %v12219 = vunpack.c.h.b16 %v11729
    %v12220 = vunpack.c.l.b16 %v11730
    %v12221 = vunpack.c.l.b16 %v11731
    %v12222 = vunpack.c.h.b16 %v11731
    %v12223 = vunpack.c.l.b16 %v11732
    %v12224 = vunpack.c.l.b16 %v11733
    %v12225 = vunpack.c.h.b16 %v11733
    %v12226 = vunpack.c.l.b16 %v11734
    %v12227 = vunpack.c.l.b16 %v11735
    %v12228 = vunpack.c.h.b16 %v11735
    %v12229 = vunpack.c.l.b16 %v11736
    %v12230 = vunpack.c.l.b16 %v11737
    %v12231 = vunpack.c.h.b16 %v11737
    %v12232 = vunpack.c.l.b16 %v11738
    %v12233 = vunpack.c.l.b16 %v11739
    %v12234 = vunpack.c.h.b16 %v11739
    %v12235 = vunpack.c.l.b16 %v11740
    %v12236 = vunpack.c.l.b16 %v11741
    %v12237 = vunpack.c.h.b16 %v11741
    %v12238 = vunpack.c.l.b16 %v11742
    %v12239 = vunpack.c.l.b16 %v11743
    %v12240 = vunpack.c.h.b16 %v11743
    %v12241 = vunpack.c.l.b16 %v11744
    %v12242 = vunpack.c.l.b16 %v11745
    %v12243 = vunpack.c.h.b16 %v11745
    %v12244 = vunpack.c.l.b16 %v11746
    %v12245 = vunpack.c.l.b16 %v11747
    %v12246 = vunpack.c.h.b16 %v11747
    %v12247 = vunpack.c.l.b16 %v11748
    %v12248 = vunpack.c.l.b16 %v11749
    %v12249 = vunpack.c.h.b16 %v11749
    %v12250 = vunpack.c.l.b16 %v11750
    %v12251 = vunpack.c.l.b16 %v11751
    %v12252 = vunpack.c.h.b16 %v11751
    %v12253 = vunpack.c.l.b16 %v11752
    %v12254 = vunpack.c.l.b16 %v11753
    %v12255 = vunpack.c.h.b16 %v11753
    %v12256 = vunpack.c.l.b16 %v11754
    %v12257 = vunpack.c.l.b16 %v11755
    %v12258 = vunpack.c.h.b16 %v11755
    %v12259 = vunpack.c.l.b16 %v11756
    %v12260 = vunpack.c.l.b16 %v11757
    %v12261 = vunpack.c.h.b16 %v11757
    %v12262 = vunpack.c.l.b16 %v11758
    %v12263 = vunpack.c.l.b16 %v11759
    %v12264 = vunpack.c.h.b16 %v11759
    %v12265 = vunpack.c.l.b16 %v11760
    %v12266 = vunpack.c.l.b16 %v11761
    %v12267 = vunpack.c.h.b16 %v11761
    %v12268 = vunpack.c.l.b16 %v11762
    %v12269 = vunpack.c.l.b16 %v11763
    %v12270 = vunpack.c.h.b16 %v11763
    %v12271 = vunpack.c.l.b16 %v11764
    %v12272 = vunpack.c.l.b16 %v11765
    %v12273 = vunpack.c.h.b16 %v11765
    %v12274 = vunpack.c.l.b16 %v11766
    %v12275 = vunpack.c.l.b16 %v11767
    %v12276 = vunpack.c.h.b16 %v11767
    %v12277 = vunpack.c.l.b16 %v11768
    %v12278 = vunpack.c.l.b16 %v11769
    %v12279 = vunpack.c.h.b16 %v11769
    %v12280 = vunpack.c.l.b16 %v11770
    %v12281 = vunpack.c.l.b16 %v11771
    %v12282 = vunpack.c.h.b16 %v11771
    %v12283 = vunpack.c.l.b16 %v11772
    %v12284 = vunpack.c.l.b16 %v11773
    %v12285 = vunpack.c.h.b16 %v11773
    %v12286 = vunpack.c.l.b16 %v11774
    %v12287 = vunpack.c.l.b16 %v11775
    %v12288 = vunpack.c.h.b16 %v11775
    %v12289 = vunpack.c.l.b16 %v11776
    %v12290 = vunpack.c.l.b16 %v11777
    %v12291 = vunpack.c.h.b16 %v11777
    %v12292 = vunpack.c.l.b16 %v11778
    %v12293 = vunpack.c.l.b16 %v11779
    %v12294 = vunpack.c.h.b16 %v11779
    %v12295 = vunpack.c.l.b16 %v11780
    %v12296 = vunpack.c.l.b16 %v11781
    %v12297 = vunpack.c.h.b16 %v11781
    %v12298 = vunpack.c.l.b16 %v11782
    %v12299 = vunpack.c.l.b16 %v11783
    %v12300 = vunpack.c.h.b16 %v11783
    %v12301 = vunpack.c.l.b16 %v11784
    %v12302 = vunpack.c.l.b16 %v11785
    %v12303 = vunpack.c.h.b16 %v11785
    %v12304 = vunpack.c.l.b16 %v11786
    %v12305 = vunpack.c.l.b16 %v11787
    %v12306 = vunpack.c.h.b16 %v11787
    %v12307 = vunpack.c.l.b16 %v11788
    %v12308 = vunpack.c.l.b16 %v11789
    %v12309 = vunpack.c.h.b16 %v11789
    %v12310 = vunpack.c.l.b16 %v11790
    %v12311 = vunpack.c.l.b16 %v11791
    %v12312 = vunpack.c.h.b16 %v11791
    %v12313 = vunpack.c.l.b16 %v11792
    %v12314 = vunpack.c.l.b16 %v11793
    %v12315 = vunpack.c.h.b16 %v11793
    %v12316 = vunpack.c.l.b16 %v11794
    %v12317 = vunpack.c.l.b16 %v11795
    %v12318 = vunpack.c.h.b16 %v11795
    %v12319 = vunpack.c.l.b16 %v11796
    %v12320 = vunpack.c.l.b16 %v11797
    %v12321 = vunpack.c.h.b16 %v11797
    %v12322 = vunpack.c.l.b16 %v11798
    %v12323 = vunpack.c.l.b16 %v11799
    %v12324 = vunpack.c.h.b16 %v11799
    %v12325 = vunpack.c.l.b16 %v11800
    %v12326 = vunpack.c.l.b16 %v11801
    %v12327 = vunpack.c.h.b16 %v11801
    %v12328 = vunpack.c.l.b16 %v11802
    %v12329 = vunpack.c.l.b16 %v11803
    %v12330 = vunpack.c.h.b16 %v11803
    %v12331 = vunpack.c.l.b16 %v11804
    %v12332 = vunpack.c.l.b16 %v11805
    %v12333 = vunpack.c.h.b16 %v11805
    %v12334 = vunpack.c.l.b16 %v11806
    %v12335 = vunpack.c.l.b16 %v11807
    %v12336 = vunpack.c.h.b16 %v11807
    %v12337 = vunpack.c.l.b16 %v11808
    %v12338 = vunpack.c.l.b16 %v11809
    %v12339 = vunpack.c.h.b16 %v11809
    %v12340 = vunpack.c.l.b16 %v11810
    %v12341 = vunpack.c.l.b16 %v11811
    %v12342 = vunpack.c.h.b16 %v11811
    %v12343 = vunpack.c.l.b16 %v11812
    %v12344 = vunpack.c.l.b16 %v11813
    %v12345 = vunpack.c.h.b16 %v11813
    %v12346 = vunpack.c.l.b16 %v11814
    %v12347 = vunpack.c.l.b16 %v11815
    %v12348 = vunpack.c.h.b16 %v11815
    %v12349 = vunpack.c.l.b16 %v11816
    %v12350 = vunpack.c.l.b16 %v11817
    %v12351 = vunpack.c.h.b16 %v11817
    %v12352 = vunpack.c.l.b16 %v11818
    %v12353 = vunpack.c.l.b16 %v11819
    %v12354 = vunpack.c.h.b16 %v11819
    %v12355 = vunpack.c.l.b16 %v11820
    %v12356 = vunpack.c.l.b16 %v11821
    %v12357 = vunpack.c.h.b16 %v11821
    %v12358 = vunpack.c.l.b16 %v11822
    %v12359 = vunpack.c.l.b16 %v11823
    %v12360 = vunpack.c.h.b16 %v11823
    %v12361 = vunpack.c.l.b16 %v11824
    %v12362 = vunpack.c.l.b16 %v11825
    %v12363 = vunpack.c.h.b16 %v11825
    %v12364 = vunpack.c.l.b16 %v11826
    %v12365 = vunpack.c.l.b16 %v11827
    %v12366 = vunpack.c.h.b16 %v11827
    %v12367 = vunpack.c.l.b16 %v11828
    %v12368 = vunpack.c.l.b16 %v11829
    %v12369 = vunpack.c.h.b16 %v11829
    %v12370 = vunpack.c.l.b16 %v11830
    %v12371 = vunpack.c.l.b16 %v11831
    %v12372 = vunpack.c.h.b16 %v11831
    %v12373 = vunpack.c.l.b16 %v11832
    %v12374 = vunpack.c.l.b16 %v11833
    %v12375 = vunpack.c.h.b16 %v11833
    %v12376 = vunpack.c.l.b16 %v11834
    %v12377 = vunpack.c.l.b16 %v11835
    %v12378 = vunpack.c.h.b16 %v11835
    %v12379 = vunpack.c.l.b16 %v11836
    %v12380 = vunpack.c.l.b16 %v11837
    %v12381 = vunpack.c.h.b16 %v11837
    %v12382 = vunpack.c.l.b16 %v11838
    %v12383 = vunpack.c.l.b16 %v11839
    %v12384 = vunpack.c.h.b16 %v11839
    %v12385 = vunpack.c.l.b16 %v11840
    %v12386 = vunpack.c.l.b16 %v11841
    %v12387 = vunpack.c.h.b16 %v11841
    %v12388 = vunpack.c.l.b16 %v11842
    %v12389 = vunpack.c.l.b16 %v11843
    %v12390 = vunpack.c.h.b16 %v11843
    %v12391 = vunpack.c.l.b16 %v11844
    %v12392 = vunpack.c.l.b16 %v11845
    %v12393 = vunpack.c.h.b16 %v11845
    %v12394 = vunpack.c.l.b16 %v11846
    %v12395 = vunpack.c.l.b16 %v11847
    %v12396 = vunpack.c.h.b16 %v11847
    %v12397 = vunpack.c.l.b16 %v11848
    %v12398 = vunpack.c.l.b16 %v11849
    %v12399 = vunpack.c.h.b16 %v11849
    %v12400 = vunpack.c.l.b16 %v11850
    %v12401 = vunpack.c.l.b16 %v11851
    %v12402 = vunpack.c.h.b16 %v11851
    %v12403 = vunpack.c.l.b16 %v11852
    %v12404 = vunpack.c.l.b16 %v11853
    %v12405 = vunpack.c.h.b16 %v11853
    %v12406 = vunpack.c.l.b16 %v11854
    %v12407 = vunpack.c.l.b16 %v11855
    %v12408 = vunpack.c.h.b16 %v11855
    %v12409 = vunpack.c.l.b16 %v11856
    %v12410 = vunpack.c.l.b16 %v11857
    %v12411 = vunpack.c.h.b16 %v11857
    %v12412 = vunpack.c.l.b16 %v11858
    %v12413 = vunpack.c.l.b16 %v11859
    %v12414 = vunpack.c.h.b16 %v11859
    %v12415 = vunpack.c.l.b16 %v11860
    %v12416 = vunpack.c.l.b16 %v11861
    %v12417 = vunpack.c.h.b16 %v11861
    %v12418 = vunpack.c.l.b16 %v11862
    %v12419 = vunpack.c.l.b16 %v11863
    %v12420 = vunpack.c.h.b16 %v11863
    %v12421 = vunpack.c.l.b16 %v11864
    %v12422 = vunpack.c.l.b16 %v11865
    %v12423 = vunpack.c.h.b16 %v11865
    %v12424 = vunpack.c.l.b16 %v11866
    %v12425 = vunpack.c.l.b16 %v11867
    %v12426 = vunpack.c.h.b16 %v11867
    %v12427 = vunpack.c.l.b16 %v11868
    %v12428 = vunpack.c.l.b16 %v11869
    %v12429 = vunpack.c.h.b16 %v11869
    %v12430 = vunpack.c.l.b16 %v11870
    %v12431 = vunpack.c.l.b16 %v11871
    %v12432 = vunpack.c.h.b16 %v11871
    %v12433 = vunpack.c.l.b16 %v11872
    %v12434 = vunpack.c.l.b16 %v11873
    %v12435 = vunpack.c.h.b16 %v11873
    %v12436 = vunpack.c.l.b16 %v11874
    %v12437 = vunpack.c.l.b16 %v11875
    %v12438 = vunpack.c.h.b16 %v11875
    %v12439 = vunpack.c.l.b16 %v11876
    %v12440 = vunpack.c.l.b16 %v11877
    %v12441 = vunpack.c.h.b16 %v11877
    %v12442 = vunpack.c.l.b16 %v11878
    %v12443 = vunpack.c.l.b16 %v11879
    %v12444 = vunpack.c.h.b16 %v11879
    %v12445 = vunpack.c.l.b16 %v11880
    %v12446 = vunpack.c.l.b16 %v11881
    %v12447 = vunpack.c.h.b16 %v11881
    %v12448 = vunpack.c.l.b16 %v11882
    %v12449 = vunpack.c.l.b16 %v11883
    %v12450 = vunpack.c.h.b16 %v11883
    %v12451 = vunpack.c.l.b16 %v11884
    %v12452 = vunpack.c.l.b16 %v11885
    %v12453 = vunpack.c.h.b16 %v11885
    %v12454 = vunpack.c.l.b16 %v11886
    %v12455 = vunpack.c.l.b16 %v11887
    %v12456 = vunpack.c.h.b16 %v11887
    %v12457 = vunpack.c.l.b16 %v11888
    %v12458 = vunpack.c.l.b16 %v11889
    %v12459 = vunpack.c.h.b16 %v11889
    %v12460 = vunpack.c.l.b16 %v11890
    %v12461 = vunpack.c.l.b16 %v11891
    %v12462 = vunpack.c.h.b16 %v11891
    %v12463 = vunpack.c.l.b16 %v11892
    %v12464 = vunpack.c.l.b16 %v11893
    %v12465 = vunpack.c.h.b16 %v11893
    %v12466 = vunpack.c.l.b16 %v11894
    %v12467 = vunpack.c.l.b16 %v11895
    %v12468 = vunpack.c.h.b16 %v11895
    %v12469 = vunpack.c.l.b16 %v11896
    %v12470 = vunpack.c.l.b16 %v11897
    %v12471 = vunpack.c.h.b16 %v11897
    %v12472 = vunpack.c.l.b16 %v11898
    %v12473 = vunpack.c.l.b16 %v11899
    %v12474 = vunpack.c.h.b16 %v11899
    %v12475 = vunpack.c.l.b16 %v11900
    %v12476 = vunpack.c.l.b16 %v11901
    %v12477 = vunpack.c.h.b16 %v11901
    %v12478 = vunpack.c.l.b16 %v11902
    %v12479 = vunpack.c.l.b16 %v11903
    %v12480 = vunpack.c.h.b16 %v11903
    %v12481 = vunpack.c.l.b16 %v11904
    %v12482 = vpack.c.b16 %v12149, %v12146
    %v12483 = vpack.c.b16 %v12150, %v12147
    %v12484 = vpack.c.b16 %v12151, %v12148
    %v12485 = vpack.c.b16 %v12155, %v12152
    %v12486 = vpack.c.b16 %v12156, %v12153
    %v12487 = vpack.c.b16 %v12157, %v12154
    %v12488 = vpack.c.b16 %v12161, %v12158
    %v12489 = vpack.c.b16 %v12162, %v12159
    %v12490 = vpack.c.b16 %v12163, %v12160
    %v12491 = vpack.c.b16 %v12167, %v12164
    %v12492 = vpack.c.b16 %v12168, %v12165
    %v12493 = vpack.c.b16 %v12169, %v12166
    %v12494 = vpack.c.b16 %v12173, %v12170
    %v12495 = vpack.c.b16 %v12174, %v12171
    %v12496 = vpack.c.b16 %v12175, %v12172
    %v12497 = vpack.c.b16 %v12179, %v12176
    %v12498 = vpack.c.b16 %v12180, %v12177
    %v12499 = vpack.c.b16 %v12181, %v12178
    %v12500 = vpack.c.b16 %v12185, %v12182
    %v12501 = vpack.c.b16 %v12186, %v12183
    %v12502 = vpack.c.b16 %v12187, %v12184
    %v12503 = vpack.c.b16 %v12191, %v12188
    %v12504 = vpack.c.b16 %v12192, %v12189
    %v12505 = vpack.c.b16 %v12193, %v12190
    %v12506 = vpack.c.b16 %v12197, %v12194
    %v12507 = vpack.c.b16 %v12198, %v12195
    %v12508 = vpack.c.b16 %v12199, %v12196
    %v12509 = vpack.c.b16 %v12203, %v12200
    %v12510 = vpack.c.b16 %v12204, %v12201
    %v12511 = vpack.c.b16 %v12205, %v12202
    %v12512 = vpack.c.b16 %v12209, %v12206
    %v12513 = vpack.c.b16 %v12210, %v12207
    %v12514 = vpack.c.b16 %v12211, %v12208
    %v12515 = vpack.c.b16 %v12215, %v12212
    %v12516 = vpack.c.b16 %v12216, %v12213
    %v12517 = vpack.c.b16 %v12217, %v12214
    %v12518 = vpack.c.b16 %v12221, %v12218
    %v12519 = vpack.c.b16 %v12222, %v12219
    %v12520 = vpack.c.b16 %v12223, %v12220
    %v12521 = vpack.c.b16 %v12227, %v12224
    %v12522 = vpack.c.b16 %v12228, %v12225
    %v12523 = vpack.c.b16 %v12229, %v12226
    %v12524 = vpack.c.b16 %v12233, %v12230
    %v12525 = vpack.c.b16 %v12234, %v12231
    %v12526 = vpack.c.b16 %v12235, %v12232
    %v12527 = vpack.c.b16 %v12239, %v12236
    %v12528 = vpack.c.b16 %v12240, %v12237
    %v12529 = vpack.c.b16 %v12241, %v12238
    %v12530 = vpack.c.b16 %v12245, %v12242
    %v12531 = vpack.c.b16 %v12246, %v12243
    %v12532 = vpack.c.b16 %v12247, %v12244
    %v12533 = vpack.c.b16 %v12251, %v12248
    %v12534 = vpack.c.b16 %v12252, %v12249
    %v12535 = vpack.c.b16 %v12253, %v12250
    %v12536 = vpack.c.b16 %v12257, %v12254
    %v12537 = vpack.c.b16 %v12258, %v12255
    %v12538 = vpack.c.b16 %v12259, %v12256
    %v12539 = vpack.c.b16 %v12263, %v12260
    %v12540 = vpack.c.b16 %v12264, %v12261
    %v12541 = vpack.c.b16 %v12265, %v12262
    %v12542 = vpack.c.b16 %v12269, %v12266
    %v12543 = vpack.c.b16 %v12270, %v12267
    %v12544 = vpack.c.b16 %v12271, %v12268
    %v12545 = vpack.c.b16 %v12275, %v12272
    %v12546 = vpack.c.b16 %v12276, %v12273
    %v12547 = vpack.c.b16 %v12277, %v12274
    %v12548 = vpack.c.b16 %v12281, %v12278
    %v12549 = vpack.c.b16 %v12282, %v12279
    %v12550 = vpack.c.b16 %v12283, %v12280
    %v12551 = vpack.c.b16 %v12287, %v12284
    %v12552 = vpack.c.b16 %v12288, %v12285
    %v12553 = vpack.c.b16 %v12289, %v12286
    %v12554 = vpack.c.b16 %v12293, %v12290
    %v12555 = vpack.c.b16 %v12294, %v12291
    %v12556 = vpack.c.b16 %v12295, %v12292
    %v12557 = vpack.c.b16 %v12299, %v12296
    %v12558 = vpack.c.b16 %v12300, %v12297
    %v12559 = vpack.c.b16 %v12301, %v12298
    %v12560 = vpack.c.b16 %v12305, %v12302
    %v12561 = vpack.c.b16 %v12306, %v12303
    %v12562 = vpack.c.b16 %v12307, %v12304
    %v12563 = vpack.c.b16 %v12311, %v12308
    %v12564 = vpack.c.b16 %v12312, %v12309
    %v12565 = vpack.c.b16 %v12313, %v12310
    %v12566 = vpack.c.b16 %v12317, %v12314
    %v12567 = vpack.c.b16 %v12318, %v12315
    %v12568 = vpack.c.b16 %v12319, %v12316
    %v12569 = vpack.c.b16 %v12323, %v12320
    %v12570 = vpack.c.b16 %v12324, %v12321
    %v12571 = vpack.c.b16 %v12325, %v12322
    %v12572 = vpack.c.b16 %v12329, %v12326
    %v12573 = vpack.c.b16 %v12330, %v12327
    %v12574 = vpack.c.b16 %v12331, %v12328
    %v12575 = vpack.c.b16 %v12335, %v12332
    %v12576 = vpack.c.b16 %v12336, %v12333
    %v12577 = vpack.c.b16 %v12337, %v12334
    %v12578 = vpack.c.b16 %v12341, %v12338
    %v12579 = vpack.c.b16 %v12342, %v12339
    %v12580 = vpack.c.b16 %v12343, %v12340
    %v12581 = vpack.c.b16 %v12347, %v12344
    %v12582 = vpack.c.b16 %v12348, %v12345
    %v12583 = vpack.c.b16 %v12349, %v12346
    %v12584 = vpack.c.b16 %v12353, %v12350
    %v12585 = vpack.c.b16 %v12354, %v12351
    %v12586 = vpack.c.b16 %v12355, %v12352
    %v12587 = vpack.c.b16 %v12359, %v12356
    %v12588 = vpack.c.b16 %v12360, %v12357
    %v12589 = vpack.c.b16 %v12361, %v12358
    %v12590 = vpack.c.b16 %v12365, %v12362
    %v12591 = vpack.c.b16 %v12366, %v12363
    %v12592 = vpack.c.b16 %v12367, %v12364
    %v12593 = vpack.c.b16 %v12371, %v12368
    %v12594 = vpack.c.b16 %v12372, %v12369
    %v12595 = vpack.c.b16 %v12373, %v12370
    %v12596 = vpack.c.b16 %v12377, %v12374
    %v12597 = vpack.c.b16 %v12378, %v12375
    %v12598 = vpack.c.b16 %v12379, %v12376
    %v12599 = vpack.c.b16 %v12383, %v12380
    %v12600 = vpack.c.b16 %v12384, %v12381
    %v12601 = vpack.c.b16 %v12385, %v12382
    %v12602 = vpack.c.b16 %v12389, %v12386
    %v12603 = vpack.c.b16 %v12390, %v12387
    %v12604 = vpack.c.b16 %v12391, %v12388
    %v12605 = vpack.c.b16 %v12395, %v12392
    %v12606 = vpack.c.b16 %v12396, %v12393
    %v12607 = vpack.c.b16 %v12397, %v12394
    %v12608 = vpack.c.b16 %v12401, %v12398
    %v12609 = vpack.c.b16 %v12402, %v12399
    %v12610 = vpack.c.b16 %v12403, %v12400
    %v12611 = vpack.c.b16 %v12407, %v12404
    %v12612 = vpack.c.b16 %v12408, %v12405
    %v12613 = vpack.c.b16 %v12409, %v12406
    %v12614 = vpack.c.b16 %v12413, %v12410
    %v12615 = vpack.c.b16 %v12414, %v12411
    %v12616 = vpack.c.b16 %v12415, %v12412
    %v12617 = vpack.c.b16 %v12419, %v12416
    %v12618 = vpack.c.b16 %v12420, %v12417
    %v12619 = vpack.c.b16 %v12421, %v12418
    %v12620 = vpack.c.b16 %v12425, %v12422
    %v12621 = vpack.c.b16 %v12426, %v12423
    %v12622 = vpack.c.b16 %v12427, %v12424
    %v12623 = vpack.c.b16 %v12431, %v12428
    %v12624 = vpack.c.b16 %v12432, %v12429
    %v12625 = vpack.c.b16 %v12433, %v12430
    %v12626 = vpack.c.b16 %v12437, %v12434
    %v12627 = vpack.c.b16 %v12438, %v12435
    %v12628 = vpack.c.b16 %v12439, %v12436
    %v12629 = vpack.c.b16 %v12443, %v12440
    %v12630 = vpack.c.b16 %v12444, %v12441
    %v12631 = vpack.c.b16 %v12445, %v12442
    %v12632 = vpack.c.b16 %v12449, %v12446
    %v12633 = vpack.c.b16 %v12450, %v12447
    %v12634 = vpack.c.b16 %v12451, %v12448
    %v12635 = vpack.c.b16 %v12455, %v12452
    %v12636 = vpack.c.b16 %v12456, %v12453
    %v12637 = vpack.c.b16 %v12457, %v12454
    %v12638 = vpack.c.b16 %v12461, %v12458
    %v12639 = vpack.c.b16 %v12462, %v12459
    %v12640 = vpack.c.b16 %v12463, %v12460
    %v12641 = vpack.c.b16 %v12467, %v12464
    %v12642 = vpack.c.b16 %v12468, %v12465
    %v12643 = vpack.c.b16 %v12469, %v12466
    %v12644 = vpack.c.b16 %v12473, %v12470
    %v12645 = vpack.c.b16 %v12474, %v12471
    %v12646 = vpack.c.b16 %v12475, %v12472
    %v12647 = vpack.c.b16 %v12479, %v12476
    %v12648 = vpack.c.b16 %v12480, %v12477
    %v12649 = vpack.c.b16 %v12481, %v12478
    %12818 = vmatprep.subr.bf16.mxu0 %v12504
    %12819 = vmatpush1.bf16.msra.mxu0 %v12503
    %12820 = vmatprep.subr.bf16.mxu0 %v12501
    %12821 = vmatpush1.bf16.msra.mxu0 %v12500
    %12822 = vmatprep.subr.bf16.mxu0 %v12498
    %12823 = vmatpush1.bf16.msra.mxu0 %v12497
    %12824 = vmatprep.subr.bf16.mxu0 %v12495
    %12825 = vmatpush1.bf16.msra.mxu0 %v12494
    %12826 = vmatprep.subr.bf16.mxu0 %v12492
    %12827 = vmatpush1.bf16.msra.mxu0 %v12491
    %12828 = vmatprep.subr.bf16.mxu0 %v12489
    %12829 = vmatpush1.bf16.msra.mxu0 %v12488
    %12830 = vmatprep.subr.bf16.mxu0 %v12486
    %12831 = vmatpush1.bf16.msra.mxu0 %v12485
    %12832 = vmatprep.subr.bf16.mxu0 %v12483
    %12833 = vmatpush1.bf16.msra.mxu0 %v12482
    %12834 = vmatprep.subr.bf16.mxu0 %v12528
    %12835 = vmatpush2.bf16.msra.mxu0 %v12527
    %12836 = vmatprep.subr.bf16.mxu0 %v12525
    %12837 = vmatpush2.bf16.msra.mxu0 %v12524
    %12838 = vmatprep.subr.bf16.mxu0 %v12522
    %12839 = vmatpush2.bf16.msra.mxu0 %v12521
    %12840 = vmatprep.subr.bf16.mxu0 %v12519
    %12841 = vmatpush2.bf16.msra.mxu0 %v12518
    %12842 = vmatprep.subr.bf16.mxu0 %v12516
    %12843 = vmatpush2.bf16.msra.mxu0 %v12515
    %12844 = vmatprep.subr.bf16.mxu0 %v12513
    %12845 = vmatpush2.bf16.msra.mxu0 %v12512
    %12846 = vmatprep.subr.bf16.mxu0 %v12510
    %12847 = vmatpush2.bf16.msra.mxu0 %v12509
    %12848 = vmatprep.subr.bf16.mxu0 %v12507
    %12849 = vmatpush2.bf16.msra.mxu0 %v12506
    %12850 = vmatprep.mubr.bf16.mxu0 %v11675
    %12851 = vmatmul.mubr.bf16.gmra.mxu0 %v11674
    %v12852 = vpop.f32.mrf.mxu0
    %v12853 = vadd.f32 %v11910, %v12852
    %v12854 = vpop.f32.mrf.mxu0
    %v12855 = vadd.f32 %v11914, %v12854
    %v12856 = vpop.f32.mrf.mxu0
    %v12857 = vpop.f32.mrf.mxu0
    %12858 = vdwg.mxu0
    %12859 = vmatprep.subr.bf16.mxu0 %v12552
    %12860 = vmatpush1.bf16.msra.mxu0 %v12551
    %12861 = vmatprep.subr.bf16.mxu0 %v12549
    %12862 = vmatpush1.bf16.msra.mxu0 %v12548
    %12863 = vmatprep.subr.bf16.mxu0 %v12546
    %12864 = vmatpush1.bf16.msra.mxu0 %v12545
    %12865 = vmatprep.subr.bf16.mxu0 %v12543
    %12866 = vmatpush1.bf16.msra.mxu0 %v12542
    %12867 = vmatprep.subr.bf16.mxu0 %v12540
    %12868 = vmatpush1.bf16.msra.mxu0 %v12539
    %12869 = vmatprep.subr.bf16.mxu0 %v12537
    %12870 = vmatpush1.bf16.msra.mxu0 %v12536
    %12871 = vmatprep.subr.bf16.mxu0 %v12534
    %12872 = vmatpush1.bf16.msra.mxu0 %v12533
    %12873 = vmatprep.subr.bf16.mxu0 %v12531
    %12874 = vmatpush1.bf16.msra.mxu0 %v12530
    %12875 = vmatprep.subr.bf16.mxu0 %v12576
    %12876 = vmatpush2.bf16.msra.mxu0 %v12575
    %12877 = vmatprep.subr.bf16.mxu0 %v12573
    %12878 = vmatpush2.bf16.msra.mxu0 %v12572
    %12879 = vmatprep.subr.bf16.mxu0 %v12570
    %12880 = vmatpush2.bf16.msra.mxu0 %v12569
    %12881 = vmatprep.subr.bf16.mxu0 %v12567
    %12882 = vmatpush2.bf16.msra.mxu0 %v12566
    %12883 = vmatprep.subr.bf16.mxu0 %v12564
    %12884 = vmatpush2.bf16.msra.mxu0 %v12563
    %12885 = vmatprep.subr.bf16.mxu0 %v12561
    %12886 = vmatpush2.bf16.msra.mxu0 %v12560
    %12887 = vmatprep.subr.bf16.mxu0 %v12558
    %12888 = vmatpush2.bf16.msra.mxu0 %v12557
    %12889 = vmatprep.subr.bf16.mxu0 %v12555
    %12890 = vmatpush2.bf16.msra.mxu0 %v12554
    %12891 = vmatprep.mubr.bf16.mxu0 %v11677
    %12892 = vmatmul.mubr.bf16.gmra.mxu0 %v11676
    %v12893 = vpop.f32.mrf.mxu0
    %v12894 = vadd.f32 %v12853, %v12893
    %v12895 = vpop.f32.mrf.mxu0
    %v12896 = vadd.f32 %v12855, %v12895
    %v12897 = vpop.f32.mrf.mxu0
    %v12898 = vpop.f32.mrf.mxu0
    %12899 = vdwg.mxu0
    %12900 = vmatprep.subr.bf16.mxu0 %v12600
    %12901 = vmatpush1.bf16.msra.mxu0 %v12599
    %12902 = vmatprep.subr.bf16.mxu0 %v12597
    %12903 = vmatpush1.bf16.msra.mxu0 %v12596
    %12904 = vmatprep.subr.bf16.mxu0 %v12594
    %12905 = vmatpush1.bf16.msra.mxu0 %v12593
    %12906 = vmatprep.subr.bf16.mxu0 %v12591
    %12907 = vmatpush1.bf16.msra.mxu0 %v12590
    %12908 = vmatprep.subr.bf16.mxu0 %v12588
    %12909 = vmatpush1.bf16.msra.mxu0 %v12587
    %12910 = vmatprep.subr.bf16.mxu0 %v12585
    %12911 = vmatpush1.bf16.msra.mxu0 %v12584
    %12912 = vmatprep.subr.bf16.mxu0 %v12582
    %12913 = vmatpush1.bf16.msra.mxu0 %v12581
    %12914 = vmatprep.subr.bf16.mxu0 %v12579
    %12915 = vmatpush1.bf16.msra.mxu0 %v12578
    %12916 = vmatprep.subr.bf16.mxu0 %v12624
    %12917 = vmatpush2.bf16.msra.mxu0 %v12623
    %12918 = vmatprep.subr.bf16.mxu0 %v12621
    %12919 = vmatpush2.bf16.msra.mxu0 %v12620
    %12920 = vmatprep.subr.bf16.mxu0 %v12618
    %12921 = vmatpush2.bf16.msra.mxu0 %v12617
    %12922 = vmatprep.subr.bf16.mxu0 %v12615
    %12923 = vmatpush2.bf16.msra.mxu0 %v12614
    %12924 = vmatprep.subr.bf16.mxu0 %v12612
    %12925 = vmatpush2.bf16.msra.mxu0 %v12611
    %12926 = vmatprep.subr.bf16.mxu0 %v12609
    %12927 = vmatpush2.bf16.msra.mxu0 %v12608
    %12928 = vmatprep.subr.bf16.mxu0 %v12606
    %12929 = vmatpush2.bf16.msra.mxu0 %v12605
    %12930 = vmatprep.subr.bf16.mxu0 %v12603
    %12931 = vmatpush2.bf16.msra.mxu0 %v12602
    %12932 = vmatprep.mubr.bf16.mxu0 %v11679
    %12933 = vmatmul.mubr.bf16.gmra.mxu0 %v11678
    %v12934 = vpop.f32.mrf.mxu0
    %v12935 = vadd.f32 %v12894, %v12934
    %v12936 = vpop.f32.mrf.mxu0
    %v12937 = vadd.f32 %v12896, %v12936
    %v12938 = vpop.f32.mrf.mxu0
    %v12939 = vpop.f32.mrf.mxu0
    %12940 = vdwg.mxu0
    %12941 = vmatprep.subr.bf16.mxu0 %v12648
    %12942 = vmatpush1.bf16.msra.mxu0 %v12647
    %12943 = vmatprep.subr.bf16.mxu0 %v12645
    %12944 = vmatpush1.bf16.msra.mxu0 %v12644
    %12945 = vmatprep.subr.bf16.mxu0 %v12642
    %12946 = vmatpush1.bf16.msra.mxu0 %v12641
    %12947 = vmatprep.subr.bf16.mxu0 %v12639
    %12948 = vmatpush1.bf16.msra.mxu0 %v12638
    %12949 = vmatprep.subr.bf16.mxu0 %v12636
    %12950 = vmatpush1.bf16.msra.mxu0 %v12635
    %12951 = vmatprep.subr.bf16.mxu0 %v12633
    %12952 = vmatpush1.bf16.msra.mxu0 %v12632
    %12953 = vmatprep.subr.bf16.mxu0 %v12630
    %12954 = vmatpush1.bf16.msra.mxu0 %v12629
    %12955 = vmatprep.subr.bf16.mxu0 %v12627
    %12956 = vmatpush1.bf16.msra.mxu0 %v12626
    %12957 = vmatprep.subr.bf16.mxu0 0
    %12958 = vmatpush2.bf16.msra.mxu0 0
    %12959 = vmatprep.subr.bf16.mxu0 0
    %12960 = vmatpush2.bf16.msra.mxu0 0
    %12961 = vmatprep.subr.bf16.mxu0 0
    %12962 = vmatpush2.bf16.msra.mxu0 0
    %12963 = vmatprep.subr.bf16.mxu0 0
    %12964 = vmatpush2.bf16.msra.mxu0 0
    %12965 = vmatprep.subr.bf16.mxu0 0
    %12966 = vmatpush2.bf16.msra.mxu0 0
    %12967 = vmatprep.subr.bf16.mxu0 0
    %12968 = vmatpush2.bf16.msra.mxu0 0
    %12969 = vmatprep.subr.bf16.mxu0 0
    %12970 = vmatpush2.bf16.msra.mxu0 0
    %12971 = vmatprep.subr.bf16.mxu0 0
    %12972 = vmatpush2.bf16.msra.mxu0 0
    %12973 = vmatprep.mubr.bf16.mxu0 0
    %12974 = vmatmul.mubr.bf16.gmra.mxu0 %v11680
    %v12975 = vpop.f32.mrf.mxu0
    %v12976 = vadd.f32 %v12935, %v12975
    %v12977 = vpop.f32.mrf.mxu0
    %v12978 = vadd.f32 %v12937, %v12977
    %v12979 = vpop.f32.mrf.mxu0
    %v12980 = vpop.f32.mrf.mxu0
    %12981 = vdwg.mxu0
    %12982 = vmatprep.subr.bf16.mxu0 0
    %12983 = vmatpush1.bf16.msra.mxu0 %v12505
    %12984 = vmatprep.subr.bf16.mxu0 0
    %12985 = vmatpush1.bf16.msra.mxu0 %v12502
    %12986 = vmatprep.subr.bf16.mxu0 0
    %12987 = vmatpush1.bf16.msra.mxu0 %v12499
    %12988 = vmatprep.subr.bf16.mxu0 0
    %12989 = vmatpush1.bf16.msra.mxu0 %v12496
    %12990 = vmatprep.subr.bf16.mxu0 0
    %12991 = vmatpush1.bf16.msra.mxu0 %v12493
    %12992 = vmatprep.subr.bf16.mxu0 0
    %12993 = vmatpush1.bf16.msra.mxu0 %v12490
    %12994 = vmatprep.subr.bf16.mxu0 0
    %12995 = vmatpush1.bf16.msra.mxu0 %v12487
    %12996 = vmatprep.subr.bf16.mxu0 0
    %12997 = vmatpush1.bf16.msra.mxu0 %v12484
    %12998 = vmatprep.subr.bf16.mxu0 0
    %12999 = vmatpush2.bf16.msra.mxu0 %v12529
    %13000 = vmatprep.subr.bf16.mxu0 0
    %13001 = vmatpush2.bf16.msra.mxu0 %v12526
    %13002 = vmatprep.subr.bf16.mxu0 0
    %13003 = vmatpush2.bf16.msra.mxu0 %v12523
    %13004 = vmatprep.subr.bf16.mxu0 0
    %13005 = vmatpush2.bf16.msra.mxu0 %v12520
    %13006 = vmatprep.subr.bf16.mxu0 0
    %13007 = vmatpush2.bf16.msra.mxu0 %v12517
    %13008 = vmatprep.subr.bf16.mxu0 0
    %13009 = vmatpush2.bf16.msra.mxu0 %v12514
    %13010 = vmatprep.subr.bf16.mxu0 0
    %13011 = vmatpush2.bf16.msra.mxu0 %v12511
    %13012 = vmatprep.subr.bf16.mxu0 0
    %13013 = vmatpush2.bf16.msra.mxu0 %v12508
    %13014 = vmatprep.mubr.bf16.mxu0 %v11675
    %13015 = vmatmul.mubr.bf16.gmra.mxu0 %v11674
    %v13016 = vpop.f32.mrf.mxu0
    %v13017 = vadd.f32 %v11918, %v13016
    %v13018 = vpop.f32.mrf.mxu0
    %v13019 = vpop.f32.mrf.mxu0
    %v13020 = vpop.f32.mrf.mxu0
    %13021 = vdwg.mxu0
    %13022 = vmatprep.subr.bf16.mxu0 0
    %13023 = vmatpush1.bf16.msra.mxu0 %v12553
    %13024 = vmatprep.subr.bf16.mxu0 0
    %13025 = vmatpush1.bf16.msra.mxu0 %v12550
    %13026 = vmatprep.subr.bf16.mxu0 0
    %13027 = vmatpush1.bf16.msra.mxu0 %v12547
    %13028 = vmatprep.subr.bf16.mxu0 0
    %13029 = vmatpush1.bf16.msra.mxu0 %v12544
    %13030 = vmatprep.subr.bf16.mxu0 0
    %13031 = vmatpush1.bf16.msra.mxu0 %v12541
    %13032 = vmatprep.subr.bf16.mxu0 0
    %13033 = vmatpush1.bf16.msra.mxu0 %v12538
    %13034 = vmatprep.subr.bf16.mxu0 0
    %13035 = vmatpush1.bf16.msra.mxu0 %v12535
    %13036 = vmatprep.subr.bf16.mxu0 0
    %13037 = vmatpush1.bf16.msra.mxu0 %v12532
    %13038 = vmatprep.subr.bf16.mxu0 0
    %13039 = vmatpush2.bf16.msra.mxu0 %v12577
    %13040 = vmatprep.subr.bf16.mxu0 0
    %13041 = vmatpush2.bf16.msra.mxu0 %v12574
    %13042 = vmatprep.subr.bf16.mxu0 0
    %13043 = vmatpush2.bf16.msra.mxu0 %v12571
    %13044 = vmatprep.subr.bf16.mxu0 0
    %13045 = vmatpush2.bf16.msra.mxu0 %v12568
    %13046 = vmatprep.subr.bf16.mxu0 0
    %13047 = vmatpush2.bf16.msra.mxu0 %v12565
    %13048 = vmatprep.subr.bf16.mxu0 0
    %13049 = vmatpush2.bf16.msra.mxu0 %v12562
    %13050 = vmatprep.subr.bf16.mxu0 0
    %13051 = vmatpush2.bf16.msra.mxu0 %v12559
    %13052 = vmatprep.subr.bf16.mxu0 0
    %13053 = vmatpush2.bf16.msra.mxu0 %v12556
    %13054 = vmatprep.mubr.bf16.mxu0 %v11677
    %13055 = vmatmul.mubr.bf16.gmra.mxu0 %v11676
    %v13056 = vpop.f32.mrf.mxu0
    %v13057 = vadd.f32 %v13017, %v13056
    %v13058 = vpop.f32.mrf.mxu0
    %v13059 = vpop.f32.mrf.mxu0
    %v13060 = vpop.f32.mrf.mxu0
    %13061 = vdwg.mxu0
    %13062 = vmatprep.subr.bf16.mxu0 0
    %13063 = vmatpush1.bf16.msra.mxu0 %v12601
    %13064 = vmatprep.subr.bf16.mxu0 0
    %13065 = vmatpush1.bf16.msra.mxu0 %v12598
    %13066 = vmatprep.subr.bf16.mxu0 0
    %13067 = vmatpush1.bf16.msra.mxu0 %v12595
    %13068 = vmatprep.subr.bf16.mxu0 0
    %13069 = vmatpush1.bf16.msra.mxu0 %v12592
    %13070 = vmatprep.subr.bf16.mxu0 0
    %13071 = vmatpush1.bf16.msra.mxu0 %v12589
    %13072 = vmatprep.subr.bf16.mxu0 0
    %13073 = vmatpush1.bf16.msra.mxu0 %v12586
    %13074 = vmatprep.subr.bf16.mxu0 0
    %13075 = vmatpush1.bf16.msra.mxu0 %v12583
    %13076 = vmatprep.subr.bf16.mxu0 0
    %13077 = vmatpush1.bf16.msra.mxu0 %v12580
    %13078 = vmatprep.subr.bf16.mxu0 0
    %13079 = vmatpush2.bf16.msra.mxu0 %v12625
    %13080 = vmatprep.subr.bf16.mxu0 0
    %13081 = vmatpush2.bf16.msra.mxu0 %v12622
    %13082 = vmatprep.subr.bf16.mxu0 0
    %13083 = vmatpush2.bf16.msra.mxu0 %v12619
    %13084 = vmatprep.subr.bf16.mxu0 0
    %13085 = vmatpush2.bf16.msra.mxu0 %v12616
    %13086 = vmatprep.subr.bf16.mxu0 0
    %13087 = vmatpush2.bf16.msra.mxu0 %v12613
    %13088 = vmatprep.subr.bf16.mxu0 0
    %13089 = vmatpush2.bf16.msra.mxu0 %v12610
    %13090 = vmatprep.subr.bf16.mxu0 0
    %13091 = vmatpush2.bf16.msra.mxu0 %v12607
    %13092 = vmatprep.subr.bf16.mxu0 0
    %13093 = vmatpush2.bf16.msra.mxu0 %v12604
    %13094 = vmatprep.mubr.bf16.mxu0 %v11679
    %13095 = vmatmul.mubr.bf16.gmra.mxu0 %v11678
    %v13096 = vpop.f32.mrf.mxu0
    %v13097 = vadd.f32 %v13057, %v13096
    %v13098 = vpop.f32.mrf.mxu0
    %v13099 = vpop.f32.mrf.mxu0
    %v13100 = vpop.f32.mrf.mxu0
    %13101 = vdwg.mxu0
    %13102 = vmatprep.subr.bf16.mxu0 0
    %13103 = vmatpush1.bf16.msra.mxu0 %v12649
    %13104 = vmatprep.subr.bf16.mxu0 0
    %13105 = vmatpush1.bf16.msra.mxu0 %v12646
    %13106 = vmatprep.subr.bf16.mxu0 0
    %13107 = vmatpush1.bf16.msra.mxu0 %v12643
    %13108 = vmatprep.subr.bf16.mxu0 0
    %13109 = vmatpush1.bf16.msra.mxu0 %v12640
    %13110 = vmatprep.subr.bf16.mxu0 0
    %13111 = vmatpush1.bf16.msra.mxu0 %v12637
    %13112 = vmatprep.subr.bf16.mxu0 0
    %13113 = vmatpush1.bf16.msra.mxu0 %v12634
    %13114 = vmatprep.subr.bf16.mxu0 0
    %13115 = vmatpush1.bf16.msra.mxu0 %v12631
    %13116 = vmatprep.subr.bf16.mxu0 0
    %13117 = vmatpush1.bf16.msra.mxu0 %v12628
    %13118 = vmatprep.subr.bf16.mxu0 0
    %13119 = vmatpush2.bf16.msra.mxu0 0
    %13120 = vmatprep.subr.bf16.mxu0 0
    %13121 = vmatpush2.bf16.msra.mxu0 0
    %13122 = vmatprep.subr.bf16.mxu0 0
    %13123 = vmatpush2.bf16.msra.mxu0 0
    %13124 = vmatprep.subr.bf16.mxu0 0
    %13125 = vmatpush2.bf16.msra.mxu0 0
    %13126 = vmatprep.subr.bf16.mxu0 0
    %13127 = vmatpush2.bf16.msra.mxu0 0
    %13128 = vmatprep.subr.bf16.mxu0 0
    %13129 = vmatpush2.bf16.msra.mxu0 0
    %13130 = vmatprep.subr.bf16.mxu0 0
    %13131 = vmatpush2.bf16.msra.mxu0 0
    %13132 = vmatprep.subr.bf16.mxu0 0
    %13133 = vmatpush2.bf16.msra.mxu0 0
    %13134 = vmatprep.mubr.bf16.mxu0 0
    %13135 = vmatmul.mubr.bf16.gmra.mxu0 %v11680
    %v13136 = vpop.f32.mrf.mxu0
    %v13137 = vadd.f32 %v13097, %v13136
    %v13138 = vpop.f32.mrf.mxu0
    %v13139 = vpop.f32.mrf.mxu0
    %v13140 = vpop.f32.mrf.mxu0
    %13141 = vdwg.mxu0
    %v13142 = vmax.f32 %v12976, 0.0
    %v13143 = vmax.f32 %v12978, 0.0
    %v13144 = vmax.f32 %v13137, 0.0
    %v13145 = vpack.c.bf16 %v13142, %v13142
    %v13146 = vpack.c.bf16 %v13143, %v13143
    %v13147 = vpack.c.bf16 %v13144, %v13144
    %v13148 = vld [vmem:[#allocation12] sm:$0xf]
    %v13149 = vld [vmem:[#allocation12 + $0x4] sm:$0xf]
    %v13150 = vld [vmem:[#allocation12 + $0x8] sm:$0xf]
    %v13151 = vld [vmem:[#allocation12 + $0xc] sm:$0xf]
    %v13152 = vld [vmem:[#allocation12 + $0x10] sm:$0xf]
    %v13153 = vld [vmem:[#allocation12 + $0x14] sm:$0xf]
    %v13154 = vld [vmem:[#allocation12 + $0x18] sm:$0xf]
    %v13155 = vld [vmem:[#allocation12 + $0x1c] sm:$0xf]
    %v13156 = vld [vmem:[#allocation12 + $0x20] sm:$0xf]
    %v13157 = vld [vmem:[#allocation12 + $0x24] sm:$0xf]
    %v13158 = vld [vmem:[#allocation12 + $0x28] sm:$0xf]
    %v13159 = vld [vmem:[#allocation12 + $0x2c] sm:$0xf]
    %v13160 = vld [vmem:[#allocation12 + $0x30] sm:$0xf]
    %v13161 = vld [vmem:[#allocation12 + $0x34] sm:$0xf]
    %v13162 = vld [vmem:[#allocation12 + $0x38] sm:$0xf]
    %v13163 = vld [vmem:[#allocation12 + $0x3c] sm:$0xf]
    %v13164 = vld [vmem:[#allocation12 + $0x40] sm:$0xf]
    %v13165 = vld [vmem:[#allocation12 + $0x44] sm:$0xf]
    %v13166 = vld [vmem:[#allocation12 + $0x48] sm:$0xf]
    %v13167 = vld [vmem:[#allocation12 + $0x4c] sm:$0xf]
    %v13168 = vld [vmem:[#allocation12 + $0x50] sm:$0xf]
    %v13169 = vld [vmem:[#allocation12 + $0x54] sm:$0xf]
    %v13170 = vld [vmem:[#allocation12 + $0x58] sm:$0xf]
    %v13171 = vld [vmem:[#allocation12 + $0x5c] sm:$0xf]
    %v13172 = vld [vmem:[#allocation12 + $0x60] sm:$0xf]
    %v13173 = vld [vmem:[#allocation12 + $0x64] sm:$0xf]
    %v13174 = vld [vmem:[#allocation12 + $0x68] sm:$0xf]
    %v13175 = vld [vmem:[#allocation12 + $0x6c] sm:$0xf]
    %v13176 = vld [vmem:[#allocation12 + $0x70] sm:$0xf]
    %v13177 = vld [vmem:[#allocation12 + $0x74] sm:$0xf]
    %v13178 = vld [vmem:[#allocation12 + $0x78] sm:$0xf]
    %v13179 = vld [vmem:[#allocation12 + $0x7c] sm:$0xf]
    %v13180 = vld [vmem:[#allocation12 + $0x80] sm:$0xf]
    %v13181 = vld [vmem:[#allocation12 + $0x84] sm:$0xf]
    %v13182 = vld [vmem:[#allocation12 + $0x88] sm:$0xf]
    %v13183 = vld [vmem:[#allocation12 + $0x8c] sm:$0xf]
    %v13184 = vld [vmem:[#allocation12 + $0x90] sm:$0xf]
    %v13185 = vld [vmem:[#allocation12 + $0x94] sm:$0xf]
    %v13186 = vld [vmem:[#allocation12 + $0x98] sm:$0xf]
    %v13187 = vld [vmem:[#allocation12 + $0x9c] sm:$0xf]
    %v13188 = vld [vmem:[#allocation12 + $0xa0] sm:$0xf]
    %v13189 = vld [vmem:[#allocation12 + $0xa4] sm:$0xf]
    %v13190 = vld [vmem:[#allocation12 + $0xa8] sm:$0xf]
    %v13191 = vld [vmem:[#allocation12 + $0xac] sm:$0xf]
    %v13192 = vld [vmem:[#allocation12 + $0xb0] sm:$0xf]
    %v13193 = vld [vmem:[#allocation12 + $0xb4] sm:$0xf]
    %v13194 = vld [vmem:[#allocation12 + $0xb8] sm:$0xf]
    %v13195 = vld [vmem:[#allocation12 + $0xbc] sm:$0xf]
    %v13196 = vld [vmem:[#allocation13] sm:$0x1]
    %v13198 = vlaneseq
    %v13199 = vshrl.u32 %v13198, 7
    %v13200 = vsub.s32 0, %v13199
    %v13201 = vrot.slane %v13196, %v13200
    %v13251 = vunpack.c.l.b16 %v13148
    %v13252 = vunpack.c.l.b16 %v13149
    %v13253 = vunpack.c.l.b16 %v13150
    %v13254 = vunpack.c.l.b16 %v13151
    %v13255 = vunpack.c.l.b16 %v13152
    %v13256 = vunpack.c.l.b16 %v13153
    %v13257 = vunpack.c.l.b16 %v13154
    %v13258 = vunpack.c.l.b16 %v13155
    %v13259 = vunpack.c.l.b16 %v13156
    %v13260 = vunpack.c.l.b16 %v13157
    %v13261 = vunpack.c.l.b16 %v13158
    %v13262 = vunpack.c.l.b16 %v13159
    %v13263 = vunpack.c.l.b16 %v13160
    %v13264 = vunpack.c.l.b16 %v13161
    %v13265 = vunpack.c.l.b16 %v13162
    %v13266 = vunpack.c.l.b16 %v13163
    %v13267 = vunpack.c.l.b16 %v13164
    %v13268 = vunpack.c.l.b16 %v13165
    %v13269 = vunpack.c.l.b16 %v13166
    %v13270 = vunpack.c.l.b16 %v13167
    %v13271 = vunpack.c.l.b16 %v13168
    %v13272 = vunpack.c.l.b16 %v13169
    %v13273 = vunpack.c.l.b16 %v13170
    %v13274 = vunpack.c.l.b16 %v13171
    %v13275 = vunpack.c.l.b16 %v13172
    %v13276 = vunpack.c.l.b16 %v13173
    %v13277 = vunpack.c.l.b16 %v13174
    %v13278 = vunpack.c.l.b16 %v13175
    %v13279 = vunpack.c.l.b16 %v13176
    %v13280 = vunpack.c.l.b16 %v13177
    %v13281 = vunpack.c.l.b16 %v13178
    %v13282 = vunpack.c.l.b16 %v13179
    %v13283 = vunpack.c.l.b16 %v13180
    %v13284 = vunpack.c.l.b16 %v13181
    %v13285 = vunpack.c.l.b16 %v13182
    %v13286 = vunpack.c.l.b16 %v13183
    %v13287 = vunpack.c.l.b16 %v13184
    %v13288 = vunpack.c.l.b16 %v13185
    %v13289 = vunpack.c.l.b16 %v13186
    %v13290 = vunpack.c.l.b16 %v13187
    %v13291 = vunpack.c.l.b16 %v13188
    %v13292 = vunpack.c.l.b16 %v13189
    %v13293 = vunpack.c.l.b16 %v13190
    %v13294 = vunpack.c.l.b16 %v13191
    %v13295 = vunpack.c.l.b16 %v13192
    %v13296 = vunpack.c.l.b16 %v13193
    %v13297 = vunpack.c.l.b16 %v13194
    %v13298 = vunpack.c.l.b16 %v13195
    %v13299 = vpack.c.b16 %v13252, %v13251
    %v13300 = vpack.c.b16 %v13254, %v13253
    %v13301 = vpack.c.b16 %v13256, %v13255
    %v13302 = vpack.c.b16 %v13258, %v13257
    %v13303 = vpack.c.b16 %v13260, %v13259
    %v13304 = vpack.c.b16 %v13262, %v13261
    %v13305 = vpack.c.b16 %v13264, %v13263
    %v13306 = vpack.c.b16 %v13266, %v13265
    %v13307 = vpack.c.b16 %v13268, %v13267
    %v13308 = vpack.c.b16 %v13270, %v13269
    %v13309 = vpack.c.b16 %v13272, %v13271
    %v13310 = vpack.c.b16 %v13274, %v13273
    %v13311 = vpack.c.b16 %v13276, %v13275
    %v13312 = vpack.c.b16 %v13278, %v13277
    %v13313 = vpack.c.b16 %v13280, %v13279
    %v13314 = vpack.c.b16 %v13282, %v13281
    %v13315 = vpack.c.b16 %v13284, %v13283
    %v13316 = vpack.c.b16 %v13286, %v13285
    %v13317 = vpack.c.b16 %v13288, %v13287
    %v13318 = vpack.c.b16 %v13290, %v13289
    %v13319 = vpack.c.b16 %v13292, %v13291
    %v13320 = vpack.c.b16 %v13294, %v13293
    %v13321 = vpack.c.b16 %v13296, %v13295
    %v13322 = vpack.c.b16 %v13298, %v13297
    %13347 = vmatprep.subr.bf16.mxu0 0
    %13348 = vmatpush1.bf16.msra.mxu0 %v13306
    %13349 = vmatprep.subr.bf16.mxu0 0
    %13350 = vmatpush1.bf16.msra.mxu0 %v13305
    %13351 = vmatprep.subr.bf16.mxu0 0
    %13352 = vmatpush1.bf16.msra.mxu0 %v13304
    %13353 = vmatprep.subr.bf16.mxu0 0
    %13354 = vmatpush1.bf16.msra.mxu0 %v13303
    %13355 = vmatprep.subr.bf16.mxu0 0
    %13356 = vmatpush1.bf16.msra.mxu0 %v13302
    %13357 = vmatprep.subr.bf16.mxu0 0
    %13358 = vmatpush1.bf16.msra.mxu0 %v13301
    %13359 = vmatprep.subr.bf16.mxu0 0
    %13360 = vmatpush1.bf16.msra.mxu0 %v13300
    %13361 = vmatprep.subr.bf16.mxu0 0
    %13362 = vmatpush1.bf16.msra.mxu0 %v13299
    %13363 = vmatprep.subr.bf16.mxu0 0
    %13364 = vmatpush2.bf16.msra.mxu0 %v13314
    %13365 = vmatprep.subr.bf16.mxu0 0
    %13366 = vmatpush2.bf16.msra.mxu0 %v13313
    %13367 = vmatprep.subr.bf16.mxu0 0
    %13368 = vmatpush2.bf16.msra.mxu0 %v13312
    %13369 = vmatprep.subr.bf16.mxu0 0
    %13370 = vmatpush2.bf16.msra.mxu0 %v13311
    %13371 = vmatprep.subr.bf16.mxu0 0
    %13372 = vmatpush2.bf16.msra.mxu0 %v13310
    %13373 = vmatprep.subr.bf16.mxu0 0
    %13374 = vmatpush2.bf16.msra.mxu0 %v13309
    %13375 = vmatprep.subr.bf16.mxu0 0
    %13376 = vmatpush2.bf16.msra.mxu0 %v13308
    %13377 = vmatprep.subr.bf16.mxu0 0
    %13378 = vmatpush2.bf16.msra.mxu0 %v13307
    %13379 = vmatprep.mubr.bf16.mxu0 %v13146
    %13380 = vmatmul.mubr.bf16.gmra.mxu0 %v13145
    %v13381 = vpop.f32.mrf.mxu0
    %v13382 = vadd.f32 %v13201, %v13381
    %v13383 = vpop.f32.mrf.mxu0
    %v13384 = vpop.f32.mrf.mxu0
    %v13385 = vpop.f32.mrf.mxu0
    %13386 = vdwg.mxu0
    %13387 = vmatprep.subr.bf16.mxu0 0
    %13388 = vmatpush1.bf16.msra.mxu0 %v13322
    %13389 = vmatprep.subr.bf16.mxu0 0
    %13390 = vmatpush1.bf16.msra.mxu0 %v13321
    %13391 = vmatprep.subr.bf16.mxu0 0
    %13392 = vmatpush1.bf16.msra.mxu0 %v13320
    %13393 = vmatprep.subr.bf16.mxu0 0
    %13394 = vmatpush1.bf16.msra.mxu0 %v13319
    %13395 = vmatprep.subr.bf16.mxu0 0
    %13396 = vmatpush1.bf16.msra.mxu0 %v13318
    %13397 = vmatprep.subr.bf16.mxu0 0
    %13398 = vmatpush1.bf16.msra.mxu0 %v13317
    %13399 = vmatprep.subr.bf16.mxu0 0
    %13400 = vmatpush1.bf16.msra.mxu0 %v13316
    %13401 = vmatprep.subr.bf16.mxu0 0
    %13402 = vmatpush1.bf16.msra.mxu0 %v13315
    %13403 = vmatprep.subr.bf16.mxu0 0
    %13404 = vmatpush2.bf16.msra.mxu0 0
    %13405 = vmatprep.subr.bf16.mxu0 0
    %13406 = vmatpush2.bf16.msra.mxu0 0
    %13407 = vmatprep.subr.bf16.mxu0 0
    %13408 = vmatpush2.bf16.msra.mxu0 0
    %13409 = vmatprep.subr.bf16.mxu0 0
    %13410 = vmatpush2.bf16.msra.mxu0 0
    %13411 = vmatprep.subr.bf16.mxu0 0
    %13412 = vmatpush2.bf16.msra.mxu0 0
    %13413 = vmatprep.subr.bf16.mxu0 0
    %13414 = vmatpush2.bf16.msra.mxu0 0
    %13415 = vmatprep.subr.bf16.mxu0 0
    %13416 = vmatpush2.bf16.msra.mxu0 0
    %13417 = vmatprep.subr.bf16.mxu0 0
    %13418 = vmatpush2.bf16.msra.mxu0 0
    %13419 = vmatprep.mubr.bf16.mxu0 0
    %13420 = vmatmul.mubr.bf16.gmra.mxu0 %v13147
    %v13421 = vpop.f32.mrf.mxu0
    %v13422 = vadd.f32 %v13382, %v13421
    %v13423 = vpop.f32.mrf.mxu0
    %v13424 = vpop.f32.mrf.mxu0
    %v13425 = vpop.f32.mrf.mxu0
    %13426 = vdwg.mxu0
    %v13427 = vmax.f32 %v13422, 0.0
    %v13428 = vpack.c.bf16 %v13427, %v13427
    %v13429 = vld [vmem:[#allocation15] sm:$0xf]
    %v13430 = vld [vmem:[#allocation15 + $0x4] sm:$0xf]
    %v13431 = vld [vmem:[#allocation15 + $0x8] sm:$0xf]
    %v13432 = vld [vmem:[#allocation15 + $0xc] sm:$0xf]
    %v13433 = vld [vmem:[#allocation15 + $0x10] sm:$0xf]
    %v13434 = vld [vmem:[#allocation15 + $0x14] sm:$0xf]
    %v13435 = vld [vmem:[#allocation15 + $0x18] sm:$0xf]
    %v13436 = vld [vmem:[#allocation15 + $0x1c] sm:$0xf]
    %v13437 = vld [vmem:[#allocation15 + $0x20] sm:$0xf]
    %v13438 = vld [vmem:[#allocation15 + $0x24] sm:$0xf]
    %v13439 = vld [vmem:[#allocation15 + $0x28] sm:$0xf]
    %v13440 = vld [vmem:[#allocation15 + $0x2c] sm:$0xf]
    %v13441 = vld [vmem:[#allocation15 + $0x30] sm:$0xf]
    %v13442 = vld [vmem:[#allocation15 + $0x34] sm:$0xf]
    %v13443 = vld [vmem:[#allocation15 + $0x38] sm:$0xf]
    %v13444 = vld [vmem:[#allocation15 + $0x3c] sm:$0xf]
    %v13445 = vld [vmem:[#allocation16] sm:$0x1]
    %v13447 = vlaneseq
    %v13448 = vshrl.u32 %v13447, 7
    %v13449 = vsub.s32 0, %v13448
    %v13450 = vrot.slane %v13445, %v13449
    %v13468 = vunpack.c.l.b16 %v13429
    %v13469 = vunpack.c.l.b16 %v13430
    %v13470 = vunpack.c.l.b16 %v13431
    %v13471 = vunpack.c.l.b16 %v13432
    %v13472 = vunpack.c.l.b16 %v13433
    %v13473 = vunpack.c.l.b16 %v13434
    %v13474 = vunpack.c.l.b16 %v13435
    %v13475 = vunpack.c.l.b16 %v13436
    %v13476 = vunpack.c.l.b16 %v13437
    %v13477 = vunpack.c.l.b16 %v13438
    %v13478 = vunpack.c.l.b16 %v13439
    %v13479 = vunpack.c.l.b16 %v13440
    %v13480 = vunpack.c.l.b16 %v13441
    %v13481 = vunpack.c.l.b16 %v13442
    %v13482 = vunpack.c.l.b16 %v13443
    %v13483 = vunpack.c.l.b16 %v13444
    %v13484 = vpack.c.b16 %v13469, %v13468
    %v13485 = vpack.c.b16 %v13471, %v13470
    %v13486 = vpack.c.b16 %v13473, %v13472
    %v13487 = vpack.c.b16 %v13475, %v13474
    %v13488 = vpack.c.b16 %v13477, %v13476
    %v13489 = vpack.c.b16 %v13479, %v13478
    %v13490 = vpack.c.b16 %v13481, %v13480
    %v13491 = vpack.c.b16 %v13483, %v13482
    %13500 = vmatprep.subr.bf16.mxu0 0
    %13501 = vmatpush1.bf16.msra.mxu0 %v13491
    %13502 = vmatprep.subr.bf16.mxu0 0
    %13503 = vmatpush1.bf16.msra.mxu0 %v13490
    %13504 = vmatprep.subr.bf16.mxu0 0
    %13505 = vmatpush1.bf16.msra.mxu0 %v13489
    %13506 = vmatprep.subr.bf16.mxu0 0
    %13507 = vmatpush1.bf16.msra.mxu0 %v13488
    %13508 = vmatprep.subr.bf16.mxu0 0
    %13509 = vmatpush1.bf16.msra.mxu0 %v13487
    %13510 = vmatprep.subr.bf16.mxu0 0
    %13511 = vmatpush1.bf16.msra.mxu0 %v13486
    %13512 = vmatprep.subr.bf16.mxu0 0
    %13513 = vmatpush1.bf16.msra.mxu0 %v13485
    %13514 = vmatprep.subr.bf16.mxu0 0
    %13515 = vmatpush1.bf16.msra.mxu0 %v13484
    %13516 = vmatprep.subr.bf16.mxu0 0
    %13517 = vmatpush2.bf16.msra.mxu0 0
    %13518 = vmatprep.subr.bf16.mxu0 0
    %13519 = vmatpush2.bf16.msra.mxu0 0
    %13520 = vmatprep.subr.bf16.mxu0 0
    %13521 = vmatpush2.bf16.msra.mxu0 0
    %13522 = vmatprep.subr.bf16.mxu0 0
    %13523 = vmatpush2.bf16.msra.mxu0 0
    %13524 = vmatprep.subr.bf16.mxu0 0
    %13525 = vmatpush2.bf16.msra.mxu0 0
    %13526 = vmatprep.subr.bf16.mxu0 0
    %13527 = vmatpush2.bf16.msra.mxu0 0
    %13528 = vmatprep.subr.bf16.mxu0 0
    %13529 = vmatpush2.bf16.msra.mxu0 0
    %13530 = vmatprep.subr.bf16.mxu0 0
    %13531 = vmatpush2.bf16.msra.mxu0 0
    %13532 = vmatprep.mubr.bf16.mxu0 0
    %13533 = vmatmul.mubr.bf16.gmra.mxu0 %v13428
    %v13534 = vpop.f32.mrf.mxu0
    %v13535 = vadd.f32 %v13450, %v13534
    %v13536 = vpop.f32.mrf.mxu0
    %v13537 = vpop.f32.mrf.mxu0
    %v13538 = vpop.f32.mrf.mxu0
    %13539 = vdwg.mxu0
    %v13540 = vpack.c.bf16 %v13535, %v13535
    %13541 = vst [vmem:[%s11] sm:$0xf] %v13540
    // Predicated region
    $region86: #{encoder_forward.1} parent=1 // pred_check
      _
    $region87: #{encoder_forward.1} parent=1 // pred_check_branch
      %13543 = sbr.rel (0) target = $region89
    $region88: #{encoder_forward.1} parent=1 // pred_region
      _
    $region89: #{encoder_forward.1} parent=1 // pred_fallthru
      _
    // Predicated region
    $region90: #{encoder_forward.1} parent=1 // pred_check
      _
    $region91: #{encoder_forward.1} parent=1 // pred_check_branch
      %13545 = sbr.rel (0) target = $region93
    $region92: #{encoder_forward.1} parent=1 // pred_region
      _
    $region93: #{encoder_forward.1} parent=1 // pred_fallthru
      _
    %13546 = vsyncpa [#allocation3], 1
    %13547 = vsyncpa [#allocation5], 1
    %13548 = vsyncpa [#allocation8], 1
    %13549 = vsyncpa [#allocation11], 1
    %13550 = vsyncpa [#allocation14], 1
    %13551 = vsyncpa [#allocation17], 1

</llo_original>
